<compile_context>
chip_gen: v7x
topology: tpu7x:2x2x1
jax: 0.10.0
libtpu: 0.0.40
codegen_flags: <defaults>
</compile_context>

<pallas_src>
import jax
import jax.numpy as jnp
from jax.experimental import pallas as pl
from jax.experimental.pallas import tpu as pltpu


# ------------------------- value-level building blocks ----------------------
def _conv1d_relu(x, w_flat, b_row, ksize):
    """Valid 1-D conv + bias + ReLU as a single im2col MXU matmul.

    x: (L, B, Cin) f32    w_flat: (K*Cin, Cout) bf16    b_row: (1, Cout) f32
    """
    l_out = x.shape[0] - ksize + 1
    # im2col patches: (L_out, B, K*Cin); k-major / c-minor to match w_flat rows.
    patches = jnp.concatenate([x[k:k + l_out] for k in range(ksize)], axis=-1)
    y = jnp.einsum('lbk,ko->lbo', patches.astype(jnp.bfloat16), w_flat,
                   preferred_element_type=jnp.float32)
    return jnp.maximum(y + b_row[None], 0.0)


def _lstm_layer(x_seq, wih, whh, bias, hidden, return_seq):
    """One LSTM layer with h0 = c0 = 0 (matches torch lstm(x, None)).

    x_seq: (T, B, Din) f32   wih: (Din, 4H) bf16   whh: (H, 4H) bf16
    bias:  (1, 4H) f32 (= b_ih + b_hh), gate order i, f, g, o.
    """
    t_steps, batch, _ = x_seq.shape
    # Hoisted input projection: one dense matmul for all timesteps + bias.
    xp = jnp.einsum('tbd,dh->tbh', x_seq.astype(jnp.bfloat16), wih,
                    preferred_element_type=jnp.float32) + bias[None]
    # Per-gate split done ONCE per layer (off the recurrence critical path).
    xp_i, xp_f = xp[:, :, :hidden], xp[:, :, hidden:2 * hidden]
    xp_g, xp_o = xp[:, :, 2 * hidden:3 * hidden], xp[:, :, 3 * hidden:]
    w_i, w_f = whh[:, :hidden], whh[:, hidden:2 * hidden]
    w_g, w_o = whh[:, 2 * hidden:3 * hidden], whh[:, 3 * hidden:]

    h = jnp.zeros((batch, hidden), jnp.float32)
    c = jnp.zeros((batch, hidden), jnp.float32)
    outs = []
    # T is small and static: full unroll gives the scheduler cross-step
    # visibility (no hidden fori_loop body on the serial recurrence).
    for t in range(t_steps):
        hb = h.astype(jnp.bfloat16)
        gi = jax.nn.sigmoid(xp_i[t] + jnp.dot(hb, w_i, preferred_element_type=jnp.float32))
        gf = jax.nn.sigmoid(xp_f[t] + jnp.dot(hb, w_f, preferred_element_type=jnp.float32))
        gg = jnp.tanh(xp_g[t] + jnp.dot(hb, w_g, preferred_element_type=jnp.float32))
        go = jax.nn.sigmoid(xp_o[t] + jnp.dot(hb, w_o, preferred_element_type=jnp.float32))
        c = gf * c + gi * gg
        h = go * jnp.tanh(c)
        if return_seq:
            outs.append(h)
    return jnp.stack(outs, axis=0) if return_seq else h


# ------------------------------- kernels -------------------------------------
def conv_lstm_stack_kernel(*refs):
    """Fused conv1+ReLU -> conv2+ReLU -> maxpool(2) -> 4-layer LSTM stack.

    Grid index s in {0, 1} selects the LSTM stack (lstm1 / lstm2) through the
    BlockSpecs of the stacked weights.  The (tiny) conv front end is recomputed
    per stack so no intermediate activation ever touches HBM.  Output block:
    last-timestep hidden of the top layer, (1, B, H).
    """
    x_ref, c1w_ref, c1b_ref, c2w_ref, c2b_ref = refs[:5]
    layer_refs = refs[5:-1]
    out_ref = refs[-1]
    num_layers = len(layer_refs) // 3
    hidden = layer_refs[1].shape[1]            # whh block is (1, H, 4H)

    x = x_ref[...]                                              # (L, B, Cin)
    k1 = c1w_ref.shape[0] // x.shape[2]
    y = _conv1d_relu(x, c1w_ref[...], c1b_ref[...], k1)         # (L1, B, 32)
    k2 = c2w_ref.shape[0] // y.shape[2]
    y = _conv1d_relu(y, c2w_ref[...], c2b_ref[...], k2)         # (L2, B, Cout)

    # max_pool1d(kernel=2, stride=2) along the leading time axis (floor mode).
    t_steps = y.shape[0] // 2
    y = y[:2 * t_steps].reshape(t_steps, 2, y.shape[1], y.shape[2])
    x_seq = jnp.max(y, axis=1)                                  # (T, B, Cout)

    for layer in range(num_layers):
        wih = layer_refs[3 * layer][0]         # (Din, 4H) bf16
        whh = layer_refs[3 * layer + 1][0]     # (H, 4H)   bf16
        bias = layer_refs[3 * layer + 2][0]    # (1, 4H)   f32
        last = layer == num_layers - 1
        x_seq = _lstm_layer(x_seq, wih, whh, bias, hidden, return_seq=not last)

    out_ref[0] = x_seq                         # (B, H): only the last timestep


def head_kernel(h_ref, w1_ref, b1_ref, w2_ref, b2_ref, out_ref):
    """fc1 + ReLU + fc2 + ReLU + softmax on the last-timestep hidden states.

    h_ref: (2, B, H) (stack 0 / stack 1).  fc1's weight is pre-split per stack
    as (2, H, 16), so concat([x1, x2], -1) @ W becomes two dots + add (no
    lane-concat of 32-lane chunks).
    """
    h0 = h_ref[0].astype(jnp.bfloat16)
    h1 = h_ref[1].astype(jnp.bfloat16)
    z1 = (jnp.dot(h0, w1_ref[0], preferred_element_type=jnp.float32)
          + jnp.dot(h1, w1_ref[1], preferred_element_type=jnp.float32)
          + b1_ref[...])
    z1 = jnp.maximum(z1, 0.0)
    z2 = jnp.dot(z1.astype(jnp.bfloat16), w2_ref[...],
                 preferred_element_type=jnp.float32) + b2_ref[...]
    z2 = jnp.maximum(z2, 0.0)                  # ReLU before softmax, as in the spec
    m = jnp.max(z2, axis=-1, keepdims=True)
    e = jnp.exp(z2 - m)
    out_ref[...] = e / jnp.sum(e, axis=-1, keepdims=True)


# ------------------------------- wrappers -------------------------------------
def _shared_spec(arr):
    nd = arr.ndim
    return pl.BlockSpec(arr.shape, lambda *_: (0,) * nd)       # same block, both stacks


def _stacked_spec(arr):
    nd = arr.ndim
    return pl.BlockSpec((1,) + arr.shape[1:],
                        lambda s: (s,) + (0,) * (nd - 1))      # stack selected by grid


def _vmem_spec():
    return pl.BlockSpec(memory_space=pltpu.MemorySpace.VMEM)


def cnn1d_lstm_forward(params, x_ncl):
    # Glue: PyTorch NCL -> time-major (L, B, Cin).
    x_lbc = jnp.transpose(x_ncl, (2, 0, 1)).astype(jnp.float32)
    batch = x_lbc.shape[1]
    hidden = params['lstm_whh'][0].shape[1]
    num_layers = len(params['lstm_wih'])

    lstm_args = []
    for l in range(num_layers):
        lstm_args += [params['lstm_wih'][l], params['lstm_whh'][l], params['lstm_b'][l]]
    shared = [x_lbc, params['conv1_w'], params['conv1_b'],
              params['conv2_w'], params['conv2_b']]

    # Launch 1: conv front end + both 4-layer LSTM stacks (grid=(2,) parallel).
    h_last = pl.pallas_call(
        conv_lstm_stack_kernel,
        grid=(2,),
        out_shape=jax.ShapeDtypeStruct((2, batch, hidden), jnp.float32),
        in_specs=[_shared_spec(a) for a in shared]
                 + [_stacked_spec(a) for a in lstm_args],
        out_specs=pl.BlockSpec((1, batch, hidden), lambda s: (s, 0, 0)),
        compiler_params=pltpu.CompilerParams(
            dimension_semantics=("parallel",)),
    )(*shared, *lstm_args)

    # Launch 2: tiny classification head on the last timestep only
    # (mathematically identical to per-timestep fc followed by [:, -1, :]).
    n_out = params['fc2_w'].shape[1]
    return pl.pallas_call(
        head_kernel,
        out_shape=jax.ShapeDtypeStruct((batch, n_out), jnp.float32),
        in_specs=[_vmem_spec()] * 5,
        out_specs=_vmem_spec(),
    )(h_last, params['fc1_w'], params['fc1_b'], params['fc2_w'], params['fc2_b'])


# --------------------------- deterministic params ----------------------------
def init_params(key, in_channels, conv_out, kernel_size, hidden_size,
                out_channels, num_layers=4):
    keys = iter(jax.random.split(key, 64))

    def uni(shape, scale, dtype=jnp.float32):
        return jax.random.uniform(next(keys), shape, jnp.float32,
                                  -scale, scale).astype(dtype)

    p = {}
    # torch conv weight (Cout, Cin, K) -> flat (K*Cin, Cout)
    #   via weight.transpose(2, 1, 0).reshape(K*Cin, Cout)
    s = (in_channels * kernel_size) ** -0.5
    p['conv1_w'] = uni((kernel_size * in_channels, 32), s, jnp.bfloat16)
    p['conv1_b'] = uni((1, 32), s)
    s = (32 * kernel_size) ** -0.5
    p['conv2_w'] = uni((kernel_size * 32, conv_out), s, jnp.bfloat16)
    p['conv2_b'] = uni((1, conv_out), s)

    # LSTM weights: leading dim 2 = [lstm1, lstm2]; pre-transposed (x @ W),
    # gate order i,f,g,o; bias = b_ih + b_hh.
    s = hidden_size ** -0.5
    wih, whh, b = [], [], []
    for layer in range(num_layers):
        din = conv_out if layer == 0 else hidden_size
        wih.append(uni((2, din, 4 * hidden_size), s, jnp.bfloat16))
        whh.append(uni((2, hidden_size, 4 * hidden_size), s, jnp.bfloat16))
        b.append(uni((2, 1, 4 * hidden_size), s) + uni((2, 1, 4 * hidden_size), s))
    p['lstm_wih'], p['lstm_whh'], p['lstm_b'] = wih, whh, b

    # fc1 weight is stored split per stack: (2, H, 16) == W^T rows [:H] / [H:].
    s = (2 * hidden_size) ** -0.5
    p['fc1_w'] = uni((2, hidden_size, 16), s, jnp.bfloat16)
    p['fc1_b'] = uni((1, 16), s)
    s = 16 ** -0.5
    p['fc2_w'] = uni((16, out_channels), s, jnp.bfloat16)
    p['fc2_b'] = uni((1, out_channels), s)
    return p


if __name__ == "__main__":
    batch, in_channels, length = 2, 4, 16
    kernel_size, conv_out, hidden_size, out_channels = 3, 8, 32, 5

    key = jax.random.PRNGKey(0)
    k_x, k_p = jax.random.split(key)
    x = jax.random.normal(k_x, (batch, in_channels, length), jnp.float32)
    params = init_params(k_p, in_channels, conv_out, kernel_size,
                         hidden_size, out_channels)

    out = jax.jit(cnn1d_lstm_forward)(params, x)
    out = jax.block_until_ready(out)
    assert out.shape == (batch, out_channels)
    print("KERNEL_OK")
</pallas_src>

<mosaic_0001>
module attributes {stable_mosaic.version = 11 : i64} {
  func.func @conv_lstm_stack_kernel(%arg0: i32, %arg1: memref<16x2x4xf32, #tpu.memory_space<vmem>>, %arg2: memref<12x32xbf16, #tpu.memory_space<vmem>>, %arg3: memref<1x32xf32, #tpu.memory_space<vmem>>, %arg4: memref<96x8xbf16, #tpu.memory_space<vmem>>, %arg5: memref<1x8xf32, #tpu.memory_space<vmem>>, %arg6: memref<1x8x128xbf16, #tpu.memory_space<vmem>>, %arg7: memref<1x32x128xbf16, #tpu.memory_space<vmem>>, %arg8: memref<1x1x128xf32, #tpu.memory_space<vmem>>, %arg9: memref<1x32x128xbf16, #tpu.memory_space<vmem>>, %arg10: memref<1x32x128xbf16, #tpu.memory_space<vmem>>, %arg11: memref<1x1x128xf32, #tpu.memory_space<vmem>>, %arg12: memref<1x32x128xbf16, #tpu.memory_space<vmem>>, %arg13: memref<1x32x128xbf16, #tpu.memory_space<vmem>>, %arg14: memref<1x1x128xf32, #tpu.memory_space<vmem>>, %arg15: memref<1x32x128xbf16, #tpu.memory_space<vmem>>, %arg16: memref<1x32x128xbf16, #tpu.memory_space<vmem>>, %arg17: memref<1x1x128xf32, #tpu.memory_space<vmem>>, %arg18: memref<1x2x32xf32, #tpu.memory_space<vmem>>) attributes {dimension_semantics = [#tpu.dimension_semantics<parallel>], iteration_bounds = array<i64: 2>, scalar_prefetch = 0 : i64, scratch_operands = 0 : i64, tpu.core_type = #tpu.core_type<tc>, window_params = [{pipeline_mode = #tpu.pipeline_mode<synchronous>, transform_indices = @transform_0, window_bounds = array<i64: 16, 2, 4>}, {pipeline_mode = #tpu.pipeline_mode<synchronous>, transform_indices = @transform_1, window_bounds = array<i64: 12, 32>}, {pipeline_mode = #tpu.pipeline_mode<synchronous>, transform_indices = @transform_2, window_bounds = array<i64: 1, 32>}, {pipeline_mode = #tpu.pipeline_mode<synchronous>, transform_indices = @transform_3, window_bounds = array<i64: 96, 8>}, {pipeline_mode = #tpu.pipeline_mode<synchronous>, transform_indices = @transform_4, window_bounds = array<i64: 1, 8>}, {transform_indices = @transform_5, window_bounds = array<i64: 1, 8, 128>}, {transform_indices = @transform_6, window_bounds = array<i64: 1, 32, 128>}, {transform_indices = @transform_7, window_bounds = array<i64: 1, 1, 128>}, {transform_indices = @transform_8, window_bounds = array<i64: 1, 32, 128>}, {transform_indices = @transform_9, window_bounds = array<i64: 1, 32, 128>}, {transform_indices = @transform_10, window_bounds = array<i64: 1, 1, 128>}, {transform_indices = @transform_11, window_bounds = array<i64: 1, 32, 128>}, {transform_indices = @transform_12, window_bounds = array<i64: 1, 32, 128>}, {transform_indices = @transform_13, window_bounds = array<i64: 1, 1, 128>}, {transform_indices = @transform_14, window_bounds = array<i64: 1, 32, 128>}, {transform_indices = @transform_15, window_bounds = array<i64: 1, 32, 128>}, {transform_indices = @transform_16, window_bounds = array<i64: 1, 1, 128>}, {transform_indices = @transform_17, window_bounds = array<i64: 1, 2, 32>}]} {
    %c0 = arith.constant 0 : index
    %c0_0 = arith.constant 0 : index
    %c0_1 = arith.constant 0 : index
    %0 = vector.load %arg1[%c0, %c0_0, %c0_1] : memref<16x2x4xf32, #tpu.memory_space<vmem>>, vector<16x2x4xf32>
    %c0_2 = arith.constant 0 : index
    %c0_3 = arith.constant 0 : index
    %1 = vector.load %arg2[%c0_2, %c0_3] : memref<12x32xbf16, #tpu.memory_space<vmem>>, vector<12x32xbf16>
    %c0_4 = arith.constant 0 : index
    %c0_5 = arith.constant 0 : index
    %2 = vector.load %arg3[%c0_4, %c0_5] : memref<1x32xf32, #tpu.memory_space<vmem>>, vector<1x32xf32>
    %3 = vector.extract_strided_slice %0 {offsets = [0, 0, 0], sizes = [14, 2, 4], strides = [1, 1, 1]} : vector<16x2x4xf32> to vector<14x2x4xf32>
    %4 = vector.extract_strided_slice %0 {offsets = [1, 0, 0], sizes = [14, 2, 4], strides = [1, 1, 1]} : vector<16x2x4xf32> to vector<14x2x4xf32>
    %5 = vector.extract_strided_slice %0 {offsets = [2, 0, 0], sizes = [14, 2, 4], strides = [1, 1, 1]} : vector<16x2x4xf32> to vector<14x2x4xf32>
    %6 = tpu.concatenate %3, %4, %5 in 2 : vector<14x2x4xf32>, vector<14x2x4xf32>, vector<14x2x4xf32> -> vector<14x2x12xf32>
    %7 = arith.truncf %6 : vector<14x2x12xf32> to vector<14x2x12xbf16>
    "tpu.trace_start"() <{level = 10 : i32, message = "lbk,ko->lbo"}> : () -> ()
    %cst = arith.constant dense<0.000000e+00> : vector<14x2x32xf32>
    %8 = tpu.matmul %7, %1, %cst {dimension_numbers = #tpu.dot_dimension_numbers<[2], [0], [0, 1], [1], [0, 0, 0, 1, 1, 1], [], []>} : vector<14x2x12xbf16>, vector<12x32xbf16>, vector<14x2x32xf32> -> vector<14x2x32xf32>
    "tpu.trace_stop"() : () -> ()
    %9 = vector.shape_cast %2 : vector<1x32xf32> to vector<1x1x32xf32>
    %10 = vector.broadcast %9 : vector<1x1x32xf32> to vector<14x2x32xf32>
    %11 = arith.addf %8, %10 : vector<14x2x32xf32>
    %cst_6 = arith.constant 0.000000e+00 : f32
    %12 = vector.broadcast %cst_6 : f32 to vector<14x2x32xf32>
    %13 = arith.maximumf %11, %12 : vector<14x2x32xf32>
    %c0_7 = arith.constant 0 : index
    %c0_8 = arith.constant 0 : index
    %14 = vector.load %arg4[%c0_7, %c0_8] : memref<96x8xbf16, #tpu.memory_space<vmem>>, vector<96x8xbf16>
    %c0_9 = arith.constant 0 : index
    %c0_10 = arith.constant 0 : index
    %15 = vector.load %arg5[%c0_9, %c0_10] : memref<1x8xf32, #tpu.memory_space<vmem>>, vector<1x8xf32>
    %16 = vector.extract_strided_slice %13 {offsets = [0, 0, 0], sizes = [12, 2, 32], strides = [1, 1, 1]} : vector<14x2x32xf32> to vector<12x2x32xf32>
    %17 = vector.extract_strided_slice %13 {offsets = [1, 0, 0], sizes = [12, 2, 32], strides = [1, 1, 1]} : vector<14x2x32xf32> to vector<12x2x32xf32>
    %18 = vector.extract_strided_slice %13 {offsets = [2, 0, 0], sizes = [12, 2, 32], strides = [1, 1, 1]} : vector<14x2x32xf32> to vector<12x2x32xf32>
    %19 = tpu.concatenate %16, %17, %18 in 2 : vector<12x2x32xf32>, vector<12x2x32xf32>, vector<12x2x32xf32> -> vector<12x2x96xf32>
    %20 = arith.truncf %19 : vector<12x2x96xf32> to vector<12x2x96xbf16>
    "tpu.trace_start"() <{level = 10 : i32, message = "lbk,ko->lbo"}> : () -> ()
    %cst_11 = arith.constant dense<0.000000e+00> : vector<12x2x8xf32>
    %21 = tpu.matmul %20, %14, %cst_11 {dimension_numbers = #tpu.dot_dimension_numbers<[2], [0], [0, 1], [1], [0, 0, 0, 1, 1, 1], [], []>} : vector<12x2x96xbf16>, vector<96x8xbf16>, vector<12x2x8xf32> -> vector<12x2x8xf32>
    "tpu.trace_stop"() : () -> ()
    %22 = vector.shape_cast %15 : vector<1x8xf32> to vector<1x1x8xf32>
    %23 = vector.broadcast %22 : vector<1x1x8xf32> to vector<12x2x8xf32>
    %24 = arith.addf %21, %23 : vector<12x2x8xf32>
    %cst_12 = arith.constant 0.000000e+00 : f32
    %25 = vector.broadcast %cst_12 : f32 to vector<12x2x8xf32>
    %26 = arith.maximumf %24, %25 : vector<12x2x8xf32>
    %27 = vector.shape_cast %26 : vector<12x2x8xf32> to vector<6x2x2x8xf32>
    %cst_13 = arith.constant dense<0xFF800000> : vector<6x2x8xf32>
    %28 = vector.multi_reduction <maximumf>, %27, %cst_13 [1] : vector<6x2x2x8xf32> to vector<6x2x8xf32>
    %c0_14 = arith.constant 0 : index
    %c0_15 = arith.constant 0 : index
    %c0_16 = arith.constant 0 : index
    %29 = vector.load %arg6[%c0_14, %c0_15, %c0_16] : memref<1x8x128xbf16, #tpu.memory_space<vmem>>, vector<1x8x128xbf16>
    %30 = vector.shape_cast %29 : vector<1x8x128xbf16> to vector<8x128xbf16>
    %c0_17 = arith.constant 0 : index
    %c0_18 = arith.constant 0 : index
    %c0_19 = arith.constant 0 : index
    %31 = vector.load %arg7[%c0_17, %c0_18, %c0_19] : memref<1x32x128xbf16, #tpu.memory_space<vmem>>, vector<1x32x128xbf16>
    %32 = vector.shape_cast %31 : vector<1x32x128xbf16> to vector<32x128xbf16>
    %c0_20 = arith.constant 0 : index
    %c0_21 = arith.constant 0 : index
    %c0_22 = arith.constant 0 : index
    %33 = vector.load %arg8[%c0_20, %c0_21, %c0_22] : memref<1x1x128xf32, #tpu.memory_space<vmem>>, vector<1x1x128xf32>
    %34 = vector.shape_cast %33 : vector<1x1x128xf32> to vector<1x128xf32>
    %35 = arith.truncf %28 : vector<6x2x8xf32> to vector<6x2x8xbf16>
    "tpu.trace_start"() <{level = 10 : i32, message = "tbd,dh->tbh"}> : () -> ()
    %cst_23 = arith.constant dense<0.000000e+00> : vector<6x2x128xf32>
    %36 = tpu.matmul %35, %30, %cst_23 {dimension_numbers = #tpu.dot_dimension_numbers<[2], [0], [0, 1], [1], [0, 0, 0, 1, 1, 1], [], []>} : vector<6x2x8xbf16>, vector<8x128xbf16>, vector<6x2x128xf32> -> vector<6x2x128xf32>
    "tpu.trace_stop"() : () -> ()
    %37 = vector.shape_cast %34 : vector<1x128xf32> to vector<1x1x128xf32>
    %38 = vector.broadcast %37 : vector<1x1x128xf32> to vector<6x2x128xf32>
    %39 = arith.addf %36, %38 : vector<6x2x128xf32>
    %40 = vector.extract_strided_slice %39 {offsets = [0, 0, 0], sizes = [6, 2, 32], strides = [1, 1, 1]} : vector<6x2x128xf32> to vector<6x2x32xf32>
    %41 = vector.extract_strided_slice %39 {offsets = [0, 0, 32], sizes = [6, 2, 32], strides = [1, 1, 1]} : vector<6x2x128xf32> to vector<6x2x32xf32>
    %42 = vector.extract_strided_slice %39 {offsets = [0, 0, 64], sizes = [6, 2, 32], strides = [1, 1, 1]} : vector<6x2x128xf32> to vector<6x2x32xf32>
    %43 = vector.extract_strided_slice %39 {offsets = [0, 0, 96], sizes = [6, 2, 32], strides = [1, 1, 1]} : vector<6x2x128xf32> to vector<6x2x32xf32>
    %44 = vector.extract_strided_slice %32 {offsets = [0, 0], sizes = [32, 32], strides = [1, 1]} : vector<32x128xbf16> to vector<32x32xbf16>
    %45 = vector.extract_strided_slice %32 {offsets = [0, 32], sizes = [32, 32], strides = [1, 1]} : vector<32x128xbf16> to vector<32x32xbf16>
    %46 = vector.extract_strided_slice %32 {offsets = [0, 64], sizes = [32, 32], strides = [1, 1]} : vector<32x128xbf16> to vector<32x32xbf16>
    %47 = vector.extract_strided_slice %32 {offsets = [0, 96], sizes = [32, 32], strides = [1, 1]} : vector<32x128xbf16> to vector<32x32xbf16>
    %cst_24 = arith.constant 0.000000e+00 : f32
    %48 = vector.broadcast %cst_24 : f32 to vector<2x32xf32>
    %cst_25 = arith.constant 0.000000e+00 : f32
    %49 = vector.broadcast %cst_25 : f32 to vector<2x32xf32>
    %50 = arith.truncf %48 : vector<2x32xf32> to vector<2x32xbf16>
    %51 = vector.extract_strided_slice %40 {offsets = [0, 0, 0], sizes = [1, 2, 32], strides = [1, 1, 1]} : vector<6x2x32xf32> to vector<1x2x32xf32>
    %52 = vector.shape_cast %51 : vector<1x2x32xf32> to vector<2x32xf32>
    %cst_26 = arith.constant dense<0.000000e+00> : vector<2x32xf32>
    %53 = tpu.matmul %50, %44, %cst_26 {dimension_numbers = #tpu.dot_dimension_numbers<[1], [0], [0], [1], [0, 0, 1, 1], [], []>} : vector<2x32xbf16>, vector<32x32xbf16>, vector<2x32xf32> -> vector<2x32xf32>
    %54 = arith.addf %52, %53 : vector<2x32xf32>
    %55 = arith.negf %54 : vector<2x32xf32>
    %56 = math.exp %55 : vector<2x32xf32>
    %cst_27 = arith.constant 1.000000e+00 : f32
    %57 = vector.broadcast %cst_27 : f32 to vector<2x32xf32>
    %58 = arith.addf %57, %56 : vector<2x32xf32>
    %59 = arith.divf %57, %58 : vector<2x32xf32>
    %60 = vector.extract_strided_slice %41 {offsets = [0, 0, 0], sizes = [1, 2, 32], strides = [1, 1, 1]} : vector<6x2x32xf32> to vector<1x2x32xf32>
    %61 = vector.shape_cast %60 : vector<1x2x32xf32> to vector<2x32xf32>
    %cst_28 = arith.constant dense<0.000000e+00> : vector<2x32xf32>
    %62 = tpu.matmul %50, %45, %cst_28 {dimension_numbers = #tpu.dot_dimension_numbers<[1], [0], [0], [1], [0, 0, 1, 1], [], []>} : vector<2x32xbf16>, vector<32x32xbf16>, vector<2x32xf32> -> vector<2x32xf32>
    %63 = arith.addf %61, %62 : vector<2x32xf32>
    %64 = arith.negf %63 : vector<2x32xf32>
    %65 = math.exp %64 : vector<2x32xf32>
    %cst_29 = arith.constant 1.000000e+00 : f32
    %66 = vector.broadcast %cst_29 : f32 to vector<2x32xf32>
    %67 = arith.addf %66, %65 : vector<2x32xf32>
    %68 = arith.divf %66, %67 : vector<2x32xf32>
    %69 = vector.extract_strided_slice %42 {offsets = [0, 0, 0], sizes = [1, 2, 32], strides = [1, 1, 1]} : vector<6x2x32xf32> to vector<1x2x32xf32>
    %70 = vector.shape_cast %69 : vector<1x2x32xf32> to vector<2x32xf32>
    %cst_30 = arith.constant dense<0.000000e+00> : vector<2x32xf32>
    %71 = tpu.matmul %50, %46, %cst_30 {dimension_numbers = #tpu.dot_dimension_numbers<[1], [0], [0], [1], [0, 0, 1, 1], [], []>} : vector<2x32xbf16>, vector<32x32xbf16>, vector<2x32xf32> -> vector<2x32xf32>
    %72 = arith.addf %70, %71 : vector<2x32xf32>
    %73 = math.tanh %72 : vector<2x32xf32>
    %74 = vector.extract_strided_slice %43 {offsets = [0, 0, 0], sizes = [1, 2, 32], strides = [1, 1, 1]} : vector<6x2x32xf32> to vector<1x2x32xf32>
    %75 = vector.shape_cast %74 : vector<1x2x32xf32> to vector<2x32xf32>
    %cst_31 = arith.constant dense<0.000000e+00> : vector<2x32xf32>
    %76 = tpu.matmul %50, %47, %cst_31 {dimension_numbers = #tpu.dot_dimension_numbers<[1], [0], [0], [1], [0, 0, 1, 1], [], []>} : vector<2x32xbf16>, vector<32x32xbf16>, vector<2x32xf32> -> vector<2x32xf32>
    %77 = arith.addf %75, %76 : vector<2x32xf32>
    %78 = arith.negf %77 : vector<2x32xf32>
    %79 = math.exp %78 : vector<2x32xf32>
    %cst_32 = arith.constant 1.000000e+00 : f32
    %80 = vector.broadcast %cst_32 : f32 to vector<2x32xf32>
    %81 = arith.addf %80, %79 : vector<2x32xf32>
    %82 = arith.divf %80, %81 : vector<2x32xf32>
    %83 = arith.mulf %68, %49 : vector<2x32xf32>
    %84 = arith.mulf %59, %73 : vector<2x32xf32>
    %85 = arith.addf %83, %84 : vector<2x32xf32>
    %86 = math.tanh %85 : vector<2x32xf32>
    %87 = arith.mulf %82, %86 : vector<2x32xf32>
    %88 = arith.truncf %87 : vector<2x32xf32> to vector<2x32xbf16>
    %89 = vector.extract_strided_slice %40 {offsets = [1, 0, 0], sizes = [1, 2, 32], strides = [1, 1, 1]} : vector<6x2x32xf32> to vector<1x2x32xf32>
    %90 = vector.shape_cast %89 : vector<1x2x32xf32> to vector<2x32xf32>
    %cst_33 = arith.constant dense<0.000000e+00> : vector<2x32xf32>
    %91 = tpu.matmul %88, %44, %cst_33 {dimension_numbers = #tpu.dot_dimension_numbers<[1], [0], [0], [1], [0, 0, 1, 1], [], []>} : vector<2x32xbf16>, vector<32x32xbf16>, vector<2x32xf32> -> vector<2x32xf32>
    %92 = arith.addf %90, %91 : vector<2x32xf32>
    %93 = arith.negf %92 : vector<2x32xf32>
    %94 = math.exp %93 : vector<2x32xf32>
    %cst_34 = arith.constant 1.000000e+00 : f32
    %95 = vector.broadcast %cst_34 : f32 to vector<2x32xf32>
    %96 = arith.addf %95, %94 : vector<2x32xf32>
    %97 = arith.divf %95, %96 : vector<2x32xf32>
    %98 = vector.extract_strided_slice %41 {offsets = [1, 0, 0], sizes = [1, 2, 32], strides = [1, 1, 1]} : vector<6x2x32xf32> to vector<1x2x32xf32>
    %99 = vector.shape_cast %98 : vector<1x2x32xf32> to vector<2x32xf32>
    %cst_35 = arith.constant dense<0.000000e+00> : vector<2x32xf32>
    %100 = tpu.matmul %88, %45, %cst_35 {dimension_numbers = #tpu.dot_dimension_numbers<[1], [0], [0], [1], [0, 0, 1, 1], [], []>} : vector<2x32xbf16>, vector<32x32xbf16>, vector<2x32xf32> -> vector<2x32xf32>
    %101 = arith.addf %99, %100 : vector<2x32xf32>
    %102 = arith.negf %101 : vector<2x32xf32>
    %103 = math.exp %102 : vector<2x32xf32>
    %cst_36 = arith.constant 1.000000e+00 : f32
    %104 = vector.broadcast %cst_36 : f32 to vector<2x32xf32>
    %105 = arith.addf %104, %103 : vector<2x32xf32>
    %106 = arith.divf %104, %105 : vector<2x32xf32>
    %107 = vector.extract_strided_slice %42 {offsets = [1, 0, 0], sizes = [1, 2, 32], strides = [1, 1, 1]} : vector<6x2x32xf32> to vector<1x2x32xf32>
    %108 = vector.shape_cast %107 : vector<1x2x32xf32> to vector<2x32xf32>
    %cst_37 = arith.constant dense<0.000000e+00> : vector<2x32xf32>
    %109 = tpu.matmul %88, %46, %cst_37 {dimension_numbers = #tpu.dot_dimension_numbers<[1], [0], [0], [1], [0, 0, 1, 1], [], []>} : vector<2x32xbf16>, vector<32x32xbf16>, vector<2x32xf32> -> vector<2x32xf32>
    %110 = arith.addf %108, %109 : vector<2x32xf32>
    %111 = math.tanh %110 : vector<2x32xf32>
    %112 = vector.extract_strided_slice %43 {offsets = [1, 0, 0], sizes = [1, 2, 32], strides = [1, 1, 1]} : vector<6x2x32xf32> to vector<1x2x32xf32>
    %113 = vector.shape_cast %112 : vector<1x2x32xf32> to vector<2x32xf32>
    %cst_38 = arith.constant dense<0.000000e+00> : vector<2x32xf32>
    %114 = tpu.matmul %88, %47, %cst_38 {dimension_numbers = #tpu.dot_dimension_numbers<[1], [0], [0], [1], [0, 0, 1, 1], [], []>} : vector<2x32xbf16>, vector<32x32xbf16>, vector<2x32xf32> -> vector<2x32xf32>
    %115 = arith.addf %113, %114 : vector<2x32xf32>
    %116 = arith.negf %115 : vector<2x32xf32>
    %117 = math.exp %116 : vector<2x32xf32>
    %cst_39 = arith.constant 1.000000e+00 : f32
    %118 = vector.broadcast %cst_39 : f32 to vector<2x32xf32>
    %119 = arith.addf %118, %117 : vector<2x32xf32>
    %120 = arith.divf %118, %119 : vector<2x32xf32>
    %121 = arith.mulf %106, %85 : vector<2x32xf32>
    %122 = arith.mulf %97, %111 : vector<2x32xf32>
    %123 = arith.addf %121, %122 : vector<2x32xf32>
    %124 = math.tanh %123 : vector<2x32xf32>
    %125 = arith.mulf %120, %124 : vector<2x32xf32>
    %126 = arith.truncf %125 : vector<2x32xf32> to vector<2x32xbf16>
    %127 = vector.extract_strided_slice %40 {offsets = [2, 0, 0], sizes = [1, 2, 32], strides = [1, 1, 1]} : vector<6x2x32xf32> to vector<1x2x32xf32>
    %128 = vector.shape_cast %127 : vector<1x2x32xf32> to vector<2x32xf32>
    %cst_40 = arith.constant dense<0.000000e+00> : vector<2x32xf32>
    %129 = tpu.matmul %126, %44, %cst_40 {dimension_numbers = #tpu.dot_dimension_numbers<[1], [0], [0], [1], [0, 0, 1, 1], [], []>} : vector<2x32xbf16>, vector<32x32xbf16>, vector<2x32xf32> -> vector<2x32xf32>
    %130 = arith.addf %128, %129 : vector<2x32xf32>
    %131 = arith.negf %130 : vector<2x32xf32>
    %132 = math.exp %131 : vector<2x32xf32>
    %cst_41 = arith.constant 1.000000e+00 : f32
    %133 = vector.broadcast %cst_41 : f32 to vector<2x32xf32>
    %134 = arith.addf %133, %132 : vector<2x32xf32>
    %135 = arith.divf %133, %134 : vector<2x32xf32>
    %136 = vector.extract_strided_slice %41 {offsets = [2, 0, 0], sizes = [1, 2, 32], strides = [1, 1, 1]} : vector<6x2x32xf32> to vector<1x2x32xf32>
    %137 = vector.shape_cast %136 : vector<1x2x32xf32> to vector<2x32xf32>
    %cst_42 = arith.constant dense<0.000000e+00> : vector<2x32xf32>
    %138 = tpu.matmul %126, %45, %cst_42 {dimension_numbers = #tpu.dot_dimension_numbers<[1], [0], [0], [1], [0, 0, 1, 1], [], []>} : vector<2x32xbf16>, vector<32x32xbf16>, vector<2x32xf32> -> vector<2x32xf32>
    %139 = arith.addf %137, %138 : vector<2x32xf32>
    %140 = arith.negf %139 : vector<2x32xf32>
    %141 = math.exp %140 : vector<2x32xf32>
    %cst_43 = arith.constant 1.000000e+00 : f32
    %142 = vector.broadcast %cst_43 : f32 to vector<2x32xf32>
    %143 = arith.addf %142, %141 : vector<2x32xf32>
    %144 = arith.divf %142, %143 : vector<2x32xf32>
    %145 = vector.extract_strided_slice %42 {offsets = [2, 0, 0], sizes = [1, 2, 32], strides = [1, 1, 1]} : vector<6x2x32xf32> to vector<1x2x32xf32>
    %146 = vector.shape_cast %145 : vector<1x2x32xf32> to vector<2x32xf32>
    %cst_44 = arith.constant dense<0.000000e+00> : vector<2x32xf32>
    %147 = tpu.matmul %126, %46, %cst_44 {dimension_numbers = #tpu.dot_dimension_numbers<[1], [0], [0], [1], [0, 0, 1, 1], [], []>} : vector<2x32xbf16>, vector<32x32xbf16>, vector<2x32xf32> -> vector<2x32xf32>
    %148 = arith.addf %146, %147 : vector<2x32xf32>
    %149 = math.tanh %148 : vector<2x32xf32>
    %150 = vector.extract_strided_slice %43 {offsets = [2, 0, 0], sizes = [1, 2, 32], strides = [1, 1, 1]} : vector<6x2x32xf32> to vector<1x2x32xf32>
    %151 = vector.shape_cast %150 : vector<1x2x32xf32> to vector<2x32xf32>
    %cst_45 = arith.constant dense<0.000000e+00> : vector<2x32xf32>
    %152 = tpu.matmul %126, %47, %cst_45 {dimension_numbers = #tpu.dot_dimension_numbers<[1], [0], [0], [1], [0, 0, 1, 1], [], []>} : vector<2x32xbf16>, vector<32x32xbf16>, vector<2x32xf32> -> vector<2x32xf32>
    %153 = arith.addf %151, %152 : vector<2x32xf32>
    %154 = arith.negf %153 : vector<2x32xf32>
    %155 = math.exp %154 : vector<2x32xf32>
    %cst_46 = arith.constant 1.000000e+00 : f32
    %156 = vector.broadcast %cst_46 : f32 to vector<2x32xf32>
    %157 = arith.addf %156, %155 : vector<2x32xf32>
    %158 = arith.divf %156, %157 : vector<2x32xf32>
    %159 = arith.mulf %144, %123 : vector<2x32xf32>
    %160 = arith.mulf %135, %149 : vector<2x32xf32>
    %161 = arith.addf %159, %160 : vector<2x32xf32>
    %162 = math.tanh %161 : vector<2x32xf32>
    %163 = arith.mulf %158, %162 : vector<2x32xf32>
    %164 = arith.truncf %163 : vector<2x32xf32> to vector<2x32xbf16>
    %165 = vector.extract_strided_slice %40 {offsets = [3, 0, 0], sizes = [1, 2, 32], strides = [1, 1, 1]} : vector<6x2x32xf32> to vector<1x2x32xf32>
    %166 = vector.shape_cast %165 : vector<1x2x32xf32> to vector<2x32xf32>
    %cst_47 = arith.constant dense<0.000000e+00> : vector<2x32xf32>
    %167 = tpu.matmul %164, %44, %cst_47 {dimension_numbers = #tpu.dot_dimension_numbers<[1], [0], [0], [1], [0, 0, 1, 1], [], []>} : vector<2x32xbf16>, vector<32x32xbf16>, vector<2x32xf32> -> vector<2x32xf32>
    %168 = arith.addf %166, %167 : vector<2x32xf32>
    %169 = arith.negf %168 : vector<2x32xf32>
    %170 = math.exp %169 : vector<2x32xf32>
    %cst_48 = arith.constant 1.000000e+00 : f32
    %171 = vector.broadcast %cst_48 : f32 to vector<2x32xf32>
    %172 = arith.addf %171, %170 : vector<2x32xf32>
    %173 = arith.divf %171, %172 : vector<2x32xf32>
    %174 = vector.extract_strided_slice %41 {offsets = [3, 0, 0], sizes = [1, 2, 32], strides = [1, 1, 1]} : vector<6x2x32xf32> to vector<1x2x32xf32>
    %175 = vector.shape_cast %174 : vector<1x2x32xf32> to vector<2x32xf32>
    %cst_49 = arith.constant dense<0.000000e+00> : vector<2x32xf32>
    %176 = tpu.matmul %164, %45, %cst_49 {dimension_numbers = #tpu.dot_dimension_numbers<[1], [0], [0], [1], [0, 0, 1, 1], [], []>} : vector<2x32xbf16>, vector<32x32xbf16>, vector<2x32xf32> -> vector<2x32xf32>
    %177 = arith.addf %175, %176 : vector<2x32xf32>
    %178 = arith.negf %177 : vector<2x32xf32>
    %179 = math.exp %178 : vector<2x32xf32>
    %cst_50 = arith.constant 1.000000e+00 : f32
    %180 = vector.broadcast %cst_50 : f32 to vector<2x32xf32>
    %181 = arith.addf %180, %179 : vector<2x32xf32>
    %182 = arith.divf %180, %181 : vector<2x32xf32>
    %183 = vector.extract_strided_slice %42 {offsets = [3, 0, 0], sizes = [1, 2, 32], strides = [1, 1, 1]} : vector<6x2x32xf32> to vector<1x2x32xf32>
    %184 = vector.shape_cast %183 : vector<1x2x32xf32> to vector<2x32xf32>
    %cst_51 = arith.constant dense<0.000000e+00> : vector<2x32xf32>
    %185 = tpu.matmul %164, %46, %cst_51 {dimension_numbers = #tpu.dot_dimension_numbers<[1], [0], [0], [1], [0, 0, 1, 1], [], []>} : vector<2x32xbf16>, vector<32x32xbf16>, vector<2x32xf32> -> vector<2x32xf32>
    %186 = arith.addf %184, %185 : vector<2x32xf32>
    %187 = math.tanh %186 : vector<2x32xf32>
    %188 = vector.extract_strided_slice %43 {offsets = [3, 0, 0], sizes = [1, 2, 32], strides = [1, 1, 1]} : vector<6x2x32xf32> to vector<1x2x32xf32>
    %189 = vector.shape_cast %188 : vector<1x2x32xf32> to vector<2x32xf32>
    %cst_52 = arith.constant dense<0.000000e+00> : vector<2x32xf32>
    %190 = tpu.matmul %164, %47, %cst_52 {dimension_numbers = #tpu.dot_dimension_numbers<[1], [0], [0], [1], [0, 0, 1, 1], [], []>} : vector<2x32xbf16>, vector<32x32xbf16>, vector<2x32xf32> -> vector<2x32xf32>
    %191 = arith.addf %189, %190 : vector<2x32xf32>
    %192 = arith.negf %191 : vector<2x32xf32>
    %193 = math.exp %192 : vector<2x32xf32>
    %cst_53 = arith.constant 1.000000e+00 : f32
    %194 = vector.broadcast %cst_53 : f32 to vector<2x32xf32>
    %195 = arith.addf %194, %193 : vector<2x32xf32>
    %196 = arith.divf %194, %195 : vector<2x32xf32>
    %197 = arith.mulf %182, %161 : vector<2x32xf32>
    %198 = arith.mulf %173, %187 : vector<2x32xf32>
    %199 = arith.addf %197, %198 : vector<2x32xf32>
    %200 = math.tanh %199 : vector<2x32xf32>
    %201 = arith.mulf %196, %200 : vector<2x32xf32>
    %202 = arith.truncf %201 : vector<2x32xf32> to vector<2x32xbf16>
    %203 = vector.extract_strided_slice %40 {offsets = [4, 0, 0], sizes = [1, 2, 32], strides = [1, 1, 1]} : vector<6x2x32xf32> to vector<1x2x32xf32>
    %204 = vector.shape_cast %203 : vector<1x2x32xf32> to vector<2x32xf32>
    %cst_54 = arith.constant dense<0.000000e+00> : vector<2x32xf32>
    %205 = tpu.matmul %202, %44, %cst_54 {dimension_numbers = #tpu.dot_dimension_numbers<[1], [0], [0], [1], [0, 0, 1, 1], [], []>} : vector<2x32xbf16>, vector<32x32xbf16>, vector<2x32xf32> -> vector<2x32xf32>
    %206 = arith.addf %204, %205 : vector<2x32xf32>
    %207 = arith.negf %206 : vector<2x32xf32>
    %208 = math.exp %207 : vector<2x32xf32>
    %cst_55 = arith.constant 1.000000e+00 : f32
    %209 = vector.broadcast %cst_55 : f32 to vector<2x32xf32>
    %210 = arith.addf %209, %208 : vector<2x32xf32>
    %211 = arith.divf %209, %210 : vector<2x32xf32>
    %212 = vector.extract_strided_slice %41 {offsets = [4, 0, 0], sizes = [1, 2, 32], strides = [1, 1, 1]} : vector<6x2x32xf32> to vector<1x2x32xf32>
    %213 = vector.shape_cast %212 : vector<1x2x32xf32> to vector<2x32xf32>
    %cst_56 = arith.constant dense<0.000000e+00> : vector<2x32xf32>
    %214 = tpu.matmul %202, %45, %cst_56 {dimension_numbers = #tpu.dot_dimension_numbers<[1], [0], [0], [1], [0, 0, 1, 1], [], []>} : vector<2x32xbf16>, vector<32x32xbf16>, vector<2x32xf32> -> vector<2x32xf32>
    %215 = arith.addf %213, %214 : vector<2x32xf32>
    %216 = arith.negf %215 : vector<2x32xf32>
    %217 = math.exp %216 : vector<2x32xf32>
    %cst_57 = arith.constant 1.000000e+00 : f32
    %218 = vector.broadcast %cst_57 : f32 to vector<2x32xf32>
    %219 = arith.addf %218, %217 : vector<2x32xf32>
    %220 = arith.divf %218, %219 : vector<2x32xf32>
    %221 = vector.extract_strided_slice %42 {offsets = [4, 0, 0], sizes = [1, 2, 32], strides = [1, 1, 1]} : vector<6x2x32xf32> to vector<1x2x32xf32>
    %222 = vector.shape_cast %221 : vector<1x2x32xf32> to vector<2x32xf32>
    %cst_58 = arith.constant dense<0.000000e+00> : vector<2x32xf32>
    %223 = tpu.matmul %202, %46, %cst_58 {dimension_numbers = #tpu.dot_dimension_numbers<[1], [0], [0], [1], [0, 0, 1, 1], [], []>} : vector<2x32xbf16>, vector<32x32xbf16>, vector<2x32xf32> -> vector<2x32xf32>
    %224 = arith.addf %222, %223 : vector<2x32xf32>
    %225 = math.tanh %224 : vector<2x32xf32>
    %226 = vector.extract_strided_slice %43 {offsets = [4, 0, 0], sizes = [1, 2, 32], strides = [1, 1, 1]} : vector<6x2x32xf32> to vector<1x2x32xf32>
    %227 = vector.shape_cast %226 : vector<1x2x32xf32> to vector<2x32xf32>
    %cst_59 = arith.constant dense<0.000000e+00> : vector<2x32xf32>
    %228 = tpu.matmul %202, %47, %cst_59 {dimension_numbers = #tpu.dot_dimension_numbers<[1], [0], [0], [1], [0, 0, 1, 1], [], []>} : vector<2x32xbf16>, vector<32x32xbf16>, vector<2x32xf32> -> vector<2x32xf32>
    %229 = arith.addf %227, %228 : vector<2x32xf32>
    %230 = arith.negf %229 : vector<2x32xf32>
    %231 = math.exp %230 : vector<2x32xf32>
    %cst_60 = arith.constant 1.000000e+00 : f32
    %232 = vector.broadcast %cst_60 : f32 to vector<2x32xf32>
    %233 = arith.addf %232, %231 : vector<2x32xf32>
    %234 = arith.divf %232, %233 : vector<2x32xf32>
    %235 = arith.mulf %220, %199 : vector<2x32xf32>
    %236 = arith.mulf %211, %225 : vector<2x32xf32>
    %237 = arith.addf %235, %236 : vector<2x32xf32>
    %238 = math.tanh %237 : vector<2x32xf32>
    %239 = arith.mulf %234, %238 : vector<2x32xf32>
    %240 = arith.truncf %239 : vector<2x32xf32> to vector<2x32xbf16>
    %241 = vector.extract_strided_slice %40 {offsets = [5, 0, 0], sizes = [1, 2, 32], strides = [1, 1, 1]} : vector<6x2x32xf32> to vector<1x2x32xf32>
    %242 = vector.shape_cast %241 : vector<1x2x32xf32> to vector<2x32xf32>
    %cst_61 = arith.constant dense<0.000000e+00> : vector<2x32xf32>
    %243 = tpu.matmul %240, %44, %cst_61 {dimension_numbers = #tpu.dot_dimension_numbers<[1], [0], [0], [1], [0, 0, 1, 1], [], []>} : vector<2x32xbf16>, vector<32x32xbf16>, vector<2x32xf32> -> vector<2x32xf32>
    %244 = arith.addf %242, %243 : vector<2x32xf32>
    %245 = arith.negf %244 : vector<2x32xf32>
    %246 = math.exp %245 : vector<2x32xf32>
    %cst_62 = arith.constant 1.000000e+00 : f32
    %247 = vector.broadcast %cst_62 : f32 to vector<2x32xf32>
    %248 = arith.addf %247, %246 : vector<2x32xf32>
    %249 = arith.divf %247, %248 : vector<2x32xf32>
    %250 = vector.extract_strided_slice %41 {offsets = [5, 0, 0], sizes = [1, 2, 32], strides = [1, 1, 1]} : vector<6x2x32xf32> to vector<1x2x32xf32>
    %251 = vector.shape_cast %250 : vector<1x2x32xf32> to vector<2x32xf32>
    %cst_63 = arith.constant dense<0.000000e+00> : vector<2x32xf32>
    %252 = tpu.matmul %240, %45, %cst_63 {dimension_numbers = #tpu.dot_dimension_numbers<[1], [0], [0], [1], [0, 0, 1, 1], [], []>} : vector<2x32xbf16>, vector<32x32xbf16>, vector<2x32xf32> -> vector<2x32xf32>
    %253 = arith.addf %251, %252 : vector<2x32xf32>
    %254 = arith.negf %253 : vector<2x32xf32>
    %255 = math.exp %254 : vector<2x32xf32>
    %cst_64 = arith.constant 1.000000e+00 : f32
    %256 = vector.broadcast %cst_64 : f32 to vector<2x32xf32>
    %257 = arith.addf %256, %255 : vector<2x32xf32>
    %258 = arith.divf %256, %257 : vector<2x32xf32>
    %259 = vector.extract_strided_slice %42 {offsets = [5, 0, 0], sizes = [1, 2, 32], strides = [1, 1, 1]} : vector<6x2x32xf32> to vector<1x2x32xf32>
    %260 = vector.shape_cast %259 : vector<1x2x32xf32> to vector<2x32xf32>
    %cst_65 = arith.constant dense<0.000000e+00> : vector<2x32xf32>
    %261 = tpu.matmul %240, %46, %cst_65 {dimension_numbers = #tpu.dot_dimension_numbers<[1], [0], [0], [1], [0, 0, 1, 1], [], []>} : vector<2x32xbf16>, vector<32x32xbf16>, vector<2x32xf32> -> vector<2x32xf32>
    %262 = arith.addf %260, %261 : vector<2x32xf32>
    %263 = math.tanh %262 : vector<2x32xf32>
    %264 = vector.extract_strided_slice %43 {offsets = [5, 0, 0], sizes = [1, 2, 32], strides = [1, 1, 1]} : vector<6x2x32xf32> to vector<1x2x32xf32>
    %265 = vector.shape_cast %264 : vector<1x2x32xf32> to vector<2x32xf32>
    %cst_66 = arith.constant dense<0.000000e+00> : vector<2x32xf32>
    %266 = tpu.matmul %240, %47, %cst_66 {dimension_numbers = #tpu.dot_dimension_numbers<[1], [0], [0], [1], [0, 0, 1, 1], [], []>} : vector<2x32xbf16>, vector<32x32xbf16>, vector<2x32xf32> -> vector<2x32xf32>
    %267 = arith.addf %265, %266 : vector<2x32xf32>
    %268 = arith.negf %267 : vector<2x32xf32>
    %269 = math.exp %268 : vector<2x32xf32>
    %cst_67 = arith.constant 1.000000e+00 : f32
    %270 = vector.broadcast %cst_67 : f32 to vector<2x32xf32>
    %271 = arith.addf %270, %269 : vector<2x32xf32>
    %272 = arith.divf %270, %271 : vector<2x32xf32>
    %273 = arith.mulf %258, %237 : vector<2x32xf32>
    %274 = arith.mulf %249, %263 : vector<2x32xf32>
    %275 = arith.addf %273, %274 : vector<2x32xf32>
    %276 = math.tanh %275 : vector<2x32xf32>
    %277 = arith.mulf %272, %276 : vector<2x32xf32>
    %278 = vector.shape_cast %87 : vector<2x32xf32> to vector<1x2x32xf32>
    %279 = vector.shape_cast %125 : vector<2x32xf32> to vector<1x2x32xf32>
    %280 = vector.shape_cast %163 : vector<2x32xf32> to vector<1x2x32xf32>
    %281 = vector.shape_cast %201 : vector<2x32xf32> to vector<1x2x32xf32>
    %282 = vector.shape_cast %239 : vector<2x32xf32> to vector<1x2x32xf32>
    %283 = vector.shape_cast %277 : vector<2x32xf32> to vector<1x2x32xf32>
    %284 = tpu.concatenate %278, %279, %280, %281, %282, %283 in 0 : vector<1x2x32xf32>, vector<1x2x32xf32>, vector<1x2x32xf32>, vector<1x2x32xf32>, vector<1x2x32xf32>, vector<1x2x32xf32> -> vector<6x2x32xf32>
    %c0_68 = arith.constant 0 : index
    %c0_69 = arith.constant 0 : index
    %c0_70 = arith.constant 0 : index
    %285 = vector.load %arg9[%c0_68, %c0_69, %c0_70] : memref<1x32x128xbf16, #tpu.memory_space<vmem>>, vector<1x32x128xbf16>
    %286 = vector.shape_cast %285 : vector<1x32x128xbf16> to vector<32x128xbf16>
    %c0_71 = arith.constant 0 : index
    %c0_72 = arith.constant 0 : index
    %c0_73 = arith.constant 0 : index
    %287 = vector.load %arg10[%c0_71, %c0_72, %c0_73] : memref<1x32x128xbf16, #tpu.memory_space<vmem>>, vector<1x32x128xbf16>
    %288 = vector.shape_cast %287 : vector<1x32x128xbf16> to vector<32x128xbf16>
    %c0_74 = arith.constant 0 : index
    %c0_75 = arith.constant 0 : index
    %c0_76 = arith.constant 0 : index
    %289 = vector.load %arg11[%c0_74, %c0_75, %c0_76] : memref<1x1x128xf32, #tpu.memory_space<vmem>>, vector<1x1x128xf32>
    %290 = vector.shape_cast %289 : vector<1x1x128xf32> to vector<1x128xf32>
    %291 = arith.truncf %284 : vector<6x2x32xf32> to vector<6x2x32xbf16>
    "tpu.trace_start"() <{level = 10 : i32, message = "tbd,dh->tbh"}> : () -> ()
    %cst_77 = arith.constant dense<0.000000e+00> : vector<6x2x128xf32>
    %292 = tpu.matmul %291, %286, %cst_77 {dimension_numbers = #tpu.dot_dimension_numbers<[2], [0], [0, 1], [1], [0, 0, 0, 1, 1, 1], [], []>} : vector<6x2x32xbf16>, vector<32x128xbf16>, vector<6x2x128xf32> -> vector<6x2x128xf32>
    "tpu.trace_stop"() : () -> ()
    %293 = vector.shape_cast %290 : vector<1x128xf32> to vector<1x1x128xf32>
    %294 = vector.broadcast %293 : vector<1x1x128xf32> to vector<6x2x128xf32>
    %295 = arith.addf %292, %294 : vector<6x2x128xf32>
    %296 = vector.extract_strided_slice %295 {offsets = [0, 0, 0], sizes = [6, 2, 32], strides = [1, 1, 1]} : vector<6x2x128xf32> to vector<6x2x32xf32>
    %297 = vector.extract_strided_slice %295 {offsets = [0, 0, 32], sizes = [6, 2, 32], strides = [1, 1, 1]} : vector<6x2x128xf32> to vector<6x2x32xf32>
    %298 = vector.extract_strided_slice %295 {offsets = [0, 0, 64], sizes = [6, 2, 32], strides = [1, 1, 1]} : vector<6x2x128xf32> to vector<6x2x32xf32>
    %299 = vector.extract_strided_slice %295 {offsets = [0, 0, 96], sizes = [6, 2, 32], strides = [1, 1, 1]} : vector<6x2x128xf32> to vector<6x2x32xf32>
    %300 = vector.extract_strided_slice %288 {offsets = [0, 0], sizes = [32, 32], strides = [1, 1]} : vector<32x128xbf16> to vector<32x32xbf16>
    %301 = vector.extract_strided_slice %288 {offsets = [0, 32], sizes = [32, 32], strides = [1, 1]} : vector<32x128xbf16> to vector<32x32xbf16>
    %302 = vector.extract_strided_slice %288 {offsets = [0, 64], sizes = [32, 32], strides = [1, 1]} : vector<32x128xbf16> to vector<32x32xbf16>
    %303 = vector.extract_strided_slice %288 {offsets = [0, 96], sizes = [32, 32], strides = [1, 1]} : vector<32x128xbf16> to vector<32x32xbf16>
    %cst_78 = arith.constant 0.000000e+00 : f32
    %304 = vector.broadcast %cst_78 : f32 to vector<2x32xf32>
    %cst_79 = arith.constant 0.000000e+00 : f32
    %305 = vector.broadcast %cst_79 : f32 to vector<2x32xf32>
    %306 = arith.truncf %304 : vector<2x32xf32> to vector<2x32xbf16>
    %307 = vector.extract_strided_slice %296 {offsets = [0, 0, 0], sizes = [1, 2, 32], strides = [1, 1, 1]} : vector<6x2x32xf32> to vector<1x2x32xf32>
    %308 = vector.shape_cast %307 : vector<1x2x32xf32> to vector<2x32xf32>
    %cst_80 = arith.constant dense<0.000000e+00> : vector<2x32xf32>
    %309 = tpu.matmul %306, %300, %cst_80 {dimension_numbers = #tpu.dot_dimension_numbers<[1], [0], [0], [1], [0, 0, 1, 1], [], []>} : vector<2x32xbf16>, vector<32x32xbf16>, vector<2x32xf32> -> vector<2x32xf32>
    %310 = arith.addf %308, %309 : vector<2x32xf32>
    %311 = arith.negf %310 : vector<2x32xf32>
    %312 = math.exp %311 : vector<2x32xf32>
    %cst_81 = arith.constant 1.000000e+00 : f32
    %313 = vector.broadcast %cst_81 : f32 to vector<2x32xf32>
    %314 = arith.addf %313, %312 : vector<2x32xf32>
    %315 = arith.divf %313, %314 : vector<2x32xf32>
    %316 = vector.extract_strided_slice %297 {offsets = [0, 0, 0], sizes = [1, 2, 32], strides = [1, 1, 1]} : vector<6x2x32xf32> to vector<1x2x32xf32>
    %317 = vector.shape_cast %316 : vector<1x2x32xf32> to vector<2x32xf32>
    %cst_82 = arith.constant dense<0.000000e+00> : vector<2x32xf32>
    %318 = tpu.matmul %306, %301, %cst_82 {dimension_numbers = #tpu.dot_dimension_numbers<[1], [0], [0], [1], [0, 0, 1, 1], [], []>} : vector<2x32xbf16>, vector<32x32xbf16>, vector<2x32xf32> -> vector<2x32xf32>
    %319 = arith.addf %317, %318 : vector<2x32xf32>
    %320 = arith.negf %319 : vector<2x32xf32>
    %321 = math.exp %320 : vector<2x32xf32>
    %cst_83 = arith.constant 1.000000e+00 : f32
    %322 = vector.broadcast %cst_83 : f32 to vector<2x32xf32>
    %323 = arith.addf %322, %321 : vector<2x32xf32>
    %324 = arith.divf %322, %323 : vector<2x32xf32>
    %325 = vector.extract_strided_slice %298 {offsets = [0, 0, 0], sizes = [1, 2, 32], strides = [1, 1, 1]} : vector<6x2x32xf32> to vector<1x2x32xf32>
    %326 = vector.shape_cast %325 : vector<1x2x32xf32> to vector<2x32xf32>
    %cst_84 = arith.constant dense<0.000000e+00> : vector<2x32xf32>
    %327 = tpu.matmul %306, %302, %cst_84 {dimension_numbers = #tpu.dot_dimension_numbers<[1], [0], [0], [1], [0, 0, 1, 1], [], []>} : vector<2x32xbf16>, vector<32x32xbf16>, vector<2x32xf32> -> vector<2x32xf32>
    %328 = arith.addf %326, %327 : vector<2x32xf32>
    %329 = math.tanh %328 : vector<2x32xf32>
    %330 = vector.extract_strided_slice %299 {offsets = [0, 0, 0], sizes = [1, 2, 32], strides = [1, 1, 1]} : vector<6x2x32xf32> to vector<1x2x32xf32>
    %331 = vector.shape_cast %330 : vector<1x2x32xf32> to vector<2x32xf32>
    %cst_85 = arith.constant dense<0.000000e+00> : vector<2x32xf32>
    %332 = tpu.matmul %306, %303, %cst_85 {dimension_numbers = #tpu.dot_dimension_numbers<[1], [0], [0], [1], [0, 0, 1, 1], [], []>} : vector<2x32xbf16>, vector<32x32xbf16>, vector<2x32xf32> -> vector<2x32xf32>
    %333 = arith.addf %331, %332 : vector<2x32xf32>
    %334 = arith.negf %333 : vector<2x32xf32>
    %335 = math.exp %334 : vector<2x32xf32>
    %cst_86 = arith.constant 1.000000e+00 : f32
    %336 = vector.broadcast %cst_86 : f32 to vector<2x32xf32>
    %337 = arith.addf %336, %335 : vector<2x32xf32>
    %338 = arith.divf %336, %337 : vector<2x32xf32>
    %339 = arith.mulf %324, %305 : vector<2x32xf32>
    %340 = arith.mulf %315, %329 : vector<2x32xf32>
    %341 = arith.addf %339, %340 : vector<2x32xf32>
    %342 = math.tanh %341 : vector<2x32xf32>
    %343 = arith.mulf %338, %342 : vector<2x32xf32>
    %344 = arith.truncf %343 : vector<2x32xf32> to vector<2x32xbf16>
    %345 = vector.extract_strided_slice %296 {offsets = [1, 0, 0], sizes = [1, 2, 32], strides = [1, 1, 1]} : vector<6x2x32xf32> to vector<1x2x32xf32>
    %346 = vector.shape_cast %345 : vector<1x2x32xf32> to vector<2x32xf32>
    %cst_87 = arith.constant dense<0.000000e+00> : vector<2x32xf32>
    %347 = tpu.matmul %344, %300, %cst_87 {dimension_numbers = #tpu.dot_dimension_numbers<[1], [0], [0], [1], [0, 0, 1, 1], [], []>} : vector<2x32xbf16>, vector<32x32xbf16>, vector<2x32xf32> -> vector<2x32xf32>
    %348 = arith.addf %346, %347 : vector<2x32xf32>
    %349 = arith.negf %348 : vector<2x32xf32>
    %350 = math.exp %349 : vector<2x32xf32>
    %cst_88 = arith.constant 1.000000e+00 : f32
    %351 = vector.broadcast %cst_88 : f32 to vector<2x32xf32>
    %352 = arith.addf %351, %350 : vector<2x32xf32>
    %353 = arith.divf %351, %352 : vector<2x32xf32>
    %354 = vector.extract_strided_slice %297 {offsets = [1, 0, 0], sizes = [1, 2, 32], strides = [1, 1, 1]} : vector<6x2x32xf32> to vector<1x2x32xf32>
    %355 = vector.shape_cast %354 : vector<1x2x32xf32> to vector<2x32xf32>
    %cst_89 = arith.constant dense<0.000000e+00> : vector<2x32xf32>
    %356 = tpu.matmul %344, %301, %cst_89 {dimension_numbers = #tpu.dot_dimension_numbers<[1], [0], [0], [1], [0, 0, 1, 1], [], []>} : vector<2x32xbf16>, vector<32x32xbf16>, vector<2x32xf32> -> vector<2x32xf32>
    %357 = arith.addf %355, %356 : vector<2x32xf32>
    %358 = arith.negf %357 : vector<2x32xf32>
    %359 = math.exp %358 : vector<2x32xf32>
    %cst_90 = arith.constant 1.000000e+00 : f32
    %360 = vector.broadcast %cst_90 : f32 to vector<2x32xf32>
    %361 = arith.addf %360, %359 : vector<2x32xf32>
    %362 = arith.divf %360, %361 : vector<2x32xf32>
    %363 = vector.extract_strided_slice %298 {offsets = [1, 0, 0], sizes = [1, 2, 32], strides = [1, 1, 1]} : vector<6x2x32xf32> to vector<1x2x32xf32>
    %364 = vector.shape_cast %363 : vector<1x2x32xf32> to vector<2x32xf32>
    %cst_91 = arith.constant dense<0.000000e+00> : vector<2x32xf32>
    %365 = tpu.matmul %344, %302, %cst_91 {dimension_numbers = #tpu.dot_dimension_numbers<[1], [0], [0], [1], [0, 0, 1, 1], [], []>} : vector<2x32xbf16>, vector<32x32xbf16>, vector<2x32xf32> -> vector<2x32xf32>
    %366 = arith.addf %364, %365 : vector<2x32xf32>
    %367 = math.tanh %366 : vector<2x32xf32>
    %368 = vector.extract_strided_slice %299 {offsets = [1, 0, 0], sizes = [1, 2, 32], strides = [1, 1, 1]} : vector<6x2x32xf32> to vector<1x2x32xf32>
    %369 = vector.shape_cast %368 : vector<1x2x32xf32> to vector<2x32xf32>
    %cst_92 = arith.constant dense<0.000000e+00> : vector<2x32xf32>
    %370 = tpu.matmul %344, %303, %cst_92 {dimension_numbers = #tpu.dot_dimension_numbers<[1], [0], [0], [1], [0, 0, 1, 1], [], []>} : vector<2x32xbf16>, vector<32x32xbf16>, vector<2x32xf32> -> vector<2x32xf32>
    %371 = arith.addf %369, %370 : vector<2x32xf32>
    %372 = arith.negf %371 : vector<2x32xf32>
    %373 = math.exp %372 : vector<2x32xf32>
    %cst_93 = arith.constant 1.000000e+00 : f32
    %374 = vector.broadcast %cst_93 : f32 to vector<2x32xf32>
    %375 = arith.addf %374, %373 : vector<2x32xf32>
    %376 = arith.divf %374, %375 : vector<2x32xf32>
    %377 = arith.mulf %362, %341 : vector<2x32xf32>
    %378 = arith.mulf %353, %367 : vector<2x32xf32>
    %379 = arith.addf %377, %378 : vector<2x32xf32>
    %380 = math.tanh %379 : vector<2x32xf32>
    %381 = arith.mulf %376, %380 : vector<2x32xf32>
    %382 = arith.truncf %381 : vector<2x32xf32> to vector<2x32xbf16>
    %383 = vector.extract_strided_slice %296 {offsets = [2, 0, 0], sizes = [1, 2, 32], strides = [1, 1, 1]} : vector<6x2x32xf32> to vector<1x2x32xf32>
    %384 = vector.shape_cast %383 : vector<1x2x32xf32> to vector<2x32xf32>
    %cst_94 = arith.constant dense<0.000000e+00> : vector<2x32xf32>
    %385 = tpu.matmul %382, %300, %cst_94 {dimension_numbers = #tpu.dot_dimension_numbers<[1], [0], [0], [1], [0, 0, 1, 1], [], []>} : vector<2x32xbf16>, vector<32x32xbf16>, vector<2x32xf32> -> vector<2x32xf32>
    %386 = arith.addf %384, %385 : vector<2x32xf32>
    %387 = arith.negf %386 : vector<2x32xf32>
    %388 = math.exp %387 : vector<2x32xf32>
    %cst_95 = arith.constant 1.000000e+00 : f32
    %389 = vector.broadcast %cst_95 : f32 to vector<2x32xf32>
    %390 = arith.addf %389, %388 : vector<2x32xf32>
    %391 = arith.divf %389, %390 : vector<2x32xf32>
    %392 = vector.extract_strided_slice %297 {offsets = [2, 0, 0], sizes = [1, 2, 32], strides = [1, 1, 1]} : vector<6x2x32xf32> to vector<1x2x32xf32>
    %393 = vector.shape_cast %392 : vector<1x2x32xf32> to vector<2x32xf32>
    %cst_96 = arith.constant dense<0.000000e+00> : vector<2x32xf32>
    %394 = tpu.matmul %382, %301, %cst_96 {dimension_numbers = #tpu.dot_dimension_numbers<[1], [0], [0], [1], [0, 0, 1, 1], [], []>} : vector<2x32xbf16>, vector<32x32xbf16>, vector<2x32xf32> -> vector<2x32xf32>
    %395 = arith.addf %393, %394 : vector<2x32xf32>
    %396 = arith.negf %395 : vector<2x32xf32>
    %397 = math.exp %396 : vector<2x32xf32>
    %cst_97 = arith.constant 1.000000e+00 : f32
    %398 = vector.broadcast %cst_97 : f32 to vector<2x32xf32>
    %399 = arith.addf %398, %397 : vector<2x32xf32>
    %400 = arith.divf %398, %399 : vector<2x32xf32>
    %401 = vector.extract_strided_slice %298 {offsets = [2, 0, 0], sizes = [1, 2, 32], strides = [1, 1, 1]} : vector<6x2x32xf32> to vector<1x2x32xf32>
    %402 = vector.shape_cast %401 : vector<1x2x32xf32> to vector<2x32xf32>
    %cst_98 = arith.constant dense<0.000000e+00> : vector<2x32xf32>
    %403 = tpu.matmul %382, %302, %cst_98 {dimension_numbers = #tpu.dot_dimension_numbers<[1], [0], [0], [1], [0, 0, 1, 1], [], []>} : vector<2x32xbf16>, vector<32x32xbf16>, vector<2x32xf32> -> vector<2x32xf32>
    %404 = arith.addf %402, %403 : vector<2x32xf32>
    %405 = math.tanh %404 : vector<2x32xf32>
    %406 = vector.extract_strided_slice %299 {offsets = [2, 0, 0], sizes = [1, 2, 32], strides = [1, 1, 1]} : vector<6x2x32xf32> to vector<1x2x32xf32>
    %407 = vector.shape_cast %406 : vector<1x2x32xf32> to vector<2x32xf32>
    %cst_99 = arith.constant dense<0.000000e+00> : vector<2x32xf32>
    %408 = tpu.matmul %382, %303, %cst_99 {dimension_numbers = #tpu.dot_dimension_numbers<[1], [0], [0], [1], [0, 0, 1, 1], [], []>} : vector<2x32xbf16>, vector<32x32xbf16>, vector<2x32xf32> -> vector<2x32xf32>
    %409 = arith.addf %407, %408 : vector<2x32xf32>
    %410 = arith.negf %409 : vector<2x32xf32>
    %411 = math.exp %410 : vector<2x32xf32>
    %cst_100 = arith.constant 1.000000e+00 : f32
    %412 = vector.broadcast %cst_100 : f32 to vector<2x32xf32>
    %413 = arith.addf %412, %411 : vector<2x32xf32>
    %414 = arith.divf %412, %413 : vector<2x32xf32>
    %415 = arith.mulf %400, %379 : vector<2x32xf32>
    %416 = arith.mulf %391, %405 : vector<2x32xf32>
    %417 = arith.addf %415, %416 : vector<2x32xf32>
    %418 = math.tanh %417 : vector<2x32xf32>
    %419 = arith.mulf %414, %418 : vector<2x32xf32>
    %420 = arith.truncf %419 : vector<2x32xf32> to vector<2x32xbf16>
    %421 = vector.extract_strided_slice %296 {offsets = [3, 0, 0], sizes = [1, 2, 32], strides = [1, 1, 1]} : vector<6x2x32xf32> to vector<1x2x32xf32>
    %422 = vector.shape_cast %421 : vector<1x2x32xf32> to vector<2x32xf32>
    %cst_101 = arith.constant dense<0.000000e+00> : vector<2x32xf32>
    %423 = tpu.matmul %420, %300, %cst_101 {dimension_numbers = #tpu.dot_dimension_numbers<[1], [0], [0], [1], [0, 0, 1, 1], [], []>} : vector<2x32xbf16>, vector<32x32xbf16>, vector<2x32xf32> -> vector<2x32xf32>
    %424 = arith.addf %422, %423 : vector<2x32xf32>
    %425 = arith.negf %424 : vector<2x32xf32>
    %426 = math.exp %425 : vector<2x32xf32>
    %cst_102 = arith.constant 1.000000e+00 : f32
    %427 = vector.broadcast %cst_102 : f32 to vector<2x32xf32>
    %428 = arith.addf %427, %426 : vector<2x32xf32>
    %429 = arith.divf %427, %428 : vector<2x32xf32>
    %430 = vector.extract_strided_slice %297 {offsets = [3, 0, 0], sizes = [1, 2, 32], strides = [1, 1, 1]} : vector<6x2x32xf32> to vector<1x2x32xf32>
    %431 = vector.shape_cast %430 : vector<1x2x32xf32> to vector<2x32xf32>
    %cst_103 = arith.constant dense<0.000000e+00> : vector<2x32xf32>
    %432 = tpu.matmul %420, %301, %cst_103 {dimension_numbers = #tpu.dot_dimension_numbers<[1], [0], [0], [1], [0, 0, 1, 1], [], []>} : vector<2x32xbf16>, vector<32x32xbf16>, vector<2x32xf32> -> vector<2x32xf32>
    %433 = arith.addf %431, %432 : vector<2x32xf32>
    %434 = arith.negf %433 : vector<2x32xf32>
    %435 = math.exp %434 : vector<2x32xf32>
    %cst_104 = arith.constant 1.000000e+00 : f32
    %436 = vector.broadcast %cst_104 : f32 to vector<2x32xf32>
    %437 = arith.addf %436, %435 : vector<2x32xf32>
    %438 = arith.divf %436, %437 : vector<2x32xf32>
    %439 = vector.extract_strided_slice %298 {offsets = [3, 0, 0], sizes = [1, 2, 32], strides = [1, 1, 1]} : vector<6x2x32xf32> to vector<1x2x32xf32>
    %440 = vector.shape_cast %439 : vector<1x2x32xf32> to vector<2x32xf32>
    %cst_105 = arith.constant dense<0.000000e+00> : vector<2x32xf32>
    %441 = tpu.matmul %420, %302, %cst_105 {dimension_numbers = #tpu.dot_dimension_numbers<[1], [0], [0], [1], [0, 0, 1, 1], [], []>} : vector<2x32xbf16>, vector<32x32xbf16>, vector<2x32xf32> -> vector<2x32xf32>
    %442 = arith.addf %440, %441 : vector<2x32xf32>
    %443 = math.tanh %442 : vector<2x32xf32>
    %444 = vector.extract_strided_slice %299 {offsets = [3, 0, 0], sizes = [1, 2, 32], strides = [1, 1, 1]} : vector<6x2x32xf32> to vector<1x2x32xf32>
    %445 = vector.shape_cast %444 : vector<1x2x32xf32> to vector<2x32xf32>
    %cst_106 = arith.constant dense<0.000000e+00> : vector<2x32xf32>
    %446 = tpu.matmul %420, %303, %cst_106 {dimension_numbers = #tpu.dot_dimension_numbers<[1], [0], [0], [1], [0, 0, 1, 1], [], []>} : vector<2x32xbf16>, vector<32x32xbf16>, vector<2x32xf32> -> vector<2x32xf32>
    %447 = arith.addf %445, %446 : vector<2x32xf32>
    %448 = arith.negf %447 : vector<2x32xf32>
    %449 = math.exp %448 : vector<2x32xf32>
    %cst_107 = arith.constant 1.000000e+00 : f32
    %450 = vector.broadcast %cst_107 : f32 to vector<2x32xf32>
    %451 = arith.addf %450, %449 : vector<2x32xf32>
    %452 = arith.divf %450, %451 : vector<2x32xf32>
    %453 = arith.mulf %438, %417 : vector<2x32xf32>
    %454 = arith.mulf %429, %443 : vector<2x32xf32>
    %455 = arith.addf %453, %454 : vector<2x32xf32>
    %456 = math.tanh %455 : vector<2x32xf32>
    %457 = arith.mulf %452, %456 : vector<2x32xf32>
    %458 = arith.truncf %457 : vector<2x32xf32> to vector<2x32xbf16>
    %459 = vector.extract_strided_slice %296 {offsets = [4, 0, 0], sizes = [1, 2, 32], strides = [1, 1, 1]} : vector<6x2x32xf32> to vector<1x2x32xf32>
    %460 = vector.shape_cast %459 : vector<1x2x32xf32> to vector<2x32xf32>
    %cst_108 = arith.constant dense<0.000000e+00> : vector<2x32xf32>
    %461 = tpu.matmul %458, %300, %cst_108 {dimension_numbers = #tpu.dot_dimension_numbers<[1], [0], [0], [1], [0, 0, 1, 1], [], []>} : vector<2x32xbf16>, vector<32x32xbf16>, vector<2x32xf32> -> vector<2x32xf32>
    %462 = arith.addf %460, %461 : vector<2x32xf32>
    %463 = arith.negf %462 : vector<2x32xf32>
    %464 = math.exp %463 : vector<2x32xf32>
    %cst_109 = arith.constant 1.000000e+00 : f32
    %465 = vector.broadcast %cst_109 : f32 to vector<2x32xf32>
    %466 = arith.addf %465, %464 : vector<2x32xf32>
    %467 = arith.divf %465, %466 : vector<2x32xf32>
    %468 = vector.extract_strided_slice %297 {offsets = [4, 0, 0], sizes = [1, 2, 32], strides = [1, 1, 1]} : vector<6x2x32xf32> to vector<1x2x32xf32>
    %469 = vector.shape_cast %468 : vector<1x2x32xf32> to vector<2x32xf32>
    %cst_110 = arith.constant dense<0.000000e+00> : vector<2x32xf32>
    %470 = tpu.matmul %458, %301, %cst_110 {dimension_numbers = #tpu.dot_dimension_numbers<[1], [0], [0], [1], [0, 0, 1, 1], [], []>} : vector<2x32xbf16>, vector<32x32xbf16>, vector<2x32xf32> -> vector<2x32xf32>
    %471 = arith.addf %469, %470 : vector<2x32xf32>
    %472 = arith.negf %471 : vector<2x32xf32>
    %473 = math.exp %472 : vector<2x32xf32>
    %cst_111 = arith.constant 1.000000e+00 : f32
    %474 = vector.broadcast %cst_111 : f32 to vector<2x32xf32>
    %475 = arith.addf %474, %473 : vector<2x32xf32>
    %476 = arith.divf %474, %475 : vector<2x32xf32>
    %477 = vector.extract_strided_slice %298 {offsets = [4, 0, 0], sizes = [1, 2, 32], strides = [1, 1, 1]} : vector<6x2x32xf32> to vector<1x2x32xf32>
    %478 = vector.shape_cast %477 : vector<1x2x32xf32> to vector<2x32xf32>
    %cst_112 = arith.constant dense<0.000000e+00> : vector<2x32xf32>
    %479 = tpu.matmul %458, %302, %cst_112 {dimension_numbers = #tpu.dot_dimension_numbers<[1], [0], [0], [1], [0, 0, 1, 1], [], []>} : vector<2x32xbf16>, vector<32x32xbf16>, vector<2x32xf32> -> vector<2x32xf32>
    %480 = arith.addf %478, %479 : vector<2x32xf32>
    %481 = math.tanh %480 : vector<2x32xf32>
    %482 = vector.extract_strided_slice %299 {offsets = [4, 0, 0], sizes = [1, 2, 32], strides = [1, 1, 1]} : vector<6x2x32xf32> to vector<1x2x32xf32>
    %483 = vector.shape_cast %482 : vector<1x2x32xf32> to vector<2x32xf32>
    %cst_113 = arith.constant dense<0.000000e+00> : vector<2x32xf32>
    %484 = tpu.matmul %458, %303, %cst_113 {dimension_numbers = #tpu.dot_dimension_numbers<[1], [0], [0], [1], [0, 0, 1, 1], [], []>} : vector<2x32xbf16>, vector<32x32xbf16>, vector<2x32xf32> -> vector<2x32xf32>
    %485 = arith.addf %483, %484 : vector<2x32xf32>
    %486 = arith.negf %485 : vector<2x32xf32>
    %487 = math.exp %486 : vector<2x32xf32>
    %cst_114 = arith.constant 1.000000e+00 : f32
    %488 = vector.broadcast %cst_114 : f32 to vector<2x32xf32>
    %489 = arith.addf %488, %487 : vector<2x32xf32>
    %490 = arith.divf %488, %489 : vector<2x32xf32>
    %491 = arith.mulf %476, %455 : vector<2x32xf32>
    %492 = arith.mulf %467, %481 : vector<2x32xf32>
    %493 = arith.addf %491, %492 : vector<2x32xf32>
    %494 = math.tanh %493 : vector<2x32xf32>
    %495 = arith.mulf %490, %494 : vector<2x32xf32>
    %496 = arith.truncf %495 : vector<2x32xf32> to vector<2x32xbf16>
    %497 = vector.extract_strided_slice %296 {offsets = [5, 0, 0], sizes = [1, 2, 32], strides = [1, 1, 1]} : vector<6x2x32xf32> to vector<1x2x32xf32>
    %498 = vector.shape_cast %497 : vector<1x2x32xf32> to vector<2x32xf32>
    %cst_115 = arith.constant dense<0.000000e+00> : vector<2x32xf32>
    %499 = tpu.matmul %496, %300, %cst_115 {dimension_numbers = #tpu.dot_dimension_numbers<[1], [0], [0], [1], [0, 0, 1, 1], [], []>} : vector<2x32xbf16>, vector<32x32xbf16>, vector<2x32xf32> -> vector<2x32xf32>
    %500 = arith.addf %498, %499 : vector<2x32xf32>
    %501 = arith.negf %500 : vector<2x32xf32>
    %502 = math.exp %501 : vector<2x32xf32>
    %cst_116 = arith.constant 1.000000e+00 : f32
    %503 = vector.broadcast %cst_116 : f32 to vector<2x32xf32>
    %504 = arith.addf %503, %502 : vector<2x32xf32>
    %505 = arith.divf %503, %504 : vector<2x32xf32>
    %506 = vector.extract_strided_slice %297 {offsets = [5, 0, 0], sizes = [1, 2, 32], strides = [1, 1, 1]} : vector<6x2x32xf32> to vector<1x2x32xf32>
    %507 = vector.shape_cast %506 : vector<1x2x32xf32> to vector<2x32xf32>
    %cst_117 = arith.constant dense<0.000000e+00> : vector<2x32xf32>
    %508 = tpu.matmul %496, %301, %cst_117 {dimension_numbers = #tpu.dot_dimension_numbers<[1], [0], [0], [1], [0, 0, 1, 1], [], []>} : vector<2x32xbf16>, vector<32x32xbf16>, vector<2x32xf32> -> vector<2x32xf32>
    %509 = arith.addf %507, %508 : vector<2x32xf32>
    %510 = arith.negf %509 : vector<2x32xf32>
    %511 = math.exp %510 : vector<2x32xf32>
    %cst_118 = arith.constant 1.000000e+00 : f32
    %512 = vector.broadcast %cst_118 : f32 to vector<2x32xf32>
    %513 = arith.addf %512, %511 : vector<2x32xf32>
    %514 = arith.divf %512, %513 : vector<2x32xf32>
    %515 = vector.extract_strided_slice %298 {offsets = [5, 0, 0], sizes = [1, 2, 32], strides = [1, 1, 1]} : vector<6x2x32xf32> to vector<1x2x32xf32>
    %516 = vector.shape_cast %515 : vector<1x2x32xf32> to vector<2x32xf32>
    %cst_119 = arith.constant dense<0.000000e+00> : vector<2x32xf32>
    %517 = tpu.matmul %496, %302, %cst_119 {dimension_numbers = #tpu.dot_dimension_numbers<[1], [0], [0], [1], [0, 0, 1, 1], [], []>} : vector<2x32xbf16>, vector<32x32xbf16>, vector<2x32xf32> -> vector<2x32xf32>
    %518 = arith.addf %516, %517 : vector<2x32xf32>
    %519 = math.tanh %518 : vector<2x32xf32>
    %520 = vector.extract_strided_slice %299 {offsets = [5, 0, 0], sizes = [1, 2, 32], strides = [1, 1, 1]} : vector<6x2x32xf32> to vector<1x2x32xf32>
    %521 = vector.shape_cast %520 : vector<1x2x32xf32> to vector<2x32xf32>
    %cst_120 = arith.constant dense<0.000000e+00> : vector<2x32xf32>
    %522 = tpu.matmul %496, %303, %cst_120 {dimension_numbers = #tpu.dot_dimension_numbers<[1], [0], [0], [1], [0, 0, 1, 1], [], []>} : vector<2x32xbf16>, vector<32x32xbf16>, vector<2x32xf32> -> vector<2x32xf32>
    %523 = arith.addf %521, %522 : vector<2x32xf32>
    %524 = arith.negf %523 : vector<2x32xf32>
    %525 = math.exp %524 : vector<2x32xf32>
    %cst_121 = arith.constant 1.000000e+00 : f32
    %526 = vector.broadcast %cst_121 : f32 to vector<2x32xf32>
    %527 = arith.addf %526, %525 : vector<2x32xf32>
    %528 = arith.divf %526, %527 : vector<2x32xf32>
    %529 = arith.mulf %514, %493 : vector<2x32xf32>
    %530 = arith.mulf %505, %519 : vector<2x32xf32>
    %531 = arith.addf %529, %530 : vector<2x32xf32>
    %532 = math.tanh %531 : vector<2x32xf32>
    %533 = arith.mulf %528, %532 : vector<2x32xf32>
    %534 = vector.shape_cast %343 : vector<2x32xf32> to vector<1x2x32xf32>
    %535 = vector.shape_cast %381 : vector<2x32xf32> to vector<1x2x32xf32>
    %536 = vector.shape_cast %419 : vector<2x32xf32> to vector<1x2x32xf32>
    %537 = vector.shape_cast %457 : vector<2x32xf32> to vector<1x2x32xf32>
    %538 = vector.shape_cast %495 : vector<2x32xf32> to vector<1x2x32xf32>
    %539 = vector.shape_cast %533 : vector<2x32xf32> to vector<1x2x32xf32>
    %540 = tpu.concatenate %534, %535, %536, %537, %538, %539 in 0 : vector<1x2x32xf32>, vector<1x2x32xf32>, vector<1x2x32xf32>, vector<1x2x32xf32>, vector<1x2x32xf32>, vector<1x2x32xf32> -> vector<6x2x32xf32>
    %c0_122 = arith.constant 0 : index
    %c0_123 = arith.constant 0 : index
    %c0_124 = arith.constant 0 : index
    %541 = vector.load %arg12[%c0_122, %c0_123, %c0_124] : memref<1x32x128xbf16, #tpu.memory_space<vmem>>, vector<1x32x128xbf16>
    %542 = vector.shape_cast %541 : vector<1x32x128xbf16> to vector<32x128xbf16>
    %c0_125 = arith.constant 0 : index
    %c0_126 = arith.constant 0 : index
    %c0_127 = arith.constant 0 : index
    %543 = vector.load %arg13[%c0_125, %c0_126, %c0_127] : memref<1x32x128xbf16, #tpu.memory_space<vmem>>, vector<1x32x128xbf16>
    %544 = vector.shape_cast %543 : vector<1x32x128xbf16> to vector<32x128xbf16>
    %c0_128 = arith.constant 0 : index
    %c0_129 = arith.constant 0 : index
    %c0_130 = arith.constant 0 : index
    %545 = vector.load %arg14[%c0_128, %c0_129, %c0_130] : memref<1x1x128xf32, #tpu.memory_space<vmem>>, vector<1x1x128xf32>
    %546 = vector.shape_cast %545 : vector<1x1x128xf32> to vector<1x128xf32>
    %547 = arith.truncf %540 : vector<6x2x32xf32> to vector<6x2x32xbf16>
    "tpu.trace_start"() <{level = 10 : i32, message = "tbd,dh->tbh"}> : () -> ()
    %cst_131 = arith.constant dense<0.000000e+00> : vector<6x2x128xf32>
    %548 = tpu.matmul %547, %542, %cst_131 {dimension_numbers = #tpu.dot_dimension_numbers<[2], [0], [0, 1], [1], [0, 0, 0, 1, 1, 1], [], []>} : vector<6x2x32xbf16>, vector<32x128xbf16>, vector<6x2x128xf32> -> vector<6x2x128xf32>
    "tpu.trace_stop"() : () -> ()
    %549 = vector.shape_cast %546 : vector<1x128xf32> to vector<1x1x128xf32>
    %550 = vector.broadcast %549 : vector<1x1x128xf32> to vector<6x2x128xf32>
    %551 = arith.addf %548, %550 : vector<6x2x128xf32>
    %552 = vector.extract_strided_slice %551 {offsets = [0, 0, 0], sizes = [6, 2, 32], strides = [1, 1, 1]} : vector<6x2x128xf32> to vector<6x2x32xf32>
    %553 = vector.extract_strided_slice %551 {offsets = [0, 0, 32], sizes = [6, 2, 32], strides = [1, 1, 1]} : vector<6x2x128xf32> to vector<6x2x32xf32>
    %554 = vector.extract_strided_slice %551 {offsets = [0, 0, 64], sizes = [6, 2, 32], strides = [1, 1, 1]} : vector<6x2x128xf32> to vector<6x2x32xf32>
    %555 = vector.extract_strided_slice %551 {offsets = [0, 0, 96], sizes = [6, 2, 32], strides = [1, 1, 1]} : vector<6x2x128xf32> to vector<6x2x32xf32>
    %556 = vector.extract_strided_slice %544 {offsets = [0, 0], sizes = [32, 32], strides = [1, 1]} : vector<32x128xbf16> to vector<32x32xbf16>
    %557 = vector.extract_strided_slice %544 {offsets = [0, 32], sizes = [32, 32], strides = [1, 1]} : vector<32x128xbf16> to vector<32x32xbf16>
    %558 = vector.extract_strided_slice %544 {offsets = [0, 64], sizes = [32, 32], strides = [1, 1]} : vector<32x128xbf16> to vector<32x32xbf16>
    %559 = vector.extract_strided_slice %544 {offsets = [0, 96], sizes = [32, 32], strides = [1, 1]} : vector<32x128xbf16> to vector<32x32xbf16>
    %cst_132 = arith.constant 0.000000e+00 : f32
    %560 = vector.broadcast %cst_132 : f32 to vector<2x32xf32>
    %cst_133 = arith.constant 0.000000e+00 : f32
    %561 = vector.broadcast %cst_133 : f32 to vector<2x32xf32>
    %562 = arith.truncf %560 : vector<2x32xf32> to vector<2x32xbf16>
    %563 = vector.extract_strided_slice %552 {offsets = [0, 0, 0], sizes = [1, 2, 32], strides = [1, 1, 1]} : vector<6x2x32xf32> to vector<1x2x32xf32>
    %564 = vector.shape_cast %563 : vector<1x2x32xf32> to vector<2x32xf32>
    %cst_134 = arith.constant dense<0.000000e+00> : vector<2x32xf32>
    %565 = tpu.matmul %562, %556, %cst_134 {dimension_numbers = #tpu.dot_dimension_numbers<[1], [0], [0], [1], [0, 0, 1, 1], [], []>} : vector<2x32xbf16>, vector<32x32xbf16>, vector<2x32xf32> -> vector<2x32xf32>
    %566 = arith.addf %564, %565 : vector<2x32xf32>
    %567 = arith.negf %566 : vector<2x32xf32>
    %568 = math.exp %567 : vector<2x32xf32>
    %cst_135 = arith.constant 1.000000e+00 : f32
    %569 = vector.broadcast %cst_135 : f32 to vector<2x32xf32>
    %570 = arith.addf %569, %568 : vector<2x32xf32>
    %571 = arith.divf %569, %570 : vector<2x32xf32>
    %572 = vector.extract_strided_slice %553 {offsets = [0, 0, 0], sizes = [1, 2, 32], strides = [1, 1, 1]} : vector<6x2x32xf32> to vector<1x2x32xf32>
    %573 = vector.shape_cast %572 : vector<1x2x32xf32> to vector<2x32xf32>
    %cst_136 = arith.constant dense<0.000000e+00> : vector<2x32xf32>
    %574 = tpu.matmul %562, %557, %cst_136 {dimension_numbers = #tpu.dot_dimension_numbers<[1], [0], [0], [1], [0, 0, 1, 1], [], []>} : vector<2x32xbf16>, vector<32x32xbf16>, vector<2x32xf32> -> vector<2x32xf32>
    %575 = arith.addf %573, %574 : vector<2x32xf32>
    %576 = arith.negf %575 : vector<2x32xf32>
    %577 = math.exp %576 : vector<2x32xf32>
    %cst_137 = arith.constant 1.000000e+00 : f32
    %578 = vector.broadcast %cst_137 : f32 to vector<2x32xf32>
    %579 = arith.addf %578, %577 : vector<2x32xf32>
    %580 = arith.divf %578, %579 : vector<2x32xf32>
    %581 = vector.extract_strided_slice %554 {offsets = [0, 0, 0], sizes = [1, 2, 32], strides = [1, 1, 1]} : vector<6x2x32xf32> to vector<1x2x32xf32>
    %582 = vector.shape_cast %581 : vector<1x2x32xf32> to vector<2x32xf32>
    %cst_138 = arith.constant dense<0.000000e+00> : vector<2x32xf32>
    %583 = tpu.matmul %562, %558, %cst_138 {dimension_numbers = #tpu.dot_dimension_numbers<[1], [0], [0], [1], [0, 0, 1, 1], [], []>} : vector<2x32xbf16>, vector<32x32xbf16>, vector<2x32xf32> -> vector<2x32xf32>
    %584 = arith.addf %582, %583 : vector<2x32xf32>
    %585 = math.tanh %584 : vector<2x32xf32>
    %586 = vector.extract_strided_slice %555 {offsets = [0, 0, 0], sizes = [1, 2, 32], strides = [1, 1, 1]} : vector<6x2x32xf32> to vector<1x2x32xf32>
    %587 = vector.shape_cast %586 : vector<1x2x32xf32> to vector<2x32xf32>
    %cst_139 = arith.constant dense<0.000000e+00> : vector<2x32xf32>
    %588 = tpu.matmul %562, %559, %cst_139 {dimension_numbers = #tpu.dot_dimension_numbers<[1], [0], [0], [1], [0, 0, 1, 1], [], []>} : vector<2x32xbf16>, vector<32x32xbf16>, vector<2x32xf32> -> vector<2x32xf32>
    %589 = arith.addf %587, %588 : vector<2x32xf32>
    %590 = arith.negf %589 : vector<2x32xf32>
    %591 = math.exp %590 : vector<2x32xf32>
    %cst_140 = arith.constant 1.000000e+00 : f32
    %592 = vector.broadcast %cst_140 : f32 to vector<2x32xf32>
    %593 = arith.addf %592, %591 : vector<2x32xf32>
    %594 = arith.divf %592, %593 : vector<2x32xf32>
    %595 = arith.mulf %580, %561 : vector<2x32xf32>
    %596 = arith.mulf %571, %585 : vector<2x32xf32>
    %597 = arith.addf %595, %596 : vector<2x32xf32>
    %598 = math.tanh %597 : vector<2x32xf32>
    %599 = arith.mulf %594, %598 : vector<2x32xf32>
    %600 = arith.truncf %599 : vector<2x32xf32> to vector<2x32xbf16>
    %601 = vector.extract_strided_slice %552 {offsets = [1, 0, 0], sizes = [1, 2, 32], strides = [1, 1, 1]} : vector<6x2x32xf32> to vector<1x2x32xf32>
    %602 = vector.shape_cast %601 : vector<1x2x32xf32> to vector<2x32xf32>
    %cst_141 = arith.constant dense<0.000000e+00> : vector<2x32xf32>
    %603 = tpu.matmul %600, %556, %cst_141 {dimension_numbers = #tpu.dot_dimension_numbers<[1], [0], [0], [1], [0, 0, 1, 1], [], []>} : vector<2x32xbf16>, vector<32x32xbf16>, vector<2x32xf32> -> vector<2x32xf32>
    %604 = arith.addf %602, %603 : vector<2x32xf32>
    %605 = arith.negf %604 : vector<2x32xf32>
    %606 = math.exp %605 : vector<2x32xf32>
    %cst_142 = arith.constant 1.000000e+00 : f32
    %607 = vector.broadcast %cst_142 : f32 to vector<2x32xf32>
    %608 = arith.addf %607, %606 : vector<2x32xf32>
    %609 = arith.divf %607, %608 : vector<2x32xf32>
    %610 = vector.extract_strided_slice %553 {offsets = [1, 0, 0], sizes = [1, 2, 32], strides = [1, 1, 1]} : vector<6x2x32xf32> to vector<1x2x32xf32>
    %611 = vector.shape_cast %610 : vector<1x2x32xf32> to vector<2x32xf32>
    %cst_143 = arith.constant dense<0.000000e+00> : vector<2x32xf32>
    %612 = tpu.matmul %600, %557, %cst_143 {dimension_numbers = #tpu.dot_dimension_numbers<[1], [0], [0], [1], [0, 0, 1, 1], [], []>} : vector<2x32xbf16>, vector<32x32xbf16>, vector<2x32xf32> -> vector<2x32xf32>
    %613 = arith.addf %611, %612 : vector<2x32xf32>
    %614 = arith.negf %613 : vector<2x32xf32>
    %615 = math.exp %614 : vector<2x32xf32>
    %cst_144 = arith.constant 1.000000e+00 : f32
    %616 = vector.broadcast %cst_144 : f32 to vector<2x32xf32>
    %617 = arith.addf %616, %615 : vector<2x32xf32>
    %618 = arith.divf %616, %617 : vector<2x32xf32>
    %619 = vector.extract_strided_slice %554 {offsets = [1, 0, 0], sizes = [1, 2, 32], strides = [1, 1, 1]} : vector<6x2x32xf32> to vector<1x2x32xf32>
    %620 = vector.shape_cast %619 : vector<1x2x32xf32> to vector<2x32xf32>
    %cst_145 = arith.constant dense<0.000000e+00> : vector<2x32xf32>
    %621 = tpu.matmul %600, %558, %cst_145 {dimension_numbers = #tpu.dot_dimension_numbers<[1], [0], [0], [1], [0, 0, 1, 1], [], []>} : vector<2x32xbf16>, vector<32x32xbf16>, vector<2x32xf32> -> vector<2x32xf32>
    %622 = arith.addf %620, %621 : vector<2x32xf32>
    %623 = math.tanh %622 : vector<2x32xf32>
    %624 = vector.extract_strided_slice %555 {offsets = [1, 0, 0], sizes = [1, 2, 32], strides = [1, 1, 1]} : vector<6x2x32xf32> to vector<1x2x32xf32>
    %625 = vector.shape_cast %624 : vector<1x2x32xf32> to vector<2x32xf32>
    %cst_146 = arith.constant dense<0.000000e+00> : vector<2x32xf32>
    %626 = tpu.matmul %600, %559, %cst_146 {dimension_numbers = #tpu.dot_dimension_numbers<[1], [0], [0], [1], [0, 0, 1, 1], [], []>} : vector<2x32xbf16>, vector<32x32xbf16>, vector<2x32xf32> -> vector<2x32xf32>
    %627 = arith.addf %625, %626 : vector<2x32xf32>
    %628 = arith.negf %627 : vector<2x32xf32>
    %629 = math.exp %628 : vector<2x32xf32>
    %cst_147 = arith.constant 1.000000e+00 : f32
    %630 = vector.broadcast %cst_147 : f32 to vector<2x32xf32>
    %631 = arith.addf %630, %629 : vector<2x32xf32>
    %632 = arith.divf %630, %631 : vector<2x32xf32>
    %633 = arith.mulf %618, %597 : vector<2x32xf32>
    %634 = arith.mulf %609, %623 : vector<2x32xf32>
    %635 = arith.addf %633, %634 : vector<2x32xf32>
    %636 = math.tanh %635 : vector<2x32xf32>
    %637 = arith.mulf %632, %636 : vector<2x32xf32>
    %638 = arith.truncf %637 : vector<2x32xf32> to vector<2x32xbf16>
    %639 = vector.extract_strided_slice %552 {offsets = [2, 0, 0], sizes = [1, 2, 32], strides = [1, 1, 1]} : vector<6x2x32xf32> to vector<1x2x32xf32>
    %640 = vector.shape_cast %639 : vector<1x2x32xf32> to vector<2x32xf32>
    %cst_148 = arith.constant dense<0.000000e+00> : vector<2x32xf32>
    %641 = tpu.matmul %638, %556, %cst_148 {dimension_numbers = #tpu.dot_dimension_numbers<[1], [0], [0], [1], [0, 0, 1, 1], [], []>} : vector<2x32xbf16>, vector<32x32xbf16>, vector<2x32xf32> -> vector<2x32xf32>
    %642 = arith.addf %640, %641 : vector<2x32xf32>
    %643 = arith.negf %642 : vector<2x32xf32>
    %644 = math.exp %643 : vector<2x32xf32>
    %cst_149 = arith.constant 1.000000e+00 : f32
    %645 = vector.broadcast %cst_149 : f32 to vector<2x32xf32>
    %646 = arith.addf %645, %644 : vector<2x32xf32>
    %647 = arith.divf %645, %646 : vector<2x32xf32>
    %648 = vector.extract_strided_slice %553 {offsets = [2, 0, 0], sizes = [1, 2, 32], strides = [1, 1, 1]} : vector<6x2x32xf32> to vector<1x2x32xf32>
    %649 = vector.shape_cast %648 : vector<1x2x32xf32> to vector<2x32xf32>
    %cst_150 = arith.constant dense<0.000000e+00> : vector<2x32xf32>
    %650 = tpu.matmul %638, %557, %cst_150 {dimension_numbers = #tpu.dot_dimension_numbers<[1], [0], [0], [1], [0, 0, 1, 1], [], []>} : vector<2x32xbf16>, vector<32x32xbf16>, vector<2x32xf32> -> vector<2x32xf32>
    %651 = arith.addf %649, %650 : vector<2x32xf32>
    %652 = arith.negf %651 : vector<2x32xf32>
    %653 = math.exp %652 : vector<2x32xf32>
    %cst_151 = arith.constant 1.000000e+00 : f32
    %654 = vector.broadcast %cst_151 : f32 to vector<2x32xf32>
    %655 = arith.addf %654, %653 : vector<2x32xf32>
    %656 = arith.divf %654, %655 : vector<2x32xf32>
    %657 = vector.extract_strided_slice %554 {offsets = [2, 0, 0], sizes = [1, 2, 32], strides = [1, 1, 1]} : vector<6x2x32xf32> to vector<1x2x32xf32>
    %658 = vector.shape_cast %657 : vector<1x2x32xf32> to vector<2x32xf32>
    %cst_152 = arith.constant dense<0.000000e+00> : vector<2x32xf32>
    %659 = tpu.matmul %638, %558, %cst_152 {dimension_numbers = #tpu.dot_dimension_numbers<[1], [0], [0], [1], [0, 0, 1, 1], [], []>} : vector<2x32xbf16>, vector<32x32xbf16>, vector<2x32xf32> -> vector<2x32xf32>
    %660 = arith.addf %658, %659 : vector<2x32xf32>
    %661 = math.tanh %660 : vector<2x32xf32>
    %662 = vector.extract_strided_slice %555 {offsets = [2, 0, 0], sizes = [1, 2, 32], strides = [1, 1, 1]} : vector<6x2x32xf32> to vector<1x2x32xf32>
    %663 = vector.shape_cast %662 : vector<1x2x32xf32> to vector<2x32xf32>
    %cst_153 = arith.constant dense<0.000000e+00> : vector<2x32xf32>
    %664 = tpu.matmul %638, %559, %cst_153 {dimension_numbers = #tpu.dot_dimension_numbers<[1], [0], [0], [1], [0, 0, 1, 1], [], []>} : vector<2x32xbf16>, vector<32x32xbf16>, vector<2x32xf32> -> vector<2x32xf32>
    %665 = arith.addf %663, %664 : vector<2x32xf32>
    %666 = arith.negf %665 : vector<2x32xf32>
    %667 = math.exp %666 : vector<2x32xf32>
    %cst_154 = arith.constant 1.000000e+00 : f32
    %668 = vector.broadcast %cst_154 : f32 to vector<2x32xf32>
    %669 = arith.addf %668, %667 : vector<2x32xf32>
    %670 = arith.divf %668, %669 : vector<2x32xf32>
    %671 = arith.mulf %656, %635 : vector<2x32xf32>
    %672 = arith.mulf %647, %661 : vector<2x32xf32>
    %673 = arith.addf %671, %672 : vector<2x32xf32>
    %674 = math.tanh %673 : vector<2x32xf32>
    %675 = arith.mulf %670, %674 : vector<2x32xf32>
    %676 = arith.truncf %675 : vector<2x32xf32> to vector<2x32xbf16>
    %677 = vector.extract_strided_slice %552 {offsets = [3, 0, 0], sizes = [1, 2, 32], strides = [1, 1, 1]} : vector<6x2x32xf32> to vector<1x2x32xf32>
    %678 = vector.shape_cast %677 : vector<1x2x32xf32> to vector<2x32xf32>
    %cst_155 = arith.constant dense<0.000000e+00> : vector<2x32xf32>
    %679 = tpu.matmul %676, %556, %cst_155 {dimension_numbers = #tpu.dot_dimension_numbers<[1], [0], [0], [1], [0, 0, 1, 1], [], []>} : vector<2x32xbf16>, vector<32x32xbf16>, vector<2x32xf32> -> vector<2x32xf32>
    %680 = arith.addf %678, %679 : vector<2x32xf32>
    %681 = arith.negf %680 : vector<2x32xf32>
    %682 = math.exp %681 : vector<2x32xf32>
    %cst_156 = arith.constant 1.000000e+00 : f32
    %683 = vector.broadcast %cst_156 : f32 to vector<2x32xf32>
    %684 = arith.addf %683, %682 : vector<2x32xf32>
    %685 = arith.divf %683, %684 : vector<2x32xf32>
    %686 = vector.extract_strided_slice %553 {offsets = [3, 0, 0], sizes = [1, 2, 32], strides = [1, 1, 1]} : vector<6x2x32xf32> to vector<1x2x32xf32>
    %687 = vector.shape_cast %686 : vector<1x2x32xf32> to vector<2x32xf32>
    %cst_157 = arith.constant dense<0.000000e+00> : vector<2x32xf32>
    %688 = tpu.matmul %676, %557, %cst_157 {dimension_numbers = #tpu.dot_dimension_numbers<[1], [0], [0], [1], [0, 0, 1, 1], [], []>} : vector<2x32xbf16>, vector<32x32xbf16>, vector<2x32xf32> -> vector<2x32xf32>
    %689 = arith.addf %687, %688 : vector<2x32xf32>
    %690 = arith.negf %689 : vector<2x32xf32>
    %691 = math.exp %690 : vector<2x32xf32>
    %cst_158 = arith.constant 1.000000e+00 : f32
    %692 = vector.broadcast %cst_158 : f32 to vector<2x32xf32>
    %693 = arith.addf %692, %691 : vector<2x32xf32>
    %694 = arith.divf %692, %693 : vector<2x32xf32>
    %695 = vector.extract_strided_slice %554 {offsets = [3, 0, 0], sizes = [1, 2, 32], strides = [1, 1, 1]} : vector<6x2x32xf32> to vector<1x2x32xf32>
    %696 = vector.shape_cast %695 : vector<1x2x32xf32> to vector<2x32xf32>
    %cst_159 = arith.constant dense<0.000000e+00> : vector<2x32xf32>
    %697 = tpu.matmul %676, %558, %cst_159 {dimension_numbers = #tpu.dot_dimension_numbers<[1], [0], [0], [1], [0, 0, 1, 1], [], []>} : vector<2x32xbf16>, vector<32x32xbf16>, vector<2x32xf32> -> vector<2x32xf32>
    %698 = arith.addf %696, %697 : vector<2x32xf32>
    %699 = math.tanh %698 : vector<2x32xf32>
    %700 = vector.extract_strided_slice %555 {offsets = [3, 0, 0], sizes = [1, 2, 32], strides = [1, 1, 1]} : vector<6x2x32xf32> to vector<1x2x32xf32>
    %701 = vector.shape_cast %700 : vector<1x2x32xf32> to vector<2x32xf32>
    %cst_160 = arith.constant dense<0.000000e+00> : vector<2x32xf32>
    %702 = tpu.matmul %676, %559, %cst_160 {dimension_numbers = #tpu.dot_dimension_numbers<[1], [0], [0], [1], [0, 0, 1, 1], [], []>} : vector<2x32xbf16>, vector<32x32xbf16>, vector<2x32xf32> -> vector<2x32xf32>
    %703 = arith.addf %701, %702 : vector<2x32xf32>
    %704 = arith.negf %703 : vector<2x32xf32>
    %705 = math.exp %704 : vector<2x32xf32>
    %cst_161 = arith.constant 1.000000e+00 : f32
    %706 = vector.broadcast %cst_161 : f32 to vector<2x32xf32>
    %707 = arith.addf %706, %705 : vector<2x32xf32>
    %708 = arith.divf %706, %707 : vector<2x32xf32>
    %709 = arith.mulf %694, %673 : vector<2x32xf32>
    %710 = arith.mulf %685, %699 : vector<2x32xf32>
    %711 = arith.addf %709, %710 : vector<2x32xf32>
    %712 = math.tanh %711 : vector<2x32xf32>
    %713 = arith.mulf %708, %712 : vector<2x32xf32>
    %714 = arith.truncf %713 : vector<2x32xf32> to vector<2x32xbf16>
    %715 = vector.extract_strided_slice %552 {offsets = [4, 0, 0], sizes = [1, 2, 32], strides = [1, 1, 1]} : vector<6x2x32xf32> to vector<1x2x32xf32>
    %716 = vector.shape_cast %715 : vector<1x2x32xf32> to vector<2x32xf32>
    %cst_162 = arith.constant dense<0.000000e+00> : vector<2x32xf32>
    %717 = tpu.matmul %714, %556, %cst_162 {dimension_numbers = #tpu.dot_dimension_numbers<[1], [0], [0], [1], [0, 0, 1, 1], [], []>} : vector<2x32xbf16>, vector<32x32xbf16>, vector<2x32xf32> -> vector<2x32xf32>
    %718 = arith.addf %716, %717 : vector<2x32xf32>
    %719 = arith.negf %718 : vector<2x32xf32>
    %720 = math.exp %719 : vector<2x32xf32>
    %cst_163 = arith.constant 1.000000e+00 : f32
    %721 = vector.broadcast %cst_163 : f32 to vector<2x32xf32>
    %722 = arith.addf %721, %720 : vector<2x32xf32>
    %723 = arith.divf %721, %722 : vector<2x32xf32>
    %724 = vector.extract_strided_slice %553 {offsets = [4, 0, 0], sizes = [1, 2, 32], strides = [1, 1, 1]} : vector<6x2x32xf32> to vector<1x2x32xf32>
    %725 = vector.shape_cast %724 : vector<1x2x32xf32> to vector<2x32xf32>
    %cst_164 = arith.constant dense<0.000000e+00> : vector<2x32xf32>
    %726 = tpu.matmul %714, %557, %cst_164 {dimension_numbers = #tpu.dot_dimension_numbers<[1], [0], [0], [1], [0, 0, 1, 1], [], []>} : vector<2x32xbf16>, vector<32x32xbf16>, vector<2x32xf32> -> vector<2x32xf32>
    %727 = arith.addf %725, %726 : vector<2x32xf32>
    %728 = arith.negf %727 : vector<2x32xf32>
    %729 = math.exp %728 : vector<2x32xf32>
    %cst_165 = arith.constant 1.000000e+00 : f32
    %730 = vector.broadcast %cst_165 : f32 to vector<2x32xf32>
    %731 = arith.addf %730, %729 : vector<2x32xf32>
    %732 = arith.divf %730, %731 : vector<2x32xf32>
    %733 = vector.extract_strided_slice %554 {offsets = [4, 0, 0], sizes = [1, 2, 32], strides = [1, 1, 1]} : vector<6x2x32xf32> to vector<1x2x32xf32>
    %734 = vector.shape_cast %733 : vector<1x2x32xf32> to vector<2x32xf32>
    %cst_166 = arith.constant dense<0.000000e+00> : vector<2x32xf32>
    %735 = tpu.matmul %714, %558, %cst_166 {dimension_numbers = #tpu.dot_dimension_numbers<[1], [0], [0], [1], [0, 0, 1, 1], [], []>} : vector<2x32xbf16>, vector<32x32xbf16>, vector<2x32xf32> -> vector<2x32xf32>
    %736 = arith.addf %734, %735 : vector<2x32xf32>
    %737 = math.tanh %736 : vector<2x32xf32>
    %738 = vector.extract_strided_slice %555 {offsets = [4, 0, 0], sizes = [1, 2, 32], strides = [1, 1, 1]} : vector<6x2x32xf32> to vector<1x2x32xf32>
    %739 = vector.shape_cast %738 : vector<1x2x32xf32> to vector<2x32xf32>
    %cst_167 = arith.constant dense<0.000000e+00> : vector<2x32xf32>
    %740 = tpu.matmul %714, %559, %cst_167 {dimension_numbers = #tpu.dot_dimension_numbers<[1], [0], [0], [1], [0, 0, 1, 1], [], []>} : vector<2x32xbf16>, vector<32x32xbf16>, vector<2x32xf32> -> vector<2x32xf32>
    %741 = arith.addf %739, %740 : vector<2x32xf32>
    %742 = arith.negf %741 : vector<2x32xf32>
    %743 = math.exp %742 : vector<2x32xf32>
    %cst_168 = arith.constant 1.000000e+00 : f32
    %744 = vector.broadcast %cst_168 : f32 to vector<2x32xf32>
    %745 = arith.addf %744, %743 : vector<2x32xf32>
    %746 = arith.divf %744, %745 : vector<2x32xf32>
    %747 = arith.mulf %732, %711 : vector<2x32xf32>
    %748 = arith.mulf %723, %737 : vector<2x32xf32>
    %749 = arith.addf %747, %748 : vector<2x32xf32>
    %750 = math.tanh %749 : vector<2x32xf32>
    %751 = arith.mulf %746, %750 : vector<2x32xf32>
    %752 = arith.truncf %751 : vector<2x32xf32> to vector<2x32xbf16>
    %753 = vector.extract_strided_slice %552 {offsets = [5, 0, 0], sizes = [1, 2, 32], strides = [1, 1, 1]} : vector<6x2x32xf32> to vector<1x2x32xf32>
    %754 = vector.shape_cast %753 : vector<1x2x32xf32> to vector<2x32xf32>
    %cst_169 = arith.constant dense<0.000000e+00> : vector<2x32xf32>
    %755 = tpu.matmul %752, %556, %cst_169 {dimension_numbers = #tpu.dot_dimension_numbers<[1], [0], [0], [1], [0, 0, 1, 1], [], []>} : vector<2x32xbf16>, vector<32x32xbf16>, vector<2x32xf32> -> vector<2x32xf32>
    %756 = arith.addf %754, %755 : vector<2x32xf32>
    %757 = arith.negf %756 : vector<2x32xf32>
    %758 = math.exp %757 : vector<2x32xf32>
    %cst_170 = arith.constant 1.000000e+00 : f32
    %759 = vector.broadcast %cst_170 : f32 to vector<2x32xf32>
    %760 = arith.addf %759, %758 : vector<2x32xf32>
    %761 = arith.divf %759, %760 : vector<2x32xf32>
    %762 = vector.extract_strided_slice %553 {offsets = [5, 0, 0], sizes = [1, 2, 32], strides = [1, 1, 1]} : vector<6x2x32xf32> to vector<1x2x32xf32>
    %763 = vector.shape_cast %762 : vector<1x2x32xf32> to vector<2x32xf32>
    %cst_171 = arith.constant dense<0.000000e+00> : vector<2x32xf32>
    %764 = tpu.matmul %752, %557, %cst_171 {dimension_numbers = #tpu.dot_dimension_numbers<[1], [0], [0], [1], [0, 0, 1, 1], [], []>} : vector<2x32xbf16>, vector<32x32xbf16>, vector<2x32xf32> -> vector<2x32xf32>
    %765 = arith.addf %763, %764 : vector<2x32xf32>
    %766 = arith.negf %765 : vector<2x32xf32>
    %767 = math.exp %766 : vector<2x32xf32>
    %cst_172 = arith.constant 1.000000e+00 : f32
    %768 = vector.broadcast %cst_172 : f32 to vector<2x32xf32>
    %769 = arith.addf %768, %767 : vector<2x32xf32>
    %770 = arith.divf %768, %769 : vector<2x32xf32>
    %771 = vector.extract_strided_slice %554 {offsets = [5, 0, 0], sizes = [1, 2, 32], strides = [1, 1, 1]} : vector<6x2x32xf32> to vector<1x2x32xf32>
    %772 = vector.shape_cast %771 : vector<1x2x32xf32> to vector<2x32xf32>
    %cst_173 = arith.constant dense<0.000000e+00> : vector<2x32xf32>
    %773 = tpu.matmul %752, %558, %cst_173 {dimension_numbers = #tpu.dot_dimension_numbers<[1], [0], [0], [1], [0, 0, 1, 1], [], []>} : vector<2x32xbf16>, vector<32x32xbf16>, vector<2x32xf32> -> vector<2x32xf32>
    %774 = arith.addf %772, %773 : vector<2x32xf32>
    %775 = math.tanh %774 : vector<2x32xf32>
    %776 = vector.extract_strided_slice %555 {offsets = [5, 0, 0], sizes = [1, 2, 32], strides = [1, 1, 1]} : vector<6x2x32xf32> to vector<1x2x32xf32>
    %777 = vector.shape_cast %776 : vector<1x2x32xf32> to vector<2x32xf32>
    %cst_174 = arith.constant dense<0.000000e+00> : vector<2x32xf32>
    %778 = tpu.matmul %752, %559, %cst_174 {dimension_numbers = #tpu.dot_dimension_numbers<[1], [0], [0], [1], [0, 0, 1, 1], [], []>} : vector<2x32xbf16>, vector<32x32xbf16>, vector<2x32xf32> -> vector<2x32xf32>
    %779 = arith.addf %777, %778 : vector<2x32xf32>
    %780 = arith.negf %779 : vector<2x32xf32>
    %781 = math.exp %780 : vector<2x32xf32>
    %cst_175 = arith.constant 1.000000e+00 : f32
    %782 = vector.broadcast %cst_175 : f32 to vector<2x32xf32>
    %783 = arith.addf %782, %781 : vector<2x32xf32>
    %784 = arith.divf %782, %783 : vector<2x32xf32>
    %785 = arith.mulf %770, %749 : vector<2x32xf32>
    %786 = arith.mulf %761, %775 : vector<2x32xf32>
    %787 = arith.addf %785, %786 : vector<2x32xf32>
    %788 = math.tanh %787 : vector<2x32xf32>
    %789 = arith.mulf %784, %788 : vector<2x32xf32>
    %790 = vector.shape_cast %599 : vector<2x32xf32> to vector<1x2x32xf32>
    %791 = vector.shape_cast %637 : vector<2x32xf32> to vector<1x2x32xf32>
    %792 = vector.shape_cast %675 : vector<2x32xf32> to vector<1x2x32xf32>
    %793 = vector.shape_cast %713 : vector<2x32xf32> to vector<1x2x32xf32>
    %794 = vector.shape_cast %751 : vector<2x32xf32> to vector<1x2x32xf32>
    %795 = vector.shape_cast %789 : vector<2x32xf32> to vector<1x2x32xf32>
    %796 = tpu.concatenate %790, %791, %792, %793, %794, %795 in 0 : vector<1x2x32xf32>, vector<1x2x32xf32>, vector<1x2x32xf32>, vector<1x2x32xf32>, vector<1x2x32xf32>, vector<1x2x32xf32> -> vector<6x2x32xf32>
    %c0_176 = arith.constant 0 : index
    %c0_177 = arith.constant 0 : index
    %c0_178 = arith.constant 0 : index
    %797 = vector.load %arg15[%c0_176, %c0_177, %c0_178] : memref<1x32x128xbf16, #tpu.memory_space<vmem>>, vector<1x32x128xbf16>
    %798 = vector.shape_cast %797 : vector<1x32x128xbf16> to vector<32x128xbf16>
    %c0_179 = arith.constant 0 : index
    %c0_180 = arith.constant 0 : index
    %c0_181 = arith.constant 0 : index
    %799 = vector.load %arg16[%c0_179, %c0_180, %c0_181] : memref<1x32x128xbf16, #tpu.memory_space<vmem>>, vector<1x32x128xbf16>
    %800 = vector.shape_cast %799 : vector<1x32x128xbf16> to vector<32x128xbf16>
    %c0_182 = arith.constant 0 : index
    %c0_183 = arith.constant 0 : index
    %c0_184 = arith.constant 0 : index
    %801 = vector.load %arg17[%c0_182, %c0_183, %c0_184] : memref<1x1x128xf32, #tpu.memory_space<vmem>>, vector<1x1x128xf32>
    %802 = vector.shape_cast %801 : vector<1x1x128xf32> to vector<1x128xf32>
    %803 = arith.truncf %796 : vector<6x2x32xf32> to vector<6x2x32xbf16>
    "tpu.trace_start"() <{level = 10 : i32, message = "tbd,dh->tbh"}> : () -> ()
    %cst_185 = arith.constant dense<0.000000e+00> : vector<6x2x128xf32>
    %804 = tpu.matmul %803, %798, %cst_185 {dimension_numbers = #tpu.dot_dimension_numbers<[2], [0], [0, 1], [1], [0, 0, 0, 1, 1, 1], [], []>} : vector<6x2x32xbf16>, vector<32x128xbf16>, vector<6x2x128xf32> -> vector<6x2x128xf32>
    "tpu.trace_stop"() : () -> ()
    %805 = vector.shape_cast %802 : vector<1x128xf32> to vector<1x1x128xf32>
    %806 = vector.broadcast %805 : vector<1x1x128xf32> to vector<6x2x128xf32>
    %807 = arith.addf %804, %806 : vector<6x2x128xf32>
    %808 = vector.extract_strided_slice %807 {offsets = [0, 0, 0], sizes = [6, 2, 32], strides = [1, 1, 1]} : vector<6x2x128xf32> to vector<6x2x32xf32>
    %809 = vector.extract_strided_slice %807 {offsets = [0, 0, 32], sizes = [6, 2, 32], strides = [1, 1, 1]} : vector<6x2x128xf32> to vector<6x2x32xf32>
    %810 = vector.extract_strided_slice %807 {offsets = [0, 0, 64], sizes = [6, 2, 32], strides = [1, 1, 1]} : vector<6x2x128xf32> to vector<6x2x32xf32>
    %811 = vector.extract_strided_slice %807 {offsets = [0, 0, 96], sizes = [6, 2, 32], strides = [1, 1, 1]} : vector<6x2x128xf32> to vector<6x2x32xf32>
    %812 = vector.extract_strided_slice %800 {offsets = [0, 0], sizes = [32, 32], strides = [1, 1]} : vector<32x128xbf16> to vector<32x32xbf16>
    %813 = vector.extract_strided_slice %800 {offsets = [0, 32], sizes = [32, 32], strides = [1, 1]} : vector<32x128xbf16> to vector<32x32xbf16>
    %814 = vector.extract_strided_slice %800 {offsets = [0, 64], sizes = [32, 32], strides = [1, 1]} : vector<32x128xbf16> to vector<32x32xbf16>
    %815 = vector.extract_strided_slice %800 {offsets = [0, 96], sizes = [32, 32], strides = [1, 1]} : vector<32x128xbf16> to vector<32x32xbf16>
    %cst_186 = arith.constant 0.000000e+00 : f32
    %816 = vector.broadcast %cst_186 : f32 to vector<2x32xf32>
    %cst_187 = arith.constant 0.000000e+00 : f32
    %817 = vector.broadcast %cst_187 : f32 to vector<2x32xf32>
    %818 = arith.truncf %816 : vector<2x32xf32> to vector<2x32xbf16>
    %819 = vector.extract_strided_slice %808 {offsets = [0, 0, 0], sizes = [1, 2, 32], strides = [1, 1, 1]} : vector<6x2x32xf32> to vector<1x2x32xf32>
    %820 = vector.shape_cast %819 : vector<1x2x32xf32> to vector<2x32xf32>
    %cst_188 = arith.constant dense<0.000000e+00> : vector<2x32xf32>
    %821 = tpu.matmul %818, %812, %cst_188 {dimension_numbers = #tpu.dot_dimension_numbers<[1], [0], [0], [1], [0, 0, 1, 1], [], []>} : vector<2x32xbf16>, vector<32x32xbf16>, vector<2x32xf32> -> vector<2x32xf32>
    %822 = arith.addf %820, %821 : vector<2x32xf32>
    %823 = arith.negf %822 : vector<2x32xf32>
    %824 = math.exp %823 : vector<2x32xf32>
    %cst_189 = arith.constant 1.000000e+00 : f32
    %825 = vector.broadcast %cst_189 : f32 to vector<2x32xf32>
    %826 = arith.addf %825, %824 : vector<2x32xf32>
    %827 = arith.divf %825, %826 : vector<2x32xf32>
    %828 = vector.extract_strided_slice %809 {offsets = [0, 0, 0], sizes = [1, 2, 32], strides = [1, 1, 1]} : vector<6x2x32xf32> to vector<1x2x32xf32>
    %829 = vector.shape_cast %828 : vector<1x2x32xf32> to vector<2x32xf32>
    %cst_190 = arith.constant dense<0.000000e+00> : vector<2x32xf32>
    %830 = tpu.matmul %818, %813, %cst_190 {dimension_numbers = #tpu.dot_dimension_numbers<[1], [0], [0], [1], [0, 0, 1, 1], [], []>} : vector<2x32xbf16>, vector<32x32xbf16>, vector<2x32xf32> -> vector<2x32xf32>
    %831 = arith.addf %829, %830 : vector<2x32xf32>
    %832 = arith.negf %831 : vector<2x32xf32>
    %833 = math.exp %832 : vector<2x32xf32>
    %cst_191 = arith.constant 1.000000e+00 : f32
    %834 = vector.broadcast %cst_191 : f32 to vector<2x32xf32>
    %835 = arith.addf %834, %833 : vector<2x32xf32>
    %836 = arith.divf %834, %835 : vector<2x32xf32>
    %837 = vector.extract_strided_slice %810 {offsets = [0, 0, 0], sizes = [1, 2, 32], strides = [1, 1, 1]} : vector<6x2x32xf32> to vector<1x2x32xf32>
    %838 = vector.shape_cast %837 : vector<1x2x32xf32> to vector<2x32xf32>
    %cst_192 = arith.constant dense<0.000000e+00> : vector<2x32xf32>
    %839 = tpu.matmul %818, %814, %cst_192 {dimension_numbers = #tpu.dot_dimension_numbers<[1], [0], [0], [1], [0, 0, 1, 1], [], []>} : vector<2x32xbf16>, vector<32x32xbf16>, vector<2x32xf32> -> vector<2x32xf32>
    %840 = arith.addf %838, %839 : vector<2x32xf32>
    %841 = math.tanh %840 : vector<2x32xf32>
    %842 = vector.extract_strided_slice %811 {offsets = [0, 0, 0], sizes = [1, 2, 32], strides = [1, 1, 1]} : vector<6x2x32xf32> to vector<1x2x32xf32>
    %843 = vector.shape_cast %842 : vector<1x2x32xf32> to vector<2x32xf32>
    %cst_193 = arith.constant dense<0.000000e+00> : vector<2x32xf32>
    %844 = tpu.matmul %818, %815, %cst_193 {dimension_numbers = #tpu.dot_dimension_numbers<[1], [0], [0], [1], [0, 0, 1, 1], [], []>} : vector<2x32xbf16>, vector<32x32xbf16>, vector<2x32xf32> -> vector<2x32xf32>
    %845 = arith.addf %843, %844 : vector<2x32xf32>
    %846 = arith.negf %845 : vector<2x32xf32>
    %847 = math.exp %846 : vector<2x32xf32>
    %cst_194 = arith.constant 1.000000e+00 : f32
    %848 = vector.broadcast %cst_194 : f32 to vector<2x32xf32>
    %849 = arith.addf %848, %847 : vector<2x32xf32>
    %850 = arith.divf %848, %849 : vector<2x32xf32>
    %851 = arith.mulf %836, %817 : vector<2x32xf32>
    %852 = arith.mulf %827, %841 : vector<2x32xf32>
    %853 = arith.addf %851, %852 : vector<2x32xf32>
    %854 = math.tanh %853 : vector<2x32xf32>
    %855 = arith.mulf %850, %854 : vector<2x32xf32>
    %856 = arith.truncf %855 : vector<2x32xf32> to vector<2x32xbf16>
    %857 = vector.extract_strided_slice %808 {offsets = [1, 0, 0], sizes = [1, 2, 32], strides = [1, 1, 1]} : vector<6x2x32xf32> to vector<1x2x32xf32>
    %858 = vector.shape_cast %857 : vector<1x2x32xf32> to vector<2x32xf32>
    %cst_195 = arith.constant dense<0.000000e+00> : vector<2x32xf32>
    %859 = tpu.matmul %856, %812, %cst_195 {dimension_numbers = #tpu.dot_dimension_numbers<[1], [0], [0], [1], [0, 0, 1, 1], [], []>} : vector<2x32xbf16>, vector<32x32xbf16>, vector<2x32xf32> -> vector<2x32xf32>
    %860 = arith.addf %858, %859 : vector<2x32xf32>
    %861 = arith.negf %860 : vector<2x32xf32>
    %862 = math.exp %861 : vector<2x32xf32>
    %cst_196 = arith.constant 1.000000e+00 : f32
    %863 = vector.broadcast %cst_196 : f32 to vector<2x32xf32>
    %864 = arith.addf %863, %862 : vector<2x32xf32>
    %865 = arith.divf %863, %864 : vector<2x32xf32>
    %866 = vector.extract_strided_slice %809 {offsets = [1, 0, 0], sizes = [1, 2, 32], strides = [1, 1, 1]} : vector<6x2x32xf32> to vector<1x2x32xf32>
    %867 = vector.shape_cast %866 : vector<1x2x32xf32> to vector<2x32xf32>
    %cst_197 = arith.constant dense<0.000000e+00> : vector<2x32xf32>
    %868 = tpu.matmul %856, %813, %cst_197 {dimension_numbers = #tpu.dot_dimension_numbers<[1], [0], [0], [1], [0, 0, 1, 1], [], []>} : vector<2x32xbf16>, vector<32x32xbf16>, vector<2x32xf32> -> vector<2x32xf32>
    %869 = arith.addf %867, %868 : vector<2x32xf32>
    %870 = arith.negf %869 : vector<2x32xf32>
    %871 = math.exp %870 : vector<2x32xf32>
    %cst_198 = arith.constant 1.000000e+00 : f32
    %872 = vector.broadcast %cst_198 : f32 to vector<2x32xf32>
    %873 = arith.addf %872, %871 : vector<2x32xf32>
    %874 = arith.divf %872, %873 : vector<2x32xf32>
    %875 = vector.extract_strided_slice %810 {offsets = [1, 0, 0], sizes = [1, 2, 32], strides = [1, 1, 1]} : vector<6x2x32xf32> to vector<1x2x32xf32>
    %876 = vector.shape_cast %875 : vector<1x2x32xf32> to vector<2x32xf32>
    %cst_199 = arith.constant dense<0.000000e+00> : vector<2x32xf32>
    %877 = tpu.matmul %856, %814, %cst_199 {dimension_numbers = #tpu.dot_dimension_numbers<[1], [0], [0], [1], [0, 0, 1, 1], [], []>} : vector<2x32xbf16>, vector<32x32xbf16>, vector<2x32xf32> -> vector<2x32xf32>
    %878 = arith.addf %876, %877 : vector<2x32xf32>
    %879 = math.tanh %878 : vector<2x32xf32>
    %880 = vector.extract_strided_slice %811 {offsets = [1, 0, 0], sizes = [1, 2, 32], strides = [1, 1, 1]} : vector<6x2x32xf32> to vector<1x2x32xf32>
    %881 = vector.shape_cast %880 : vector<1x2x32xf32> to vector<2x32xf32>
    %cst_200 = arith.constant dense<0.000000e+00> : vector<2x32xf32>
    %882 = tpu.matmul %856, %815, %cst_200 {dimension_numbers = #tpu.dot_dimension_numbers<[1], [0], [0], [1], [0, 0, 1, 1], [], []>} : vector<2x32xbf16>, vector<32x32xbf16>, vector<2x32xf32> -> vector<2x32xf32>
    %883 = arith.addf %881, %882 : vector<2x32xf32>
    %884 = arith.negf %883 : vector<2x32xf32>
    %885 = math.exp %884 : vector<2x32xf32>
    %cst_201 = arith.constant 1.000000e+00 : f32
    %886 = vector.broadcast %cst_201 : f32 to vector<2x32xf32>
    %887 = arith.addf %886, %885 : vector<2x32xf32>
    %888 = arith.divf %886, %887 : vector<2x32xf32>
    %889 = arith.mulf %874, %853 : vector<2x32xf32>
    %890 = arith.mulf %865, %879 : vector<2x32xf32>
    %891 = arith.addf %889, %890 : vector<2x32xf32>
    %892 = math.tanh %891 : vector<2x32xf32>
    %893 = arith.mulf %888, %892 : vector<2x32xf32>
    %894 = arith.truncf %893 : vector<2x32xf32> to vector<2x32xbf16>
    %895 = vector.extract_strided_slice %808 {offsets = [2, 0, 0], sizes = [1, 2, 32], strides = [1, 1, 1]} : vector<6x2x32xf32> to vector<1x2x32xf32>
    %896 = vector.shape_cast %895 : vector<1x2x32xf32> to vector<2x32xf32>
    %cst_202 = arith.constant dense<0.000000e+00> : vector<2x32xf32>
    %897 = tpu.matmul %894, %812, %cst_202 {dimension_numbers = #tpu.dot_dimension_numbers<[1], [0], [0], [1], [0, 0, 1, 1], [], []>} : vector<2x32xbf16>, vector<32x32xbf16>, vector<2x32xf32> -> vector<2x32xf32>
    %898 = arith.addf %896, %897 : vector<2x32xf32>
    %899 = arith.negf %898 : vector<2x32xf32>
    %900 = math.exp %899 : vector<2x32xf32>
    %cst_203 = arith.constant 1.000000e+00 : f32
    %901 = vector.broadcast %cst_203 : f32 to vector<2x32xf32>
    %902 = arith.addf %901, %900 : vector<2x32xf32>
    %903 = arith.divf %901, %902 : vector<2x32xf32>
    %904 = vector.extract_strided_slice %809 {offsets = [2, 0, 0], sizes = [1, 2, 32], strides = [1, 1, 1]} : vector<6x2x32xf32> to vector<1x2x32xf32>
    %905 = vector.shape_cast %904 : vector<1x2x32xf32> to vector<2x32xf32>
    %cst_204 = arith.constant dense<0.000000e+00> : vector<2x32xf32>
    %906 = tpu.matmul %894, %813, %cst_204 {dimension_numbers = #tpu.dot_dimension_numbers<[1], [0], [0], [1], [0, 0, 1, 1], [], []>} : vector<2x32xbf16>, vector<32x32xbf16>, vector<2x32xf32> -> vector<2x32xf32>
    %907 = arith.addf %905, %906 : vector<2x32xf32>
    %908 = arith.negf %907 : vector<2x32xf32>
    %909 = math.exp %908 : vector<2x32xf32>
    %cst_205 = arith.constant 1.000000e+00 : f32
    %910 = vector.broadcast %cst_205 : f32 to vector<2x32xf32>
    %911 = arith.addf %910, %909 : vector<2x32xf32>
    %912 = arith.divf %910, %911 : vector<2x32xf32>
    %913 = vector.extract_strided_slice %810 {offsets = [2, 0, 0], sizes = [1, 2, 32], strides = [1, 1, 1]} : vector<6x2x32xf32> to vector<1x2x32xf32>
    %914 = vector.shape_cast %913 : vector<1x2x32xf32> to vector<2x32xf32>
    %cst_206 = arith.constant dense<0.000000e+00> : vector<2x32xf32>
    %915 = tpu.matmul %894, %814, %cst_206 {dimension_numbers = #tpu.dot_dimension_numbers<[1], [0], [0], [1], [0, 0, 1, 1], [], []>} : vector<2x32xbf16>, vector<32x32xbf16>, vector<2x32xf32> -> vector<2x32xf32>
    %916 = arith.addf %914, %915 : vector<2x32xf32>
    %917 = math.tanh %916 : vector<2x32xf32>
    %918 = vector.extract_strided_slice %811 {offsets = [2, 0, 0], sizes = [1, 2, 32], strides = [1, 1, 1]} : vector<6x2x32xf32> to vector<1x2x32xf32>
    %919 = vector.shape_cast %918 : vector<1x2x32xf32> to vector<2x32xf32>
    %cst_207 = arith.constant dense<0.000000e+00> : vector<2x32xf32>
    %920 = tpu.matmul %894, %815, %cst_207 {dimension_numbers = #tpu.dot_dimension_numbers<[1], [0], [0], [1], [0, 0, 1, 1], [], []>} : vector<2x32xbf16>, vector<32x32xbf16>, vector<2x32xf32> -> vector<2x32xf32>
    %921 = arith.addf %919, %920 : vector<2x32xf32>
    %922 = arith.negf %921 : vector<2x32xf32>
    %923 = math.exp %922 : vector<2x32xf32>
    %cst_208 = arith.constant 1.000000e+00 : f32
    %924 = vector.broadcast %cst_208 : f32 to vector<2x32xf32>
    %925 = arith.addf %924, %923 : vector<2x32xf32>
    %926 = arith.divf %924, %925 : vector<2x32xf32>
    %927 = arith.mulf %912, %891 : vector<2x32xf32>
    %928 = arith.mulf %903, %917 : vector<2x32xf32>
    %929 = arith.addf %927, %928 : vector<2x32xf32>
    %930 = math.tanh %929 : vector<2x32xf32>
    %931 = arith.mulf %926, %930 : vector<2x32xf32>
    %932 = arith.truncf %931 : vector<2x32xf32> to vector<2x32xbf16>
    %933 = vector.extract_strided_slice %808 {offsets = [3, 0, 0], sizes = [1, 2, 32], strides = [1, 1, 1]} : vector<6x2x32xf32> to vector<1x2x32xf32>
    %934 = vector.shape_cast %933 : vector<1x2x32xf32> to vector<2x32xf32>
    %cst_209 = arith.constant dense<0.000000e+00> : vector<2x32xf32>
    %935 = tpu.matmul %932, %812, %cst_209 {dimension_numbers = #tpu.dot_dimension_numbers<[1], [0], [0], [1], [0, 0, 1, 1], [], []>} : vector<2x32xbf16>, vector<32x32xbf16>, vector<2x32xf32> -> vector<2x32xf32>
    %936 = arith.addf %934, %935 : vector<2x32xf32>
    %937 = arith.negf %936 : vector<2x32xf32>
    %938 = math.exp %937 : vector<2x32xf32>
    %cst_210 = arith.constant 1.000000e+00 : f32
    %939 = vector.broadcast %cst_210 : f32 to vector<2x32xf32>
    %940 = arith.addf %939, %938 : vector<2x32xf32>
    %941 = arith.divf %939, %940 : vector<2x32xf32>
    %942 = vector.extract_strided_slice %809 {offsets = [3, 0, 0], sizes = [1, 2, 32], strides = [1, 1, 1]} : vector<6x2x32xf32> to vector<1x2x32xf32>
    %943 = vector.shape_cast %942 : vector<1x2x32xf32> to vector<2x32xf32>
    %cst_211 = arith.constant dense<0.000000e+00> : vector<2x32xf32>
    %944 = tpu.matmul %932, %813, %cst_211 {dimension_numbers = #tpu.dot_dimension_numbers<[1], [0], [0], [1], [0, 0, 1, 1], [], []>} : vector<2x32xbf16>, vector<32x32xbf16>, vector<2x32xf32> -> vector<2x32xf32>
    %945 = arith.addf %943, %944 : vector<2x32xf32>
    %946 = arith.negf %945 : vector<2x32xf32>
    %947 = math.exp %946 : vector<2x32xf32>
    %cst_212 = arith.constant 1.000000e+00 : f32
    %948 = vector.broadcast %cst_212 : f32 to vector<2x32xf32>
    %949 = arith.addf %948, %947 : vector<2x32xf32>
    %950 = arith.divf %948, %949 : vector<2x32xf32>
    %951 = vector.extract_strided_slice %810 {offsets = [3, 0, 0], sizes = [1, 2, 32], strides = [1, 1, 1]} : vector<6x2x32xf32> to vector<1x2x32xf32>
    %952 = vector.shape_cast %951 : vector<1x2x32xf32> to vector<2x32xf32>
    %cst_213 = arith.constant dense<0.000000e+00> : vector<2x32xf32>
    %953 = tpu.matmul %932, %814, %cst_213 {dimension_numbers = #tpu.dot_dimension_numbers<[1], [0], [0], [1], [0, 0, 1, 1], [], []>} : vector<2x32xbf16>, vector<32x32xbf16>, vector<2x32xf32> -> vector<2x32xf32>
    %954 = arith.addf %952, %953 : vector<2x32xf32>
    %955 = math.tanh %954 : vector<2x32xf32>
    %956 = vector.extract_strided_slice %811 {offsets = [3, 0, 0], sizes = [1, 2, 32], strides = [1, 1, 1]} : vector<6x2x32xf32> to vector<1x2x32xf32>
    %957 = vector.shape_cast %956 : vector<1x2x32xf32> to vector<2x32xf32>
    %cst_214 = arith.constant dense<0.000000e+00> : vector<2x32xf32>
    %958 = tpu.matmul %932, %815, %cst_214 {dimension_numbers = #tpu.dot_dimension_numbers<[1], [0], [0], [1], [0, 0, 1, 1], [], []>} : vector<2x32xbf16>, vector<32x32xbf16>, vector<2x32xf32> -> vector<2x32xf32>
    %959 = arith.addf %957, %958 : vector<2x32xf32>
    %960 = arith.negf %959 : vector<2x32xf32>
    %961 = math.exp %960 : vector<2x32xf32>
    %cst_215 = arith.constant 1.000000e+00 : f32
    %962 = vector.broadcast %cst_215 : f32 to vector<2x32xf32>
    %963 = arith.addf %962, %961 : vector<2x32xf32>
    %964 = arith.divf %962, %963 : vector<2x32xf32>
    %965 = arith.mulf %950, %929 : vector<2x32xf32>
    %966 = arith.mulf %941, %955 : vector<2x32xf32>
    %967 = arith.addf %965, %966 : vector<2x32xf32>
    %968 = math.tanh %967 : vector<2x32xf32>
    %969 = arith.mulf %964, %968 : vector<2x32xf32>
    %970 = arith.truncf %969 : vector<2x32xf32> to vector<2x32xbf16>
    %971 = vector.extract_strided_slice %808 {offsets = [4, 0, 0], sizes = [1, 2, 32], strides = [1, 1, 1]} : vector<6x2x32xf32> to vector<1x2x32xf32>
    %972 = vector.shape_cast %971 : vector<1x2x32xf32> to vector<2x32xf32>
    %cst_216 = arith.constant dense<0.000000e+00> : vector<2x32xf32>
    %973 = tpu.matmul %970, %812, %cst_216 {dimension_numbers = #tpu.dot_dimension_numbers<[1], [0], [0], [1], [0, 0, 1, 1], [], []>} : vector<2x32xbf16>, vector<32x32xbf16>, vector<2x32xf32> -> vector<2x32xf32>
    %974 = arith.addf %972, %973 : vector<2x32xf32>
    %975 = arith.negf %974 : vector<2x32xf32>
    %976 = math.exp %975 : vector<2x32xf32>
    %cst_217 = arith.constant 1.000000e+00 : f32
    %977 = vector.broadcast %cst_217 : f32 to vector<2x32xf32>
    %978 = arith.addf %977, %976 : vector<2x32xf32>
    %979 = arith.divf %977, %978 : vector<2x32xf32>
    %980 = vector.extract_strided_slice %809 {offsets = [4, 0, 0], sizes = [1, 2, 32], strides = [1, 1, 1]} : vector<6x2x32xf32> to vector<1x2x32xf32>
    %981 = vector.shape_cast %980 : vector<1x2x32xf32> to vector<2x32xf32>
    %cst_218 = arith.constant dense<0.000000e+00> : vector<2x32xf32>
    %982 = tpu.matmul %970, %813, %cst_218 {dimension_numbers = #tpu.dot_dimension_numbers<[1], [0], [0], [1], [0, 0, 1, 1], [], []>} : vector<2x32xbf16>, vector<32x32xbf16>, vector<2x32xf32> -> vector<2x32xf32>
    %983 = arith.addf %981, %982 : vector<2x32xf32>
    %984 = arith.negf %983 : vector<2x32xf32>
    %985 = math.exp %984 : vector<2x32xf32>
    %cst_219 = arith.constant 1.000000e+00 : f32
    %986 = vector.broadcast %cst_219 : f32 to vector<2x32xf32>
    %987 = arith.addf %986, %985 : vector<2x32xf32>
    %988 = arith.divf %986, %987 : vector<2x32xf32>
    %989 = vector.extract_strided_slice %810 {offsets = [4, 0, 0], sizes = [1, 2, 32], strides = [1, 1, 1]} : vector<6x2x32xf32> to vector<1x2x32xf32>
    %990 = vector.shape_cast %989 : vector<1x2x32xf32> to vector<2x32xf32>
    %cst_220 = arith.constant dense<0.000000e+00> : vector<2x32xf32>
    %991 = tpu.matmul %970, %814, %cst_220 {dimension_numbers = #tpu.dot_dimension_numbers<[1], [0], [0], [1], [0, 0, 1, 1], [], []>} : vector<2x32xbf16>, vector<32x32xbf16>, vector<2x32xf32> -> vector<2x32xf32>
    %992 = arith.addf %990, %991 : vector<2x32xf32>
    %993 = math.tanh %992 : vector<2x32xf32>
    %994 = vector.extract_strided_slice %811 {offsets = [4, 0, 0], sizes = [1, 2, 32], strides = [1, 1, 1]} : vector<6x2x32xf32> to vector<1x2x32xf32>
    %995 = vector.shape_cast %994 : vector<1x2x32xf32> to vector<2x32xf32>
    %cst_221 = arith.constant dense<0.000000e+00> : vector<2x32xf32>
    %996 = tpu.matmul %970, %815, %cst_221 {dimension_numbers = #tpu.dot_dimension_numbers<[1], [0], [0], [1], [0, 0, 1, 1], [], []>} : vector<2x32xbf16>, vector<32x32xbf16>, vector<2x32xf32> -> vector<2x32xf32>
    %997 = arith.addf %995, %996 : vector<2x32xf32>
    %998 = arith.negf %997 : vector<2x32xf32>
    %999 = math.exp %998 : vector<2x32xf32>
    %cst_222 = arith.constant 1.000000e+00 : f32
    %1000 = vector.broadcast %cst_222 : f32 to vector<2x32xf32>
    %1001 = arith.addf %1000, %999 : vector<2x32xf32>
    %1002 = arith.divf %1000, %1001 : vector<2x32xf32>
    %1003 = arith.mulf %988, %967 : vector<2x32xf32>
    %1004 = arith.mulf %979, %993 : vector<2x32xf32>
    %1005 = arith.addf %1003, %1004 : vector<2x32xf32>
    %1006 = math.tanh %1005 : vector<2x32xf32>
    %1007 = arith.mulf %1002, %1006 : vector<2x32xf32>
    %1008 = arith.truncf %1007 : vector<2x32xf32> to vector<2x32xbf16>
    %1009 = vector.extract_strided_slice %808 {offsets = [5, 0, 0], sizes = [1, 2, 32], strides = [1, 1, 1]} : vector<6x2x32xf32> to vector<1x2x32xf32>
    %1010 = vector.shape_cast %1009 : vector<1x2x32xf32> to vector<2x32xf32>
    %cst_223 = arith.constant dense<0.000000e+00> : vector<2x32xf32>
    %1011 = tpu.matmul %1008, %812, %cst_223 {dimension_numbers = #tpu.dot_dimension_numbers<[1], [0], [0], [1], [0, 0, 1, 1], [], []>} : vector<2x32xbf16>, vector<32x32xbf16>, vector<2x32xf32> -> vector<2x32xf32>
    %1012 = arith.addf %1010, %1011 : vector<2x32xf32>
    %1013 = arith.negf %1012 : vector<2x32xf32>
    %1014 = math.exp %1013 : vector<2x32xf32>
    %cst_224 = arith.constant 1.000000e+00 : f32
    %1015 = vector.broadcast %cst_224 : f32 to vector<2x32xf32>
    %1016 = arith.addf %1015, %1014 : vector<2x32xf32>
    %1017 = arith.divf %1015, %1016 : vector<2x32xf32>
    %1018 = vector.extract_strided_slice %809 {offsets = [5, 0, 0], sizes = [1, 2, 32], strides = [1, 1, 1]} : vector<6x2x32xf32> to vector<1x2x32xf32>
    %1019 = vector.shape_cast %1018 : vector<1x2x32xf32> to vector<2x32xf32>
    %cst_225 = arith.constant dense<0.000000e+00> : vector<2x32xf32>
    %1020 = tpu.matmul %1008, %813, %cst_225 {dimension_numbers = #tpu.dot_dimension_numbers<[1], [0], [0], [1], [0, 0, 1, 1], [], []>} : vector<2x32xbf16>, vector<32x32xbf16>, vector<2x32xf32> -> vector<2x32xf32>
    %1021 = arith.addf %1019, %1020 : vector<2x32xf32>
    %1022 = arith.negf %1021 : vector<2x32xf32>
    %1023 = math.exp %1022 : vector<2x32xf32>
    %cst_226 = arith.constant 1.000000e+00 : f32
    %1024 = vector.broadcast %cst_226 : f32 to vector<2x32xf32>
    %1025 = arith.addf %1024, %1023 : vector<2x32xf32>
    %1026 = arith.divf %1024, %1025 : vector<2x32xf32>
    %1027 = vector.extract_strided_slice %810 {offsets = [5, 0, 0], sizes = [1, 2, 32], strides = [1, 1, 1]} : vector<6x2x32xf32> to vector<1x2x32xf32>
    %1028 = vector.shape_cast %1027 : vector<1x2x32xf32> to vector<2x32xf32>
    %cst_227 = arith.constant dense<0.000000e+00> : vector<2x32xf32>
    %1029 = tpu.matmul %1008, %814, %cst_227 {dimension_numbers = #tpu.dot_dimension_numbers<[1], [0], [0], [1], [0, 0, 1, 1], [], []>} : vector<2x32xbf16>, vector<32x32xbf16>, vector<2x32xf32> -> vector<2x32xf32>
    %1030 = arith.addf %1028, %1029 : vector<2x32xf32>
    %1031 = math.tanh %1030 : vector<2x32xf32>
    %1032 = vector.extract_strided_slice %811 {offsets = [5, 0, 0], sizes = [1, 2, 32], strides = [1, 1, 1]} : vector<6x2x32xf32> to vector<1x2x32xf32>
    %1033 = vector.shape_cast %1032 : vector<1x2x32xf32> to vector<2x32xf32>
    %cst_228 = arith.constant dense<0.000000e+00> : vector<2x32xf32>
    %1034 = tpu.matmul %1008, %815, %cst_228 {dimension_numbers = #tpu.dot_dimension_numbers<[1], [0], [0], [1], [0, 0, 1, 1], [], []>} : vector<2x32xbf16>, vector<32x32xbf16>, vector<2x32xf32> -> vector<2x32xf32>
    %1035 = arith.addf %1033, %1034 : vector<2x32xf32>
    %1036 = arith.negf %1035 : vector<2x32xf32>
    %1037 = math.exp %1036 : vector<2x32xf32>
    %cst_229 = arith.constant 1.000000e+00 : f32
    %1038 = vector.broadcast %cst_229 : f32 to vector<2x32xf32>
    %1039 = arith.addf %1038, %1037 : vector<2x32xf32>
    %1040 = arith.divf %1038, %1039 : vector<2x32xf32>
    %1041 = arith.mulf %1026, %1005 : vector<2x32xf32>
    %1042 = arith.mulf %1017, %1031 : vector<2x32xf32>
    %1043 = arith.addf %1041, %1042 : vector<2x32xf32>
    %1044 = math.tanh %1043 : vector<2x32xf32>
    %1045 = arith.mulf %1040, %1044 : vector<2x32xf32>
    %c0_230 = arith.constant 0 : index
    %c0_231 = arith.constant 0 : index
    %c0_232 = arith.constant 0 : index
    %1046 = vector.load %arg18[%c0_230, %c0_231, %c0_232] : memref<1x2x32xf32, #tpu.memory_space<vmem>>, vector<1x2x32xf32>
    %1047 = vector.shape_cast %1046 : vector<1x2x32xf32> to vector<2x32xf32>
    %1048 = vector.shape_cast %1045 : vector<2x32xf32> to vector<1x2x32xf32>
    tpu.vector_store %arg18[%c0_230, %c0_231, %c0_232], %1048 {strides = array<i32>} : memref<1x2x32xf32, #tpu.memory_space<vmem>>, vector<1x2x32xf32>,
    return
  }
  func.func @transform_0(%arg0: i32) -> (i32, i32, i32) {
    %c0_i32 = arith.constant 0 : i32
    %c0_i32_0 = arith.constant 0 : i32
    %c0_i32_1 = arith.constant 0 : i32
    %c0_i32_2 = arith.constant 0 : i32
    return %c0_i32, %c0_i32_0, %c0_i32_1 : i32, i32, i32
  }
  func.func @transform_1(%arg0: i32) -> (i32, i32) {
    %c0_i32 = arith.constant 0 : i32
    %c0_i32_0 = arith.constant 0 : i32
    %c0_i32_1 = arith.constant 0 : i32
    return %c0_i32, %c0_i32_0 : i32, i32
  }
  func.func @transform_2(%arg0: i32) -> (i32, i32) {
    %c0_i32 = arith.constant 0 : i32
    %c0_i32_0 = arith.constant 0 : i32
    %c0_i32_1 = arith.constant 0 : i32
    return %c0_i32, %c0_i32_0 : i32, i32
  }
  func.func @transform_3(%arg0: i32) -> (i32, i32) {
    %c0_i32 = arith.constant 0 : i32
    %c0_i32_0 = arith.constant 0 : i32
    %c0_i32_1 = arith.constant 0 : i32
    return %c0_i32, %c0_i32_0 : i32, i32
  }
  func.func @transform_4(%arg0: i32) -> (i32, i32) {
    %c0_i32 = arith.constant 0 : i32
    %c0_i32_0 = arith.constant 0 : i32
    %c0_i32_1 = arith.constant 0 : i32
    return %c0_i32, %c0_i32_0 : i32, i32
  }
  func.func @transform_5(%arg0: i32) -> (i32, i32, i32) {
    %c0_i32 = arith.constant 0 : i32
    %c0_i32_0 = arith.constant 0 : i32
    %c0_i32_1 = arith.constant 0 : i32
    return %arg0, %c0_i32, %c0_i32_0 : i32, i32, i32
  }
  func.func @transform_6(%arg0: i32) -> (i32, i32, i32) {
    %c0_i32 = arith.constant 0 : i32
    %c0_i32_0 = arith.constant 0 : i32
    %c0_i32_1 = arith.constant 0 : i32
    return %arg0, %c0_i32, %c0_i32_0 : i32, i32, i32
  }
  func.func @transform_7(%arg0: i32) -> (i32, i32, i32) {
    %c0_i32 = arith.constant 0 : i32
    %c0_i32_0 = arith.constant 0 : i32
    %c0_i32_1 = arith.constant 0 : i32
    return %arg0, %c0_i32, %c0_i32_0 : i32, i32, i32
  }
  func.func @transform_8(%arg0: i32) -> (i32, i32, i32) {
    %c0_i32 = arith.constant 0 : i32
    %c0_i32_0 = arith.constant 0 : i32
    %c0_i32_1 = arith.constant 0 : i32
    return %arg0, %c0_i32, %c0_i32_0 : i32, i32, i32
  }
  func.func @transform_9(%arg0: i32) -> (i32, i32, i32) {
    %c0_i32 = arith.constant 0 : i32
    %c0_i32_0 = arith.constant 0 : i32
    %c0_i32_1 = arith.constant 0 : i32
    return %arg0, %c0_i32, %c0_i32_0 : i32, i32, i32
  }
  func.func @transform_10(%arg0: i32) -> (i32, i32, i32) {
    %c0_i32 = arith.constant 0 : i32
    %c0_i32_0 = arith.constant 0 : i32
    %c0_i32_1 = arith.constant 0 : i32
    return %arg0, %c0_i32, %c0_i32_0 : i32, i32, i32
  }
  func.func @transform_11(%arg0: i32) -> (i32, i32, i32) {
    %c0_i32 = arith.constant 0 : i32
    %c0_i32_0 = arith.constant 0 : i32
    %c0_i32_1 = arith.constant 0 : i32
    return %arg0, %c0_i32, %c0_i32_0 : i32, i32, i32
  }
  func.func @transform_12(%arg0: i32) -> (i32, i32, i32) {
    %c0_i32 = arith.constant 0 : i32
    %c0_i32_0 = arith.constant 0 : i32
    %c0_i32_1 = arith.constant 0 : i32
    return %arg0, %c0_i32, %c0_i32_0 : i32, i32, i32
  }
  func.func @transform_13(%arg0: i32) -> (i32, i32, i32) {
    %c0_i32 = arith.constant 0 : i32
    %c0_i32_0 = arith.constant 0 : i32
    %c0_i32_1 = arith.constant 0 : i32
    return %arg0, %c0_i32, %c0_i32_0 : i32, i32, i32
  }
  func.func @transform_14(%arg0: i32) -> (i32, i32, i32) {
    %c0_i32 = arith.constant 0 : i32
    %c0_i32_0 = arith.constant 0 : i32
    %c0_i32_1 = arith.constant 0 : i32
    return %arg0, %c0_i32, %c0_i32_0 : i32, i32, i32
  }
  func.func @transform_15(%arg0: i32) -> (i32, i32, i32) {
    %c0_i32 = arith.constant 0 : i32
    %c0_i32_0 = arith.constant 0 : i32
    %c0_i32_1 = arith.constant 0 : i32
    return %arg0, %c0_i32, %c0_i32_0 : i32, i32, i32
  }
  func.func @transform_16(%arg0: i32) -> (i32, i32, i32) {
    %c0_i32 = arith.constant 0 : i32
    %c0_i32_0 = arith.constant 0 : i32
    %c0_i32_1 = arith.constant 0 : i32
    return %arg0, %c0_i32, %c0_i32_0 : i32, i32, i32
  }
  func.func @transform_17(%arg0: i32) -> (i32, i32, i32) {
    %c0_i32 = arith.constant 0 : i32
    %c0_i32_0 = arith.constant 0 : i32
    %c0_i32_1 = arith.constant 0 : i32
    return %arg0, %c0_i32, %c0_i32_0 : i32, i32, i32
  }
}

module attributes {stable_mosaic.version = 11 : i64} {
  func.func @head_kernel(%arg0: memref<2x2x32xf32, #tpu.memory_space<vmem>>, %arg1: memref<2x32x16xbf16, #tpu.memory_space<vmem>>, %arg2: memref<1x16xf32, #tpu.memory_space<vmem>>, %arg3: memref<16x5xbf16, #tpu.memory_space<vmem>>, %arg4: memref<1x5xf32, #tpu.memory_space<vmem>>, %arg5: memref<2x5xf32, #tpu.memory_space<vmem>>) attributes {dimension_semantics = [], scalar_prefetch = 0 : i64, scratch_operands = 0 : i64, tpu.core_type = #tpu.core_type<tc>} {
    %c0 = arith.constant 0 : index
    %c0_0 = arith.constant 0 : index
    %c0_1 = arith.constant 0 : index
    %0 = vector.load %arg0[%c0, %c0_0, %c0_1] : memref<2x2x32xf32, #tpu.memory_space<vmem>>, vector<1x2x32xf32>
    %1 = vector.shape_cast %0 : vector<1x2x32xf32> to vector<2x32xf32>
    %2 = arith.truncf %1 : vector<2x32xf32> to vector<2x32xbf16>
    %c1 = arith.constant 1 : index
    %c0_2 = arith.constant 0 : index
    %c0_3 = arith.constant 0 : index
    %3 = vector.load %arg0[%c1, %c0_2, %c0_3] : memref<2x2x32xf32, #tpu.memory_space<vmem>>, vector<1x2x32xf32>
    %4 = vector.shape_cast %3 : vector<1x2x32xf32> to vector<2x32xf32>
    %5 = arith.truncf %4 : vector<2x32xf32> to vector<2x32xbf16>
    %c0_4 = arith.constant 0 : index
    %c0_5 = arith.constant 0 : index
    %c0_6 = arith.constant 0 : index
    %6 = vector.load %arg1[%c0_4, %c0_5, %c0_6] : memref<2x32x16xbf16, #tpu.memory_space<vmem>>, vector<1x32x16xbf16>
    %7 = vector.shape_cast %6 : vector<1x32x16xbf16> to vector<32x16xbf16>
    %cst = arith.constant dense<0.000000e+00> : vector<2x16xf32>
    %8 = tpu.matmul %2, %7, %cst {dimension_numbers = #tpu.dot_dimension_numbers<[1], [0], [0], [1], [0, 0, 1, 1], [], []>} : vector<2x32xbf16>, vector<32x16xbf16>, vector<2x16xf32> -> vector<2x16xf32>
    %c1_7 = arith.constant 1 : index
    %c0_8 = arith.constant 0 : index
    %c0_9 = arith.constant 0 : index
    %9 = vector.load %arg1[%c1_7, %c0_8, %c0_9] : memref<2x32x16xbf16, #tpu.memory_space<vmem>>, vector<1x32x16xbf16>
    %10 = vector.shape_cast %9 : vector<1x32x16xbf16> to vector<32x16xbf16>
    %cst_10 = arith.constant dense<0.000000e+00> : vector<2x16xf32>
    %11 = tpu.matmul %5, %10, %cst_10 {dimension_numbers = #tpu.dot_dimension_numbers<[1], [0], [0], [1], [0, 0, 1, 1], [], []>} : vector<2x32xbf16>, vector<32x16xbf16>, vector<2x16xf32> -> vector<2x16xf32>
    %12 = arith.addf %8, %11 : vector<2x16xf32>
    %c0_11 = arith.constant 0 : index
    %c0_12 = arith.constant 0 : index
    %13 = vector.load %arg2[%c0_11, %c0_12] : memref<1x16xf32, #tpu.memory_space<vmem>>, vector<1x16xf32>
    %14 = vector.broadcast %13 : vector<1x16xf32> to vector<2x16xf32>
    %15 = arith.addf %12, %14 : vector<2x16xf32>
    %cst_13 = arith.constant 0.000000e+00 : f32
    %16 = vector.broadcast %cst_13 : f32 to vector<2x16xf32>
    %17 = arith.maximumf %15, %16 : vector<2x16xf32>
    %18 = arith.truncf %17 : vector<2x16xf32> to vector<2x16xbf16>
    %c0_14 = arith.constant 0 : index
    %c0_15 = arith.constant 0 : index
    %19 = vector.load %arg3[%c0_14, %c0_15] : memref<16x5xbf16, #tpu.memory_space<vmem>>, vector<16x5xbf16>
    %cst_16 = arith.constant dense<0.000000e+00> : vector<2x5xf32>
    %20 = tpu.matmul %18, %19, %cst_16 {dimension_numbers = #tpu.dot_dimension_numbers<[1], [0], [0], [1], [0, 0, 1, 1], [], []>} : vector<2x16xbf16>, vector<16x5xbf16>, vector<2x5xf32> -> vector<2x5xf32>
    %c0_17 = arith.constant 0 : index
    %c0_18 = arith.constant 0 : index
    %21 = vector.load %arg4[%c0_17, %c0_18] : memref<1x5xf32, #tpu.memory_space<vmem>>, vector<1x5xf32>
    %22 = vector.broadcast %21 : vector<1x5xf32> to vector<2x5xf32>
    %23 = arith.addf %20, %22 : vector<2x5xf32>
    %cst_19 = arith.constant 0.000000e+00 : f32
    %24 = vector.broadcast %cst_19 : f32 to vector<2x5xf32>
    %25 = arith.maximumf %23, %24 : vector<2x5xf32>
    %cst_20 = arith.constant dense<0xFF800000> : vector<2xf32>
    %26 = vector.multi_reduction <maximumf>, %25, %cst_20 [1] : vector<2x5xf32> to vector<2xf32>
    %27 = vector.shape_cast %26 : vector<2xf32> to vector<2x1xf32>
    %28 = vector.broadcast %27 : vector<2x1xf32> to vector<2x5xf32>
    %29 = arith.subf %25, %28 : vector<2x5xf32>
    %30 = math.exp %29 : vector<2x5xf32>
    %cst_21 = arith.constant dense<0.000000e+00> : vector<2xf32>
    %31 = vector.multi_reduction <add>, %30, %cst_21 [1] : vector<2x5xf32> to vector<2xf32>
    %32 = vector.shape_cast %31 : vector<2xf32> to vector<2x1xf32>
    %33 = vector.broadcast %32 : vector<2x1xf32> to vector<2x5xf32>
    %34 = arith.divf %30, %33 : vector<2x5xf32>
    %c0_22 = arith.constant 0 : index
    %c0_23 = arith.constant 0 : index
    %35 = vector.load %arg5[%c0_22, %c0_23] : memref<2x5xf32, #tpu.memory_space<vmem>>, vector<2x5xf32>
    tpu.vector_store %arg5[%c0_22, %c0_23], %34 {strides = array<i32>} : memref<2x5xf32, #tpu.memory_space<vmem>>, vector<2x5xf32>,
    return
  }
}

</mosaic_0001>

<llo_original>
// kernel: cnn1d_lstm_forward.3
$region0: #{cnn1d_lstm_forward.3}
  #allocation0 [shape = 'u32[]', space=smem, size = 0x4, offset = 0x4, fixed_abs, tag = 'smem constant byte address 0x4 - core index']
  #allocation1 [shape = 'u32[144,128]{1,0:T(1,128)}', space=vmem, size = 0x12000, scoped, tag = 'internal scratch']
  %s0 = inlined_call_operand.vmem [shape: f32[2,2,32], index: 0, kind: input, shape index: {}]
  %s1 = inlined_call_operand.vmem [shape: bf16[2,32,16], index: 1, kind: input, shape index: {}]
  %s2 = inlined_call_operand.vmem [shape: f32[1,16], index: 2, kind: input, shape index: {}]
  %s3 = inlined_call_operand.vmem [shape: bf16[16,5], index: 3, kind: input, shape index: {}]
  %s4 = inlined_call_operand.vmem [shape: f32[1,5], index: 4, kind: input, shape index: {}]
  %s5 = inlined_call_operand.hbm [shape: f32[2,5], index: 5, kind: output, shape index: {}]
  %s6 = sld [smem:[#allocation0]]
  $region30: #{cnn1d_lstm_forward.3} parent=0
    _
  %s8 = ssub.s32 1, %s6
  %s9 = scalar_select 0, %s8, %s6
  $region1: #{cnn1d_lstm_forward.3} parent=0
    #allocation2 [shape = 'u8[1024]{0}', space=vmem, size = 0x400, scoped, tag = 'output window, operand 0, single buffered']
    #allocation3 [shape = 's32[1]{0}', space=sflag, size = 0x4, scoped, tag = 'scoped memory for cnn1d_lstm_forward.3']
    %10 = vsyncpa [#allocation3], 0
    // Predicated region
    $region2: #{cnn1d_lstm_forward.3} parent=1 // pred_check
      _
    $region3: #{cnn1d_lstm_forward.3} parent=1 // pred_check_branch
      %12 = sbr.rel (0) target = $region5
    $region4: #{cnn1d_lstm_forward.3} parent=1 // pred_region
      _
    $region5: #{cnn1d_lstm_forward.3} parent=1 // pred_fallthru
      _
    // Predicated region
    $region6: #{cnn1d_lstm_forward.3} parent=1 // pred_check
      _
    $region7: #{cnn1d_lstm_forward.3} parent=1 // pred_check_branch
      %14 = sbr.rel (0) target = $region9
    $region8: #{cnn1d_lstm_forward.3} parent=1 // pred_region
      _
    $region9: #{cnn1d_lstm_forward.3} parent=1 // pred_fallthru
      _
    // Predicated region
    $region10: #{cnn1d_lstm_forward.3} parent=1 // pred_check
      _
    $region11: #{cnn1d_lstm_forward.3} parent=1 // pred_check_branch
      %16 = sbr.rel (0) target = $region13
    $region12: #{cnn1d_lstm_forward.3} parent=1 // pred_region
      _
    $region13: #{cnn1d_lstm_forward.3} parent=1 // pred_fallthru
      _
    // Predicated region
    $region14: #{cnn1d_lstm_forward.3} parent=1 // pred_check
      _
    $region15: #{cnn1d_lstm_forward.3} parent=1 // pred_check_branch
      %18 = sbr.rel (0) target = $region17
    $region16: #{cnn1d_lstm_forward.3} parent=1 // pred_region
      _
    $region17: #{cnn1d_lstm_forward.3} parent=1 // pred_fallthru
      _
    // Predicated region
    $region18: #{cnn1d_lstm_forward.3} parent=1 // pred_check
      _
    $region19: #{cnn1d_lstm_forward.3} parent=1 // pred_check_branch
      %20 = sbr.rel (0) target = $region21
    $region20: #{cnn1d_lstm_forward.3} parent=1 // pred_region
      _
    $region21: #{cnn1d_lstm_forward.3} parent=1 // pred_fallthru
      _
    %v22 = vld [vmem:[%s0] sm:$0x3]
    %v23 = vpack.c.bf16 %v22, %v22
    %s24 = scalar_lea.vmem %s0, 2
    %v25 = vld [vmem:[%s24] sm:$0x3]
    %v26 = vpack.c.bf16 %v25, %v25
    %v27 = vld [vmem:[%s1] sm:$0xf]
    %v28 = vld [vmem:[%s1 + $0x4] sm:$0xf]
    %v29 = vld [vmem:[%s1 + $0x8] sm:$0xf]
    %v30 = vld [vmem:[%s1 + $0xc] sm:$0xf]
    %s31 = scalar_lea.vmem %s1, 16
    %v32 = vld [vmem:[%s31] sm:$0xf]
    %v33 = vld [vmem:[%s31 + $0x4] sm:$0xf]
    %v34 = vld [vmem:[%s31 + $0x8] sm:$0xf]
    %v35 = vld [vmem:[%s31 + $0xc] sm:$0xf]
    %v40 = vunpack.c.l.b16 %v32
    %v41 = vunpack.c.l.b16 %v33
    %v42 = vunpack.c.l.b16 %v34
    %v43 = vunpack.c.l.b16 %v35
    %v44 = vpack.c.b16 %v41, %v40
    %v45 = vpack.c.b16 %v43, %v42
    %vm48 = vcmask 261120
    %v50 = vsel %vm48, %v26, 0
    %52 = vmatprep.subr.bf16.mxu0 0
    %53 = vmatpush1.bf16.msra.mxu0 %v44
    %54 = vmatprep.subr.bf16.mxu0 0
    %55 = vmatpush1.bf16.msra.mxu0 %v45
    %56 = vmatprep.subr.bf16.mxu0 0
    %57 = vmatpush1.bf16.msra.mxu0 0
    %58 = vmatprep.subr.bf16.mxu0 0
    %59 = vmatpush1.bf16.msra.mxu0 0
    %60 = vmatprep.subr.bf16.mxu0 0
    %61 = vmatpush1.bf16.msra.mxu0 0
    %62 = vmatprep.subr.bf16.mxu0 0
    %63 = vmatpush1.bf16.msra.mxu0 0
    %64 = vmatprep.subr.bf16.mxu0 0
    %65 = vmatpush1.bf16.msra.mxu0 0
    %66 = vmatprep.subr.bf16.mxu0 0
    %67 = vmatpush1.bf16.msra.mxu0 0
    %68 = vmatprep.subr.bf16.mxu0 0
    %69 = vmatpush1.bf16.msra.mxu0 0
    %70 = vmatprep.subr.bf16.mxu0 0
    %71 = vmatpush1.bf16.msra.mxu0 0
    %72 = vmatprep.subr.bf16.mxu0 0
    %73 = vmatpush1.bf16.msra.mxu0 0
    %74 = vmatprep.subr.bf16.mxu0 0
    %75 = vmatpush1.bf16.msra.mxu0 0
    %76 = vmatprep.subr.bf16.mxu0 0
    %77 = vmatpush1.bf16.msra.mxu0 0
    %78 = vmatprep.subr.bf16.mxu0 0
    %79 = vmatpush1.bf16.msra.mxu0 0
    %80 = vmatprep.subr.bf16.mxu0 0
    %81 = vmatpush1.bf16.msra.mxu0 0
    %82 = vmatprep.subr.bf16.mxu0 0
    %83 = vmatpush1.bf16.msra.mxu0 0
    %84 = vmatprep.mubr.bf16.mxu0 0
    %85 = vmatmul.mubr.bf16.gmra.mrb[0].mxu0 %v50
    %v86 = vpop.f32.mrb[0].mxu0
    %v87 = vadd.f32 0.0, %v86
    %v88 = vpop.f32.mrb[0].mxu0
    %v89 = vpop.f32.mrb[0].mxu0
    %v90 = vpop.f32.mrb[0].mxu0
    %91 = vdwg.mxu0
    %v96 = vunpack.c.l.b16 %v27
    %v97 = vunpack.c.l.b16 %v28
    %v98 = vunpack.c.l.b16 %v29
    %v99 = vunpack.c.l.b16 %v30
    %v100 = vpack.c.b16 %v97, %v96
    %v101 = vpack.c.b16 %v99, %v98
    %v105 = vsel %vm48, %v23, 0
    %107 = vmatprep.subr.bf16.mxu0 0
    %108 = vmatpush1.bf16.msra.mxu0 %v100
    %109 = vmatprep.subr.bf16.mxu0 0
    %110 = vmatpush1.bf16.msra.mxu0 %v101
    %111 = vmatprep.subr.bf16.mxu0 0
    %112 = vmatpush1.bf16.msra.mxu0 0
    %113 = vmatprep.subr.bf16.mxu0 0
    %114 = vmatpush1.bf16.msra.mxu0 0
    %115 = vmatprep.subr.bf16.mxu0 0
    %116 = vmatpush1.bf16.msra.mxu0 0
    %117 = vmatprep.subr.bf16.mxu0 0
    %118 = vmatpush1.bf16.msra.mxu0 0
    %119 = vmatprep.subr.bf16.mxu0 0
    %120 = vmatpush1.bf16.msra.mxu0 0
    %121 = vmatprep.subr.bf16.mxu0 0
    %122 = vmatpush1.bf16.msra.mxu0 0
    %123 = vmatprep.subr.bf16.mxu0 0
    %124 = vmatpush1.bf16.msra.mxu0 0
    %125 = vmatprep.subr.bf16.mxu0 0
    %126 = vmatpush1.bf16.msra.mxu0 0
    %127 = vmatprep.subr.bf16.mxu0 0
    %128 = vmatpush1.bf16.msra.mxu0 0
    %129 = vmatprep.subr.bf16.mxu0 0
    %130 = vmatpush1.bf16.msra.mxu0 0
    %131 = vmatprep.subr.bf16.mxu0 0
    %132 = vmatpush1.bf16.msra.mxu0 0
    %133 = vmatprep.subr.bf16.mxu0 0
    %134 = vmatpush1.bf16.msra.mxu0 0
    %135 = vmatprep.subr.bf16.mxu0 0
    %136 = vmatpush1.bf16.msra.mxu0 0
    %137 = vmatprep.subr.bf16.mxu0 0
    %138 = vmatpush1.bf16.msra.mxu0 0
    %139 = vmatprep.mubr.bf16.mxu0 0
    %140 = vmatmul.mubr.bf16.gmra.mrb[0].mxu0 %v105
    %v141 = vpop.f32.mrb[0].mxu0
    %v142 = vadd.f32 %v87, %v141
    %v143 = vpop.f32.mrb[0].mxu0
    %v144 = vpop.f32.mrb[0].mxu0
    %v145 = vpop.f32.mrb[0].mxu0
    %146 = vdwg.mxu0
    %v147 = vld [vmem:[%s2] sm:$0x1]
    %v149 = vlaneseq
    %v150 = vshrl.u32 %v149, 7
    %v151 = vsub.s32 0, %v150
    %v152 = vrot.slane %v147, %v151
    %v154 = vadd.f32 %v142, %v152
    %v155 = vmax.f32 %v154, 0.0
    %v156 = vpack.c.bf16 %v155, %v155
    %v157 = vld [vmem:[%s3] sm:$0xf]
    %v158 = vld [vmem:[%s3 + $0x4] sm:$0xf]
    %v159 = vld [vmem:[%s4] sm:$0x1]
    %v161 = vlaneseq
    %v162 = vshrl.u32 %v161, 7
    %v163 = vsub.s32 0, %v162
    %v164 = vrot.slane %v159, %v163
    %v168 = vunpack.c.l.b16 %v157
    %v169 = vunpack.c.l.b16 %v158
    %v170 = vpack.c.b16 %v169, %v168
    %vm172 = vcmask 130048
    %v174 = vsel %vm172, %v156, 0
    %176 = vmatprep.subr.bf16.mxu0 0
    %177 = vmatpush1.bf16.msra.mxu0 %v170
    %178 = vmatprep.subr.bf16.mxu0 0
    %179 = vmatpush1.bf16.msra.mxu0 0
    %180 = vmatprep.subr.bf16.mxu0 0
    %181 = vmatpush1.bf16.msra.mxu0 0
    %182 = vmatprep.subr.bf16.mxu0 0
    %183 = vmatpush1.bf16.msra.mxu0 0
    %184 = vmatprep.subr.bf16.mxu0 0
    %185 = vmatpush1.bf16.msra.mxu0 0
    %186 = vmatprep.subr.bf16.mxu0 0
    %187 = vmatpush1.bf16.msra.mxu0 0
    %188 = vmatprep.subr.bf16.mxu0 0
    %189 = vmatpush1.bf16.msra.mxu0 0
    %190 = vmatprep.subr.bf16.mxu0 0
    %191 = vmatpush1.bf16.msra.mxu0 0
    %192 = vmatprep.subr.bf16.mxu0 0
    %193 = vmatpush1.bf16.msra.mxu0 0
    %194 = vmatprep.subr.bf16.mxu0 0
    %195 = vmatpush1.bf16.msra.mxu0 0
    %196 = vmatprep.subr.bf16.mxu0 0
    %197 = vmatpush1.bf16.msra.mxu0 0
    %198 = vmatprep.subr.bf16.mxu0 0
    %199 = vmatpush1.bf16.msra.mxu0 0
    %200 = vmatprep.subr.bf16.mxu0 0
    %201 = vmatpush1.bf16.msra.mxu0 0
    %202 = vmatprep.subr.bf16.mxu0 0
    %203 = vmatpush1.bf16.msra.mxu0 0
    %204 = vmatprep.subr.bf16.mxu0 0
    %205 = vmatpush1.bf16.msra.mxu0 0
    %206 = vmatprep.subr.bf16.mxu0 0
    %207 = vmatpush1.bf16.msra.mxu0 0
    %208 = vmatprep.mubr.bf16.mxu0 0
    %209 = vmatmul.mubr.bf16.gmra.mrb[0].mxu0 %v174
    %v210 = vpop.f32.mrb[0].mxu0
    %v211 = vadd.f32 %v164, %v210
    %v212 = vpop.f32.mrb[0].mxu0
    %v213 = vpop.f32.mrb[0].mxu0
    %v214 = vpop.f32.mrb[0].mxu0
    %215 = vdwg.mxu0
    %v216 = vmax.f32 %v211, 0.0
    %vm217 = vcmask 33792
    %v218 = vsel %vm217, %v216, -inf
    %219 = vmax.xlane.f32.xlu0 %v218
    %v220 = vpop.xlane.xlu0 %219
    %v221 = vsub.f32 %v216, %v220
    %v222 = vmul.f32 %v221, 1.442695
    %v223 = vpow.pop %v222
    %v224 = vsel %vm217, %v223, 0.0
    %225 = vadd.xlane.f32.xlu0 %v224
    %v226 = vpop.xlane.xlu0 %225
    %v227 = vrcp.pop %v226
    %v228 = vmul.f32 %v223, %v227
    %229 = vst.msk [vmem:[#allocation2] sm:$0x3] %vm217, %v228
    // Predicated region
    $region22: #{cnn1d_lstm_forward.3} parent=1 // pred_check
      _
    $region23: #{cnn1d_lstm_forward.3} parent=1 // pred_check_branch
      %231 = sbr.rel (0) target = $region25
    $region24: #{cnn1d_lstm_forward.3} parent=1 // pred_region
      %s233 = ssub.s32 32, 32
      %234 = vsyncadd [#allocation3], %s233
      %s236 = sshll.u32 [#allocation2], 4
      %s237 = int_to_ptr.vmem [resolvable:$true] %s236
      %239 = dma.vmem_to_hbm [thread:$0]  %s237, 32, %s5, [#allocation3]
    $region25: #{cnn1d_lstm_forward.3} parent=1 // pred_fallthru
      _
    // Predicated region
    $region26: #{cnn1d_lstm_forward.3} parent=1 // pred_check
      _
    $region27: #{cnn1d_lstm_forward.3} parent=1 // pred_check_branch
      %241 = sbr.rel (0) target = $region29
    $region28: #{cnn1d_lstm_forward.3} parent=1 // pred_region
      %242 = dma.done [#allocation3], 32
    $region29: #{cnn1d_lstm_forward.3} parent=1 // pred_fallthru
      _
    %243 = vsyncpa [#allocation3], 1

// kernel: cnn1d_lstm_forward.2
$region0: #{cnn1d_lstm_forward.2}
  #allocation0 [shape = 'u32[]', space=smem, size = 0x4, offset = 0x4, fixed_abs, tag = 'smem constant byte address 0x4 - core index']
  #allocation1 [shape = 'u32[144,128]{1,0:T(1,128)}', space=vmem, size = 0x12000, scoped, tag = 'internal scratch']
  %s0 = inlined_call_operand.vmem [shape: f32[16,2,4], index: 0, kind: input, shape index: {}]
  %s1 = inlined_call_operand.vmem [shape: bf16[12,32], index: 1, kind: input, shape index: {}]
  %s2 = inlined_call_operand.vmem [shape: f32[1,32], index: 2, kind: input, shape index: {}]
  %s3 = inlined_call_operand.vmem [shape: bf16[96,8], index: 3, kind: input, shape index: {}]
  %s4 = inlined_call_operand.vmem [shape: f32[1,8], index: 4, kind: input, shape index: {}]
  %s5 = inlined_call_operand.hbm [shape: bf16[2,8,128], index: 5, kind: input, shape index: {}]
  %s6 = inlined_call_operand.vmem [shape: bf16[2,32,128], index: 6, kind: input, shape index: {}]
  %s7 = inlined_call_operand.vmem [shape: f32[2,1,128], index: 7, kind: input, shape index: {}]
  %s8 = inlined_call_operand.vmem [shape: bf16[2,32,128], index: 8, kind: input, shape index: {}]
  %s9 = inlined_call_operand.vmem [shape: bf16[2,32,128], index: 9, kind: input, shape index: {}]
  %s10 = inlined_call_operand.hbm [shape: f32[2,1,128], index: 10, kind: input, shape index: {}]
  %s11 = inlined_call_operand.hbm [shape: bf16[2,32,128], index: 11, kind: input, shape index: {}]
  %s12 = inlined_call_operand.vmem [shape: bf16[2,32,128], index: 12, kind: input, shape index: {}]
  %s13 = inlined_call_operand.hbm [shape: f32[2,1,128], index: 13, kind: input, shape index: {}]
  %s14 = inlined_call_operand.hbm [shape: bf16[2,32,128], index: 14, kind: input, shape index: {}]
  %s15 = inlined_call_operand.hbm [shape: bf16[2,32,128], index: 15, kind: input, shape index: {}]
  %s16 = inlined_call_operand.hbm [shape: f32[2,1,128], index: 16, kind: input, shape index: {}]
  %s17 = inlined_call_operand.vmem [shape: f32[2,2,32], index: 17, kind: output, shape index: {}]
  %s18 = sld [smem:[#allocation0]]
  $region129: #{cnn1d_lstm_forward.2} parent=0
    _
  %s20 = ssub.s32 1, %s18
  %s21 = scalar_select 0, %s20, %s18
  $region1: #{cnn1d_lstm_forward.2} parent=0
    #allocation2 [shape = 'u8[4096]{0}', space=vmem, size = 0x1000, scoped, tag = 'input window, operand 5']
    #allocation3 [shape = 's32[2]{0}', space=sflag, size = 0x8, scoped, tag = 'scoped memory for cnn1d_lstm_forward.2']
    #allocation4 [shape = 'u8[1024]{0}', space=vmem, size = 0x400, scoped, tag = 'input window, operand 10']
    #allocation5 [shape = 's32[2]{0}', space=sflag, size = 0x8, scoped, tag = 'scoped memory for cnn1d_lstm_forward.2']
    #allocation6 [shape = 'u8[16384]{0}', space=vmem, size = 0x4000, scoped, tag = 'input window, operand 11']
    #allocation7 [shape = 'u8[1024]{0}', space=vmem, size = 0x400, scoped, tag = 'input window, operand 13']
    #allocation8 [shape = 's32[2]{0}', space=sflag, size = 0x8, scoped, tag = 'scoped memory for cnn1d_lstm_forward.2']
    #allocation9 [shape = 'u8[16384]{0}', space=vmem, size = 0x4000, scoped, tag = 'input window, operand 14']
    #allocation10 [shape = 'u8[16384]{0}', space=vmem, size = 0x4000, scoped, tag = 'input window, operand 15']
    #allocation11 [shape = 's32[2]{0}', space=sflag, size = 0x8, scoped, tag = 'scoped memory for cnn1d_lstm_forward.2']
    #allocation12 [shape = 'u8[1024]{0}', space=vmem, size = 0x400, scoped, tag = 'input window, operand 16']
    %22 = vsyncpa [#allocation3], 0
    %s23 = scalar_lea.sflag [#allocation3], 1
    %24 = vsyncpa %s23, 0
    %25 = vsyncpa [#allocation5], 0
    %s26 = scalar_lea.sflag [#allocation5], 1
    %27 = vsyncpa %s26, 0
    %28 = vsyncpa [#allocation8], 0
    %s29 = scalar_lea.sflag [#allocation8], 1
    %30 = vsyncpa %s29, 0
    %31 = vsyncpa [#allocation11], 0
    %s32 = scalar_lea.sflag [#allocation11], 1
    %33 = vsyncpa %s32, 0
    loop: start=0, step=1, limit=4
    $region2: #{cnn1d_lstm_forward.2} parent=1 // loop_pre_header
      _
    $region3: #{cnn1d_lstm_forward.2} parent=1 // loop_header
      %s35 = sphi 0, %s39
      %p36 = scmp.ge.s32.totalorder %s35, 4
      %s43 = sphi 0, %s43
      %s45 = sphi 0, %s43
      %s46 = sphi 0, %s45
      %s60 = sphi 0, %s46
      %s64 = sphi 0, %s64
      %s66 = sphi 0, %s64
      %s67 = sphi 0, %s66
      %s81 = sphi 0, %s67
      %s85 = sphi 0, %s85
      %s87 = sphi 0, %s85
      %s88 = sphi 0, %s87
      %s102 = sphi 0, %s88
      %s106 = sphi 0, %s106
      %s108 = sphi 0, %s106
      %s109 = sphi 0, %s108
      %s123 = sphi 0, %s109
      %s127 = sphi 0, %s127
      %s129 = sphi 0, %s127
      %s130 = sphi 0, %s129
      %s144 = sphi 0, %s130
      %s150 = sphi 0, %s152
      %s153 = sphi 0, %s150
      %s154 = sphi 0, %s153
      %s170 = sphi 0, %s154
      %s176 = sphi 0, %s178
      %s179 = sphi 0, %s176
      %s180 = sphi 0, %s179
      %s196 = sphi 0, %s180
      %s202 = sphi 0, %s204
      %s205 = sphi 0, %s202
      %s206 = sphi 0, %s205
      %s222 = sphi 0, %s206
      %s228 = sphi 0, %s230
      %s231 = sphi 0, %s228
      %s232 = sphi 0, %s231
      %s248 = sphi 0, %s232
      %s254 = sphi 0, %s256
      %s257 = sphi 0, %s254
      %s258 = sphi 0, %s257
      %s274 = sphi 0, %s258
      %s280 = sphi 0, %s282
      %s283 = sphi 0, %s280
      %s284 = sphi 0, %s283
      %s300 = sphi 0, %s284
      %s306 = sphi 0, %s308
      %s309 = sphi 0, %s306
      %s310 = sphi 0, %s309
      %s326 = sphi 0, %s310
      %s332 = sphi 0, %s334
      %s335 = sphi 0, %s332
      %s336 = sphi 0, %s335
      %s352 = sphi 0, %s336
      %s358 = sphi 0, %s360
      %s361 = sphi 0, %s358
      %s362 = sphi 0, %s361
      %s378 = sphi 0, %s362
      %s384 = sphi 0, %s386
      %s387 = sphi 0, %s384
      %s388 = sphi 0, %s387
      %s404 = sphi 0, %s388
      %s410 = sphi 0, %s412
      %s413 = sphi 0, %s410
      %s414 = sphi 0, %s413
      %s430 = sphi 0, %s414
      %s436 = sphi 0, %s438
      %s439 = sphi 0, %s436
      %s440 = sphi 0, %s439
      %s456 = sphi 0, %s440
      %s462 = sphi 0, %s464
      %s465 = sphi 0, %s462
      %s466 = sphi 0, %s465
      %s482 = sphi 0, %s466
    $region4: #{cnn1d_lstm_forward.2} parent=1 // loop_header_branch
      %38 = sbr.rel (%p36) target = $region8
    $region5: #{cnn1d_lstm_forward.2} parent=1 // loop_body
      %s40 = ssub.s32 %s35, 1
      %s41 = ssub.s32 %s35, 2
      %s42 = sadd.s32 %s35, 1
      %s44 = sadd.s32 %s43, 1
      %p47 = scmp.eq.s32.totalorder %s35, 1
      %p48 = scmp.ne.s32.totalorder %s43, %s45
      %p49 = scmp.eq.s32.totalorder %s35, 0
      %p50 = por %p48, %p49
      %p51 = scmp.ne.s32.totalorder %s43, %s45
      %p52 = scmp.eq.s32.totalorder %s40, 1
      %p53 = por %p51, %p52
      %p54 = scmp.ne.s32.totalorder %s45, %s46
      %p55 = scmp.eq.s32.totalorder %s40, 0
      %p56 = por %p54, %p55
      %p57 = scmp.ne.s32.totalorder %s45, %s46
      %p58 = scmp.eq.s32.totalorder %s41, 1
      %p59 = por %p57, %p58
      %p61 = scmp.ne.s32.totalorder %s46, %s60
      %p62 = scmp.eq.s32.totalorder %s41, 0
      %p63 = por %p61, %p62
      %s65 = sadd.s32 %s64, 1
      %p68 = scmp.eq.s32.totalorder %s35, 1
      %p69 = scmp.ne.s32.totalorder %s64, %s66
      %p70 = scmp.eq.s32.totalorder %s35, 0
      %p71 = por %p69, %p70
      %p72 = scmp.ne.s32.totalorder %s64, %s66
      %p73 = scmp.eq.s32.totalorder %s40, 1
      %p74 = por %p72, %p73
      %p75 = scmp.ne.s32.totalorder %s66, %s67
      %p76 = scmp.eq.s32.totalorder %s40, 0
      %p77 = por %p75, %p76
      %p78 = scmp.ne.s32.totalorder %s66, %s67
      %p79 = scmp.eq.s32.totalorder %s41, 1
      %p80 = por %p78, %p79
      %p82 = scmp.ne.s32.totalorder %s67, %s81
      %p83 = scmp.eq.s32.totalorder %s41, 0
      %p84 = por %p82, %p83
      %s86 = sadd.s32 %s85, 1
      %p89 = scmp.eq.s32.totalorder %s35, 1
      %p90 = scmp.ne.s32.totalorder %s85, %s87
      %p91 = scmp.eq.s32.totalorder %s35, 0
      %p92 = por %p90, %p91
      %p93 = scmp.ne.s32.totalorder %s85, %s87
      %p94 = scmp.eq.s32.totalorder %s40, 1
      %p95 = por %p93, %p94
      %p96 = scmp.ne.s32.totalorder %s87, %s88
      %p97 = scmp.eq.s32.totalorder %s40, 0
      %p98 = por %p96, %p97
      %p99 = scmp.ne.s32.totalorder %s87, %s88
      %p100 = scmp.eq.s32.totalorder %s41, 1
      %p101 = por %p99, %p100
      %p103 = scmp.ne.s32.totalorder %s88, %s102
      %p104 = scmp.eq.s32.totalorder %s41, 0
      %p105 = por %p103, %p104
      %s107 = sadd.s32 %s106, 1
      %p110 = scmp.eq.s32.totalorder %s35, 1
      %p111 = scmp.ne.s32.totalorder %s106, %s108
      %p112 = scmp.eq.s32.totalorder %s35, 0
      %p113 = por %p111, %p112
      %p114 = scmp.ne.s32.totalorder %s106, %s108
      %p115 = scmp.eq.s32.totalorder %s40, 1
      %p116 = por %p114, %p115
      %p117 = scmp.ne.s32.totalorder %s108, %s109
      %p118 = scmp.eq.s32.totalorder %s40, 0
      %p119 = por %p117, %p118
      %p120 = scmp.ne.s32.totalorder %s108, %s109
      %p121 = scmp.eq.s32.totalorder %s41, 1
      %p122 = por %p120, %p121
      %p124 = scmp.ne.s32.totalorder %s109, %s123
      %p125 = scmp.eq.s32.totalorder %s41, 0
      %p126 = por %p124, %p125
      %s128 = sadd.s32 %s127, 1
      %p131 = scmp.eq.s32.totalorder %s35, 1
      %p132 = scmp.ne.s32.totalorder %s127, %s129
      %p133 = scmp.eq.s32.totalorder %s35, 0
      %p134 = por %p132, %p133
      %p135 = scmp.ne.s32.totalorder %s127, %s129
      %p136 = scmp.eq.s32.totalorder %s40, 1
      %p137 = por %p135, %p136
      %p138 = scmp.ne.s32.totalorder %s129, %s130
      %p139 = scmp.eq.s32.totalorder %s40, 0
      %p140 = por %p138, %p139
      %p141 = scmp.ne.s32.totalorder %s129, %s130
      %p142 = scmp.eq.s32.totalorder %s41, 1
      %p143 = por %p141, %p142
      %p145 = scmp.ne.s32.totalorder %s130, %s144
      %p146 = scmp.eq.s32.totalorder %s41, 0
      %p147 = por %p145, %p146
      %s148 = ssub.s32 %s35, %s42
      %p149 = scmp.eq.s32.totalorder %s148, 0
      %s151 = sadd.s32 %s150, 1
      %s152 = scalar_select %p149, %s150, %s151
      %p155 = pneg %p149
      %p156 = scmp.eq.s32.totalorder %s35, 1
      %p157 = por %p155, %p156
      %p158 = scmp.ne.s32.totalorder %s150, %s153
      %p159 = scmp.eq.s32.totalorder %s35, 0
      %p160 = por %p158, %p159
      %p161 = scmp.ne.s32.totalorder %s150, %s153
      %p162 = scmp.eq.s32.totalorder %s40, 1
      %p163 = por %p161, %p162
      %p164 = scmp.ne.s32.totalorder %s153, %s154
      %p165 = scmp.eq.s32.totalorder %s40, 0
      %p166 = por %p164, %p165
      %p167 = scmp.ne.s32.totalorder %s153, %s154
      %p168 = scmp.eq.s32.totalorder %s41, 1
      %p169 = por %p167, %p168
      %p171 = scmp.ne.s32.totalorder %s154, %s170
      %p172 = scmp.eq.s32.totalorder %s41, 0
      %p173 = por %p171, %p172
      %s174 = ssub.s32 %s35, %s42
      %p175 = scmp.eq.s32.totalorder %s174, 0
      %s177 = sadd.s32 %s176, 1
      %s178 = scalar_select %p175, %s176, %s177
      %p181 = pneg %p175
      %p182 = scmp.eq.s32.totalorder %s35, 1
      %p183 = por %p181, %p182
      %p184 = scmp.ne.s32.totalorder %s176, %s179
      %p185 = scmp.eq.s32.totalorder %s35, 0
      %p186 = por %p184, %p185
      %p187 = scmp.ne.s32.totalorder %s176, %s179
      %p188 = scmp.eq.s32.totalorder %s40, 1
      %p189 = por %p187, %p188
      %p190 = scmp.ne.s32.totalorder %s179, %s180
      %p191 = scmp.eq.s32.totalorder %s40, 0
      %p192 = por %p190, %p191
      %p193 = scmp.ne.s32.totalorder %s179, %s180
      %p194 = scmp.eq.s32.totalorder %s41, 1
      %p195 = por %p193, %p194
      %p197 = scmp.ne.s32.totalorder %s180, %s196
      %p198 = scmp.eq.s32.totalorder %s41, 0
      %p199 = por %p197, %p198
      %s200 = ssub.s32 %s35, %s42
      %p201 = scmp.eq.s32.totalorder %s200, 0
      %s203 = sadd.s32 %s202, 1
      %s204 = scalar_select %p201, %s202, %s203
      %p207 = pneg %p201
      %p208 = scmp.eq.s32.totalorder %s35, 1
      %p209 = por %p207, %p208
      %p210 = scmp.ne.s32.totalorder %s202, %s205
      %p211 = scmp.eq.s32.totalorder %s35, 0
      %p212 = por %p210, %p211
      %p213 = scmp.ne.s32.totalorder %s202, %s205
      %p214 = scmp.eq.s32.totalorder %s40, 1
      %p215 = por %p213, %p214
      %p216 = scmp.ne.s32.totalorder %s205, %s206
      %p217 = scmp.eq.s32.totalorder %s40, 0
      %p218 = por %p216, %p217
      %p219 = scmp.ne.s32.totalorder %s205, %s206
      %p220 = scmp.eq.s32.totalorder %s41, 1
      %p221 = por %p219, %p220
      %p223 = scmp.ne.s32.totalorder %s206, %s222
      %p224 = scmp.eq.s32.totalorder %s41, 0
      %p225 = por %p223, %p224
      %s226 = ssub.s32 %s35, %s42
      %p227 = scmp.eq.s32.totalorder %s226, 0
      %s229 = sadd.s32 %s228, 1
      %s230 = scalar_select %p227, %s228, %s229
      %p233 = pneg %p227
      %p234 = scmp.eq.s32.totalorder %s35, 1
      %p235 = por %p233, %p234
      %p236 = scmp.ne.s32.totalorder %s228, %s231
      %p237 = scmp.eq.s32.totalorder %s35, 0
      %p238 = por %p236, %p237
      %p239 = scmp.ne.s32.totalorder %s228, %s231
      %p240 = scmp.eq.s32.totalorder %s40, 1
      %p241 = por %p239, %p240
      %p242 = scmp.ne.s32.totalorder %s231, %s232
      %p243 = scmp.eq.s32.totalorder %s40, 0
      %p244 = por %p242, %p243
      %p245 = scmp.ne.s32.totalorder %s231, %s232
      %p246 = scmp.eq.s32.totalorder %s41, 1
      %p247 = por %p245, %p246
      %p249 = scmp.ne.s32.totalorder %s232, %s248
      %p250 = scmp.eq.s32.totalorder %s41, 0
      %p251 = por %p249, %p250
      %s252 = ssub.s32 %s35, %s42
      %p253 = scmp.eq.s32.totalorder %s252, 0
      %s255 = sadd.s32 %s254, 1
      %s256 = scalar_select %p253, %s254, %s255
      %p259 = pneg %p253
      %p260 = scmp.eq.s32.totalorder %s35, 1
      %p261 = por %p259, %p260
      %p262 = scmp.ne.s32.totalorder %s254, %s257
      %p263 = scmp.eq.s32.totalorder %s35, 0
      %p264 = por %p262, %p263
      %p265 = scmp.ne.s32.totalorder %s254, %s257
      %p266 = scmp.eq.s32.totalorder %s40, 1
      %p267 = por %p265, %p266
      %p268 = scmp.ne.s32.totalorder %s257, %s258
      %p269 = scmp.eq.s32.totalorder %s40, 0
      %p270 = por %p268, %p269
      %p271 = scmp.ne.s32.totalorder %s257, %s258
      %p272 = scmp.eq.s32.totalorder %s41, 1
      %p273 = por %p271, %p272
      %p275 = scmp.ne.s32.totalorder %s258, %s274
      %p276 = scmp.eq.s32.totalorder %s41, 0
      %p277 = por %p275, %p276
      %s278 = ssub.s32 %s35, %s42
      %p279 = scmp.eq.s32.totalorder %s278, 0
      %s281 = sadd.s32 %s280, 1
      %s282 = scalar_select %p279, %s280, %s281
      %p285 = pneg %p279
      %p286 = scmp.eq.s32.totalorder %s35, 1
      %p287 = por %p285, %p286
      %p288 = scmp.ne.s32.totalorder %s280, %s283
      %p289 = scmp.eq.s32.totalorder %s35, 0
      %p290 = por %p288, %p289
      %p291 = scmp.ne.s32.totalorder %s280, %s283
      %p292 = scmp.eq.s32.totalorder %s40, 1
      %p293 = por %p291, %p292
      %p294 = scmp.ne.s32.totalorder %s283, %s284
      %p295 = scmp.eq.s32.totalorder %s40, 0
      %p296 = por %p294, %p295
      %p297 = scmp.ne.s32.totalorder %s283, %s284
      %p298 = scmp.eq.s32.totalorder %s41, 1
      %p299 = por %p297, %p298
      %p301 = scmp.ne.s32.totalorder %s284, %s300
      %p302 = scmp.eq.s32.totalorder %s41, 0
      %p303 = por %p301, %p302
      %s304 = ssub.s32 %s35, %s42
      %p305 = scmp.eq.s32.totalorder %s304, 0
      %s307 = sadd.s32 %s306, 1
      %s308 = scalar_select %p305, %s306, %s307
      %p311 = pneg %p305
      %p312 = scmp.eq.s32.totalorder %s35, 1
      %p313 = por %p311, %p312
      %p314 = scmp.ne.s32.totalorder %s306, %s309
      %p315 = scmp.eq.s32.totalorder %s35, 0
      %p316 = por %p314, %p315
      %p317 = scmp.ne.s32.totalorder %s306, %s309
      %p318 = scmp.eq.s32.totalorder %s40, 1
      %p319 = por %p317, %p318
      %p320 = scmp.ne.s32.totalorder %s309, %s310
      %p321 = scmp.eq.s32.totalorder %s40, 0
      %p322 = por %p320, %p321
      %p323 = scmp.ne.s32.totalorder %s309, %s310
      %p324 = scmp.eq.s32.totalorder %s41, 1
      %p325 = por %p323, %p324
      %p327 = scmp.ne.s32.totalorder %s310, %s326
      %p328 = scmp.eq.s32.totalorder %s41, 0
      %p329 = por %p327, %p328
      %s330 = ssub.s32 %s35, %s42
      %p331 = scmp.eq.s32.totalorder %s330, 0
      %s333 = sadd.s32 %s332, 1
      %s334 = scalar_select %p331, %s332, %s333
      %p337 = pneg %p331
      %p338 = scmp.eq.s32.totalorder %s35, 1
      %p339 = por %p337, %p338
      %p340 = scmp.ne.s32.totalorder %s332, %s335
      %p341 = scmp.eq.s32.totalorder %s35, 0
      %p342 = por %p340, %p341
      %p343 = scmp.ne.s32.totalorder %s332, %s335
      %p344 = scmp.eq.s32.totalorder %s40, 1
      %p345 = por %p343, %p344
      %p346 = scmp.ne.s32.totalorder %s335, %s336
      %p347 = scmp.eq.s32.totalorder %s40, 0
      %p348 = por %p346, %p347
      %p349 = scmp.ne.s32.totalorder %s335, %s336
      %p350 = scmp.eq.s32.totalorder %s41, 1
      %p351 = por %p349, %p350
      %p353 = scmp.ne.s32.totalorder %s336, %s352
      %p354 = scmp.eq.s32.totalorder %s41, 0
      %p355 = por %p353, %p354
      %s356 = ssub.s32 %s35, %s42
      %p357 = scmp.eq.s32.totalorder %s356, 0
      %s359 = sadd.s32 %s358, 1
      %s360 = scalar_select %p357, %s358, %s359
      %p363 = pneg %p357
      %p364 = scmp.eq.s32.totalorder %s35, 1
      %p365 = por %p363, %p364
      %p366 = scmp.ne.s32.totalorder %s358, %s361
      %p367 = scmp.eq.s32.totalorder %s35, 0
      %p368 = por %p366, %p367
      %p369 = scmp.ne.s32.totalorder %s358, %s361
      %p370 = scmp.eq.s32.totalorder %s40, 1
      %p371 = por %p369, %p370
      %p372 = scmp.ne.s32.totalorder %s361, %s362
      %p373 = scmp.eq.s32.totalorder %s40, 0
      %p374 = por %p372, %p373
      %p375 = scmp.ne.s32.totalorder %s361, %s362
      %p376 = scmp.eq.s32.totalorder %s41, 1
      %p377 = por %p375, %p376
      %p379 = scmp.ne.s32.totalorder %s362, %s378
      %p380 = scmp.eq.s32.totalorder %s41, 0
      %p381 = por %p379, %p380
      %s382 = ssub.s32 %s35, %s42
      %p383 = scmp.eq.s32.totalorder %s382, 0
      %s385 = sadd.s32 %s384, 1
      %s386 = scalar_select %p383, %s384, %s385
      %p389 = pneg %p383
      %p390 = scmp.eq.s32.totalorder %s35, 1
      %p391 = por %p389, %p390
      %p392 = scmp.ne.s32.totalorder %s384, %s387
      %p393 = scmp.eq.s32.totalorder %s35, 0
      %p394 = por %p392, %p393
      %p395 = scmp.ne.s32.totalorder %s384, %s387
      %p396 = scmp.eq.s32.totalorder %s40, 1
      %p397 = por %p395, %p396
      %p398 = scmp.ne.s32.totalorder %s387, %s388
      %p399 = scmp.eq.s32.totalorder %s40, 0
      %p400 = por %p398, %p399
      %p401 = scmp.ne.s32.totalorder %s387, %s388
      %p402 = scmp.eq.s32.totalorder %s41, 1
      %p403 = por %p401, %p402
      %p405 = scmp.ne.s32.totalorder %s388, %s404
      %p406 = scmp.eq.s32.totalorder %s41, 0
      %p407 = por %p405, %p406
      %s408 = ssub.s32 %s35, %s42
      %p409 = scmp.eq.s32.totalorder %s408, 0
      %s411 = sadd.s32 %s410, 1
      %s412 = scalar_select %p409, %s410, %s411
      %p415 = pneg %p409
      %p416 = scmp.eq.s32.totalorder %s35, 1
      %p417 = por %p415, %p416
      %p418 = scmp.ne.s32.totalorder %s410, %s413
      %p419 = scmp.eq.s32.totalorder %s35, 0
      %p420 = por %p418, %p419
      %p421 = scmp.ne.s32.totalorder %s410, %s413
      %p422 = scmp.eq.s32.totalorder %s40, 1
      %p423 = por %p421, %p422
      %p424 = scmp.ne.s32.totalorder %s413, %s414
      %p425 = scmp.eq.s32.totalorder %s40, 0
      %p426 = por %p424, %p425
      %p427 = scmp.ne.s32.totalorder %s413, %s414
      %p428 = scmp.eq.s32.totalorder %s41, 1
      %p429 = por %p427, %p428
      %p431 = scmp.ne.s32.totalorder %s414, %s430
      %p432 = scmp.eq.s32.totalorder %s41, 0
      %p433 = por %p431, %p432
      %s434 = ssub.s32 %s35, %s42
      %p435 = scmp.eq.s32.totalorder %s434, 0
      %s437 = sadd.s32 %s436, 1
      %s438 = scalar_select %p435, %s436, %s437
      %p441 = pneg %p435
      %p442 = scmp.eq.s32.totalorder %s35, 1
      %p443 = por %p441, %p442
      %p444 = scmp.ne.s32.totalorder %s436, %s439
      %p445 = scmp.eq.s32.totalorder %s35, 0
      %p446 = por %p444, %p445
      %p447 = scmp.ne.s32.totalorder %s436, %s439
      %p448 = scmp.eq.s32.totalorder %s40, 1
      %p449 = por %p447, %p448
      %p450 = scmp.ne.s32.totalorder %s439, %s440
      %p451 = scmp.eq.s32.totalorder %s40, 0
      %p452 = por %p450, %p451
      %p453 = scmp.ne.s32.totalorder %s439, %s440
      %p454 = scmp.eq.s32.totalorder %s41, 1
      %p455 = por %p453, %p454
      %p457 = scmp.ne.s32.totalorder %s440, %s456
      %p458 = scmp.eq.s32.totalorder %s41, 0
      %p459 = por %p457, %p458
      %s460 = ssub.s32 %s35, %s42
      %p461 = scmp.eq.s32.totalorder %s460, 0
      %s463 = sadd.s32 %s462, 1
      %s464 = scalar_select %p461, %s462, %s463
      %p467 = pneg %p461
      %p468 = scmp.eq.s32.totalorder %s35, 1
      %p469 = por %p467, %p468
      %p470 = scmp.ne.s32.totalorder %s462, %s465
      %p471 = scmp.eq.s32.totalorder %s35, 0
      %p472 = por %p470, %p471
      %p473 = scmp.ne.s32.totalorder %s462, %s465
      %p474 = scmp.eq.s32.totalorder %s40, 1
      %p475 = por %p473, %p474
      %p476 = scmp.ne.s32.totalorder %s465, %s466
      %p477 = scmp.eq.s32.totalorder %s40, 0
      %p478 = por %p476, %p477
      %p479 = scmp.ne.s32.totalorder %s465, %s466
      %p480 = scmp.eq.s32.totalorder %s41, 1
      %p481 = por %p479, %p480
      %p483 = scmp.ne.s32.totalorder %s466, %s482
      %p484 = scmp.eq.s32.totalorder %s41, 0
      %p485 = por %p483, %p484
      %p486 = scmp.le.s32.totalorder 1, %s35
      %p487 = scmp.lt.s32.totalorder %s35, 3
      %p488 = pnand %p486, %p487
      %p489 = pneg %p488
      // Predicated region
      $region9: #{cnn1d_lstm_forward.2} parent=5 // pred_check
        _
      $region10: #{cnn1d_lstm_forward.2} parent=5 // pred_check_branch
        %491 = sbr.rel (%p488) target = $region12
      $region11: #{cnn1d_lstm_forward.2} parent=5 // pred_region
        %s492 = ssub.s32 %s35, 1
        // Predicated region
        $region13: #{cnn1d_lstm_forward.2} parent=11 // pred_check
          %p493 = pneg %p56
        $region14: #{cnn1d_lstm_forward.2} parent=11 // pred_check_branch
          %495 = sbr.rel (%p493) target = $region16
        $region15: #{cnn1d_lstm_forward.2} parent=11 // pred_region
          _
        $region16: #{cnn1d_lstm_forward.2} parent=11 // pred_fallthru
          _
        // Predicated region
        $region17: #{cnn1d_lstm_forward.2} parent=11 // pred_check
          %p496 = pneg %p77
        $region18: #{cnn1d_lstm_forward.2} parent=11 // pred_check_branch
          %498 = sbr.rel (%p496) target = $region20
        $region19: #{cnn1d_lstm_forward.2} parent=11 // pred_region
          _
        $region20: #{cnn1d_lstm_forward.2} parent=11 // pred_fallthru
          _
        // Predicated region
        $region21: #{cnn1d_lstm_forward.2} parent=11 // pred_check
          %p499 = pneg %p98
        $region22: #{cnn1d_lstm_forward.2} parent=11 // pred_check_branch
          %501 = sbr.rel (%p499) target = $region24
        $region23: #{cnn1d_lstm_forward.2} parent=11 // pred_region
          _
        $region24: #{cnn1d_lstm_forward.2} parent=11 // pred_fallthru
          _
        // Predicated region
        $region25: #{cnn1d_lstm_forward.2} parent=11 // pred_check
          %p502 = pneg %p119
        $region26: #{cnn1d_lstm_forward.2} parent=11 // pred_check_branch
          %504 = sbr.rel (%p502) target = $region28
        $region27: #{cnn1d_lstm_forward.2} parent=11 // pred_region
          _
        $region28: #{cnn1d_lstm_forward.2} parent=11 // pred_fallthru
          _
        // Predicated region
        $region29: #{cnn1d_lstm_forward.2} parent=11 // pred_check
          %p505 = pneg %p140
        $region30: #{cnn1d_lstm_forward.2} parent=11 // pred_check_branch
          %507 = sbr.rel (%p505) target = $region32
        $region31: #{cnn1d_lstm_forward.2} parent=11 // pred_region
          _
        $region32: #{cnn1d_lstm_forward.2} parent=11 // pred_fallthru
          _
      $region12: #{cnn1d_lstm_forward.2} parent=5 // pred_fallthru
        _
      %p508 = scmp.lt.s32.totalorder %s35, 2
      // Predicated region
      $region33: #{cnn1d_lstm_forward.2} parent=5 // pred_check
        %p509 = pneg %p508
      $region34: #{cnn1d_lstm_forward.2} parent=5 // pred_check_branch
        %511 = sbr.rel (%p509) target = $region36
      $region35: #{cnn1d_lstm_forward.2} parent=5 // pred_region
        // Predicated region
        $region37: #{cnn1d_lstm_forward.2} parent=35 // pred_check
          %p512 = pneg %p160
        $region38: #{cnn1d_lstm_forward.2} parent=35 // pred_check_branch
          %514 = sbr.rel (%p512) target = $region40
        $region39: #{cnn1d_lstm_forward.2} parent=35 // pred_region
          %s515 = sand.u32 %s150, 1
          %s516 = scalar_lea.sflag [#allocation3], %s515
          %s517 = sand.u32 %s150, 1
          %s518 = smul.addr %s517, 4
          %s519 = scalar_lea.vmem [#allocation2], %s518
          %s521 = ssub.s32 64, 64
          %522 = vsyncadd %s516, %s521
          %s523 = smul.addr %s35, 64
          %s524 = scalar_lea.hbm %s5, %s523
          %s526 = sshll.u32 %s519, 4
          %s527 = int_to_ptr.vmem [resolvable:$true] %s526
          %529 = dma.hbm_to_vmem [thread:$0]  %s524, 64, %s527, %s516
        $region40: #{cnn1d_lstm_forward.2} parent=35 // pred_fallthru
          _
        // Predicated region
        $region41: #{cnn1d_lstm_forward.2} parent=35 // pred_check
          %p530 = pneg %p186
        $region42: #{cnn1d_lstm_forward.2} parent=35 // pred_check_branch
          %532 = sbr.rel (%p530) target = $region44
        $region43: #{cnn1d_lstm_forward.2} parent=35 // pred_region
          %p533 = scmp.lt.s32.totalorder %s35, 1
          %s534 = scalar_select %p533, %s35, 1
          %s535 = smul.addr %s534, 4
          %s536 = smul.addr %s535, 4
          %s537 = scalar_lea.vmem %s6, %s536
        $region44: #{cnn1d_lstm_forward.2} parent=35 // pred_fallthru
          _
        // Predicated region
        $region45: #{cnn1d_lstm_forward.2} parent=35 // pred_check
          %p538 = pneg %p212
        $region46: #{cnn1d_lstm_forward.2} parent=35 // pred_check_branch
          %540 = sbr.rel (%p538) target = $region48
        $region47: #{cnn1d_lstm_forward.2} parent=35 // pred_region
          %p541 = scmp.lt.s32.totalorder %s35, 1
          %s542 = scalar_select %p541, %s35, 1
          %s543 = scalar_lea.vmem %s7, %s542
        $region48: #{cnn1d_lstm_forward.2} parent=35 // pred_fallthru
          _
        // Predicated region
        $region49: #{cnn1d_lstm_forward.2} parent=35 // pred_check
          %p544 = pneg %p238
        $region50: #{cnn1d_lstm_forward.2} parent=35 // pred_check_branch
          %546 = sbr.rel (%p544) target = $region52
        $region51: #{cnn1d_lstm_forward.2} parent=35 // pred_region
          %p547 = scmp.lt.s32.totalorder %s35, 1
          %s548 = scalar_select %p547, %s35, 1
          %s549 = smul.addr %s548, 4
          %s550 = smul.addr %s549, 4
          %s551 = scalar_lea.vmem %s8, %s550
        $region52: #{cnn1d_lstm_forward.2} parent=35 // pred_fallthru
          _
        // Predicated region
        $region53: #{cnn1d_lstm_forward.2} parent=35 // pred_check
          %p552 = pneg %p264
        $region54: #{cnn1d_lstm_forward.2} parent=35 // pred_check_branch
          %554 = sbr.rel (%p552) target = $region56
        $region55: #{cnn1d_lstm_forward.2} parent=35 // pred_region
          %p555 = scmp.lt.s32.totalorder %s35, 1
          %s556 = scalar_select %p555, %s35, 1
          %s557 = smul.addr %s556, 4
          %s558 = smul.addr %s557, 4
          %s559 = scalar_lea.vmem %s9, %s558
        $region56: #{cnn1d_lstm_forward.2} parent=35 // pred_fallthru
          _
        // Predicated region
        $region57: #{cnn1d_lstm_forward.2} parent=35 // pred_check
          %p560 = pneg %p290
        $region58: #{cnn1d_lstm_forward.2} parent=35 // pred_check_branch
          %562 = sbr.rel (%p560) target = $region60
        $region59: #{cnn1d_lstm_forward.2} parent=35 // pred_region
          %s563 = sand.u32 %s35, 1
          %s564 = scalar_lea.sflag [#allocation5], %s563
          %s565 = sand.u32 %s280, 1
          %s566 = scalar_lea.vmem [#allocation4], %s565
          %s568 = ssub.s32 16, 16
          %569 = vsyncadd %s564, %s568
          %s570 = smul.addr %s35, 16
          %s571 = scalar_lea.hbm %s10, %s570
          %s573 = sshll.u32 %s566, 4
          %s574 = int_to_ptr.vmem [resolvable:$true] %s573
          %576 = dma.hbm_to_vmem [thread:$0]  %s571, 16, %s574, %s564
        $region60: #{cnn1d_lstm_forward.2} parent=35 // pred_fallthru
          _
        // Predicated region
        $region61: #{cnn1d_lstm_forward.2} parent=35 // pred_check
          %p577 = pneg %p316
        $region62: #{cnn1d_lstm_forward.2} parent=35 // pred_check_branch
          %579 = sbr.rel (%p577) target = $region64
        $region63: #{cnn1d_lstm_forward.2} parent=35 // pred_region
          %s580 = sand.u32 %s35, 1
          %s581 = scalar_lea.sflag [#allocation5], %s580
          %s582 = sand.u32 %s306, 1
          %s583 = smul.addr %s582, 16
          %s584 = scalar_lea.vmem [#allocation6], %s583
          %s586 = ssub.s32 256, 256
          %587 = vsyncadd %s581, %s586
          %s588 = smul.addr %s35, 4
          %s589 = smul.addr %s588, 64
          %s590 = scalar_lea.hbm %s11, %s589
          %s591 = sshll.u32 %s584, 4
          %s592 = int_to_ptr.vmem [resolvable:$true] %s591
          %597 = dma.hbm_to_vmem [thread:$0]  %s590, 256, %s592, %s581, 64, 64, 4
        $region64: #{cnn1d_lstm_forward.2} parent=35 // pred_fallthru
          _
        // Predicated region
        $region65: #{cnn1d_lstm_forward.2} parent=35 // pred_check
          %p598 = pneg %p342
        $region66: #{cnn1d_lstm_forward.2} parent=35 // pred_check_branch
          %600 = sbr.rel (%p598) target = $region68
        $region67: #{cnn1d_lstm_forward.2} parent=35 // pred_region
          %p601 = scmp.lt.s32.totalorder %s35, 1
          %s602 = scalar_select %p601, %s35, 1
          %s603 = smul.addr %s602, 4
          %s604 = smul.addr %s603, 4
          %s605 = scalar_lea.vmem %s12, %s604
        $region68: #{cnn1d_lstm_forward.2} parent=35 // pred_fallthru
          _
        // Predicated region
        $region69: #{cnn1d_lstm_forward.2} parent=35 // pred_check
          %p606 = pneg %p368
        $region70: #{cnn1d_lstm_forward.2} parent=35 // pred_check_branch
          %608 = sbr.rel (%p606) target = $region72
        $region71: #{cnn1d_lstm_forward.2} parent=35 // pred_region
          %s609 = sand.u32 %s35, 1
          %s610 = scalar_lea.sflag [#allocation8], %s609
          %s611 = sand.u32 %s358, 1
          %s612 = scalar_lea.vmem [#allocation7], %s611
          %s614 = ssub.s32 16, 16
          %615 = vsyncadd %s610, %s614
          %s616 = smul.addr %s35, 16
          %s617 = scalar_lea.hbm %s13, %s616
          %s619 = sshll.u32 %s612, 4
          %s620 = int_to_ptr.vmem [resolvable:$true] %s619
          %622 = dma.hbm_to_vmem [thread:$0]  %s617, 16, %s620, %s610
        $region72: #{cnn1d_lstm_forward.2} parent=35 // pred_fallthru
          _
        // Predicated region
        $region73: #{cnn1d_lstm_forward.2} parent=35 // pred_check
          %p623 = pneg %p394
        $region74: #{cnn1d_lstm_forward.2} parent=35 // pred_check_branch
          %625 = sbr.rel (%p623) target = $region76
        $region75: #{cnn1d_lstm_forward.2} parent=35 // pred_region
          %s626 = sand.u32 %s35, 1
          %s627 = scalar_lea.sflag [#allocation8], %s626
          %s628 = sand.u32 %s384, 1
          %s629 = smul.addr %s628, 16
          %s630 = scalar_lea.vmem [#allocation9], %s629
          %s632 = ssub.s32 256, 256
          %633 = vsyncadd %s627, %s632
          %s634 = smul.addr %s35, 4
          %s635 = smul.addr %s634, 64
          %s636 = scalar_lea.hbm %s14, %s635
          %s637 = sshll.u32 %s630, 4
          %s638 = int_to_ptr.vmem [resolvable:$true] %s637
          %643 = dma.hbm_to_vmem [thread:$0]  %s636, 256, %s638, %s627, 64, 64, 4
        $region76: #{cnn1d_lstm_forward.2} parent=35 // pred_fallthru
          _
        // Predicated region
        $region77: #{cnn1d_lstm_forward.2} parent=35 // pred_check
          %p644 = pneg %p420
        $region78: #{cnn1d_lstm_forward.2} parent=35 // pred_check_branch
          %646 = sbr.rel (%p644) target = $region80
        $region79: #{cnn1d_lstm_forward.2} parent=35 // pred_region
          %s647 = sand.u32 %s35, 1
          %s648 = scalar_lea.sflag [#allocation11], %s647
          %s649 = sand.u32 %s410, 1
          %s650 = smul.addr %s649, 16
          %s651 = scalar_lea.vmem [#allocation10], %s650
          %s653 = ssub.s32 256, 256
          %654 = vsyncadd %s648, %s653
          %s655 = smul.addr %s35, 4
          %s656 = smul.addr %s655, 64
          %s657 = scalar_lea.hbm %s15, %s656
          %s658 = sshll.u32 %s651, 4
          %s659 = int_to_ptr.vmem [resolvable:$true] %s658
          %664 = dma.hbm_to_vmem [thread:$0]  %s657, 256, %s659, %s648, 64, 64, 4
        $region80: #{cnn1d_lstm_forward.2} parent=35 // pred_fallthru
          _
        // Predicated region
        $region81: #{cnn1d_lstm_forward.2} parent=35 // pred_check
          %p665 = pneg %p446
        $region82: #{cnn1d_lstm_forward.2} parent=35 // pred_check_branch
          %667 = sbr.rel (%p665) target = $region84
        $region83: #{cnn1d_lstm_forward.2} parent=35 // pred_region
          %s668 = sand.u32 %s35, 1
          %s669 = scalar_lea.sflag [#allocation11], %s668
          %s670 = sand.u32 %s436, 1
          %s671 = scalar_lea.vmem [#allocation12], %s670
          %s673 = ssub.s32 16, 16
          %674 = vsyncadd %s669, %s673
          %s675 = smul.addr %s35, 16
          %s676 = scalar_lea.hbm %s16, %s675
          %s678 = sshll.u32 %s671, 4
          %s679 = int_to_ptr.vmem [resolvable:$true] %s678
          %681 = dma.hbm_to_vmem [thread:$0]  %s676, 16, %s679, %s669
        $region84: #{cnn1d_lstm_forward.2} parent=35 // pred_fallthru
          _
      $region36: #{cnn1d_lstm_forward.2} parent=5 // pred_fallthru
        _
      %p682 = scmp.le.s32.totalorder 1, %s35
      %p683 = scmp.lt.s32.totalorder %s35, 3
      %p684 = pnand %p682, %p683
      %p685 = pneg %p684
      // Predicated region
      $region85: #{cnn1d_lstm_forward.2} parent=5 // pred_check
        _
      $region86: #{cnn1d_lstm_forward.2} parent=5 // pred_check_branch
        %687 = sbr.rel (%p684) target = $region88
      $region87: #{cnn1d_lstm_forward.2} parent=5 // pred_region
        %s688 = ssub.s32 %s35, 1
        %s689 = sand.u32 %s153, 1
        %s690 = scalar_lea.sflag [#allocation3], %s689
        %s691 = sand.u32 %s153, 1
        %s692 = smul.addr %s691, 4
        %s693 = scalar_lea.vmem [#allocation2], %s692
        // Predicated region
        $region89: #{cnn1d_lstm_forward.2} parent=87 // pred_check
          %p694 = pneg %p166
        $region90: #{cnn1d_lstm_forward.2} parent=87 // pred_check_branch
          %696 = sbr.rel (%p694) target = $region92
        $region91: #{cnn1d_lstm_forward.2} parent=87 // pred_region
          %697 = dma.done %s690, 64
        $region92: #{cnn1d_lstm_forward.2} parent=87 // pred_fallthru
          _
        %s698 = sand.u32 %s40, 1
        %s699 = scalar_lea.sflag [#allocation5], %s698
        %s700 = sand.u32 %s283, 1
        %s701 = scalar_lea.vmem [#allocation4], %s700
        // Predicated region
        $region93: #{cnn1d_lstm_forward.2} parent=87 // pred_check
          %p702 = pneg %p296
        $region94: #{cnn1d_lstm_forward.2} parent=87 // pred_check_branch
          %704 = sbr.rel (%p702) target = $region96
        $region95: #{cnn1d_lstm_forward.2} parent=87 // pred_region
          %705 = dma.done %s699, 16
        $region96: #{cnn1d_lstm_forward.2} parent=87 // pred_fallthru
          _
        %s706 = sand.u32 %s40, 1
        %s707 = scalar_lea.sflag [#allocation5], %s706
        %s708 = sand.u32 %s309, 1
        %s709 = smul.addr %s708, 16
        %s710 = scalar_lea.vmem [#allocation6], %s709
        // Predicated region
        $region97: #{cnn1d_lstm_forward.2} parent=87 // pred_check
          %p711 = pneg %p322
        $region98: #{cnn1d_lstm_forward.2} parent=87 // pred_check_branch
          %713 = sbr.rel (%p711) target = $region100
        $region99: #{cnn1d_lstm_forward.2} parent=87 // pred_region
          %714 = dma.done %s707, 256
        $region100: #{cnn1d_lstm_forward.2} parent=87 // pred_fallthru
          _
        %s715 = sand.u32 %s40, 1
        %s716 = scalar_lea.sflag [#allocation8], %s715
        %s717 = sand.u32 %s361, 1
        %s718 = scalar_lea.vmem [#allocation7], %s717
        // Predicated region
        $region101: #{cnn1d_lstm_forward.2} parent=87 // pred_check
          %p719 = pneg %p374
        $region102: #{cnn1d_lstm_forward.2} parent=87 // pred_check_branch
          %721 = sbr.rel (%p719) target = $region104
        $region103: #{cnn1d_lstm_forward.2} parent=87 // pred_region
          %722 = dma.done %s716, 16
        $region104: #{cnn1d_lstm_forward.2} parent=87 // pred_fallthru
          _
        %s723 = sand.u32 %s40, 1
        %s724 = scalar_lea.sflag [#allocation8], %s723
        %s725 = sand.u32 %s387, 1
        %s726 = smul.addr %s725, 16
        %s727 = scalar_lea.vmem [#allocation9], %s726
        // Predicated region
        $region105: #{cnn1d_lstm_forward.2} parent=87 // pred_check
          %p728 = pneg %p400
        $region106: #{cnn1d_lstm_forward.2} parent=87 // pred_check_branch
          %730 = sbr.rel (%p728) target = $region108
        $region107: #{cnn1d_lstm_forward.2} parent=87 // pred_region
          %731 = dma.done %s724, 256
        $region108: #{cnn1d_lstm_forward.2} parent=87 // pred_fallthru
          _
        %s732 = sand.u32 %s40, 1
        %s733 = scalar_lea.sflag [#allocation11], %s732
        %s734 = sand.u32 %s413, 1
        %s735 = smul.addr %s734, 16
        %s736 = scalar_lea.vmem [#allocation10], %s735
        // Predicated region
        $region109: #{cnn1d_lstm_forward.2} parent=87 // pred_check
          %p737 = pneg %p426
        $region110: #{cnn1d_lstm_forward.2} parent=87 // pred_check_branch
          %739 = sbr.rel (%p737) target = $region112
        $region111: #{cnn1d_lstm_forward.2} parent=87 // pred_region
          %740 = dma.done %s733, 256
        $region112: #{cnn1d_lstm_forward.2} parent=87 // pred_fallthru
          _
        %s741 = sand.u32 %s40, 1
        %s742 = scalar_lea.sflag [#allocation11], %s741
        %s743 = sand.u32 %s439, 1
        %s744 = scalar_lea.vmem [#allocation12], %s743
        // Predicated region
        $region113: #{cnn1d_lstm_forward.2} parent=87 // pred_check
          %p745 = pneg %p452
        $region114: #{cnn1d_lstm_forward.2} parent=87 // pred_check_branch
          %747 = sbr.rel (%p745) target = $region116
        $region115: #{cnn1d_lstm_forward.2} parent=87 // pred_region
          %748 = dma.done %s742, 16
        $region116: #{cnn1d_lstm_forward.2} parent=87 // pred_fallthru
          _
        %p749 = pneg %p56
        %p750 = pneg %p53
        %p751 = pneg %p77
        %p752 = pneg %p74
        %p753 = pneg %p98
        %p754 = pneg %p95
        %p755 = pneg %p119
        %p756 = pneg %p116
        %p757 = pneg %p140
        %p758 = pneg %p137
        %s759 = sand.u32 %s153, 1
        %s760 = scalar_lea.sflag [#allocation3], %s759
        %s761 = sand.u32 %s153, 1
        %s762 = smul.addr %s761, 4
        %s763 = scalar_lea.vmem [#allocation2], %s762
        %p764 = pneg %p166
        %p765 = pneg %p163
        %p766 = scmp.lt.s32.totalorder %s40, 1
        %s767 = scalar_select %p766, %s40, 1
        %s768 = smul.addr %s767, 4
        %s769 = smul.addr %s768, 4
        %s770 = scalar_lea.vmem %s6, %s769
        %p771 = pneg %p192
        %p772 = pneg %p189
        %p773 = scmp.lt.s32.totalorder %s40, 1
        %s774 = scalar_select %p773, %s40, 1
        %s775 = scalar_lea.vmem %s7, %s774
        %p776 = pneg %p218
        %p777 = pneg %p215
        %p778 = scmp.lt.s32.totalorder %s40, 1
        %s779 = scalar_select %p778, %s40, 1
        %s780 = smul.addr %s779, 4
        %s781 = smul.addr %s780, 4
        %s782 = scalar_lea.vmem %s8, %s781
        %p783 = pneg %p244
        %p784 = pneg %p241
        %p785 = scmp.lt.s32.totalorder %s40, 1
        %s786 = scalar_select %p785, %s40, 1
        %s787 = smul.addr %s786, 4
        %s788 = smul.addr %s787, 4
        %s789 = scalar_lea.vmem %s9, %s788
        %p790 = pneg %p270
        %p791 = pneg %p267
        %s792 = sand.u32 %s40, 1
        %s793 = scalar_lea.sflag [#allocation5], %s792
        %s794 = sand.u32 %s283, 1
        %s795 = scalar_lea.vmem [#allocation4], %s794
        %p796 = pneg %p296
        %p797 = pneg %p293
        %s798 = sand.u32 %s40, 1
        %s799 = scalar_lea.sflag [#allocation5], %s798
        %s800 = sand.u32 %s309, 1
        %s801 = smul.addr %s800, 16
        %s802 = scalar_lea.vmem [#allocation6], %s801
        %p803 = pneg %p322
        %p804 = pneg %p319
        %p805 = scmp.lt.s32.totalorder %s40, 1
        %s806 = scalar_select %p805, %s40, 1
        %s807 = smul.addr %s806, 4
        %s808 = smul.addr %s807, 4
        %s809 = scalar_lea.vmem %s12, %s808
        %p810 = pneg %p348
        %p811 = pneg %p345
        %s812 = sand.u32 %s40, 1
        %s813 = scalar_lea.sflag [#allocation8], %s812
        %s814 = sand.u32 %s361, 1
        %s815 = scalar_lea.vmem [#allocation7], %s814
        %p816 = pneg %p374
        %p817 = pneg %p371
        %s818 = sand.u32 %s40, 1
        %s819 = scalar_lea.sflag [#allocation8], %s818
        %s820 = sand.u32 %s387, 1
        %s821 = smul.addr %s820, 16
        %s822 = scalar_lea.vmem [#allocation9], %s821
        %p823 = pneg %p400
        %p824 = pneg %p397
        %s825 = sand.u32 %s40, 1
        %s826 = scalar_lea.sflag [#allocation11], %s825
        %s827 = sand.u32 %s413, 1
        %s828 = smul.addr %s827, 16
        %s829 = scalar_lea.vmem [#allocation10], %s828
        %p830 = pneg %p426
        %p831 = pneg %p423
        %s832 = sand.u32 %s40, 1
        %s833 = scalar_lea.sflag [#allocation11], %s832
        %s834 = sand.u32 %s439, 1
        %s835 = scalar_lea.vmem [#allocation12], %s834
        %p836 = pneg %p452
        %p837 = pneg %p449
        %p838 = pneg %p478
        %p839 = pneg %p475
        %p840 = scmp.lt.s32.totalorder %s40, 1
        %s841 = scalar_select %p840, %s40, 1
        %s842 = smul.addr %s841, 2
        %s843 = scalar_lea.vmem %s17, %s842
        %p844 = scmp.lt.s32.totalorder %s40, 1
        %s845 = scalar_select %p844, %s40, 1
        %s846 = smul.addr %s845, 4
        %s847 = smul.addr %s846, 4
        %s848 = scalar_lea.vmem %s6, %s847
        %p849 = scmp.lt.s32.totalorder %s40, 1
        %s850 = scalar_select %p849, %s40, 1
        %s851 = scalar_lea.vmem %s7, %s850
        %p852 = scmp.lt.s32.totalorder %s40, 1
        %s853 = scalar_select %p852, %s40, 1
        %s854 = smul.addr %s853, 4
        %s855 = smul.addr %s854, 4
        %s856 = scalar_lea.vmem %s8, %s855
        %p857 = scmp.lt.s32.totalorder %s40, 1
        %s858 = scalar_select %p857, %s40, 1
        %s859 = smul.addr %s858, 4
        %s860 = smul.addr %s859, 4
        %s861 = scalar_lea.vmem %s9, %s860
        %p862 = scmp.lt.s32.totalorder %s40, 1
        %s863 = scalar_select %p862, %s40, 1
        %s864 = smul.addr %s863, 4
        %s865 = smul.addr %s864, 4
        %s866 = scalar_lea.vmem %s12, %s865
        %p867 = scmp.lt.s32.totalorder %s40, 1
        %s868 = scalar_select %p867, %s40, 1
        %s869 = smul.addr %s868, 2
        %s870 = scalar_lea.vmem %s17, %s869
        %v872 = vld [vmem:[%s0] sm:$0x3]
        %v873 = vld [vmem:[%s0 + $0x2] sm:$0x3]
        %v874 = vld [vmem:[%s0 + $0x4] sm:$0x3]
        %v875 = vld [vmem:[%s0 + $0x6] sm:$0x3]
        %v876 = vld [vmem:[%s0 + $0x8] sm:$0x3]
        %v877 = vld [vmem:[%s0 + $0xa] sm:$0x3]
        %v878 = vld [vmem:[%s0 + $0xc] sm:$0x3]
        %v879 = vld [vmem:[%s0 + $0xe] sm:$0x3]
        %v880 = vld [vmem:[%s0 + $0x10] sm:$0x3]
        %v881 = vld [vmem:[%s0 + $0x12] sm:$0x3]
        %v882 = vld [vmem:[%s0 + $0x14] sm:$0x3]
        %v883 = vld [vmem:[%s0 + $0x16] sm:$0x3]
        %v884 = vld [vmem:[%s0 + $0x18] sm:$0x3]
        %v885 = vld [vmem:[%s0 + $0x1a] sm:$0x3]
        %v886 = vld [vmem:[%s0 + $0x1c] sm:$0x3]
        %v887 = vld [vmem:[%s0 + $0x1e] sm:$0x3]
        %v888 = vld [vmem:[%s1] sm:$0xf]
        %v889 = vld [vmem:[%s1 + $0x4] sm:$0x3]
        %v890 = vld [vmem:[%s2] sm:$0x1]
        %905 = vrot.lane.b32.xlu0 %v873, 4
        %v906 = vpop.permute.xlu0 %905
        %907 = vrot.lane.b32.xlu0 %v874, 4
        %v908 = vpop.permute.xlu0 %907
        %909 = vrot.lane.b32.xlu0 %v875, 4
        %v910 = vpop.permute.xlu0 %909
        %911 = vrot.lane.b32.xlu0 %v876, 4
        %v912 = vpop.permute.xlu0 %911
        %913 = vrot.lane.b32.xlu0 %v877, 4
        %v914 = vpop.permute.xlu0 %913
        %915 = vrot.lane.b32.xlu0 %v878, 4
        %v916 = vpop.permute.xlu0 %915
        %917 = vrot.lane.b32.xlu0 %v879, 4
        %v918 = vpop.permute.xlu0 %917
        %919 = vrot.lane.b32.xlu0 %v880, 4
        %v920 = vpop.permute.xlu0 %919
        %921 = vrot.lane.b32.xlu0 %v881, 4
        %v922 = vpop.permute.xlu0 %921
        %923 = vrot.lane.b32.xlu0 %v882, 4
        %v924 = vpop.permute.xlu0 %923
        %925 = vrot.lane.b32.xlu0 %v883, 4
        %v926 = vpop.permute.xlu0 %925
        %927 = vrot.lane.b32.xlu0 %v884, 4
        %v928 = vpop.permute.xlu0 %927
        %929 = vrot.lane.b32.xlu0 %v885, 4
        %v930 = vpop.permute.xlu0 %929
        %931 = vrot.lane.b32.xlu0 %v886, 4
        %v932 = vpop.permute.xlu0 %931
        %948 = vrot.lane.b32.xlu0 %v874, 8
        %v949 = vpop.permute.xlu0 %948
        %950 = vrot.lane.b32.xlu0 %v875, 8
        %v951 = vpop.permute.xlu0 %950
        %952 = vrot.lane.b32.xlu0 %v876, 8
        %v953 = vpop.permute.xlu0 %952
        %954 = vrot.lane.b32.xlu0 %v877, 8
        %v955 = vpop.permute.xlu0 %954
        %956 = vrot.lane.b32.xlu0 %v878, 8
        %v957 = vpop.permute.xlu0 %956
        %958 = vrot.lane.b32.xlu0 %v879, 8
        %v959 = vpop.permute.xlu0 %958
        %960 = vrot.lane.b32.xlu0 %v880, 8
        %v961 = vpop.permute.xlu0 %960
        %962 = vrot.lane.b32.xlu0 %v881, 8
        %v963 = vpop.permute.xlu0 %962
        %964 = vrot.lane.b32.xlu0 %v882, 8
        %v965 = vpop.permute.xlu0 %964
        %966 = vrot.lane.b32.xlu0 %v883, 8
        %v967 = vpop.permute.xlu0 %966
        %968 = vrot.lane.b32.xlu0 %v884, 8
        %v969 = vpop.permute.xlu0 %968
        %970 = vrot.lane.b32.xlu0 %v885, 8
        %v971 = vpop.permute.xlu0 %970
        %972 = vrot.lane.b32.xlu0 %v886, 8
        %v973 = vpop.permute.xlu0 %972
        %974 = vrot.lane.b32.xlu0 %v887, 8
        %v975 = vpop.permute.xlu0 %974
        %vm990 = vcmask 31744
        %v991 = vsel %vm990, %v872, %v906
        %v992 = vsel %vm990, %v873, %v908
        %v993 = vsel %vm990, %v874, %v910
        %v994 = vsel %vm990, %v875, %v912
        %v995 = vsel %vm990, %v876, %v914
        %v996 = vsel %vm990, %v877, %v916
        %v997 = vsel %vm990, %v878, %v918
        %v998 = vsel %vm990, %v879, %v920
        %v999 = vsel %vm990, %v880, %v922
        %v1000 = vsel %vm990, %v881, %v924
        %v1001 = vsel %vm990, %v882, %v926
        %v1002 = vsel %vm990, %v883, %v928
        %v1003 = vsel %vm990, %v884, %v930
        %v1004 = vsel %vm990, %v885, %v932
        %vm1005 = vcmask 64512
        %v1006 = vsel %vm1005, %v991, %v949
        %v1007 = vsel %vm1005, %v992, %v951
        %v1008 = vsel %vm1005, %v993, %v953
        %v1009 = vsel %vm1005, %v994, %v955
        %v1010 = vsel %vm1005, %v995, %v957
        %v1011 = vsel %vm1005, %v996, %v959
        %v1012 = vsel %vm1005, %v997, %v961
        %v1013 = vsel %vm1005, %v998, %v963
        %v1014 = vsel %vm1005, %v999, %v965
        %v1015 = vsel %vm1005, %v1000, %v967
        %v1016 = vsel %vm1005, %v1001, %v969
        %v1017 = vsel %vm1005, %v1002, %v971
        %v1018 = vsel %vm1005, %v1003, %v973
        %v1019 = vsel %vm1005, %v1004, %v975
        %v1020 = vpack.c.bf16 %v1006, %v1006
        %v1021 = vpack.c.bf16 %v1007, %v1007
        %v1022 = vpack.c.bf16 %v1008, %v1008
        %v1023 = vpack.c.bf16 %v1009, %v1009
        %v1024 = vpack.c.bf16 %v1010, %v1010
        %v1025 = vpack.c.bf16 %v1011, %v1011
        %v1026 = vpack.c.bf16 %v1012, %v1012
        %v1027 = vpack.c.bf16 %v1013, %v1013
        %v1028 = vpack.c.bf16 %v1014, %v1014
        %v1029 = vpack.c.bf16 %v1015, %v1015
        %v1030 = vpack.c.bf16 %v1016, %v1016
        %v1031 = vpack.c.bf16 %v1017, %v1017
        %v1032 = vpack.c.bf16 %v1018, %v1018
        %v1033 = vpack.c.bf16 %v1019, %v1019
        %v1035 = vlaneseq
        %v1036 = vshrl.u32 %v1035, 7
        %v1037 = vsub.s32 0, %v1036
        %v1038 = vrot.slane %v890, %v1037
        %v1053 = vcombine.low %v1020, %v1021
        %v1054 = vcombine.low %v1022, %v1023
        %v1055 = vcombine.low %v1024, %v1025
        %v1056 = vcombine.low %v1026, %v1027
        %v1058 = vunpack.c.l.s4 1966171168
        %v1059 = vunpack.c.0.s8 %v1058
        %v1060 = vlaneseq
        %v1061 = vshrl.u32 %v1060, 7
        %v1062 = vsub.s32 %v1059, %v1061
        %v1063 = vrot.slane %v1053, %v1062
        %v1065 = vunpack.c.l.s4 1966171168
        %v1066 = vunpack.c.0.s8 %v1065
        %v1067 = vlaneseq
        %v1068 = vshrl.u32 %v1067, 7
        %v1069 = vsub.s32 %v1066, %v1068
        %v1070 = vrot.slane %v1054, %v1069
        %v1072 = vunpack.c.l.s4 1966171168
        %v1073 = vunpack.c.0.s8 %v1072
        %v1074 = vlaneseq
        %v1075 = vshrl.u32 %v1074, 7
        %v1076 = vsub.s32 %v1073, %v1075
        %v1077 = vrot.slane %v1055, %v1076
        %v1079 = vunpack.c.l.s4 1966171168
        %v1080 = vunpack.c.0.s8 %v1079
        %v1081 = vlaneseq
        %v1082 = vshrl.u32 %v1081, 7
        %v1083 = vsub.s32 %v1080, %v1082
        %v1084 = vrot.slane %v1056, %v1083
        %v1085 = vcombine.low %v1063, %v1070
        %v1086 = vcombine.low %v1077, %v1084
        %v1088 = vunpack.c.l.s4 1966171168
        %v1089 = vunpack.c.0.s8 %v1088
        %v1090 = vlaneseq
        %v1091 = vshrl.u32 %v1090, 7
        %v1092 = vsub.s32 %v1089, %v1091
        %v1093 = vrot.slane %v1085, %v1092
        %v1095 = vunpack.c.l.s4 1966171168
        %v1096 = vunpack.c.0.s8 %v1095
        %v1097 = vlaneseq
        %v1098 = vshrl.u32 %v1097, 7
        %v1099 = vsub.s32 %v1096, %v1098
        %v1100 = vrot.slane %v1086, %v1099
        %v1101 = vcombine.low %v1093, %v1100
        %v1102 = vcombine.low %v1028, %v1029
        %v1103 = vcombine.low %v1030, %v1031
        %v1104 = vcombine.low %v1032, %v1033
        %v1106 = vunpack.c.l.s4 1966171168
        %v1107 = vunpack.c.0.s8 %v1106
        %v1108 = vlaneseq
        %v1109 = vshrl.u32 %v1108, 7
        %v1110 = vsub.s32 %v1107, %v1109
        %v1111 = vrot.slane %v1102, %v1110
        %v1113 = vunpack.c.l.s4 1966171168
        %v1114 = vunpack.c.0.s8 %v1113
        %v1115 = vlaneseq
        %v1116 = vshrl.u32 %v1115, 7
        %v1117 = vsub.s32 %v1114, %v1116
        %v1118 = vrot.slane %v1103, %v1117
        %v1120 = vunpack.c.l.s4 1966171168
        %v1121 = vunpack.c.0.s8 %v1120
        %v1122 = vlaneseq
        %v1123 = vshrl.u32 %v1122, 7
        %v1124 = vsub.s32 %v1121, %v1123
        %v1125 = vrot.slane %v1104, %v1124
        %v1126 = vcombine.low %v1111, %v1118
        %v1128 = vunpack.c.l.s4 1966171168
        %v1129 = vunpack.c.0.s8 %v1128
        %v1130 = vlaneseq
        %v1131 = vshrl.u32 %v1130, 7
        %v1132 = vsub.s32 %v1129, %v1131
        %v1133 = vrot.slane %v1126, %v1132
        %v1135 = vunpack.c.l.s4 1966171168
        %v1136 = vunpack.c.0.s8 %v1135
        %v1137 = vlaneseq
        %v1138 = vshrl.u32 %v1137, 7
        %v1139 = vsub.s32 %v1136, %v1138
        %v1140 = vrot.slane %v1125, %v1139
        %v1141 = vcombine.low %v1133, %v1140
        %v1144 = vunpack.c.l.b16 %v888
        %v1145 = vunpack.c.l.b16 %v889
        %v1146 = vpack.c.b16 %v1145, %v1144
        %v1147 = vcombine.low %v1038, %v1038
        %v1149 = vunpack.c.l.s4 1983009808
        %v1150 = vunpack.c.0.s8 %v1149
        %v1151 = vlaneseq
        %v1152 = vshrl.u32 %v1151, 7
        %v1153 = vsub.s32 %v1150, %v1152
        %v1154 = vrot.slane %v1147, %v1153
        %v1155 = vcombine.low %v1154, %v1154
        %vm1158 = vcmask 97280
        %v1160 = vsel %vm1158, %v1101, 0
        %v1163 = vsel %vm1158, %v1141, 0
        %vm1165 = vcmask 1045504
        %v1167 = vsel %vm1165, %v1146, 0
        %1169 = vmatprep.subr.bf16.mxu0 0
        %1170 = vmatpush1.bf16.msra.mxu0 %v1167
        %1171 = vmatprep.subr.bf16.mxu0 0
        %1172 = vmatpush1.bf16.msra.mxu0 0
        %1173 = vmatprep.subr.bf16.mxu0 0
        %1174 = vmatpush1.bf16.msra.mxu0 0
        %1175 = vmatprep.subr.bf16.mxu0 0
        %1176 = vmatpush1.bf16.msra.mxu0 0
        %1177 = vmatprep.subr.bf16.mxu0 0
        %1178 = vmatpush1.bf16.msra.mxu0 0
        %1179 = vmatprep.subr.bf16.mxu0 0
        %1180 = vmatpush1.bf16.msra.mxu0 0
        %1181 = vmatprep.subr.bf16.mxu0 0
        %1182 = vmatpush1.bf16.msra.mxu0 0
        %1183 = vmatprep.subr.bf16.mxu0 0
        %1184 = vmatpush1.bf16.msra.mxu0 0
        %1185 = vmatprep.subr.bf16.mxu0 0
        %1186 = vmatpush1.bf16.msra.mxu0 0
        %1187 = vmatprep.subr.bf16.mxu0 0
        %1188 = vmatpush1.bf16.msra.mxu0 0
        %1189 = vmatprep.subr.bf16.mxu0 0
        %1190 = vmatpush1.bf16.msra.mxu0 0
        %1191 = vmatprep.subr.bf16.mxu0 0
        %1192 = vmatpush1.bf16.msra.mxu0 0
        %1193 = vmatprep.subr.bf16.mxu0 0
        %1194 = vmatpush1.bf16.msra.mxu0 0
        %1195 = vmatprep.subr.bf16.mxu0 0
        %1196 = vmatpush1.bf16.msra.mxu0 0
        %1197 = vmatprep.subr.bf16.mxu0 0
        %1198 = vmatpush1.bf16.msra.mxu0 0
        %1199 = vmatprep.subr.bf16.mxu0 0
        %1200 = vmatpush1.bf16.msra.mxu0 0
        %1201 = vmatprep.mubr.bf16.mxu0 0
        %1202 = vmatmul.mubr.bf16.gmra.mrb[0].mxu0 %v1160
        %v1203 = vpop.f32.mrb[0].mxu0
        %v1204 = vadd.f32 %v1155, %v1203
        %v1205 = vpop.f32.mrb[0].mxu0
        %v1206 = vpop.f32.mrb[0].mxu0
        %v1207 = vadd.f32 %v1155, %v1206
        %v1208 = vpop.f32.mrb[0].mxu0
        %1209 = vmatprep.mubr.bf16.mxu0 0
        %1210 = vmatmul.mubr.bf16.gmra.mrb[0].mxu0 %v1163
        %v1211 = vpop.f32.mrb[0].mxu0
        %v1212 = vadd.f32 %v1155, %v1211
        %v1213 = vpop.f32.mrb[0].mxu0
        %v1214 = vpop.f32.mrb[0].mxu0
        %v1215 = vadd.f32 %v1154, %v1214
        %v1216 = vpop.f32.mrb[0].mxu0
        %1217 = vdwg.mxu0
        %v1222 = vcombine.high %v1204, %v1204
        %v1224 = vunpack.c.l.s4 1983009808
        %v1225 = vunpack.c.0.s8 %v1224
        %v1226 = vlaneseq
        %v1227 = vshrl.u32 %v1226, 7
        %v1228 = vsub.s32 %v1225, %v1227
        %v1229 = vrot.slane %v1204, %v1228
        %v1231 = vunpack.c.l.s4 1983009808
        %v1232 = vunpack.c.0.s8 %v1231
        %v1233 = vlaneseq
        %v1234 = vshrl.u32 %v1233, 7
        %v1235 = vsub.s32 %v1232, %v1234
        %v1236 = vrot.slane %v1222, %v1235
        %v1237 = vcombine.high %v1229, %v1229
        %v1238 = vcombine.high %v1236, %v1236
        %v1239 = vcombine.high %v1207, %v1207
        %v1241 = vunpack.c.l.s4 1983009808
        %v1242 = vunpack.c.0.s8 %v1241
        %v1243 = vlaneseq
        %v1244 = vshrl.u32 %v1243, 7
        %v1245 = vsub.s32 %v1242, %v1244
        %v1246 = vrot.slane %v1207, %v1245
        %v1248 = vunpack.c.l.s4 1983009808
        %v1249 = vunpack.c.0.s8 %v1248
        %v1250 = vlaneseq
        %v1251 = vshrl.u32 %v1250, 7
        %v1252 = vsub.s32 %v1249, %v1251
        %v1253 = vrot.slane %v1239, %v1252
        %v1254 = vcombine.high %v1246, %v1246
        %v1255 = vcombine.high %v1253, %v1253
        %v1256 = vcombine.high %v1212, %v1212
        %v1258 = vunpack.c.l.s4 1983009808
        %v1259 = vunpack.c.0.s8 %v1258
        %v1260 = vlaneseq
        %v1261 = vshrl.u32 %v1260, 7
        %v1262 = vsub.s32 %v1259, %v1261
        %v1263 = vrot.slane %v1212, %v1262
        %v1265 = vunpack.c.l.s4 1983009808
        %v1266 = vunpack.c.0.s8 %v1265
        %v1267 = vlaneseq
        %v1268 = vshrl.u32 %v1267, 7
        %v1269 = vsub.s32 %v1266, %v1268
        %v1270 = vrot.slane %v1256, %v1269
        %v1271 = vcombine.high %v1263, %v1263
        %v1272 = vcombine.high %v1270, %v1270
        %v1274 = vunpack.c.l.s4 1983009808
        %v1275 = vunpack.c.0.s8 %v1274
        %v1276 = vlaneseq
        %v1277 = vshrl.u32 %v1276, 7
        %v1278 = vsub.s32 %v1275, %v1277
        %v1279 = vrot.slane %v1215, %v1278
        %v1280 = vcombine.high %v1279, %v1279
        %v1295 = vmax.f32 %v1229, 0.0
        %v1296 = vmax.f32 %v1237, 0.0
        %v1297 = vmax.f32 %v1236, 0.0
        %v1298 = vmax.f32 %v1238, 0.0
        %v1299 = vmax.f32 %v1246, 0.0
        %v1300 = vmax.f32 %v1254, 0.0
        %v1301 = vmax.f32 %v1253, 0.0
        %v1302 = vmax.f32 %v1255, 0.0
        %v1303 = vmax.f32 %v1263, 0.0
        %v1304 = vmax.f32 %v1271, 0.0
        %v1305 = vmax.f32 %v1270, 0.0
        %v1306 = vmax.f32 %v1272, 0.0
        %v1307 = vmax.f32 %v1279, 0.0
        %v1308 = vmax.f32 %v1280, 0.0
        %v1309 = vld [vmem:[%s3] sm:$0xf]
        %v1310 = vld [vmem:[%s3 + $0x4] sm:$0xf]
        %v1311 = vld [vmem:[%s3 + $0x8] sm:$0xf]
        %v1312 = vld [vmem:[%s3 + $0xc] sm:$0xf]
        %v1313 = vld [vmem:[%s3 + $0x10] sm:$0xf]
        %v1314 = vld [vmem:[%s3 + $0x14] sm:$0xf]
        %v1315 = vld [vmem:[%s3 + $0x18] sm:$0xf]
        %v1316 = vld [vmem:[%s3 + $0x1c] sm:$0xf]
        %v1317 = vld [vmem:[%s3 + $0x20] sm:$0xf]
        %v1318 = vld [vmem:[%s3 + $0x24] sm:$0xf]
        %v1319 = vld [vmem:[%s3 + $0x28] sm:$0xf]
        %v1320 = vld [vmem:[%s3 + $0x2c] sm:$0xf]
        %v1321 = vld [vmem:[%s4] sm:$0x1]
        %v1335 = vunpack.c.l.s4 1983009808
        %v1336 = vunpack.c.0.s8 %v1335
        %v1337 = vlaneseq
        %v1338 = vshrl.u32 %v1337, 7
        %v1339 = vsub.s32 %v1336, %v1338
        %v1340 = vrot.slane %v1296, %v1339
        %v1342 = vunpack.c.l.s4 1983009808
        %v1343 = vunpack.c.0.s8 %v1342
        %v1344 = vlaneseq
        %v1345 = vshrl.u32 %v1344, 7
        %v1346 = vsub.s32 %v1343, %v1345
        %v1347 = vrot.slane %v1297, %v1346
        %v1349 = vunpack.c.l.s4 1983009808
        %v1350 = vunpack.c.0.s8 %v1349
        %v1351 = vlaneseq
        %v1352 = vshrl.u32 %v1351, 7
        %v1353 = vsub.s32 %v1350, %v1352
        %v1354 = vrot.slane %v1298, %v1353
        %v1356 = vunpack.c.l.s4 1983009808
        %v1357 = vunpack.c.0.s8 %v1356
        %v1358 = vlaneseq
        %v1359 = vshrl.u32 %v1358, 7
        %v1360 = vsub.s32 %v1357, %v1359
        %v1361 = vrot.slane %v1299, %v1360
        %v1363 = vunpack.c.l.s4 1983009808
        %v1364 = vunpack.c.0.s8 %v1363
        %v1365 = vlaneseq
        %v1366 = vshrl.u32 %v1365, 7
        %v1367 = vsub.s32 %v1364, %v1366
        %v1368 = vrot.slane %v1300, %v1367
        %v1370 = vunpack.c.l.s4 1983009808
        %v1371 = vunpack.c.0.s8 %v1370
        %v1372 = vlaneseq
        %v1373 = vshrl.u32 %v1372, 7
        %v1374 = vsub.s32 %v1371, %v1373
        %v1375 = vrot.slane %v1301, %v1374
        %v1377 = vunpack.c.l.s4 1983009808
        %v1378 = vunpack.c.0.s8 %v1377
        %v1379 = vlaneseq
        %v1380 = vshrl.u32 %v1379, 7
        %v1381 = vsub.s32 %v1378, %v1380
        %v1382 = vrot.slane %v1302, %v1381
        %v1384 = vunpack.c.l.s4 1983009808
        %v1385 = vunpack.c.0.s8 %v1384
        %v1386 = vlaneseq
        %v1387 = vshrl.u32 %v1386, 7
        %v1388 = vsub.s32 %v1385, %v1387
        %v1389 = vrot.slane %v1303, %v1388
        %v1391 = vunpack.c.l.s4 1983009808
        %v1392 = vunpack.c.0.s8 %v1391
        %v1393 = vlaneseq
        %v1394 = vshrl.u32 %v1393, 7
        %v1395 = vsub.s32 %v1392, %v1394
        %v1396 = vrot.slane %v1304, %v1395
        %v1398 = vunpack.c.l.s4 1983009808
        %v1399 = vunpack.c.0.s8 %v1398
        %v1400 = vlaneseq
        %v1401 = vshrl.u32 %v1400, 7
        %v1402 = vsub.s32 %v1399, %v1401
        %v1403 = vrot.slane %v1305, %v1402
        %v1405 = vunpack.c.l.s4 1983009808
        %v1406 = vunpack.c.0.s8 %v1405
        %v1407 = vlaneseq
        %v1408 = vshrl.u32 %v1407, 7
        %v1409 = vsub.s32 %v1406, %v1408
        %v1410 = vrot.slane %v1306, %v1409
        %v1412 = vunpack.c.l.s4 1983009808
        %v1413 = vunpack.c.0.s8 %v1412
        %v1414 = vlaneseq
        %v1415 = vshrl.u32 %v1414, 7
        %v1416 = vsub.s32 %v1413, %v1415
        %v1417 = vrot.slane %v1307, %v1416
        %1418 = vrot.lane.b32.xlu0 %v1340, 32
        %v1419 = vpop.permute.xlu0 %1418
        %1420 = vrot.lane.b32.xlu0 %v1347, 32
        %v1421 = vpop.permute.xlu0 %1420
        %1422 = vrot.lane.b32.xlu0 %v1354, 32
        %v1423 = vpop.permute.xlu0 %1422
        %1424 = vrot.lane.b32.xlu0 %v1361, 32
        %v1425 = vpop.permute.xlu0 %1424
        %1426 = vrot.lane.b32.xlu0 %v1368, 32
        %v1427 = vpop.permute.xlu0 %1426
        %1428 = vrot.lane.b32.xlu0 %v1375, 32
        %v1429 = vpop.permute.xlu0 %1428
        %1430 = vrot.lane.b32.xlu0 %v1382, 32
        %v1431 = vpop.permute.xlu0 %1430
        %1432 = vrot.lane.b32.xlu0 %v1389, 32
        %v1433 = vpop.permute.xlu0 %1432
        %1434 = vrot.lane.b32.xlu0 %v1396, 32
        %v1435 = vpop.permute.xlu0 %1434
        %1436 = vrot.lane.b32.xlu0 %v1403, 32
        %v1437 = vpop.permute.xlu0 %1436
        %1438 = vrot.lane.b32.xlu0 %v1410, 32
        %v1439 = vpop.permute.xlu0 %1438
        %1440 = vrot.lane.b32.xlu0 %v1417, 32
        %v1441 = vpop.permute.xlu0 %1440
        %v1456 = vunpack.c.l.s4 1983009808
        %v1457 = vunpack.c.0.s8 %v1456
        %v1458 = vlaneseq
        %v1459 = vshrl.u32 %v1458, 7
        %v1460 = vsub.s32 %v1457, %v1459
        %v1461 = vrot.slane %v1308, %v1460
        %1462 = vrot.lane.b32.xlu0 %v1347, 64
        %v1463 = vpop.permute.xlu0 %1462
        %1464 = vrot.lane.b32.xlu0 %v1354, 64
        %v1465 = vpop.permute.xlu0 %1464
        %1466 = vrot.lane.b32.xlu0 %v1361, 64
        %v1467 = vpop.permute.xlu0 %1466
        %1468 = vrot.lane.b32.xlu0 %v1368, 64
        %v1469 = vpop.permute.xlu0 %1468
        %1470 = vrot.lane.b32.xlu0 %v1375, 64
        %v1471 = vpop.permute.xlu0 %1470
        %1472 = vrot.lane.b32.xlu0 %v1382, 64
        %v1473 = vpop.permute.xlu0 %1472
        %1474 = vrot.lane.b32.xlu0 %v1389, 64
        %v1475 = vpop.permute.xlu0 %1474
        %1476 = vrot.lane.b32.xlu0 %v1396, 64
        %v1477 = vpop.permute.xlu0 %1476
        %1478 = vrot.lane.b32.xlu0 %v1403, 64
        %v1479 = vpop.permute.xlu0 %1478
        %1480 = vrot.lane.b32.xlu0 %v1410, 64
        %v1481 = vpop.permute.xlu0 %1480
        %1482 = vrot.lane.b32.xlu0 %v1417, 64
        %v1483 = vpop.permute.xlu0 %1482
        %1484 = vrot.lane.b32.xlu0 %v1461, 64
        %v1485 = vpop.permute.xlu0 %1484
        %vm1498 = vcmask 261120
        %v1499 = vsel %vm1498, %v1295, %v1419
        %v1500 = vsel %vm1498, %v1296, %v1421
        %v1501 = vsel %vm1498, %v1297, %v1423
        %v1502 = vsel %vm1498, %v1298, %v1425
        %v1503 = vsel %vm1498, %v1299, %v1427
        %v1504 = vsel %vm1498, %v1300, %v1429
        %v1505 = vsel %vm1498, %v1301, %v1431
        %v1506 = vsel %vm1498, %v1302, %v1433
        %v1507 = vsel %vm1498, %v1303, %v1435
        %v1508 = vsel %vm1498, %v1304, %v1437
        %v1509 = vsel %vm1498, %v1305, %v1439
        %v1510 = vsel %vm1498, %v1306, %v1441
        %vm1511 = vcmask 523264
        %v1512 = vsel %vm1511, %v1499, %v1463
        %v1513 = vsel %vm1511, %v1500, %v1465
        %v1514 = vsel %vm1511, %v1501, %v1467
        %v1515 = vsel %vm1511, %v1502, %v1469
        %v1516 = vsel %vm1511, %v1503, %v1471
        %v1517 = vsel %vm1511, %v1504, %v1473
        %v1518 = vsel %vm1511, %v1505, %v1475
        %v1519 = vsel %vm1511, %v1506, %v1477
        %v1520 = vsel %vm1511, %v1507, %v1479
        %v1521 = vsel %vm1511, %v1508, %v1481
        %v1522 = vsel %vm1511, %v1509, %v1483
        %v1523 = vsel %vm1511, %v1510, %v1485
        %v1524 = vpack.c.bf16 %v1512, %v1512
        %v1525 = vpack.c.bf16 %v1513, %v1513
        %v1526 = vpack.c.bf16 %v1514, %v1514
        %v1527 = vpack.c.bf16 %v1515, %v1515
        %v1528 = vpack.c.bf16 %v1516, %v1516
        %v1529 = vpack.c.bf16 %v1517, %v1517
        %v1530 = vpack.c.bf16 %v1518, %v1518
        %v1531 = vpack.c.bf16 %v1519, %v1519
        %v1532 = vpack.c.bf16 %v1520, %v1520
        %v1533 = vpack.c.bf16 %v1521, %v1521
        %v1534 = vpack.c.bf16 %v1522, %v1522
        %v1535 = vpack.c.bf16 %v1523, %v1523
        %v1537 = vlaneseq
        %v1538 = vshrl.u32 %v1537, 7
        %v1539 = vsub.s32 0, %v1538
        %v1540 = vrot.slane %v1321, %v1539
        %v1553 = vcombine.low %v1524, %v1525
        %v1554 = vcombine.low %v1526, %v1527
        %v1555 = vcombine.low %v1528, %v1529
        %v1556 = vcombine.low %v1530, %v1531
        %v1558 = vunpack.c.l.s4 1966171168
        %v1559 = vunpack.c.0.s8 %v1558
        %v1560 = vlaneseq
        %v1561 = vshrl.u32 %v1560, 7
        %v1562 = vsub.s32 %v1559, %v1561
        %v1563 = vrot.slane %v1553, %v1562
        %v1565 = vunpack.c.l.s4 1966171168
        %v1566 = vunpack.c.0.s8 %v1565
        %v1567 = vlaneseq
        %v1568 = vshrl.u32 %v1567, 7
        %v1569 = vsub.s32 %v1566, %v1568
        %v1570 = vrot.slane %v1554, %v1569
        %v1572 = vunpack.c.l.s4 1966171168
        %v1573 = vunpack.c.0.s8 %v1572
        %v1574 = vlaneseq
        %v1575 = vshrl.u32 %v1574, 7
        %v1576 = vsub.s32 %v1573, %v1575
        %v1577 = vrot.slane %v1555, %v1576
        %v1579 = vunpack.c.l.s4 1966171168
        %v1580 = vunpack.c.0.s8 %v1579
        %v1581 = vlaneseq
        %v1582 = vshrl.u32 %v1581, 7
        %v1583 = vsub.s32 %v1580, %v1582
        %v1584 = vrot.slane %v1556, %v1583
        %v1585 = vcombine.low %v1563, %v1570
        %v1586 = vcombine.low %v1577, %v1584
        %v1588 = vunpack.c.l.s4 1966171168
        %v1589 = vunpack.c.0.s8 %v1588
        %v1590 = vlaneseq
        %v1591 = vshrl.u32 %v1590, 7
        %v1592 = vsub.s32 %v1589, %v1591
        %v1593 = vrot.slane %v1585, %v1592
        %v1595 = vunpack.c.l.s4 1966171168
        %v1596 = vunpack.c.0.s8 %v1595
        %v1597 = vlaneseq
        %v1598 = vshrl.u32 %v1597, 7
        %v1599 = vsub.s32 %v1596, %v1598
        %v1600 = vrot.slane %v1586, %v1599
        %v1601 = vcombine.low %v1593, %v1600
        %v1602 = vcombine.low %v1532, %v1533
        %v1603 = vcombine.low %v1534, %v1535
        %v1605 = vunpack.c.l.s4 1966171168
        %v1606 = vunpack.c.0.s8 %v1605
        %v1607 = vlaneseq
        %v1608 = vshrl.u32 %v1607, 7
        %v1609 = vsub.s32 %v1606, %v1608
        %v1610 = vrot.slane %v1602, %v1609
        %v1612 = vunpack.c.l.s4 1966171168
        %v1613 = vunpack.c.0.s8 %v1612
        %v1614 = vlaneseq
        %v1615 = vshrl.u32 %v1614, 7
        %v1616 = vsub.s32 %v1613, %v1615
        %v1617 = vrot.slane %v1603, %v1616
        %v1618 = vcombine.low %v1610, %v1617
        %v1620 = vunpack.c.l.s4 1966171168
        %v1621 = vunpack.c.0.s8 %v1620
        %v1622 = vlaneseq
        %v1623 = vshrl.u32 %v1622, 7
        %v1624 = vsub.s32 %v1621, %v1623
        %v1625 = vrot.slane %v1618, %v1624
        %v1638 = vunpack.c.l.b16 %v1309
        %v1639 = vunpack.c.l.b16 %v1310
        %v1640 = vunpack.c.l.b16 %v1311
        %v1641 = vunpack.c.l.b16 %v1312
        %v1642 = vunpack.c.l.b16 %v1313
        %v1643 = vunpack.c.l.b16 %v1314
        %v1644 = vunpack.c.l.b16 %v1315
        %v1645 = vunpack.c.l.b16 %v1316
        %v1646 = vunpack.c.l.b16 %v1317
        %v1647 = vunpack.c.l.b16 %v1318
        %v1648 = vunpack.c.l.b16 %v1319
        %v1649 = vunpack.c.l.b16 %v1320
        %v1650 = vpack.c.b16 %v1639, %v1638
        %v1651 = vpack.c.b16 %v1641, %v1640
        %v1652 = vpack.c.b16 %v1643, %v1642
        %v1653 = vpack.c.b16 %v1645, %v1644
        %v1654 = vpack.c.b16 %v1647, %v1646
        %v1655 = vpack.c.b16 %v1649, %v1648
        %v1662 = vcombine.low %v1540, %v1540
        %v1664 = vunpack.c.l.s4 1983009808
        %v1665 = vunpack.c.0.s8 %v1664
        %v1666 = vlaneseq
        %v1667 = vshrl.u32 %v1666, 7
        %v1668 = vsub.s32 %v1665, %v1667
        %v1669 = vrot.slane %v1662, %v1668
        %v1670 = vcombine.low %v1669, %v1669
        %vm1672 = vcmask 785408
        %v1674 = vsel %vm1672, %v1601, 0
        %v1677 = vsel %vm1672, %v1625, 0
        %1679 = vmatprep.subr.bf16.mxu0 0
        %1680 = vmatpush1.bf16.msra.mxu0 %v1650
        %1681 = vmatprep.subr.bf16.mxu0 0
        %1682 = vmatpush1.bf16.msra.mxu0 %v1651
        %1683 = vmatprep.subr.bf16.mxu0 0
        %1684 = vmatpush1.bf16.msra.mxu0 %v1652
        %1685 = vmatprep.subr.bf16.mxu0 0
        %1686 = vmatpush1.bf16.msra.mxu0 %v1653
        %1687 = vmatprep.subr.bf16.mxu0 0
        %1688 = vmatpush1.bf16.msra.mxu0 %v1654
        %1689 = vmatprep.subr.bf16.mxu0 0
        %1690 = vmatpush1.bf16.msra.mxu0 %v1655
        %1691 = vmatprep.subr.bf16.mxu0 0
        %1692 = vmatpush1.bf16.msra.mxu0 0
        %1693 = vmatprep.subr.bf16.mxu0 0
        %1694 = vmatpush1.bf16.msra.mxu0 0
        %1695 = vmatprep.subr.bf16.mxu0 0
        %1696 = vmatpush1.bf16.msra.mxu0 0
        %1697 = vmatprep.subr.bf16.mxu0 0
        %1698 = vmatpush1.bf16.msra.mxu0 0
        %1699 = vmatprep.subr.bf16.mxu0 0
        %1700 = vmatpush1.bf16.msra.mxu0 0
        %1701 = vmatprep.subr.bf16.mxu0 0
        %1702 = vmatpush1.bf16.msra.mxu0 0
        %1703 = vmatprep.subr.bf16.mxu0 0
        %1704 = vmatpush1.bf16.msra.mxu0 0
        %1705 = vmatprep.subr.bf16.mxu0 0
        %1706 = vmatpush1.bf16.msra.mxu0 0
        %1707 = vmatprep.subr.bf16.mxu0 0
        %1708 = vmatpush1.bf16.msra.mxu0 0
        %1709 = vmatprep.subr.bf16.mxu0 0
        %1710 = vmatpush1.bf16.msra.mxu0 0
        %1711 = vmatprep.mubr.bf16.mxu0 0
        %1712 = vmatmul.mubr.bf16.gmra.mrb[0].mxu0 %v1674
        %v1713 = vpop.f32.mrb[0].mxu0
        %v1714 = vadd.f32 %v1670, %v1713
        %v1715 = vpop.f32.mrb[0].mxu0
        %v1716 = vpop.f32.mrb[0].mxu0
        %v1717 = vadd.f32 %v1670, %v1716
        %v1718 = vpop.f32.mrb[0].mxu0
        %1719 = vmatprep.mubr.bf16.mxu0 0
        %1720 = vmatmul.mubr.bf16.gmra.mrb[0].mxu0 %v1677
        %v1721 = vpop.f32.mrb[0].mxu0
        %v1722 = vadd.f32 %v1670, %v1721
        %v1723 = vpop.f32.mrb[0].mxu0
        %v1724 = vpop.f32.mrb[0].mxu0
        %v1725 = vpop.f32.mrb[0].mxu0
        %1726 = vdwg.mxu0
        %v1730 = vcombine.high %v1714, %v1714
        %v1732 = vunpack.c.l.s4 1983009808
        %v1733 = vunpack.c.0.s8 %v1732
        %v1734 = vlaneseq
        %v1735 = vshrl.u32 %v1734, 7
        %v1736 = vsub.s32 %v1733, %v1735
        %v1737 = vrot.slane %v1714, %v1736
        %v1739 = vunpack.c.l.s4 1983009808
        %v1740 = vunpack.c.0.s8 %v1739
        %v1741 = vlaneseq
        %v1742 = vshrl.u32 %v1741, 7
        %v1743 = vsub.s32 %v1740, %v1742
        %v1744 = vrot.slane %v1730, %v1743
        %v1745 = vcombine.high %v1737, %v1737
        %v1746 = vcombine.high %v1744, %v1744
        %v1747 = vcombine.high %v1717, %v1717
        %v1749 = vunpack.c.l.s4 1983009808
        %v1750 = vunpack.c.0.s8 %v1749
        %v1751 = vlaneseq
        %v1752 = vshrl.u32 %v1751, 7
        %v1753 = vsub.s32 %v1750, %v1752
        %v1754 = vrot.slane %v1717, %v1753
        %v1756 = vunpack.c.l.s4 1983009808
        %v1757 = vunpack.c.0.s8 %v1756
        %v1758 = vlaneseq
        %v1759 = vshrl.u32 %v1758, 7
        %v1760 = vsub.s32 %v1757, %v1759
        %v1761 = vrot.slane %v1747, %v1760
        %v1762 = vcombine.high %v1754, %v1754
        %v1763 = vcombine.high %v1761, %v1761
        %v1764 = vcombine.high %v1722, %v1722
        %v1766 = vunpack.c.l.s4 1983009808
        %v1767 = vunpack.c.0.s8 %v1766
        %v1768 = vlaneseq
        %v1769 = vshrl.u32 %v1768, 7
        %v1770 = vsub.s32 %v1767, %v1769
        %v1771 = vrot.slane %v1722, %v1770
        %v1773 = vunpack.c.l.s4 1983009808
        %v1774 = vunpack.c.0.s8 %v1773
        %v1775 = vlaneseq
        %v1776 = vshrl.u32 %v1775, 7
        %v1777 = vsub.s32 %v1774, %v1776
        %v1778 = vrot.slane %v1764, %v1777
        %v1779 = vcombine.high %v1771, %v1771
        %v1780 = vcombine.high %v1778, %v1778
        %v1793 = vmax.f32 %v1737, 0.0
        %v1794 = vmax.f32 %v1745, 0.0
        %v1795 = vmax.f32 %v1744, 0.0
        %v1796 = vmax.f32 %v1746, 0.0
        %v1797 = vmax.f32 %v1754, 0.0
        %v1798 = vmax.f32 %v1762, 0.0
        %v1799 = vmax.f32 %v1761, 0.0
        %v1800 = vmax.f32 %v1763, 0.0
        %v1801 = vmax.f32 %v1771, 0.0
        %v1802 = vmax.f32 %v1779, 0.0
        %v1803 = vmax.f32 %v1778, 0.0
        %v1804 = vmax.f32 %v1780, 0.0
        %vm1805 = vcmask 58368
        %v1806 = vsel %vm1805, %v1793, -inf
        %v1807 = vsel %vm1805, %v1794, -inf
        %v1808 = vmax.f32 %v1806, %v1807
        %v1809 = vsel %vm1805, %v1795, -inf
        %v1810 = vsel %vm1805, %v1796, -inf
        %v1811 = vmax.f32 %v1809, %v1810
        %v1812 = vsel %vm1805, %v1797, -inf
        %v1813 = vsel %vm1805, %v1798, -inf
        %v1814 = vmax.f32 %v1812, %v1813
        %v1815 = vsel %vm1805, %v1799, -inf
        %v1816 = vsel %vm1805, %v1800, -inf
        %v1817 = vmax.f32 %v1815, %v1816
        %v1818 = vsel %vm1805, %v1801, -inf
        %v1819 = vsel %vm1805, %v1802, -inf
        %v1820 = vmax.f32 %v1818, %v1819
        %v1821 = vsel %vm1805, %v1803, -inf
        %v1822 = vsel %vm1805, %v1804, -inf
        %v1823 = vmax.f32 %v1821, %v1822
        %v1824 = vld [vmem:[%s693] sm:$0xf]
        %v1825 = vld [vmem:[%s848] sm:$0xf]
        %v1826 = vld [vmem:[%s848 + $0x4] sm:$0xf]
        %v1827 = vld [vmem:[%s848 + $0x8] sm:$0xf]
        %v1828 = vld [vmem:[%s848 + $0xc] sm:$0xf]
        %v1829 = vld [vmem:[%s851] sm:$0x1]
        %v1830 = vpack.c.bf16 %v1808, %v1808
        %v1831 = vpack.c.bf16 %v1811, %v1811
        %v1832 = vpack.c.bf16 %v1814, %v1814
        %v1833 = vpack.c.bf16 %v1817, %v1817
        %v1834 = vpack.c.bf16 %v1820, %v1820
        %v1835 = vpack.c.bf16 %v1823, %v1823
        %v1837 = vlaneseq
        %v1838 = vshrl.u32 %v1837, 7
        %v1839 = vsub.s32 0, %v1838
        %v1840 = vrot.slane %v1829, %v1839
        %v1847 = vcombine.low %v1830, %v1831
        %v1848 = vcombine.low %v1832, %v1833
        %v1849 = vcombine.low %v1834, %v1835
        %v1851 = vunpack.c.l.s4 1966171168
        %v1852 = vunpack.c.0.s8 %v1851
        %v1853 = vlaneseq
        %v1854 = vshrl.u32 %v1853, 7
        %v1855 = vsub.s32 %v1852, %v1854
        %v1856 = vrot.slane %v1847, %v1855
        %v1858 = vunpack.c.l.s4 1966171168
        %v1859 = vunpack.c.0.s8 %v1858
        %v1860 = vlaneseq
        %v1861 = vshrl.u32 %v1860, 7
        %v1862 = vsub.s32 %v1859, %v1861
        %v1863 = vrot.slane %v1848, %v1862
        %v1865 = vunpack.c.l.s4 1966171168
        %v1866 = vunpack.c.0.s8 %v1865
        %v1867 = vlaneseq
        %v1868 = vshrl.u32 %v1867, 7
        %v1869 = vsub.s32 %v1866, %v1868
        %v1870 = vrot.slane %v1849, %v1869
        %v1871 = vcombine.low %v1856, %v1863
        %v1873 = vunpack.c.l.s4 1966171168
        %v1874 = vunpack.c.0.s8 %v1873
        %v1875 = vlaneseq
        %v1876 = vshrl.u32 %v1875, 7
        %v1877 = vsub.s32 %v1874, %v1876
        %v1878 = vrot.slane %v1871, %v1877
        %v1880 = vunpack.c.l.s4 1966171168
        %v1881 = vunpack.c.0.s8 %v1880
        %v1882 = vlaneseq
        %v1883 = vshrl.u32 %v1882, 7
        %v1884 = vsub.s32 %v1881, %v1883
        %v1885 = vrot.slane %v1870, %v1884
        %v1886 = vcombine.low %v1878, %v1885
        %v1887 = vcombine.low %v1840, %v1840
        %v1889 = vunpack.c.l.s4 1983009808
        %v1890 = vunpack.c.0.s8 %v1889
        %v1891 = vlaneseq
        %v1892 = vshrl.u32 %v1891, 7
        %v1893 = vsub.s32 %v1890, %v1892
        %v1894 = vrot.slane %v1887, %v1893
        %v1895 = vcombine.low %v1894, %v1894
        %v1899 = vsel %vm1005, %v1886, 0
        %vm1901 = vcmask 1043456
        %v1903 = vsel %vm1901, %v1824, 0
        %1905 = vmatprep.subr.bf16.mxu0 0
        %1906 = vmatpush1.bf16.msra.mxu0 %v1903
        %1907 = vmatprep.subr.bf16.mxu0 0
        %1908 = vmatpush1.bf16.msra.mxu0 0
        %1909 = vmatprep.subr.bf16.mxu0 0
        %1910 = vmatpush1.bf16.msra.mxu0 0
        %1911 = vmatprep.subr.bf16.mxu0 0
        %1912 = vmatpush1.bf16.msra.mxu0 0
        %1913 = vmatprep.subr.bf16.mxu0 0
        %1914 = vmatpush1.bf16.msra.mxu0 0
        %1915 = vmatprep.subr.bf16.mxu0 0
        %1916 = vmatpush1.bf16.msra.mxu0 0
        %1917 = vmatprep.subr.bf16.mxu0 0
        %1918 = vmatpush1.bf16.msra.mxu0 0
        %1919 = vmatprep.subr.bf16.mxu0 0
        %1920 = vmatpush1.bf16.msra.mxu0 0
        %1921 = vmatprep.subr.bf16.mxu0 0
        %1922 = vmatpush1.bf16.msra.mxu0 0
        %1923 = vmatprep.subr.bf16.mxu0 0
        %1924 = vmatpush1.bf16.msra.mxu0 0
        %1925 = vmatprep.subr.bf16.mxu0 0
        %1926 = vmatpush1.bf16.msra.mxu0 0
        %1927 = vmatprep.subr.bf16.mxu0 0
        %1928 = vmatpush1.bf16.msra.mxu0 0
        %1929 = vmatprep.subr.bf16.mxu0 0
        %1930 = vmatpush1.bf16.msra.mxu0 0
        %1931 = vmatprep.subr.bf16.mxu0 0
        %1932 = vmatpush1.bf16.msra.mxu0 0
        %1933 = vmatprep.subr.bf16.mxu0 0
        %1934 = vmatpush1.bf16.msra.mxu0 0
        %1935 = vmatprep.subr.bf16.mxu0 0
        %1936 = vmatpush1.bf16.msra.mxu0 0
        %1937 = vmatprep.mubr.bf16.mxu0 0
        %1938 = vmatmul.mubr.bf16.gmra.mrb[0].mxu0 %v1899
        %v1939 = vpop.f32.mrb[0].mxu0
        %v1940 = vadd.f32 %v1895, %v1939
        %v1941 = vpop.f32.mrb[0].mxu0
        %v1942 = vpop.f32.mrb[0].mxu0
        %v1943 = vadd.f32 %v1894, %v1942
        %v1944 = vpop.f32.mrb[0].mxu0
        %1945 = vdwg.mxu0
        %v1948 = vcombine.high %v1940, %v1940
        %v1950 = vunpack.c.l.s4 1983009808
        %v1951 = vunpack.c.0.s8 %v1950
        %v1952 = vlaneseq
        %v1953 = vshrl.u32 %v1952, 7
        %v1954 = vsub.s32 %v1951, %v1953
        %v1955 = vrot.slane %v1940, %v1954
        %v1957 = vunpack.c.l.s4 1983009808
        %v1958 = vunpack.c.0.s8 %v1957
        %v1959 = vlaneseq
        %v1960 = vshrl.u32 %v1959, 7
        %v1961 = vsub.s32 %v1958, %v1960
        %v1962 = vrot.slane %v1948, %v1961
        %v1963 = vcombine.high %v1955, %v1955
        %v1964 = vcombine.high %v1962, %v1962
        %v1966 = vunpack.c.l.s4 1983009808
        %v1967 = vunpack.c.0.s8 %v1966
        %v1968 = vlaneseq
        %v1969 = vshrl.u32 %v1968, 7
        %v1970 = vsub.s32 %v1967, %v1969
        %v1971 = vrot.slane %v1943, %v1970
        %v1972 = vcombine.high %v1971, %v1971
        %v1983 = vunpack.c.l.b16 %v1825
        %v1984 = vunpack.c.l.b16 %v1826
        %v1985 = vunpack.c.l.b16 %v1827
        %v1986 = vunpack.c.l.b16 %v1828
        %v1987 = vpack.c.b16 %v1984, %v1983
        %v1988 = vpack.c.b16 %v1986, %v1985
        %v1992 = vsel %vm1498, 0, 0
        %1994 = vmatprep.subr.bf16.mxu0 0
        %1995 = vmatpush1.bf16.msra.mxu0 %v1987
        %1996 = vmatprep.subr.bf16.mxu0 0
        %1997 = vmatpush1.bf16.msra.mxu0 %v1988
        %1998 = vmatprep.subr.bf16.mxu0 0
        %1999 = vmatpush1.bf16.msra.mxu0 0
        %2000 = vmatprep.subr.bf16.mxu0 0
        %2001 = vmatpush1.bf16.msra.mxu0 0
        %2002 = vmatprep.subr.bf16.mxu0 0
        %2003 = vmatpush1.bf16.msra.mxu0 0
        %2004 = vmatprep.subr.bf16.mxu0 0
        %2005 = vmatpush1.bf16.msra.mxu0 0
        %2006 = vmatprep.subr.bf16.mxu0 0
        %2007 = vmatpush1.bf16.msra.mxu0 0
        %2008 = vmatprep.subr.bf16.mxu0 0
        %2009 = vmatpush1.bf16.msra.mxu0 0
        %2010 = vmatprep.subr.bf16.mxu0 0
        %2011 = vmatpush1.bf16.msra.mxu0 0
        %2012 = vmatprep.subr.bf16.mxu0 0
        %2013 = vmatpush1.bf16.msra.mxu0 0
        %2014 = vmatprep.subr.bf16.mxu0 0
        %2015 = vmatpush1.bf16.msra.mxu0 0
        %2016 = vmatprep.subr.bf16.mxu0 0
        %2017 = vmatpush1.bf16.msra.mxu0 0
        %2018 = vmatprep.subr.bf16.mxu0 0
        %2019 = vmatpush1.bf16.msra.mxu0 0
        %2020 = vmatprep.subr.bf16.mxu0 0
        %2021 = vmatpush1.bf16.msra.mxu0 0
        %2022 = vmatprep.subr.bf16.mxu0 0
        %2023 = vmatpush1.bf16.msra.mxu0 0
        %2024 = vmatprep.subr.bf16.mxu0 0
        %2025 = vmatpush1.bf16.msra.mxu0 0
        %2026 = vmatprep.mubr.bf16.mxu0 0
        %2027 = vmatmul.mubr.bf16.gmra.mrb[0].mxu0 %v1992
        %v2028 = vpop.f32.mrb[0].mxu0
        %v2029 = vadd.f32 0.0, %v2028
        %v2030 = vpop.f32.mrb[0].mxu0
        %v2031 = vpop.f32.mrb[0].mxu0
        %v2032 = vpop.f32.mrb[0].mxu0
        %2033 = vdwg.mxu0
        %v2034 = vadd.f32 %v1955, %v2029
        %v2035 = vxor.u32 %v2034, 2147483648
        %v2036 = vmul.f32 %v2035, 1.442695
        %v2037 = vpow.pop %v2036
        %v2038 = vadd.f32 %v2037, 1.0
        %v2039 = vrcp.pop %v2038
        %v2040 = vmul.f32 1.0, %v2039
        %2041 = vrot.lane.b32.xlu0 %v1987, 96
        %v2042 = vpop.permute.xlu0 %2041
        %2043 = vrot.lane.b32.xlu0 %v1988, 96
        %v2044 = vpop.permute.xlu0 %2043
        %2047 = vmatprep.subr.bf16.mxu0 0
        %2048 = vmatpush1.bf16.msra.mxu0 %v2042
        %2049 = vmatprep.subr.bf16.mxu0 0
        %2050 = vmatpush1.bf16.msra.mxu0 %v2044
        %2051 = vmatprep.subr.bf16.mxu0 0
        %2052 = vmatpush1.bf16.msra.mxu0 0
        %2053 = vmatprep.subr.bf16.mxu0 0
        %2054 = vmatpush1.bf16.msra.mxu0 0
        %2055 = vmatprep.subr.bf16.mxu0 0
        %2056 = vmatpush1.bf16.msra.mxu0 0
        %2057 = vmatprep.subr.bf16.mxu0 0
        %2058 = vmatpush1.bf16.msra.mxu0 0
        %2059 = vmatprep.subr.bf16.mxu0 0
        %2060 = vmatpush1.bf16.msra.mxu0 0
        %2061 = vmatprep.subr.bf16.mxu0 0
        %2062 = vmatpush1.bf16.msra.mxu0 0
        %2063 = vmatprep.subr.bf16.mxu0 0
        %2064 = vmatpush1.bf16.msra.mxu0 0
        %2065 = vmatprep.subr.bf16.mxu0 0
        %2066 = vmatpush1.bf16.msra.mxu0 0
        %2067 = vmatprep.subr.bf16.mxu0 0
        %2068 = vmatpush1.bf16.msra.mxu0 0
        %2069 = vmatprep.subr.bf16.mxu0 0
        %2070 = vmatpush1.bf16.msra.mxu0 0
        %2071 = vmatprep.subr.bf16.mxu0 0
        %2072 = vmatpush1.bf16.msra.mxu0 0
        %2073 = vmatprep.subr.bf16.mxu0 0
        %2074 = vmatpush1.bf16.msra.mxu0 0
        %2075 = vmatprep.subr.bf16.mxu0 0
        %2076 = vmatpush1.bf16.msra.mxu0 0
        %2077 = vmatprep.subr.bf16.mxu0 0
        %2078 = vmatpush1.bf16.msra.mxu0 0
        %2079 = vmatprep.mubr.bf16.mxu0 0
        %2080 = vmatmul.mubr.bf16.gmra.mrb[0].mxu0 %v1992
        %v2081 = vpop.f32.mrb[0].mxu0
        %v2082 = vadd.f32 0.0, %v2081
        %v2083 = vpop.f32.mrb[0].mxu0
        %v2084 = vpop.f32.mrb[0].mxu0
        %v2085 = vpop.f32.mrb[0].mxu0
        %2086 = vdwg.mxu0
        %v2089 = vunpack.c.l.s4 1983009808
        %v2090 = vunpack.c.0.s8 %v2089
        %v2091 = vlaneseq
        %v2092 = vshrl.u32 %v2091, 7
        %v2093 = vsub.s32 %v2090, %v2092
        %v2094 = vrot.slane %v2082, %v2093
        %2095 = vrot.lane.b32.xlu0 %v2094, 32
        %v2096 = vpop.permute.xlu0 %2095
        %v2098 = vadd.f32 %v1955, %v2096
        %v2099 = vxor.u32 %v2098, 2147483648
        %v2100 = vmul.f32 %v2099, 1.442695
        %v2101 = vpow.pop %v2100
        %v2102 = vadd.f32 %v2101, 1.0
        %v2103 = vrcp.pop %v2102
        %v2104 = vmul.f32 1.0, %v2103
        %2105 = vrot.lane.b32.xlu0 %v1987, 64
        %v2106 = vpop.permute.xlu0 %2105
        %2107 = vrot.lane.b32.xlu0 %v1988, 64
        %v2108 = vpop.permute.xlu0 %2107
        %2111 = vmatprep.subr.bf16.mxu0 0
        %2112 = vmatpush1.bf16.msra.mxu0 %v2106
        %2113 = vmatprep.subr.bf16.mxu0 0
        %2114 = vmatpush1.bf16.msra.mxu0 %v2108
        %2115 = vmatprep.subr.bf16.mxu0 0
        %2116 = vmatpush1.bf16.msra.mxu0 0
        %2117 = vmatprep.subr.bf16.mxu0 0
        %2118 = vmatpush1.bf16.msra.mxu0 0
        %2119 = vmatprep.subr.bf16.mxu0 0
        %2120 = vmatpush1.bf16.msra.mxu0 0
        %2121 = vmatprep.subr.bf16.mxu0 0
        %2122 = vmatpush1.bf16.msra.mxu0 0
        %2123 = vmatprep.subr.bf16.mxu0 0
        %2124 = vmatpush1.bf16.msra.mxu0 0
        %2125 = vmatprep.subr.bf16.mxu0 0
        %2126 = vmatpush1.bf16.msra.mxu0 0
        %2127 = vmatprep.subr.bf16.mxu0 0
        %2128 = vmatpush1.bf16.msra.mxu0 0
        %2129 = vmatprep.subr.bf16.mxu0 0
        %2130 = vmatpush1.bf16.msra.mxu0 0
        %2131 = vmatprep.subr.bf16.mxu0 0
        %2132 = vmatpush1.bf16.msra.mxu0 0
        %2133 = vmatprep.subr.bf16.mxu0 0
        %2134 = vmatpush1.bf16.msra.mxu0 0
        %2135 = vmatprep.subr.bf16.mxu0 0
        %2136 = vmatpush1.bf16.msra.mxu0 0
        %2137 = vmatprep.subr.bf16.mxu0 0
        %2138 = vmatpush1.bf16.msra.mxu0 0
        %2139 = vmatprep.subr.bf16.mxu0 0
        %2140 = vmatpush1.bf16.msra.mxu0 0
        %2141 = vmatprep.subr.bf16.mxu0 0
        %2142 = vmatpush1.bf16.msra.mxu0 0
        %2143 = vmatprep.mubr.bf16.mxu0 0
        %2144 = vmatmul.mubr.bf16.gmra.mrb[0].mxu0 %v1992
        %v2145 = vpop.f32.mrb[0].mxu0
        %v2146 = vadd.f32 0.0, %v2145
        %v2147 = vpop.f32.mrb[0].mxu0
        %v2148 = vpop.f32.mrb[0].mxu0
        %v2149 = vpop.f32.mrb[0].mxu0
        %2150 = vdwg.mxu0
        %v2153 = vunpack.c.l.s4 1983009808
        %v2154 = vunpack.c.0.s8 %v2153
        %v2155 = vlaneseq
        %v2156 = vshrl.u32 %v2155, 7
        %v2157 = vsub.s32 %v2154, %v2156
        %v2158 = vrot.slane %v2146, %v2157
        %2159 = vrot.lane.b32.xlu0 %v2158, 64
        %v2160 = vpop.permute.xlu0 %2159
        %v2162 = vadd.f32 %v1955, %v2160
        %v2163 = vtanh.pop %v2162
        %2164 = vrot.lane.b32.xlu0 %v1987, 32
        %v2165 = vpop.permute.xlu0 %2164
        %2166 = vrot.lane.b32.xlu0 %v1988, 32
        %v2167 = vpop.permute.xlu0 %2166
        %2170 = vmatprep.subr.bf16.mxu0 0
        %2171 = vmatpush1.bf16.msra.mxu0 %v2165
        %2172 = vmatprep.subr.bf16.mxu0 0
        %2173 = vmatpush1.bf16.msra.mxu0 %v2167
        %2174 = vmatprep.subr.bf16.mxu0 0
        %2175 = vmatpush1.bf16.msra.mxu0 0
        %2176 = vmatprep.subr.bf16.mxu0 0
        %2177 = vmatpush1.bf16.msra.mxu0 0
        %2178 = vmatprep.subr.bf16.mxu0 0
        %2179 = vmatpush1.bf16.msra.mxu0 0
        %2180 = vmatprep.subr.bf16.mxu0 0
        %2181 = vmatpush1.bf16.msra.mxu0 0
        %2182 = vmatprep.subr.bf16.mxu0 0
        %2183 = vmatpush1.bf16.msra.mxu0 0
        %2184 = vmatprep.subr.bf16.mxu0 0
        %2185 = vmatpush1.bf16.msra.mxu0 0
        %2186 = vmatprep.subr.bf16.mxu0 0
        %2187 = vmatpush1.bf16.msra.mxu0 0
        %2188 = vmatprep.subr.bf16.mxu0 0
        %2189 = vmatpush1.bf16.msra.mxu0 0
        %2190 = vmatprep.subr.bf16.mxu0 0
        %2191 = vmatpush1.bf16.msra.mxu0 0
        %2192 = vmatprep.subr.bf16.mxu0 0
        %2193 = vmatpush1.bf16.msra.mxu0 0
        %2194 = vmatprep.subr.bf16.mxu0 0
        %2195 = vmatpush1.bf16.msra.mxu0 0
        %2196 = vmatprep.subr.bf16.mxu0 0
        %2197 = vmatpush1.bf16.msra.mxu0 0
        %2198 = vmatprep.subr.bf16.mxu0 0
        %2199 = vmatpush1.bf16.msra.mxu0 0
        %2200 = vmatprep.subr.bf16.mxu0 0
        %2201 = vmatpush1.bf16.msra.mxu0 0
        %2202 = vmatprep.mubr.bf16.mxu0 0
        %2203 = vmatmul.mubr.bf16.gmra.mrb[0].mxu0 %v1992
        %v2204 = vpop.f32.mrb[0].mxu0
        %v2205 = vadd.f32 0.0, %v2204
        %v2206 = vpop.f32.mrb[0].mxu0
        %v2207 = vpop.f32.mrb[0].mxu0
        %v2208 = vpop.f32.mrb[0].mxu0
        %2209 = vdwg.mxu0
        %v2212 = vunpack.c.l.s4 1983009808
        %v2213 = vunpack.c.0.s8 %v2212
        %v2214 = vlaneseq
        %v2215 = vshrl.u32 %v2214, 7
        %v2216 = vsub.s32 %v2213, %v2215
        %v2217 = vrot.slane %v2205, %v2216
        %2218 = vrot.lane.b32.xlu0 %v2217, 96
        %v2219 = vpop.permute.xlu0 %2218
        %v2221 = vadd.f32 %v1955, %v2219
        %v2222 = vxor.u32 %v2221, 2147483648
        %v2223 = vmul.f32 %v2222, 1.442695
        %v2224 = vpow.pop %v2223
        %v2225 = vadd.f32 %v2224, 1.0
        %v2226 = vrcp.pop %v2225
        %v2227 = vmul.f32 1.0, %v2226
        %v2228 = vmul.f32 %v2104, 0.0
        %2230 = vrot.lane.b32.xlu0 %v2163, 64
        %v2231 = vpop.permute.xlu0 %2230
        %v2233 = vmul.f32 %v2040, %v2231
        %2235 = vrot.lane.b32.xlu0 %v2233, 32
        %v2236 = vpop.permute.xlu0 %2235
        %v2238 = vadd.f32 %v2228, %v2236
        %v2239 = vtanh.pop %v2238
        %2241 = vrot.lane.b32.xlu0 %v2239, 64
        %v2242 = vpop.permute.xlu0 %2241
        %v2244 = vmul.f32 %v2227, %v2242
        %v2245 = vpack.c.bf16 %v2244, %v2244
        %2247 = vrot.lane.b32.xlu0 %v2245, 32
        %v2248 = vpop.permute.xlu0 %2247
        %v2250 = vsel %vm1498, %v2248, 0
        %2252 = vmatprep.subr.bf16.mxu0 0
        %2253 = vmatpush1.bf16.msra.mxu0 %v1987
        %2254 = vmatprep.subr.bf16.mxu0 0
        %2255 = vmatpush1.bf16.msra.mxu0 %v1988
        %2256 = vmatprep.subr.bf16.mxu0 0
        %2257 = vmatpush1.bf16.msra.mxu0 0
        %2258 = vmatprep.subr.bf16.mxu0 0
        %2259 = vmatpush1.bf16.msra.mxu0 0
        %2260 = vmatprep.subr.bf16.mxu0 0
        %2261 = vmatpush1.bf16.msra.mxu0 0
        %2262 = vmatprep.subr.bf16.mxu0 0
        %2263 = vmatpush1.bf16.msra.mxu0 0
        %2264 = vmatprep.subr.bf16.mxu0 0
        %2265 = vmatpush1.bf16.msra.mxu0 0
        %2266 = vmatprep.subr.bf16.mxu0 0
        %2267 = vmatpush1.bf16.msra.mxu0 0
        %2268 = vmatprep.subr.bf16.mxu0 0
        %2269 = vmatpush1.bf16.msra.mxu0 0
        %2270 = vmatprep.subr.bf16.mxu0 0
        %2271 = vmatpush1.bf16.msra.mxu0 0
        %2272 = vmatprep.subr.bf16.mxu0 0
        %2273 = vmatpush1.bf16.msra.mxu0 0
        %2274 = vmatprep.subr.bf16.mxu0 0
        %2275 = vmatpush1.bf16.msra.mxu0 0
        %2276 = vmatprep.subr.bf16.mxu0 0
        %2277 = vmatpush1.bf16.msra.mxu0 0
        %2278 = vmatprep.subr.bf16.mxu0 0
        %2279 = vmatpush1.bf16.msra.mxu0 0
        %2280 = vmatprep.subr.bf16.mxu0 0
        %2281 = vmatpush1.bf16.msra.mxu0 0
        %2282 = vmatprep.subr.bf16.mxu0 0
        %2283 = vmatpush1.bf16.msra.mxu0 0
        %2284 = vmatprep.mubr.bf16.mxu0 0
        %2285 = vmatmul.mubr.bf16.gmra.mrb[0].mxu0 %v2250
        %v2286 = vpop.f32.mrb[0].mxu0
        %v2287 = vadd.f32 0.0, %v2286
        %v2288 = vpop.f32.mrb[0].mxu0
        %v2289 = vpop.f32.mrb[0].mxu0
        %v2290 = vpop.f32.mrb[0].mxu0
        %2291 = vdwg.mxu0
        %v2292 = vadd.f32 %v1963, %v2287
        %v2293 = vxor.u32 %v2292, 2147483648
        %v2294 = vmul.f32 %v2293, 1.442695
        %v2295 = vpow.pop %v2294
        %v2296 = vadd.f32 %v2295, 1.0
        %v2297 = vrcp.pop %v2296
        %v2298 = vmul.f32 1.0, %v2297
        %2299 = vmatprep.subr.bf16.mxu0 0
        %2300 = vmatpush1.bf16.msra.mxu0 %v2042
        %2301 = vmatprep.subr.bf16.mxu0 0
        %2302 = vmatpush1.bf16.msra.mxu0 %v2044
        %2303 = vmatprep.subr.bf16.mxu0 0
        %2304 = vmatpush1.bf16.msra.mxu0 0
        %2305 = vmatprep.subr.bf16.mxu0 0
        %2306 = vmatpush1.bf16.msra.mxu0 0
        %2307 = vmatprep.subr.bf16.mxu0 0
        %2308 = vmatpush1.bf16.msra.mxu0 0
        %2309 = vmatprep.subr.bf16.mxu0 0
        %2310 = vmatpush1.bf16.msra.mxu0 0
        %2311 = vmatprep.subr.bf16.mxu0 0
        %2312 = vmatpush1.bf16.msra.mxu0 0
        %2313 = vmatprep.subr.bf16.mxu0 0
        %2314 = vmatpush1.bf16.msra.mxu0 0
        %2315 = vmatprep.subr.bf16.mxu0 0
        %2316 = vmatpush1.bf16.msra.mxu0 0
        %2317 = vmatprep.subr.bf16.mxu0 0
        %2318 = vmatpush1.bf16.msra.mxu0 0
        %2319 = vmatprep.subr.bf16.mxu0 0
        %2320 = vmatpush1.bf16.msra.mxu0 0
        %2321 = vmatprep.subr.bf16.mxu0 0
        %2322 = vmatpush1.bf16.msra.mxu0 0
        %2323 = vmatprep.subr.bf16.mxu0 0
        %2324 = vmatpush1.bf16.msra.mxu0 0
        %2325 = vmatprep.subr.bf16.mxu0 0
        %2326 = vmatpush1.bf16.msra.mxu0 0
        %2327 = vmatprep.subr.bf16.mxu0 0
        %2328 = vmatpush1.bf16.msra.mxu0 0
        %2329 = vmatprep.subr.bf16.mxu0 0
        %2330 = vmatpush1.bf16.msra.mxu0 0
        %2331 = vmatprep.mubr.bf16.mxu0 0
        %2332 = vmatmul.mubr.bf16.gmra.mrb[0].mxu0 %v2250
        %v2333 = vpop.f32.mrb[0].mxu0
        %v2334 = vadd.f32 0.0, %v2333
        %v2335 = vpop.f32.mrb[0].mxu0
        %v2336 = vpop.f32.mrb[0].mxu0
        %v2337 = vpop.f32.mrb[0].mxu0
        %2338 = vdwg.mxu0
        %v2341 = vunpack.c.l.s4 1983009808
        %v2342 = vunpack.c.0.s8 %v2341
        %v2343 = vlaneseq
        %v2344 = vshrl.u32 %v2343, 7
        %v2345 = vsub.s32 %v2342, %v2344
        %v2346 = vrot.slane %v2334, %v2345
        %2347 = vrot.lane.b32.xlu0 %v2346, 32
        %v2348 = vpop.permute.xlu0 %2347
        %v2350 = vadd.f32 %v1963, %v2348
        %v2351 = vxor.u32 %v2350, 2147483648
        %v2352 = vmul.f32 %v2351, 1.442695
        %v2353 = vpow.pop %v2352
        %v2354 = vadd.f32 %v2353, 1.0
        %v2355 = vrcp.pop %v2354
        %v2356 = vmul.f32 1.0, %v2355
        %2357 = vmatprep.subr.bf16.mxu0 0
        %2358 = vmatpush1.bf16.msra.mxu0 %v2106
        %2359 = vmatprep.subr.bf16.mxu0 0
        %2360 = vmatpush1.bf16.msra.mxu0 %v2108
        %2361 = vmatprep.subr.bf16.mxu0 0
        %2362 = vmatpush1.bf16.msra.mxu0 0
        %2363 = vmatprep.subr.bf16.mxu0 0
        %2364 = vmatpush1.bf16.msra.mxu0 0
        %2365 = vmatprep.subr.bf16.mxu0 0
        %2366 = vmatpush1.bf16.msra.mxu0 0
        %2367 = vmatprep.subr.bf16.mxu0 0
        %2368 = vmatpush1.bf16.msra.mxu0 0
        %2369 = vmatprep.subr.bf16.mxu0 0
        %2370 = vmatpush1.bf16.msra.mxu0 0
        %2371 = vmatprep.subr.bf16.mxu0 0
        %2372 = vmatpush1.bf16.msra.mxu0 0
        %2373 = vmatprep.subr.bf16.mxu0 0
        %2374 = vmatpush1.bf16.msra.mxu0 0
        %2375 = vmatprep.subr.bf16.mxu0 0
        %2376 = vmatpush1.bf16.msra.mxu0 0
        %2377 = vmatprep.subr.bf16.mxu0 0
        %2378 = vmatpush1.bf16.msra.mxu0 0
        %2379 = vmatprep.subr.bf16.mxu0 0
        %2380 = vmatpush1.bf16.msra.mxu0 0
        %2381 = vmatprep.subr.bf16.mxu0 0
        %2382 = vmatpush1.bf16.msra.mxu0 0
        %2383 = vmatprep.subr.bf16.mxu0 0
        %2384 = vmatpush1.bf16.msra.mxu0 0
        %2385 = vmatprep.subr.bf16.mxu0 0
        %2386 = vmatpush1.bf16.msra.mxu0 0
        %2387 = vmatprep.subr.bf16.mxu0 0
        %2388 = vmatpush1.bf16.msra.mxu0 0
        %2389 = vmatprep.mubr.bf16.mxu0 0
        %2390 = vmatmul.mubr.bf16.gmra.mrb[0].mxu0 %v2250
        %v2391 = vpop.f32.mrb[0].mxu0
        %v2392 = vadd.f32 0.0, %v2391
        %v2393 = vpop.f32.mrb[0].mxu0
        %v2394 = vpop.f32.mrb[0].mxu0
        %v2395 = vpop.f32.mrb[0].mxu0
        %2396 = vdwg.mxu0
        %v2399 = vunpack.c.l.s4 1983009808
        %v2400 = vunpack.c.0.s8 %v2399
        %v2401 = vlaneseq
        %v2402 = vshrl.u32 %v2401, 7
        %v2403 = vsub.s32 %v2400, %v2402
        %v2404 = vrot.slane %v2392, %v2403
        %2405 = vrot.lane.b32.xlu0 %v2404, 64
        %v2406 = vpop.permute.xlu0 %2405
        %v2408 = vadd.f32 %v1963, %v2406
        %v2409 = vtanh.pop %v2408
        %2410 = vmatprep.subr.bf16.mxu0 0
        %2411 = vmatpush1.bf16.msra.mxu0 %v2165
        %2412 = vmatprep.subr.bf16.mxu0 0
        %2413 = vmatpush1.bf16.msra.mxu0 %v2167
        %2414 = vmatprep.subr.bf16.mxu0 0
        %2415 = vmatpush1.bf16.msra.mxu0 0
        %2416 = vmatprep.subr.bf16.mxu0 0
        %2417 = vmatpush1.bf16.msra.mxu0 0
        %2418 = vmatprep.subr.bf16.mxu0 0
        %2419 = vmatpush1.bf16.msra.mxu0 0
        %2420 = vmatprep.subr.bf16.mxu0 0
        %2421 = vmatpush1.bf16.msra.mxu0 0
        %2422 = vmatprep.subr.bf16.mxu0 0
        %2423 = vmatpush1.bf16.msra.mxu0 0
        %2424 = vmatprep.subr.bf16.mxu0 0
        %2425 = vmatpush1.bf16.msra.mxu0 0
        %2426 = vmatprep.subr.bf16.mxu0 0
        %2427 = vmatpush1.bf16.msra.mxu0 0
        %2428 = vmatprep.subr.bf16.mxu0 0
        %2429 = vmatpush1.bf16.msra.mxu0 0
        %2430 = vmatprep.subr.bf16.mxu0 0
        %2431 = vmatpush1.bf16.msra.mxu0 0
        %2432 = vmatprep.subr.bf16.mxu0 0
        %2433 = vmatpush1.bf16.msra.mxu0 0
        %2434 = vmatprep.subr.bf16.mxu0 0
        %2435 = vmatpush1.bf16.msra.mxu0 0
        %2436 = vmatprep.subr.bf16.mxu0 0
        %2437 = vmatpush1.bf16.msra.mxu0 0
        %2438 = vmatprep.subr.bf16.mxu0 0
        %2439 = vmatpush1.bf16.msra.mxu0 0
        %2440 = vmatprep.subr.bf16.mxu0 0
        %2441 = vmatpush1.bf16.msra.mxu0 0
        %2442 = vmatprep.mubr.bf16.mxu0 0
        %2443 = vmatmul.mubr.bf16.gmra.mrb[0].mxu0 %v2250
        %v2444 = vpop.f32.mrb[0].mxu0
        %v2445 = vadd.f32 0.0, %v2444
        %v2446 = vpop.f32.mrb[0].mxu0
        %v2447 = vpop.f32.mrb[0].mxu0
        %v2448 = vpop.f32.mrb[0].mxu0
        %2449 = vdwg.mxu0
        %v2452 = vunpack.c.l.s4 1983009808
        %v2453 = vunpack.c.0.s8 %v2452
        %v2454 = vlaneseq
        %v2455 = vshrl.u32 %v2454, 7
        %v2456 = vsub.s32 %v2453, %v2455
        %v2457 = vrot.slane %v2445, %v2456
        %2458 = vrot.lane.b32.xlu0 %v2457, 96
        %v2459 = vpop.permute.xlu0 %2458
        %v2461 = vadd.f32 %v1963, %v2459
        %v2462 = vxor.u32 %v2461, 2147483648
        %v2463 = vmul.f32 %v2462, 1.442695
        %v2464 = vpow.pop %v2463
        %v2465 = vadd.f32 %v2464, 1.0
        %v2466 = vrcp.pop %v2465
        %v2467 = vmul.f32 1.0, %v2466
        %v2468 = vmul.f32 %v2356, %v2238
        %2470 = vrot.lane.b32.xlu0 %v2409, 64
        %v2471 = vpop.permute.xlu0 %2470
        %v2473 = vmul.f32 %v2298, %v2471
        %2475 = vrot.lane.b32.xlu0 %v2473, 32
        %v2476 = vpop.permute.xlu0 %2475
        %v2478 = vadd.f32 %v2468, %v2476
        %v2479 = vtanh.pop %v2478
        %2481 = vrot.lane.b32.xlu0 %v2479, 64
        %v2482 = vpop.permute.xlu0 %2481
        %v2484 = vmul.f32 %v2467, %v2482
        %v2485 = vpack.c.bf16 %v2484, %v2484
        %2487 = vrot.lane.b32.xlu0 %v2485, 32
        %v2488 = vpop.permute.xlu0 %2487
        %v2490 = vsel %vm1498, %v2488, 0
        %2492 = vmatprep.subr.bf16.mxu0 0
        %2493 = vmatpush1.bf16.msra.mxu0 %v1987
        %2494 = vmatprep.subr.bf16.mxu0 0
        %2495 = vmatpush1.bf16.msra.mxu0 %v1988
        %2496 = vmatprep.subr.bf16.mxu0 0
        %2497 = vmatpush1.bf16.msra.mxu0 0
        %2498 = vmatprep.subr.bf16.mxu0 0
        %2499 = vmatpush1.bf16.msra.mxu0 0
        %2500 = vmatprep.subr.bf16.mxu0 0
        %2501 = vmatpush1.bf16.msra.mxu0 0
        %2502 = vmatprep.subr.bf16.mxu0 0
        %2503 = vmatpush1.bf16.msra.mxu0 0
        %2504 = vmatprep.subr.bf16.mxu0 0
        %2505 = vmatpush1.bf16.msra.mxu0 0
        %2506 = vmatprep.subr.bf16.mxu0 0
        %2507 = vmatpush1.bf16.msra.mxu0 0
        %2508 = vmatprep.subr.bf16.mxu0 0
        %2509 = vmatpush1.bf16.msra.mxu0 0
        %2510 = vmatprep.subr.bf16.mxu0 0
        %2511 = vmatpush1.bf16.msra.mxu0 0
        %2512 = vmatprep.subr.bf16.mxu0 0
        %2513 = vmatpush1.bf16.msra.mxu0 0
        %2514 = vmatprep.subr.bf16.mxu0 0
        %2515 = vmatpush1.bf16.msra.mxu0 0
        %2516 = vmatprep.subr.bf16.mxu0 0
        %2517 = vmatpush1.bf16.msra.mxu0 0
        %2518 = vmatprep.subr.bf16.mxu0 0
        %2519 = vmatpush1.bf16.msra.mxu0 0
        %2520 = vmatprep.subr.bf16.mxu0 0
        %2521 = vmatpush1.bf16.msra.mxu0 0
        %2522 = vmatprep.subr.bf16.mxu0 0
        %2523 = vmatpush1.bf16.msra.mxu0 0
        %2524 = vmatprep.mubr.bf16.mxu0 0
        %2525 = vmatmul.mubr.bf16.gmra.mrb[0].mxu0 %v2490
        %v2526 = vpop.f32.mrb[0].mxu0
        %v2527 = vadd.f32 0.0, %v2526
        %v2528 = vpop.f32.mrb[0].mxu0
        %v2529 = vpop.f32.mrb[0].mxu0
        %v2530 = vpop.f32.mrb[0].mxu0
        %2531 = vdwg.mxu0
        %v2532 = vadd.f32 %v1962, %v2527
        %v2533 = vxor.u32 %v2532, 2147483648
        %v2534 = vmul.f32 %v2533, 1.442695
        %v2535 = vpow.pop %v2534
        %v2536 = vadd.f32 %v2535, 1.0
        %v2537 = vrcp.pop %v2536
        %v2538 = vmul.f32 1.0, %v2537
        %2539 = vmatprep.subr.bf16.mxu0 0
        %2540 = vmatpush1.bf16.msra.mxu0 %v2042
        %2541 = vmatprep.subr.bf16.mxu0 0
        %2542 = vmatpush1.bf16.msra.mxu0 %v2044
        %2543 = vmatprep.subr.bf16.mxu0 0
        %2544 = vmatpush1.bf16.msra.mxu0 0
        %2545 = vmatprep.subr.bf16.mxu0 0
        %2546 = vmatpush1.bf16.msra.mxu0 0
        %2547 = vmatprep.subr.bf16.mxu0 0
        %2548 = vmatpush1.bf16.msra.mxu0 0
        %2549 = vmatprep.subr.bf16.mxu0 0
        %2550 = vmatpush1.bf16.msra.mxu0 0
        %2551 = vmatprep.subr.bf16.mxu0 0
        %2552 = vmatpush1.bf16.msra.mxu0 0
        %2553 = vmatprep.subr.bf16.mxu0 0
        %2554 = vmatpush1.bf16.msra.mxu0 0
        %2555 = vmatprep.subr.bf16.mxu0 0
        %2556 = vmatpush1.bf16.msra.mxu0 0
        %2557 = vmatprep.subr.bf16.mxu0 0
        %2558 = vmatpush1.bf16.msra.mxu0 0
        %2559 = vmatprep.subr.bf16.mxu0 0
        %2560 = vmatpush1.bf16.msra.mxu0 0
        %2561 = vmatprep.subr.bf16.mxu0 0
        %2562 = vmatpush1.bf16.msra.mxu0 0
        %2563 = vmatprep.subr.bf16.mxu0 0
        %2564 = vmatpush1.bf16.msra.mxu0 0
        %2565 = vmatprep.subr.bf16.mxu0 0
        %2566 = vmatpush1.bf16.msra.mxu0 0
        %2567 = vmatprep.subr.bf16.mxu0 0
        %2568 = vmatpush1.bf16.msra.mxu0 0
        %2569 = vmatprep.subr.bf16.mxu0 0
        %2570 = vmatpush1.bf16.msra.mxu0 0
        %2571 = vmatprep.mubr.bf16.mxu0 0
        %2572 = vmatmul.mubr.bf16.gmra.mrb[0].mxu0 %v2490
        %v2573 = vpop.f32.mrb[0].mxu0
        %v2574 = vadd.f32 0.0, %v2573
        %v2575 = vpop.f32.mrb[0].mxu0
        %v2576 = vpop.f32.mrb[0].mxu0
        %v2577 = vpop.f32.mrb[0].mxu0
        %2578 = vdwg.mxu0
        %v2581 = vunpack.c.l.s4 1983009808
        %v2582 = vunpack.c.0.s8 %v2581
        %v2583 = vlaneseq
        %v2584 = vshrl.u32 %v2583, 7
        %v2585 = vsub.s32 %v2582, %v2584
        %v2586 = vrot.slane %v2574, %v2585
        %2587 = vrot.lane.b32.xlu0 %v2586, 32
        %v2588 = vpop.permute.xlu0 %2587
        %v2590 = vadd.f32 %v1962, %v2588
        %v2591 = vxor.u32 %v2590, 2147483648
        %v2592 = vmul.f32 %v2591, 1.442695
        %v2593 = vpow.pop %v2592
        %v2594 = vadd.f32 %v2593, 1.0
        %v2595 = vrcp.pop %v2594
        %v2596 = vmul.f32 1.0, %v2595
        %2597 = vmatprep.subr.bf16.mxu0 0
        %2598 = vmatpush1.bf16.msra.mxu0 %v2106
        %2599 = vmatprep.subr.bf16.mxu0 0
        %2600 = vmatpush1.bf16.msra.mxu0 %v2108
        %2601 = vmatprep.subr.bf16.mxu0 0
        %2602 = vmatpush1.bf16.msra.mxu0 0
        %2603 = vmatprep.subr.bf16.mxu0 0
        %2604 = vmatpush1.bf16.msra.mxu0 0
        %2605 = vmatprep.subr.bf16.mxu0 0
        %2606 = vmatpush1.bf16.msra.mxu0 0
        %2607 = vmatprep.subr.bf16.mxu0 0
        %2608 = vmatpush1.bf16.msra.mxu0 0
        %2609 = vmatprep.subr.bf16.mxu0 0
        %2610 = vmatpush1.bf16.msra.mxu0 0
        %2611 = vmatprep.subr.bf16.mxu0 0
        %2612 = vmatpush1.bf16.msra.mxu0 0
        %2613 = vmatprep.subr.bf16.mxu0 0
        %2614 = vmatpush1.bf16.msra.mxu0 0
        %2615 = vmatprep.subr.bf16.mxu0 0
        %2616 = vmatpush1.bf16.msra.mxu0 0
        %2617 = vmatprep.subr.bf16.mxu0 0
        %2618 = vmatpush1.bf16.msra.mxu0 0
        %2619 = vmatprep.subr.bf16.mxu0 0
        %2620 = vmatpush1.bf16.msra.mxu0 0
        %2621 = vmatprep.subr.bf16.mxu0 0
        %2622 = vmatpush1.bf16.msra.mxu0 0
        %2623 = vmatprep.subr.bf16.mxu0 0
        %2624 = vmatpush1.bf16.msra.mxu0 0
        %2625 = vmatprep.subr.bf16.mxu0 0
        %2626 = vmatpush1.bf16.msra.mxu0 0
        %2627 = vmatprep.subr.bf16.mxu0 0
        %2628 = vmatpush1.bf16.msra.mxu0 0
        %2629 = vmatprep.mubr.bf16.mxu0 0
        %2630 = vmatmul.mubr.bf16.gmra.mrb[0].mxu0 %v2490
        %v2631 = vpop.f32.mrb[0].mxu0
        %v2632 = vadd.f32 0.0, %v2631
        %v2633 = vpop.f32.mrb[0].mxu0
        %v2634 = vpop.f32.mrb[0].mxu0
        %v2635 = vpop.f32.mrb[0].mxu0
        %2636 = vdwg.mxu0
        %v2639 = vunpack.c.l.s4 1983009808
        %v2640 = vunpack.c.0.s8 %v2639
        %v2641 = vlaneseq
        %v2642 = vshrl.u32 %v2641, 7
        %v2643 = vsub.s32 %v2640, %v2642
        %v2644 = vrot.slane %v2632, %v2643
        %2645 = vrot.lane.b32.xlu0 %v2644, 64
        %v2646 = vpop.permute.xlu0 %2645
        %v2648 = vadd.f32 %v1962, %v2646
        %v2649 = vtanh.pop %v2648
        %2650 = vmatprep.subr.bf16.mxu0 0
        %2651 = vmatpush1.bf16.msra.mxu0 %v2165
        %2652 = vmatprep.subr.bf16.mxu0 0
        %2653 = vmatpush1.bf16.msra.mxu0 %v2167
        %2654 = vmatprep.subr.bf16.mxu0 0
        %2655 = vmatpush1.bf16.msra.mxu0 0
        %2656 = vmatprep.subr.bf16.mxu0 0
        %2657 = vmatpush1.bf16.msra.mxu0 0
        %2658 = vmatprep.subr.bf16.mxu0 0
        %2659 = vmatpush1.bf16.msra.mxu0 0
        %2660 = vmatprep.subr.bf16.mxu0 0
        %2661 = vmatpush1.bf16.msra.mxu0 0
        %2662 = vmatprep.subr.bf16.mxu0 0
        %2663 = vmatpush1.bf16.msra.mxu0 0
        %2664 = vmatprep.subr.bf16.mxu0 0
        %2665 = vmatpush1.bf16.msra.mxu0 0
        %2666 = vmatprep.subr.bf16.mxu0 0
        %2667 = vmatpush1.bf16.msra.mxu0 0
        %2668 = vmatprep.subr.bf16.mxu0 0
        %2669 = vmatpush1.bf16.msra.mxu0 0
        %2670 = vmatprep.subr.bf16.mxu0 0
        %2671 = vmatpush1.bf16.msra.mxu0 0
        %2672 = vmatprep.subr.bf16.mxu0 0
        %2673 = vmatpush1.bf16.msra.mxu0 0
        %2674 = vmatprep.subr.bf16.mxu0 0
        %2675 = vmatpush1.bf16.msra.mxu0 0
        %2676 = vmatprep.subr.bf16.mxu0 0
        %2677 = vmatpush1.bf16.msra.mxu0 0
        %2678 = vmatprep.subr.bf16.mxu0 0
        %2679 = vmatpush1.bf16.msra.mxu0 0
        %2680 = vmatprep.subr.bf16.mxu0 0
        %2681 = vmatpush1.bf16.msra.mxu0 0
        %2682 = vmatprep.mubr.bf16.mxu0 0
        %2683 = vmatmul.mubr.bf16.gmra.mrb[0].mxu0 %v2490
        %v2684 = vpop.f32.mrb[0].mxu0
        %v2685 = vadd.f32 0.0, %v2684
        %v2686 = vpop.f32.mrb[0].mxu0
        %v2687 = vpop.f32.mrb[0].mxu0
        %v2688 = vpop.f32.mrb[0].mxu0
        %2689 = vdwg.mxu0
        %v2692 = vunpack.c.l.s4 1983009808
        %v2693 = vunpack.c.0.s8 %v2692
        %v2694 = vlaneseq
        %v2695 = vshrl.u32 %v2694, 7
        %v2696 = vsub.s32 %v2693, %v2695
        %v2697 = vrot.slane %v2685, %v2696
        %2698 = vrot.lane.b32.xlu0 %v2697, 96
        %v2699 = vpop.permute.xlu0 %2698
        %v2701 = vadd.f32 %v1962, %v2699
        %v2702 = vxor.u32 %v2701, 2147483648
        %v2703 = vmul.f32 %v2702, 1.442695
        %v2704 = vpow.pop %v2703
        %v2705 = vadd.f32 %v2704, 1.0
        %v2706 = vrcp.pop %v2705
        %v2707 = vmul.f32 1.0, %v2706
        %v2708 = vmul.f32 %v2596, %v2478
        %2710 = vrot.lane.b32.xlu0 %v2649, 64
        %v2711 = vpop.permute.xlu0 %2710
        %v2713 = vmul.f32 %v2538, %v2711
        %2715 = vrot.lane.b32.xlu0 %v2713, 32
        %v2716 = vpop.permute.xlu0 %2715
        %v2718 = vadd.f32 %v2708, %v2716
        %v2719 = vtanh.pop %v2718
        %2721 = vrot.lane.b32.xlu0 %v2719, 64
        %v2722 = vpop.permute.xlu0 %2721
        %v2724 = vmul.f32 %v2707, %v2722
        %v2725 = vpack.c.bf16 %v2724, %v2724
        %2727 = vrot.lane.b32.xlu0 %v2725, 32
        %v2728 = vpop.permute.xlu0 %2727
        %v2730 = vsel %vm1498, %v2728, 0
        %2732 = vmatprep.subr.bf16.mxu0 0
        %2733 = vmatpush1.bf16.msra.mxu0 %v1987
        %2734 = vmatprep.subr.bf16.mxu0 0
        %2735 = vmatpush1.bf16.msra.mxu0 %v1988
        %2736 = vmatprep.subr.bf16.mxu0 0
        %2737 = vmatpush1.bf16.msra.mxu0 0
        %2738 = vmatprep.subr.bf16.mxu0 0
        %2739 = vmatpush1.bf16.msra.mxu0 0
        %2740 = vmatprep.subr.bf16.mxu0 0
        %2741 = vmatpush1.bf16.msra.mxu0 0
        %2742 = vmatprep.subr.bf16.mxu0 0
        %2743 = vmatpush1.bf16.msra.mxu0 0
        %2744 = vmatprep.subr.bf16.mxu0 0
        %2745 = vmatpush1.bf16.msra.mxu0 0
        %2746 = vmatprep.subr.bf16.mxu0 0
        %2747 = vmatpush1.bf16.msra.mxu0 0
        %2748 = vmatprep.subr.bf16.mxu0 0
        %2749 = vmatpush1.bf16.msra.mxu0 0
        %2750 = vmatprep.subr.bf16.mxu0 0
        %2751 = vmatpush1.bf16.msra.mxu0 0
        %2752 = vmatprep.subr.bf16.mxu0 0
        %2753 = vmatpush1.bf16.msra.mxu0 0
        %2754 = vmatprep.subr.bf16.mxu0 0
        %2755 = vmatpush1.bf16.msra.mxu0 0
        %2756 = vmatprep.subr.bf16.mxu0 0
        %2757 = vmatpush1.bf16.msra.mxu0 0
        %2758 = vmatprep.subr.bf16.mxu0 0
        %2759 = vmatpush1.bf16.msra.mxu0 0
        %2760 = vmatprep.subr.bf16.mxu0 0
        %2761 = vmatpush1.bf16.msra.mxu0 0
        %2762 = vmatprep.subr.bf16.mxu0 0
        %2763 = vmatpush1.bf16.msra.mxu0 0
        %2764 = vmatprep.mubr.bf16.mxu0 0
        %2765 = vmatmul.mubr.bf16.gmra.mrb[0].mxu0 %v2730
        %v2766 = vpop.f32.mrb[0].mxu0
        %v2767 = vadd.f32 0.0, %v2766
        %v2768 = vpop.f32.mrb[0].mxu0
        %v2769 = vpop.f32.mrb[0].mxu0
        %v2770 = vpop.f32.mrb[0].mxu0
        %2771 = vdwg.mxu0
        %v2772 = vadd.f32 %v1964, %v2767
        %v2773 = vxor.u32 %v2772, 2147483648
        %v2774 = vmul.f32 %v2773, 1.442695
        %v2775 = vpow.pop %v2774
        %v2776 = vadd.f32 %v2775, 1.0
        %v2777 = vrcp.pop %v2776
        %v2778 = vmul.f32 1.0, %v2777
        %2779 = vmatprep.subr.bf16.mxu0 0
        %2780 = vmatpush1.bf16.msra.mxu0 %v2042
        %2781 = vmatprep.subr.bf16.mxu0 0
        %2782 = vmatpush1.bf16.msra.mxu0 %v2044
        %2783 = vmatprep.subr.bf16.mxu0 0
        %2784 = vmatpush1.bf16.msra.mxu0 0
        %2785 = vmatprep.subr.bf16.mxu0 0
        %2786 = vmatpush1.bf16.msra.mxu0 0
        %2787 = vmatprep.subr.bf16.mxu0 0
        %2788 = vmatpush1.bf16.msra.mxu0 0
        %2789 = vmatprep.subr.bf16.mxu0 0
        %2790 = vmatpush1.bf16.msra.mxu0 0
        %2791 = vmatprep.subr.bf16.mxu0 0
        %2792 = vmatpush1.bf16.msra.mxu0 0
        %2793 = vmatprep.subr.bf16.mxu0 0
        %2794 = vmatpush1.bf16.msra.mxu0 0
        %2795 = vmatprep.subr.bf16.mxu0 0
        %2796 = vmatpush1.bf16.msra.mxu0 0
        %2797 = vmatprep.subr.bf16.mxu0 0
        %2798 = vmatpush1.bf16.msra.mxu0 0
        %2799 = vmatprep.subr.bf16.mxu0 0
        %2800 = vmatpush1.bf16.msra.mxu0 0
        %2801 = vmatprep.subr.bf16.mxu0 0
        %2802 = vmatpush1.bf16.msra.mxu0 0
        %2803 = vmatprep.subr.bf16.mxu0 0
        %2804 = vmatpush1.bf16.msra.mxu0 0
        %2805 = vmatprep.subr.bf16.mxu0 0
        %2806 = vmatpush1.bf16.msra.mxu0 0
        %2807 = vmatprep.subr.bf16.mxu0 0
        %2808 = vmatpush1.bf16.msra.mxu0 0
        %2809 = vmatprep.subr.bf16.mxu0 0
        %2810 = vmatpush1.bf16.msra.mxu0 0
        %2811 = vmatprep.mubr.bf16.mxu0 0
        %2812 = vmatmul.mubr.bf16.gmra.mrb[0].mxu0 %v2730
        %v2813 = vpop.f32.mrb[0].mxu0
        %v2814 = vadd.f32 0.0, %v2813
        %v2815 = vpop.f32.mrb[0].mxu0
        %v2816 = vpop.f32.mrb[0].mxu0
        %v2817 = vpop.f32.mrb[0].mxu0
        %2818 = vdwg.mxu0
        %v2821 = vunpack.c.l.s4 1983009808
        %v2822 = vunpack.c.0.s8 %v2821
        %v2823 = vlaneseq
        %v2824 = vshrl.u32 %v2823, 7
        %v2825 = vsub.s32 %v2822, %v2824
        %v2826 = vrot.slane %v2814, %v2825
        %2827 = vrot.lane.b32.xlu0 %v2826, 32
        %v2828 = vpop.permute.xlu0 %2827
        %v2830 = vadd.f32 %v1964, %v2828
        %v2831 = vxor.u32 %v2830, 2147483648
        %v2832 = vmul.f32 %v2831, 1.442695
        %v2833 = vpow.pop %v2832
        %v2834 = vadd.f32 %v2833, 1.0
        %v2835 = vrcp.pop %v2834
        %v2836 = vmul.f32 1.0, %v2835
        %2837 = vmatprep.subr.bf16.mxu0 0
        %2838 = vmatpush1.bf16.msra.mxu0 %v2106
        %2839 = vmatprep.subr.bf16.mxu0 0
        %2840 = vmatpush1.bf16.msra.mxu0 %v2108
        %2841 = vmatprep.subr.bf16.mxu0 0
        %2842 = vmatpush1.bf16.msra.mxu0 0
        %2843 = vmatprep.subr.bf16.mxu0 0
        %2844 = vmatpush1.bf16.msra.mxu0 0
        %2845 = vmatprep.subr.bf16.mxu0 0
        %2846 = vmatpush1.bf16.msra.mxu0 0
        %2847 = vmatprep.subr.bf16.mxu0 0
        %2848 = vmatpush1.bf16.msra.mxu0 0
        %2849 = vmatprep.subr.bf16.mxu0 0
        %2850 = vmatpush1.bf16.msra.mxu0 0
        %2851 = vmatprep.subr.bf16.mxu0 0
        %2852 = vmatpush1.bf16.msra.mxu0 0
        %2853 = vmatprep.subr.bf16.mxu0 0
        %2854 = vmatpush1.bf16.msra.mxu0 0
        %2855 = vmatprep.subr.bf16.mxu0 0
        %2856 = vmatpush1.bf16.msra.mxu0 0
        %2857 = vmatprep.subr.bf16.mxu0 0
        %2858 = vmatpush1.bf16.msra.mxu0 0
        %2859 = vmatprep.subr.bf16.mxu0 0
        %2860 = vmatpush1.bf16.msra.mxu0 0
        %2861 = vmatprep.subr.bf16.mxu0 0
        %2862 = vmatpush1.bf16.msra.mxu0 0
        %2863 = vmatprep.subr.bf16.mxu0 0
        %2864 = vmatpush1.bf16.msra.mxu0 0
        %2865 = vmatprep.subr.bf16.mxu0 0
        %2866 = vmatpush1.bf16.msra.mxu0 0
        %2867 = vmatprep.subr.bf16.mxu0 0
        %2868 = vmatpush1.bf16.msra.mxu0 0
        %2869 = vmatprep.mubr.bf16.mxu0 0
        %2870 = vmatmul.mubr.bf16.gmra.mrb[0].mxu0 %v2730
        %v2871 = vpop.f32.mrb[0].mxu0
        %v2872 = vadd.f32 0.0, %v2871
        %v2873 = vpop.f32.mrb[0].mxu0
        %v2874 = vpop.f32.mrb[0].mxu0
        %v2875 = vpop.f32.mrb[0].mxu0
        %2876 = vdwg.mxu0
        %v2879 = vunpack.c.l.s4 1983009808
        %v2880 = vunpack.c.0.s8 %v2879
        %v2881 = vlaneseq
        %v2882 = vshrl.u32 %v2881, 7
        %v2883 = vsub.s32 %v2880, %v2882
        %v2884 = vrot.slane %v2872, %v2883
        %2885 = vrot.lane.b32.xlu0 %v2884, 64
        %v2886 = vpop.permute.xlu0 %2885
        %v2888 = vadd.f32 %v1964, %v2886
        %v2889 = vtanh.pop %v2888
        %2890 = vmatprep.subr.bf16.mxu0 0
        %2891 = vmatpush1.bf16.msra.mxu0 %v2165
        %2892 = vmatprep.subr.bf16.mxu0 0
        %2893 = vmatpush1.bf16.msra.mxu0 %v2167
        %2894 = vmatprep.subr.bf16.mxu0 0
        %2895 = vmatpush1.bf16.msra.mxu0 0
        %2896 = vmatprep.subr.bf16.mxu0 0
        %2897 = vmatpush1.bf16.msra.mxu0 0
        %2898 = vmatprep.subr.bf16.mxu0 0
        %2899 = vmatpush1.bf16.msra.mxu0 0
        %2900 = vmatprep.subr.bf16.mxu0 0
        %2901 = vmatpush1.bf16.msra.mxu0 0
        %2902 = vmatprep.subr.bf16.mxu0 0
        %2903 = vmatpush1.bf16.msra.mxu0 0
        %2904 = vmatprep.subr.bf16.mxu0 0
        %2905 = vmatpush1.bf16.msra.mxu0 0
        %2906 = vmatprep.subr.bf16.mxu0 0
        %2907 = vmatpush1.bf16.msra.mxu0 0
        %2908 = vmatprep.subr.bf16.mxu0 0
        %2909 = vmatpush1.bf16.msra.mxu0 0
        %2910 = vmatprep.subr.bf16.mxu0 0
        %2911 = vmatpush1.bf16.msra.mxu0 0
        %2912 = vmatprep.subr.bf16.mxu0 0
        %2913 = vmatpush1.bf16.msra.mxu0 0
        %2914 = vmatprep.subr.bf16.mxu0 0
        %2915 = vmatpush1.bf16.msra.mxu0 0
        %2916 = vmatprep.subr.bf16.mxu0 0
        %2917 = vmatpush1.bf16.msra.mxu0 0
        %2918 = vmatprep.subr.bf16.mxu0 0
        %2919 = vmatpush1.bf16.msra.mxu0 0
        %2920 = vmatprep.subr.bf16.mxu0 0
        %2921 = vmatpush1.bf16.msra.mxu0 0
        %2922 = vmatprep.mubr.bf16.mxu0 0
        %2923 = vmatmul.mubr.bf16.gmra.mrb[0].mxu0 %v2730
        %v2924 = vpop.f32.mrb[0].mxu0
        %v2925 = vadd.f32 0.0, %v2924
        %v2926 = vpop.f32.mrb[0].mxu0
        %v2927 = vpop.f32.mrb[0].mxu0
        %v2928 = vpop.f32.mrb[0].mxu0
        %2929 = vdwg.mxu0
        %v2932 = vunpack.c.l.s4 1983009808
        %v2933 = vunpack.c.0.s8 %v2932
        %v2934 = vlaneseq
        %v2935 = vshrl.u32 %v2934, 7
        %v2936 = vsub.s32 %v2933, %v2935
        %v2937 = vrot.slane %v2925, %v2936
        %2938 = vrot.lane.b32.xlu0 %v2937, 96
        %v2939 = vpop.permute.xlu0 %2938
        %v2941 = vadd.f32 %v1964, %v2939
        %v2942 = vxor.u32 %v2941, 2147483648
        %v2943 = vmul.f32 %v2942, 1.442695
        %v2944 = vpow.pop %v2943
        %v2945 = vadd.f32 %v2944, 1.0
        %v2946 = vrcp.pop %v2945
        %v2947 = vmul.f32 1.0, %v2946
        %v2948 = vmul.f32 %v2836, %v2718
        %2950 = vrot.lane.b32.xlu0 %v2889, 64
        %v2951 = vpop.permute.xlu0 %2950
        %v2953 = vmul.f32 %v2778, %v2951
        %2955 = vrot.lane.b32.xlu0 %v2953, 32
        %v2956 = vpop.permute.xlu0 %2955
        %v2958 = vadd.f32 %v2948, %v2956
        %v2959 = vtanh.pop %v2958
        %2961 = vrot.lane.b32.xlu0 %v2959, 64
        %v2962 = vpop.permute.xlu0 %2961
        %v2964 = vmul.f32 %v2947, %v2962
        %v2965 = vpack.c.bf16 %v2964, %v2964
        %2967 = vrot.lane.b32.xlu0 %v2965, 32
        %v2968 = vpop.permute.xlu0 %2967
        %v2970 = vsel %vm1498, %v2968, 0
        %2972 = vmatprep.subr.bf16.mxu0 0
        %2973 = vmatpush1.bf16.msra.mxu0 %v1987
        %2974 = vmatprep.subr.bf16.mxu0 0
        %2975 = vmatpush1.bf16.msra.mxu0 %v1988
        %2976 = vmatprep.subr.bf16.mxu0 0
        %2977 = vmatpush1.bf16.msra.mxu0 0
        %2978 = vmatprep.subr.bf16.mxu0 0
        %2979 = vmatpush1.bf16.msra.mxu0 0
        %2980 = vmatprep.subr.bf16.mxu0 0
        %2981 = vmatpush1.bf16.msra.mxu0 0
        %2982 = vmatprep.subr.bf16.mxu0 0
        %2983 = vmatpush1.bf16.msra.mxu0 0
        %2984 = vmatprep.subr.bf16.mxu0 0
        %2985 = vmatpush1.bf16.msra.mxu0 0
        %2986 = vmatprep.subr.bf16.mxu0 0
        %2987 = vmatpush1.bf16.msra.mxu0 0
        %2988 = vmatprep.subr.bf16.mxu0 0
        %2989 = vmatpush1.bf16.msra.mxu0 0
        %2990 = vmatprep.subr.bf16.mxu0 0
        %2991 = vmatpush1.bf16.msra.mxu0 0
        %2992 = vmatprep.subr.bf16.mxu0 0
        %2993 = vmatpush1.bf16.msra.mxu0 0
        %2994 = vmatprep.subr.bf16.mxu0 0
        %2995 = vmatpush1.bf16.msra.mxu0 0
        %2996 = vmatprep.subr.bf16.mxu0 0
        %2997 = vmatpush1.bf16.msra.mxu0 0
        %2998 = vmatprep.subr.bf16.mxu0 0
        %2999 = vmatpush1.bf16.msra.mxu0 0
        %3000 = vmatprep.subr.bf16.mxu0 0
        %3001 = vmatpush1.bf16.msra.mxu0 0
        %3002 = vmatprep.subr.bf16.mxu0 0
        %3003 = vmatpush1.bf16.msra.mxu0 0
        %3004 = vmatprep.mubr.bf16.mxu0 0
        %3005 = vmatmul.mubr.bf16.gmra.mrb[0].mxu0 %v2970
        %v3006 = vpop.f32.mrb[0].mxu0
        %v3007 = vadd.f32 0.0, %v3006
        %v3008 = vpop.f32.mrb[0].mxu0
        %v3009 = vpop.f32.mrb[0].mxu0
        %v3010 = vpop.f32.mrb[0].mxu0
        %3011 = vdwg.mxu0
        %v3012 = vadd.f32 %v1971, %v3007
        %v3013 = vxor.u32 %v3012, 2147483648
        %v3014 = vmul.f32 %v3013, 1.442695
        %v3015 = vpow.pop %v3014
        %v3016 = vadd.f32 %v3015, 1.0
        %v3017 = vrcp.pop %v3016
        %v3018 = vmul.f32 1.0, %v3017
        %3019 = vmatprep.subr.bf16.mxu0 0
        %3020 = vmatpush1.bf16.msra.mxu0 %v2042
        %3021 = vmatprep.subr.bf16.mxu0 0
        %3022 = vmatpush1.bf16.msra.mxu0 %v2044
        %3023 = vmatprep.subr.bf16.mxu0 0
        %3024 = vmatpush1.bf16.msra.mxu0 0
        %3025 = vmatprep.subr.bf16.mxu0 0
        %3026 = vmatpush1.bf16.msra.mxu0 0
        %3027 = vmatprep.subr.bf16.mxu0 0
        %3028 = vmatpush1.bf16.msra.mxu0 0
        %3029 = vmatprep.subr.bf16.mxu0 0
        %3030 = vmatpush1.bf16.msra.mxu0 0
        %3031 = vmatprep.subr.bf16.mxu0 0
        %3032 = vmatpush1.bf16.msra.mxu0 0
        %3033 = vmatprep.subr.bf16.mxu0 0
        %3034 = vmatpush1.bf16.msra.mxu0 0
        %3035 = vmatprep.subr.bf16.mxu0 0
        %3036 = vmatpush1.bf16.msra.mxu0 0
        %3037 = vmatprep.subr.bf16.mxu0 0
        %3038 = vmatpush1.bf16.msra.mxu0 0
        %3039 = vmatprep.subr.bf16.mxu0 0
        %3040 = vmatpush1.bf16.msra.mxu0 0
        %3041 = vmatprep.subr.bf16.mxu0 0
        %3042 = vmatpush1.bf16.msra.mxu0 0
        %3043 = vmatprep.subr.bf16.mxu0 0
        %3044 = vmatpush1.bf16.msra.mxu0 0
        %3045 = vmatprep.subr.bf16.mxu0 0
        %3046 = vmatpush1.bf16.msra.mxu0 0
        %3047 = vmatprep.subr.bf16.mxu0 0
        %3048 = vmatpush1.bf16.msra.mxu0 0
        %3049 = vmatprep.subr.bf16.mxu0 0
        %3050 = vmatpush1.bf16.msra.mxu0 0
        %3051 = vmatprep.mubr.bf16.mxu0 0
        %3052 = vmatmul.mubr.bf16.gmra.mrb[0].mxu0 %v2970
        %v3053 = vpop.f32.mrb[0].mxu0
        %v3054 = vadd.f32 0.0, %v3053
        %v3055 = vpop.f32.mrb[0].mxu0
        %v3056 = vpop.f32.mrb[0].mxu0
        %v3057 = vpop.f32.mrb[0].mxu0
        %3058 = vdwg.mxu0
        %v3061 = vunpack.c.l.s4 1983009808
        %v3062 = vunpack.c.0.s8 %v3061
        %v3063 = vlaneseq
        %v3064 = vshrl.u32 %v3063, 7
        %v3065 = vsub.s32 %v3062, %v3064
        %v3066 = vrot.slane %v3054, %v3065
        %3067 = vrot.lane.b32.xlu0 %v3066, 32
        %v3068 = vpop.permute.xlu0 %3067
        %v3070 = vadd.f32 %v1971, %v3068
        %v3071 = vxor.u32 %v3070, 2147483648
        %v3072 = vmul.f32 %v3071, 1.442695
        %v3073 = vpow.pop %v3072
        %v3074 = vadd.f32 %v3073, 1.0
        %v3075 = vrcp.pop %v3074
        %v3076 = vmul.f32 1.0, %v3075
        %3077 = vmatprep.subr.bf16.mxu0 0
        %3078 = vmatpush1.bf16.msra.mxu0 %v2106
        %3079 = vmatprep.subr.bf16.mxu0 0
        %3080 = vmatpush1.bf16.msra.mxu0 %v2108
        %3081 = vmatprep.subr.bf16.mxu0 0
        %3082 = vmatpush1.bf16.msra.mxu0 0
        %3083 = vmatprep.subr.bf16.mxu0 0
        %3084 = vmatpush1.bf16.msra.mxu0 0
        %3085 = vmatprep.subr.bf16.mxu0 0
        %3086 = vmatpush1.bf16.msra.mxu0 0
        %3087 = vmatprep.subr.bf16.mxu0 0
        %3088 = vmatpush1.bf16.msra.mxu0 0
        %3089 = vmatprep.subr.bf16.mxu0 0
        %3090 = vmatpush1.bf16.msra.mxu0 0
        %3091 = vmatprep.subr.bf16.mxu0 0
        %3092 = vmatpush1.bf16.msra.mxu0 0
        %3093 = vmatprep.subr.bf16.mxu0 0
        %3094 = vmatpush1.bf16.msra.mxu0 0
        %3095 = vmatprep.subr.bf16.mxu0 0
        %3096 = vmatpush1.bf16.msra.mxu0 0
        %3097 = vmatprep.subr.bf16.mxu0 0
        %3098 = vmatpush1.bf16.msra.mxu0 0
        %3099 = vmatprep.subr.bf16.mxu0 0
        %3100 = vmatpush1.bf16.msra.mxu0 0
        %3101 = vmatprep.subr.bf16.mxu0 0
        %3102 = vmatpush1.bf16.msra.mxu0 0
        %3103 = vmatprep.subr.bf16.mxu0 0
        %3104 = vmatpush1.bf16.msra.mxu0 0
        %3105 = vmatprep.subr.bf16.mxu0 0
        %3106 = vmatpush1.bf16.msra.mxu0 0
        %3107 = vmatprep.subr.bf16.mxu0 0
        %3108 = vmatpush1.bf16.msra.mxu0 0
        %3109 = vmatprep.mubr.bf16.mxu0 0
        %3110 = vmatmul.mubr.bf16.gmra.mrb[0].mxu0 %v2970
        %v3111 = vpop.f32.mrb[0].mxu0
        %v3112 = vadd.f32 0.0, %v3111
        %v3113 = vpop.f32.mrb[0].mxu0
        %v3114 = vpop.f32.mrb[0].mxu0
        %v3115 = vpop.f32.mrb[0].mxu0
        %3116 = vdwg.mxu0
        %v3119 = vunpack.c.l.s4 1983009808
        %v3120 = vunpack.c.0.s8 %v3119
        %v3121 = vlaneseq
        %v3122 = vshrl.u32 %v3121, 7
        %v3123 = vsub.s32 %v3120, %v3122
        %v3124 = vrot.slane %v3112, %v3123
        %3125 = vrot.lane.b32.xlu0 %v3124, 64
        %v3126 = vpop.permute.xlu0 %3125
        %v3128 = vadd.f32 %v1971, %v3126
        %v3129 = vtanh.pop %v3128
        %3130 = vmatprep.subr.bf16.mxu0 0
        %3131 = vmatpush1.bf16.msra.mxu0 %v2165
        %3132 = vmatprep.subr.bf16.mxu0 0
        %3133 = vmatpush1.bf16.msra.mxu0 %v2167
        %3134 = vmatprep.subr.bf16.mxu0 0
        %3135 = vmatpush1.bf16.msra.mxu0 0
        %3136 = vmatprep.subr.bf16.mxu0 0
        %3137 = vmatpush1.bf16.msra.mxu0 0
        %3138 = vmatprep.subr.bf16.mxu0 0
        %3139 = vmatpush1.bf16.msra.mxu0 0
        %3140 = vmatprep.subr.bf16.mxu0 0
        %3141 = vmatpush1.bf16.msra.mxu0 0
        %3142 = vmatprep.subr.bf16.mxu0 0
        %3143 = vmatpush1.bf16.msra.mxu0 0
        %3144 = vmatprep.subr.bf16.mxu0 0
        %3145 = vmatpush1.bf16.msra.mxu0 0
        %3146 = vmatprep.subr.bf16.mxu0 0
        %3147 = vmatpush1.bf16.msra.mxu0 0
        %3148 = vmatprep.subr.bf16.mxu0 0
        %3149 = vmatpush1.bf16.msra.mxu0 0
        %3150 = vmatprep.subr.bf16.mxu0 0
        %3151 = vmatpush1.bf16.msra.mxu0 0
        %3152 = vmatprep.subr.bf16.mxu0 0
        %3153 = vmatpush1.bf16.msra.mxu0 0
        %3154 = vmatprep.subr.bf16.mxu0 0
        %3155 = vmatpush1.bf16.msra.mxu0 0
        %3156 = vmatprep.subr.bf16.mxu0 0
        %3157 = vmatpush1.bf16.msra.mxu0 0
        %3158 = vmatprep.subr.bf16.mxu0 0
        %3159 = vmatpush1.bf16.msra.mxu0 0
        %3160 = vmatprep.subr.bf16.mxu0 0
        %3161 = vmatpush1.bf16.msra.mxu0 0
        %3162 = vmatprep.mubr.bf16.mxu0 0
        %3163 = vmatmul.mubr.bf16.gmra.mrb[0].mxu0 %v2970
        %v3164 = vpop.f32.mrb[0].mxu0
        %v3165 = vadd.f32 0.0, %v3164
        %v3166 = vpop.f32.mrb[0].mxu0
        %v3167 = vpop.f32.mrb[0].mxu0
        %v3168 = vpop.f32.mrb[0].mxu0
        %3169 = vdwg.mxu0
        %v3172 = vunpack.c.l.s4 1983009808
        %v3173 = vunpack.c.0.s8 %v3172
        %v3174 = vlaneseq
        %v3175 = vshrl.u32 %v3174, 7
        %v3176 = vsub.s32 %v3173, %v3175
        %v3177 = vrot.slane %v3165, %v3176
        %3178 = vrot.lane.b32.xlu0 %v3177, 96
        %v3179 = vpop.permute.xlu0 %3178
        %v3181 = vadd.f32 %v1971, %v3179
        %v3182 = vxor.u32 %v3181, 2147483648
        %v3183 = vmul.f32 %v3182, 1.442695
        %v3184 = vpow.pop %v3183
        %v3185 = vadd.f32 %v3184, 1.0
        %v3186 = vrcp.pop %v3185
        %v3187 = vmul.f32 1.0, %v3186
        %v3188 = vmul.f32 %v3076, %v2958
        %3190 = vrot.lane.b32.xlu0 %v3129, 64
        %v3191 = vpop.permute.xlu0 %3190
        %v3193 = vmul.f32 %v3018, %v3191
        %3195 = vrot.lane.b32.xlu0 %v3193, 32
        %v3196 = vpop.permute.xlu0 %3195
        %v3198 = vadd.f32 %v3188, %v3196
        %v3199 = vtanh.pop %v3198
        %3201 = vrot.lane.b32.xlu0 %v3199, 64
        %v3202 = vpop.permute.xlu0 %3201
        %v3204 = vmul.f32 %v3187, %v3202
        %v3205 = vpack.c.bf16 %v3204, %v3204
        %3207 = vrot.lane.b32.xlu0 %v3205, 32
        %v3208 = vpop.permute.xlu0 %3207
        %v3210 = vsel %vm1498, %v3208, 0
        %3212 = vmatprep.subr.bf16.mxu0 0
        %3213 = vmatpush1.bf16.msra.mxu0 %v1987
        %3214 = vmatprep.subr.bf16.mxu0 0
        %3215 = vmatpush1.bf16.msra.mxu0 %v1988
        %3216 = vmatprep.subr.bf16.mxu0 0
        %3217 = vmatpush1.bf16.msra.mxu0 0
        %3218 = vmatprep.subr.bf16.mxu0 0
        %3219 = vmatpush1.bf16.msra.mxu0 0
        %3220 = vmatprep.subr.bf16.mxu0 0
        %3221 = vmatpush1.bf16.msra.mxu0 0
        %3222 = vmatprep.subr.bf16.mxu0 0
        %3223 = vmatpush1.bf16.msra.mxu0 0
        %3224 = vmatprep.subr.bf16.mxu0 0
        %3225 = vmatpush1.bf16.msra.mxu0 0
        %3226 = vmatprep.subr.bf16.mxu0 0
        %3227 = vmatpush1.bf16.msra.mxu0 0
        %3228 = vmatprep.subr.bf16.mxu0 0
        %3229 = vmatpush1.bf16.msra.mxu0 0
        %3230 = vmatprep.subr.bf16.mxu0 0
        %3231 = vmatpush1.bf16.msra.mxu0 0
        %3232 = vmatprep.subr.bf16.mxu0 0
        %3233 = vmatpush1.bf16.msra.mxu0 0
        %3234 = vmatprep.subr.bf16.mxu0 0
        %3235 = vmatpush1.bf16.msra.mxu0 0
        %3236 = vmatprep.subr.bf16.mxu0 0
        %3237 = vmatpush1.bf16.msra.mxu0 0
        %3238 = vmatprep.subr.bf16.mxu0 0
        %3239 = vmatpush1.bf16.msra.mxu0 0
        %3240 = vmatprep.subr.bf16.mxu0 0
        %3241 = vmatpush1.bf16.msra.mxu0 0
        %3242 = vmatprep.subr.bf16.mxu0 0
        %3243 = vmatpush1.bf16.msra.mxu0 0
        %3244 = vmatprep.mubr.bf16.mxu0 0
        %3245 = vmatmul.mubr.bf16.gmra.mrb[0].mxu0 %v3210
        %v3246 = vpop.f32.mrb[0].mxu0
        %v3247 = vadd.f32 0.0, %v3246
        %v3248 = vpop.f32.mrb[0].mxu0
        %v3249 = vpop.f32.mrb[0].mxu0
        %v3250 = vpop.f32.mrb[0].mxu0
        %3251 = vdwg.mxu0
        %v3252 = vadd.f32 %v1972, %v3247
        %v3253 = vxor.u32 %v3252, 2147483648
        %v3254 = vmul.f32 %v3253, 1.442695
        %v3255 = vpow.pop %v3254
        %v3256 = vadd.f32 %v3255, 1.0
        %v3257 = vrcp.pop %v3256
        %v3258 = vmul.f32 1.0, %v3257
        %3259 = vmatprep.subr.bf16.mxu0 0
        %3260 = vmatpush1.bf16.msra.mxu0 %v2042
        %3261 = vmatprep.subr.bf16.mxu0 0
        %3262 = vmatpush1.bf16.msra.mxu0 %v2044
        %3263 = vmatprep.subr.bf16.mxu0 0
        %3264 = vmatpush1.bf16.msra.mxu0 0
        %3265 = vmatprep.subr.bf16.mxu0 0
        %3266 = vmatpush1.bf16.msra.mxu0 0
        %3267 = vmatprep.subr.bf16.mxu0 0
        %3268 = vmatpush1.bf16.msra.mxu0 0
        %3269 = vmatprep.subr.bf16.mxu0 0
        %3270 = vmatpush1.bf16.msra.mxu0 0
        %3271 = vmatprep.subr.bf16.mxu0 0
        %3272 = vmatpush1.bf16.msra.mxu0 0
        %3273 = vmatprep.subr.bf16.mxu0 0
        %3274 = vmatpush1.bf16.msra.mxu0 0
        %3275 = vmatprep.subr.bf16.mxu0 0
        %3276 = vmatpush1.bf16.msra.mxu0 0
        %3277 = vmatprep.subr.bf16.mxu0 0
        %3278 = vmatpush1.bf16.msra.mxu0 0
        %3279 = vmatprep.subr.bf16.mxu0 0
        %3280 = vmatpush1.bf16.msra.mxu0 0
        %3281 = vmatprep.subr.bf16.mxu0 0
        %3282 = vmatpush1.bf16.msra.mxu0 0
        %3283 = vmatprep.subr.bf16.mxu0 0
        %3284 = vmatpush1.bf16.msra.mxu0 0
        %3285 = vmatprep.subr.bf16.mxu0 0
        %3286 = vmatpush1.bf16.msra.mxu0 0
        %3287 = vmatprep.subr.bf16.mxu0 0
        %3288 = vmatpush1.bf16.msra.mxu0 0
        %3289 = vmatprep.subr.bf16.mxu0 0
        %3290 = vmatpush1.bf16.msra.mxu0 0
        %3291 = vmatprep.mubr.bf16.mxu0 0
        %3292 = vmatmul.mubr.bf16.gmra.mrb[0].mxu0 %v3210
        %v3293 = vpop.f32.mrb[0].mxu0
        %v3294 = vadd.f32 0.0, %v3293
        %v3295 = vpop.f32.mrb[0].mxu0
        %v3296 = vpop.f32.mrb[0].mxu0
        %v3297 = vpop.f32.mrb[0].mxu0
        %3298 = vdwg.mxu0
        %v3301 = vunpack.c.l.s4 1983009808
        %v3302 = vunpack.c.0.s8 %v3301
        %v3303 = vlaneseq
        %v3304 = vshrl.u32 %v3303, 7
        %v3305 = vsub.s32 %v3302, %v3304
        %v3306 = vrot.slane %v3294, %v3305
        %3307 = vrot.lane.b32.xlu0 %v3306, 32
        %v3308 = vpop.permute.xlu0 %3307
        %v3310 = vadd.f32 %v1972, %v3308
        %v3311 = vxor.u32 %v3310, 2147483648
        %v3312 = vmul.f32 %v3311, 1.442695
        %v3313 = vpow.pop %v3312
        %v3314 = vadd.f32 %v3313, 1.0
        %v3315 = vrcp.pop %v3314
        %v3316 = vmul.f32 1.0, %v3315
        %3317 = vmatprep.subr.bf16.mxu0 0
        %3318 = vmatpush1.bf16.msra.mxu0 %v2106
        %3319 = vmatprep.subr.bf16.mxu0 0
        %3320 = vmatpush1.bf16.msra.mxu0 %v2108
        %3321 = vmatprep.subr.bf16.mxu0 0
        %3322 = vmatpush1.bf16.msra.mxu0 0
        %3323 = vmatprep.subr.bf16.mxu0 0
        %3324 = vmatpush1.bf16.msra.mxu0 0
        %3325 = vmatprep.subr.bf16.mxu0 0
        %3326 = vmatpush1.bf16.msra.mxu0 0
        %3327 = vmatprep.subr.bf16.mxu0 0
        %3328 = vmatpush1.bf16.msra.mxu0 0
        %3329 = vmatprep.subr.bf16.mxu0 0
        %3330 = vmatpush1.bf16.msra.mxu0 0
        %3331 = vmatprep.subr.bf16.mxu0 0
        %3332 = vmatpush1.bf16.msra.mxu0 0
        %3333 = vmatprep.subr.bf16.mxu0 0
        %3334 = vmatpush1.bf16.msra.mxu0 0
        %3335 = vmatprep.subr.bf16.mxu0 0
        %3336 = vmatpush1.bf16.msra.mxu0 0
        %3337 = vmatprep.subr.bf16.mxu0 0
        %3338 = vmatpush1.bf16.msra.mxu0 0
        %3339 = vmatprep.subr.bf16.mxu0 0
        %3340 = vmatpush1.bf16.msra.mxu0 0
        %3341 = vmatprep.subr.bf16.mxu0 0
        %3342 = vmatpush1.bf16.msra.mxu0 0
        %3343 = vmatprep.subr.bf16.mxu0 0
        %3344 = vmatpush1.bf16.msra.mxu0 0
        %3345 = vmatprep.subr.bf16.mxu0 0
        %3346 = vmatpush1.bf16.msra.mxu0 0
        %3347 = vmatprep.subr.bf16.mxu0 0
        %3348 = vmatpush1.bf16.msra.mxu0 0
        %3349 = vmatprep.mubr.bf16.mxu0 0
        %3350 = vmatmul.mubr.bf16.gmra.mrb[0].mxu0 %v3210
        %v3351 = vpop.f32.mrb[0].mxu0
        %v3352 = vadd.f32 0.0, %v3351
        %v3353 = vpop.f32.mrb[0].mxu0
        %v3354 = vpop.f32.mrb[0].mxu0
        %v3355 = vpop.f32.mrb[0].mxu0
        %3356 = vdwg.mxu0
        %v3359 = vunpack.c.l.s4 1983009808
        %v3360 = vunpack.c.0.s8 %v3359
        %v3361 = vlaneseq
        %v3362 = vshrl.u32 %v3361, 7
        %v3363 = vsub.s32 %v3360, %v3362
        %v3364 = vrot.slane %v3352, %v3363
        %3365 = vrot.lane.b32.xlu0 %v3364, 64
        %v3366 = vpop.permute.xlu0 %3365
        %v3368 = vadd.f32 %v1972, %v3366
        %v3369 = vtanh.pop %v3368
        %3370 = vmatprep.subr.bf16.mxu0 0
        %3371 = vmatpush1.bf16.msra.mxu0 %v2165
        %3372 = vmatprep.subr.bf16.mxu0 0
        %3373 = vmatpush1.bf16.msra.mxu0 %v2167
        %3374 = vmatprep.subr.bf16.mxu0 0
        %3375 = vmatpush1.bf16.msra.mxu0 0
        %3376 = vmatprep.subr.bf16.mxu0 0
        %3377 = vmatpush1.bf16.msra.mxu0 0
        %3378 = vmatprep.subr.bf16.mxu0 0
        %3379 = vmatpush1.bf16.msra.mxu0 0
        %3380 = vmatprep.subr.bf16.mxu0 0
        %3381 = vmatpush1.bf16.msra.mxu0 0
        %3382 = vmatprep.subr.bf16.mxu0 0
        %3383 = vmatpush1.bf16.msra.mxu0 0
        %3384 = vmatprep.subr.bf16.mxu0 0
        %3385 = vmatpush1.bf16.msra.mxu0 0
        %3386 = vmatprep.subr.bf16.mxu0 0
        %3387 = vmatpush1.bf16.msra.mxu0 0
        %3388 = vmatprep.subr.bf16.mxu0 0
        %3389 = vmatpush1.bf16.msra.mxu0 0
        %3390 = vmatprep.subr.bf16.mxu0 0
        %3391 = vmatpush1.bf16.msra.mxu0 0
        %3392 = vmatprep.subr.bf16.mxu0 0
        %3393 = vmatpush1.bf16.msra.mxu0 0
        %3394 = vmatprep.subr.bf16.mxu0 0
        %3395 = vmatpush1.bf16.msra.mxu0 0
        %3396 = vmatprep.subr.bf16.mxu0 0
        %3397 = vmatpush1.bf16.msra.mxu0 0
        %3398 = vmatprep.subr.bf16.mxu0 0
        %3399 = vmatpush1.bf16.msra.mxu0 0
        %3400 = vmatprep.subr.bf16.mxu0 0
        %3401 = vmatpush1.bf16.msra.mxu0 0
        %3402 = vmatprep.mubr.bf16.mxu0 0
        %3403 = vmatmul.mubr.bf16.gmra.mrb[0].mxu0 %v3210
        %v3404 = vpop.f32.mrb[0].mxu0
        %v3405 = vadd.f32 0.0, %v3404
        %v3406 = vpop.f32.mrb[0].mxu0
        %v3407 = vpop.f32.mrb[0].mxu0
        %v3408 = vpop.f32.mrb[0].mxu0
        %3409 = vdwg.mxu0
        %v3412 = vunpack.c.l.s4 1983009808
        %v3413 = vunpack.c.0.s8 %v3412
        %v3414 = vlaneseq
        %v3415 = vshrl.u32 %v3414, 7
        %v3416 = vsub.s32 %v3413, %v3415
        %v3417 = vrot.slane %v3405, %v3416
        %3418 = vrot.lane.b32.xlu0 %v3417, 96
        %v3419 = vpop.permute.xlu0 %3418
        %v3421 = vadd.f32 %v1972, %v3419
        %v3422 = vxor.u32 %v3421, 2147483648
        %v3423 = vmul.f32 %v3422, 1.442695
        %v3424 = vpow.pop %v3423
        %v3425 = vadd.f32 %v3424, 1.0
        %v3426 = vrcp.pop %v3425
        %v3427 = vmul.f32 1.0, %v3426
        %v3428 = vmul.f32 %v3316, %v3198
        %3430 = vrot.lane.b32.xlu0 %v3369, 64
        %v3431 = vpop.permute.xlu0 %3430
        %v3433 = vmul.f32 %v3258, %v3431
        %3435 = vrot.lane.b32.xlu0 %v3433, 32
        %v3436 = vpop.permute.xlu0 %3435
        %v3438 = vadd.f32 %v3428, %v3436
        %v3439 = vtanh.pop %v3438
        %3441 = vrot.lane.b32.xlu0 %v3439, 64
        %v3442 = vpop.permute.xlu0 %3441
        %v3444 = vmul.f32 %v3427, %v3442
        %v3445 = vld [vmem:[%s856] sm:$0xf]
        %v3446 = vld [vmem:[%s856 + $0x4] sm:$0xf]
        %v3447 = vld [vmem:[%s856 + $0x8] sm:$0xf]
        %v3448 = vld [vmem:[%s856 + $0xc] sm:$0xf]
        %v3449 = vld [vmem:[%s861] sm:$0xf]
        %v3450 = vld [vmem:[%s861 + $0x4] sm:$0xf]
        %v3451 = vld [vmem:[%s861 + $0x8] sm:$0xf]
        %v3452 = vld [vmem:[%s861 + $0xc] sm:$0xf]
        %v3453 = vld [vmem:[%s701] sm:$0x1]
        %v3454 = vpack.c.bf16 %v3444, %v3444
        %v3456 = vlaneseq
        %v3457 = vshrl.u32 %v3456, 7
        %v3458 = vsub.s32 0, %v3457
        %v3459 = vrot.slane %v3453, %v3458
        %v3461 = vcombine.low %v2245, %v2485
        %v3462 = vcombine.low %v2725, %v2965
        %v3463 = vcombine.low %v3205, %v3454
        %v3465 = vunpack.c.l.s4 1966171168
        %v3466 = vunpack.c.0.s8 %v3465
        %v3467 = vlaneseq
        %v3468 = vshrl.u32 %v3467, 7
        %v3469 = vsub.s32 %v3466, %v3468
        %v3470 = vrot.slane %v3461, %v3469
        %v3472 = vunpack.c.l.s4 1966171168
        %v3473 = vunpack.c.0.s8 %v3472
        %v3474 = vlaneseq
        %v3475 = vshrl.u32 %v3474, 7
        %v3476 = vsub.s32 %v3473, %v3475
        %v3477 = vrot.slane %v3462, %v3476
        %v3479 = vunpack.c.l.s4 1966171168
        %v3480 = vunpack.c.0.s8 %v3479
        %v3481 = vlaneseq
        %v3482 = vshrl.u32 %v3481, 7
        %v3483 = vsub.s32 %v3480, %v3482
        %v3484 = vrot.slane %v3463, %v3483
        %v3485 = vcombine.low %v3470, %v3477
        %v3487 = vunpack.c.l.s4 1966171168
        %v3488 = vunpack.c.0.s8 %v3487
        %v3489 = vlaneseq
        %v3490 = vshrl.u32 %v3489, 7
        %v3491 = vsub.s32 %v3488, %v3490
        %v3492 = vrot.slane %v3485, %v3491
        %v3494 = vunpack.c.l.s4 1966171168
        %v3495 = vunpack.c.0.s8 %v3494
        %v3496 = vlaneseq
        %v3497 = vshrl.u32 %v3496, 7
        %v3498 = vsub.s32 %v3495, %v3497
        %v3499 = vrot.slane %v3484, %v3498
        %v3500 = vcombine.low %v3492, %v3499
        %3501 = vrot.lane.b32.xlu0 %v3500, 32
        %v3502 = vpop.permute.xlu0 %3501
        %v3507 = vunpack.c.l.b16 %v3445
        %v3508 = vunpack.c.l.b16 %v3446
        %v3509 = vunpack.c.l.b16 %v3447
        %v3510 = vunpack.c.l.b16 %v3448
        %v3511 = vpack.c.b16 %v3508, %v3507
        %v3512 = vpack.c.b16 %v3510, %v3509
        %v3515 = vcombine.low %v3459, %v3459
        %v3517 = vunpack.c.l.s4 1983009808
        %v3518 = vunpack.c.0.s8 %v3517
        %v3519 = vlaneseq
        %v3520 = vshrl.u32 %v3519, 7
        %v3521 = vsub.s32 %v3518, %v3520
        %v3522 = vrot.slane %v3515, %v3521
        %v3523 = vcombine.low %v3522, %v3522
        %v3527 = vsel %vm1498, %v3502, 0
        %3529 = vmatprep.subr.bf16.mxu0 0
        %3530 = vmatpush1.bf16.msra.mxu0 %v3511
        %3531 = vmatprep.subr.bf16.mxu0 0
        %3532 = vmatpush1.bf16.msra.mxu0 %v3512
        %3533 = vmatprep.subr.bf16.mxu0 0
        %3534 = vmatpush1.bf16.msra.mxu0 0
        %3535 = vmatprep.subr.bf16.mxu0 0
        %3536 = vmatpush1.bf16.msra.mxu0 0
        %3537 = vmatprep.subr.bf16.mxu0 0
        %3538 = vmatpush1.bf16.msra.mxu0 0
        %3539 = vmatprep.subr.bf16.mxu0 0
        %3540 = vmatpush1.bf16.msra.mxu0 0
        %3541 = vmatprep.subr.bf16.mxu0 0
        %3542 = vmatpush1.bf16.msra.mxu0 0
        %3543 = vmatprep.subr.bf16.mxu0 0
        %3544 = vmatpush1.bf16.msra.mxu0 0
        %3545 = vmatprep.subr.bf16.mxu0 0
        %3546 = vmatpush1.bf16.msra.mxu0 0
        %3547 = vmatprep.subr.bf16.mxu0 0
        %3548 = vmatpush1.bf16.msra.mxu0 0
        %3549 = vmatprep.subr.bf16.mxu0 0
        %3550 = vmatpush1.bf16.msra.mxu0 0
        %3551 = vmatprep.subr.bf16.mxu0 0
        %3552 = vmatpush1.bf16.msra.mxu0 0
        %3553 = vmatprep.subr.bf16.mxu0 0
        %3554 = vmatpush1.bf16.msra.mxu0 0
        %3555 = vmatprep.subr.bf16.mxu0 0
        %3556 = vmatpush1.bf16.msra.mxu0 0
        %3557 = vmatprep.subr.bf16.mxu0 0
        %3558 = vmatpush1.bf16.msra.mxu0 0
        %3559 = vmatprep.subr.bf16.mxu0 0
        %3560 = vmatpush1.bf16.msra.mxu0 0
        %3561 = vmatprep.mubr.bf16.mxu0 0
        %3562 = vmatmul.mubr.bf16.gmra.mrb[0].mxu0 %v3527
        %v3563 = vpop.f32.mrb[0].mxu0
        %v3564 = vadd.f32 %v3523, %v3563
        %v3565 = vpop.f32.mrb[0].mxu0
        %v3566 = vpop.f32.mrb[0].mxu0
        %v3567 = vadd.f32 %v3522, %v3566
        %v3568 = vpop.f32.mrb[0].mxu0
        %3569 = vdwg.mxu0
        %v3572 = vcombine.high %v3564, %v3564
        %v3574 = vunpack.c.l.s4 1983009808
        %v3575 = vunpack.c.0.s8 %v3574
        %v3576 = vlaneseq
        %v3577 = vshrl.u32 %v3576, 7
        %v3578 = vsub.s32 %v3575, %v3577
        %v3579 = vrot.slane %v3564, %v3578
        %v3581 = vunpack.c.l.s4 1983009808
        %v3582 = vunpack.c.0.s8 %v3581
        %v3583 = vlaneseq
        %v3584 = vshrl.u32 %v3583, 7
        %v3585 = vsub.s32 %v3582, %v3584
        %v3586 = vrot.slane %v3572, %v3585
        %v3587 = vcombine.high %v3579, %v3579
        %v3588 = vcombine.high %v3586, %v3586
        %v3590 = vunpack.c.l.s4 1983009808
        %v3591 = vunpack.c.0.s8 %v3590
        %v3592 = vlaneseq
        %v3593 = vshrl.u32 %v3592, 7
        %v3594 = vsub.s32 %v3591, %v3593
        %v3595 = vrot.slane %v3567, %v3594
        %v3596 = vcombine.high %v3595, %v3595
        %v3607 = vunpack.c.l.b16 %v3449
        %v3608 = vunpack.c.l.b16 %v3450
        %v3609 = vunpack.c.l.b16 %v3451
        %v3610 = vunpack.c.l.b16 %v3452
        %v3611 = vpack.c.b16 %v3608, %v3607
        %v3612 = vpack.c.b16 %v3610, %v3609
        %3615 = vmatprep.subr.bf16.mxu0 0
        %3616 = vmatpush1.bf16.msra.mxu0 %v3611
        %3617 = vmatprep.subr.bf16.mxu0 0
        %3618 = vmatpush1.bf16.msra.mxu0 %v3612
        %3619 = vmatprep.subr.bf16.mxu0 0
        %3620 = vmatpush1.bf16.msra.mxu0 0
        %3621 = vmatprep.subr.bf16.mxu0 0
        %3622 = vmatpush1.bf16.msra.mxu0 0
        %3623 = vmatprep.subr.bf16.mxu0 0
        %3624 = vmatpush1.bf16.msra.mxu0 0
        %3625 = vmatprep.subr.bf16.mxu0 0
        %3626 = vmatpush1.bf16.msra.mxu0 0
        %3627 = vmatprep.subr.bf16.mxu0 0
        %3628 = vmatpush1.bf16.msra.mxu0 0
        %3629 = vmatprep.subr.bf16.mxu0 0
        %3630 = vmatpush1.bf16.msra.mxu0 0
        %3631 = vmatprep.subr.bf16.mxu0 0
        %3632 = vmatpush1.bf16.msra.mxu0 0
        %3633 = vmatprep.subr.bf16.mxu0 0
        %3634 = vmatpush1.bf16.msra.mxu0 0
        %3635 = vmatprep.subr.bf16.mxu0 0
        %3636 = vmatpush1.bf16.msra.mxu0 0
        %3637 = vmatprep.subr.bf16.mxu0 0
        %3638 = vmatpush1.bf16.msra.mxu0 0
        %3639 = vmatprep.subr.bf16.mxu0 0
        %3640 = vmatpush1.bf16.msra.mxu0 0
        %3641 = vmatprep.subr.bf16.mxu0 0
        %3642 = vmatpush1.bf16.msra.mxu0 0
        %3643 = vmatprep.subr.bf16.mxu0 0
        %3644 = vmatpush1.bf16.msra.mxu0 0
        %3645 = vmatprep.subr.bf16.mxu0 0
        %3646 = vmatpush1.bf16.msra.mxu0 0
        %3647 = vmatprep.mubr.bf16.mxu0 0
        %3648 = vmatmul.mubr.bf16.gmra.mrb[0].mxu0 %v1992
        %v3649 = vpop.f32.mrb[0].mxu0
        %v3650 = vadd.f32 0.0, %v3649
        %v3651 = vpop.f32.mrb[0].mxu0
        %v3652 = vpop.f32.mrb[0].mxu0
        %v3653 = vpop.f32.mrb[0].mxu0
        %3654 = vdwg.mxu0
        %v3655 = vadd.f32 %v3579, %v3650
        %v3656 = vxor.u32 %v3655, 2147483648
        %v3657 = vmul.f32 %v3656, 1.442695
        %v3658 = vpow.pop %v3657
        %v3659 = vadd.f32 %v3658, 1.0
        %v3660 = vrcp.pop %v3659
        %v3661 = vmul.f32 1.0, %v3660
        %3662 = vrot.lane.b32.xlu0 %v3611, 96
        %v3663 = vpop.permute.xlu0 %3662
        %3664 = vrot.lane.b32.xlu0 %v3612, 96
        %v3665 = vpop.permute.xlu0 %3664
        %3668 = vmatprep.subr.bf16.mxu0 0
        %3669 = vmatpush1.bf16.msra.mxu0 %v3663
        %3670 = vmatprep.subr.bf16.mxu0 0
        %3671 = vmatpush1.bf16.msra.mxu0 %v3665
        %3672 = vmatprep.subr.bf16.mxu0 0
        %3673 = vmatpush1.bf16.msra.mxu0 0
        %3674 = vmatprep.subr.bf16.mxu0 0
        %3675 = vmatpush1.bf16.msra.mxu0 0
        %3676 = vmatprep.subr.bf16.mxu0 0
        %3677 = vmatpush1.bf16.msra.mxu0 0
        %3678 = vmatprep.subr.bf16.mxu0 0
        %3679 = vmatpush1.bf16.msra.mxu0 0
        %3680 = vmatprep.subr.bf16.mxu0 0
        %3681 = vmatpush1.bf16.msra.mxu0 0
        %3682 = vmatprep.subr.bf16.mxu0 0
        %3683 = vmatpush1.bf16.msra.mxu0 0
        %3684 = vmatprep.subr.bf16.mxu0 0
        %3685 = vmatpush1.bf16.msra.mxu0 0
        %3686 = vmatprep.subr.bf16.mxu0 0
        %3687 = vmatpush1.bf16.msra.mxu0 0
        %3688 = vmatprep.subr.bf16.mxu0 0
        %3689 = vmatpush1.bf16.msra.mxu0 0
        %3690 = vmatprep.subr.bf16.mxu0 0
        %3691 = vmatpush1.bf16.msra.mxu0 0
        %3692 = vmatprep.subr.bf16.mxu0 0
        %3693 = vmatpush1.bf16.msra.mxu0 0
        %3694 = vmatprep.subr.bf16.mxu0 0
        %3695 = vmatpush1.bf16.msra.mxu0 0
        %3696 = vmatprep.subr.bf16.mxu0 0
        %3697 = vmatpush1.bf16.msra.mxu0 0
        %3698 = vmatprep.subr.bf16.mxu0 0
        %3699 = vmatpush1.bf16.msra.mxu0 0
        %3700 = vmatprep.mubr.bf16.mxu0 0
        %3701 = vmatmul.mubr.bf16.gmra.mrb[0].mxu0 %v1992
        %v3702 = vpop.f32.mrb[0].mxu0
        %v3703 = vadd.f32 0.0, %v3702
        %v3704 = vpop.f32.mrb[0].mxu0
        %v3705 = vpop.f32.mrb[0].mxu0
        %v3706 = vpop.f32.mrb[0].mxu0
        %3707 = vdwg.mxu0
        %v3710 = vunpack.c.l.s4 1983009808
        %v3711 = vunpack.c.0.s8 %v3710
        %v3712 = vlaneseq
        %v3713 = vshrl.u32 %v3712, 7
        %v3714 = vsub.s32 %v3711, %v3713
        %v3715 = vrot.slane %v3703, %v3714
        %3716 = vrot.lane.b32.xlu0 %v3715, 32
        %v3717 = vpop.permute.xlu0 %3716
        %v3719 = vadd.f32 %v3579, %v3717
        %v3720 = vxor.u32 %v3719, 2147483648
        %v3721 = vmul.f32 %v3720, 1.442695
        %v3722 = vpow.pop %v3721
        %v3723 = vadd.f32 %v3722, 1.0
        %v3724 = vrcp.pop %v3723
        %v3725 = vmul.f32 1.0, %v3724
        %3726 = vrot.lane.b32.xlu0 %v3611, 64
        %v3727 = vpop.permute.xlu0 %3726
        %3728 = vrot.lane.b32.xlu0 %v3612, 64
        %v3729 = vpop.permute.xlu0 %3728
        %3732 = vmatprep.subr.bf16.mxu0 0
        %3733 = vmatpush1.bf16.msra.mxu0 %v3727
        %3734 = vmatprep.subr.bf16.mxu0 0
        %3735 = vmatpush1.bf16.msra.mxu0 %v3729
        %3736 = vmatprep.subr.bf16.mxu0 0
        %3737 = vmatpush1.bf16.msra.mxu0 0
        %3738 = vmatprep.subr.bf16.mxu0 0
        %3739 = vmatpush1.bf16.msra.mxu0 0
        %3740 = vmatprep.subr.bf16.mxu0 0
        %3741 = vmatpush1.bf16.msra.mxu0 0
        %3742 = vmatprep.subr.bf16.mxu0 0
        %3743 = vmatpush1.bf16.msra.mxu0 0
        %3744 = vmatprep.subr.bf16.mxu0 0
        %3745 = vmatpush1.bf16.msra.mxu0 0
        %3746 = vmatprep.subr.bf16.mxu0 0
        %3747 = vmatpush1.bf16.msra.mxu0 0
        %3748 = vmatprep.subr.bf16.mxu0 0
        %3749 = vmatpush1.bf16.msra.mxu0 0
        %3750 = vmatprep.subr.bf16.mxu0 0
        %3751 = vmatpush1.bf16.msra.mxu0 0
        %3752 = vmatprep.subr.bf16.mxu0 0
        %3753 = vmatpush1.bf16.msra.mxu0 0
        %3754 = vmatprep.subr.bf16.mxu0 0
        %3755 = vmatpush1.bf16.msra.mxu0 0
        %3756 = vmatprep.subr.bf16.mxu0 0
        %3757 = vmatpush1.bf16.msra.mxu0 0
        %3758 = vmatprep.subr.bf16.mxu0 0
        %3759 = vmatpush1.bf16.msra.mxu0 0
        %3760 = vmatprep.subr.bf16.mxu0 0
        %3761 = vmatpush1.bf16.msra.mxu0 0
        %3762 = vmatprep.subr.bf16.mxu0 0
        %3763 = vmatpush1.bf16.msra.mxu0 0
        %3764 = vmatprep.mubr.bf16.mxu0 0
        %3765 = vmatmul.mubr.bf16.gmra.mrb[0].mxu0 %v1992
        %v3766 = vpop.f32.mrb[0].mxu0
        %v3767 = vadd.f32 0.0, %v3766
        %v3768 = vpop.f32.mrb[0].mxu0
        %v3769 = vpop.f32.mrb[0].mxu0
        %v3770 = vpop.f32.mrb[0].mxu0
        %3771 = vdwg.mxu0
        %v3774 = vunpack.c.l.s4 1983009808
        %v3775 = vunpack.c.0.s8 %v3774
        %v3776 = vlaneseq
        %v3777 = vshrl.u32 %v3776, 7
        %v3778 = vsub.s32 %v3775, %v3777
        %v3779 = vrot.slane %v3767, %v3778
        %3780 = vrot.lane.b32.xlu0 %v3779, 64
        %v3781 = vpop.permute.xlu0 %3780
        %v3783 = vadd.f32 %v3579, %v3781
        %v3784 = vtanh.pop %v3783
        %3785 = vrot.lane.b32.xlu0 %v3611, 32
        %v3786 = vpop.permute.xlu0 %3785
        %3787 = vrot.lane.b32.xlu0 %v3612, 32
        %v3788 = vpop.permute.xlu0 %3787
        %3791 = vmatprep.subr.bf16.mxu0 0
        %3792 = vmatpush1.bf16.msra.mxu0 %v3786
        %3793 = vmatprep.subr.bf16.mxu0 0
        %3794 = vmatpush1.bf16.msra.mxu0 %v3788
        %3795 = vmatprep.subr.bf16.mxu0 0
        %3796 = vmatpush1.bf16.msra.mxu0 0
        %3797 = vmatprep.subr.bf16.mxu0 0
        %3798 = vmatpush1.bf16.msra.mxu0 0
        %3799 = vmatprep.subr.bf16.mxu0 0
        %3800 = vmatpush1.bf16.msra.mxu0 0
        %3801 = vmatprep.subr.bf16.mxu0 0
        %3802 = vmatpush1.bf16.msra.mxu0 0
        %3803 = vmatprep.subr.bf16.mxu0 0
        %3804 = vmatpush1.bf16.msra.mxu0 0
        %3805 = vmatprep.subr.bf16.mxu0 0
        %3806 = vmatpush1.bf16.msra.mxu0 0
        %3807 = vmatprep.subr.bf16.mxu0 0
        %3808 = vmatpush1.bf16.msra.mxu0 0
        %3809 = vmatprep.subr.bf16.mxu0 0
        %3810 = vmatpush1.bf16.msra.mxu0 0
        %3811 = vmatprep.subr.bf16.mxu0 0
        %3812 = vmatpush1.bf16.msra.mxu0 0
        %3813 = vmatprep.subr.bf16.mxu0 0
        %3814 = vmatpush1.bf16.msra.mxu0 0
        %3815 = vmatprep.subr.bf16.mxu0 0
        %3816 = vmatpush1.bf16.msra.mxu0 0
        %3817 = vmatprep.subr.bf16.mxu0 0
        %3818 = vmatpush1.bf16.msra.mxu0 0
        %3819 = vmatprep.subr.bf16.mxu0 0
        %3820 = vmatpush1.bf16.msra.mxu0 0
        %3821 = vmatprep.subr.bf16.mxu0 0
        %3822 = vmatpush1.bf16.msra.mxu0 0
        %3823 = vmatprep.mubr.bf16.mxu0 0
        %3824 = vmatmul.mubr.bf16.gmra.mrb[0].mxu0 %v1992
        %v3825 = vpop.f32.mrb[0].mxu0
        %v3826 = vadd.f32 0.0, %v3825
        %v3827 = vpop.f32.mrb[0].mxu0
        %v3828 = vpop.f32.mrb[0].mxu0
        %v3829 = vpop.f32.mrb[0].mxu0
        %3830 = vdwg.mxu0
        %v3833 = vunpack.c.l.s4 1983009808
        %v3834 = vunpack.c.0.s8 %v3833
        %v3835 = vlaneseq
        %v3836 = vshrl.u32 %v3835, 7
        %v3837 = vsub.s32 %v3834, %v3836
        %v3838 = vrot.slane %v3826, %v3837
        %3839 = vrot.lane.b32.xlu0 %v3838, 96
        %v3840 = vpop.permute.xlu0 %3839
        %v3842 = vadd.f32 %v3579, %v3840
        %v3843 = vxor.u32 %v3842, 2147483648
        %v3844 = vmul.f32 %v3843, 1.442695
        %v3845 = vpow.pop %v3844
        %v3846 = vadd.f32 %v3845, 1.0
        %v3847 = vrcp.pop %v3846
        %v3848 = vmul.f32 1.0, %v3847
        %v3849 = vmul.f32 %v3725, 0.0
        %3851 = vrot.lane.b32.xlu0 %v3784, 64
        %v3852 = vpop.permute.xlu0 %3851
        %v3854 = vmul.f32 %v3661, %v3852
        %3856 = vrot.lane.b32.xlu0 %v3854, 32
        %v3857 = vpop.permute.xlu0 %3856
        %v3859 = vadd.f32 %v3849, %v3857
        %v3860 = vtanh.pop %v3859
        %3862 = vrot.lane.b32.xlu0 %v3860, 64
        %v3863 = vpop.permute.xlu0 %3862
        %v3865 = vmul.f32 %v3848, %v3863
        %v3866 = vpack.c.bf16 %v3865, %v3865
        %3868 = vrot.lane.b32.xlu0 %v3866, 32
        %v3869 = vpop.permute.xlu0 %3868
        %v3871 = vsel %vm1498, %v3869, 0
        %3873 = vmatprep.subr.bf16.mxu0 0
        %3874 = vmatpush1.bf16.msra.mxu0 %v3611
        %3875 = vmatprep.subr.bf16.mxu0 0
        %3876 = vmatpush1.bf16.msra.mxu0 %v3612
        %3877 = vmatprep.subr.bf16.mxu0 0
        %3878 = vmatpush1.bf16.msra.mxu0 0
        %3879 = vmatprep.subr.bf16.mxu0 0
        %3880 = vmatpush1.bf16.msra.mxu0 0
        %3881 = vmatprep.subr.bf16.mxu0 0
        %3882 = vmatpush1.bf16.msra.mxu0 0
        %3883 = vmatprep.subr.bf16.mxu0 0
        %3884 = vmatpush1.bf16.msra.mxu0 0
        %3885 = vmatprep.subr.bf16.mxu0 0
        %3886 = vmatpush1.bf16.msra.mxu0 0
        %3887 = vmatprep.subr.bf16.mxu0 0
        %3888 = vmatpush1.bf16.msra.mxu0 0
        %3889 = vmatprep.subr.bf16.mxu0 0
        %3890 = vmatpush1.bf16.msra.mxu0 0
        %3891 = vmatprep.subr.bf16.mxu0 0
        %3892 = vmatpush1.bf16.msra.mxu0 0
        %3893 = vmatprep.subr.bf16.mxu0 0
        %3894 = vmatpush1.bf16.msra.mxu0 0
        %3895 = vmatprep.subr.bf16.mxu0 0
        %3896 = vmatpush1.bf16.msra.mxu0 0
        %3897 = vmatprep.subr.bf16.mxu0 0
        %3898 = vmatpush1.bf16.msra.mxu0 0
        %3899 = vmatprep.subr.bf16.mxu0 0
        %3900 = vmatpush1.bf16.msra.mxu0 0
        %3901 = vmatprep.subr.bf16.mxu0 0
        %3902 = vmatpush1.bf16.msra.mxu0 0
        %3903 = vmatprep.subr.bf16.mxu0 0
        %3904 = vmatpush1.bf16.msra.mxu0 0
        %3905 = vmatprep.mubr.bf16.mxu0 0
        %3906 = vmatmul.mubr.bf16.gmra.mrb[0].mxu0 %v3871
        %v3907 = vpop.f32.mrb[0].mxu0
        %v3908 = vadd.f32 0.0, %v3907
        %v3909 = vpop.f32.mrb[0].mxu0
        %v3910 = vpop.f32.mrb[0].mxu0
        %v3911 = vpop.f32.mrb[0].mxu0
        %3912 = vdwg.mxu0
        %v3913 = vadd.f32 %v3587, %v3908
        %v3914 = vxor.u32 %v3913, 2147483648
        %v3915 = vmul.f32 %v3914, 1.442695
        %v3916 = vpow.pop %v3915
        %v3917 = vadd.f32 %v3916, 1.0
        %v3918 = vrcp.pop %v3917
        %v3919 = vmul.f32 1.0, %v3918
        %3920 = vmatprep.subr.bf16.mxu0 0
        %3921 = vmatpush1.bf16.msra.mxu0 %v3663
        %3922 = vmatprep.subr.bf16.mxu0 0
        %3923 = vmatpush1.bf16.msra.mxu0 %v3665
        %3924 = vmatprep.subr.bf16.mxu0 0
        %3925 = vmatpush1.bf16.msra.mxu0 0
        %3926 = vmatprep.subr.bf16.mxu0 0
        %3927 = vmatpush1.bf16.msra.mxu0 0
        %3928 = vmatprep.subr.bf16.mxu0 0
        %3929 = vmatpush1.bf16.msra.mxu0 0
        %3930 = vmatprep.subr.bf16.mxu0 0
        %3931 = vmatpush1.bf16.msra.mxu0 0
        %3932 = vmatprep.subr.bf16.mxu0 0
        %3933 = vmatpush1.bf16.msra.mxu0 0
        %3934 = vmatprep.subr.bf16.mxu0 0
        %3935 = vmatpush1.bf16.msra.mxu0 0
        %3936 = vmatprep.subr.bf16.mxu0 0
        %3937 = vmatpush1.bf16.msra.mxu0 0
        %3938 = vmatprep.subr.bf16.mxu0 0
        %3939 = vmatpush1.bf16.msra.mxu0 0
        %3940 = vmatprep.subr.bf16.mxu0 0
        %3941 = vmatpush1.bf16.msra.mxu0 0
        %3942 = vmatprep.subr.bf16.mxu0 0
        %3943 = vmatpush1.bf16.msra.mxu0 0
        %3944 = vmatprep.subr.bf16.mxu0 0
        %3945 = vmatpush1.bf16.msra.mxu0 0
        %3946 = vmatprep.subr.bf16.mxu0 0
        %3947 = vmatpush1.bf16.msra.mxu0 0
        %3948 = vmatprep.subr.bf16.mxu0 0
        %3949 = vmatpush1.bf16.msra.mxu0 0
        %3950 = vmatprep.subr.bf16.mxu0 0
        %3951 = vmatpush1.bf16.msra.mxu0 0
        %3952 = vmatprep.mubr.bf16.mxu0 0
        %3953 = vmatmul.mubr.bf16.gmra.mrb[0].mxu0 %v3871
        %v3954 = vpop.f32.mrb[0].mxu0
        %v3955 = vadd.f32 0.0, %v3954
        %v3956 = vpop.f32.mrb[0].mxu0
        %v3957 = vpop.f32.mrb[0].mxu0
        %v3958 = vpop.f32.mrb[0].mxu0
        %3959 = vdwg.mxu0
        %v3962 = vunpack.c.l.s4 1983009808
        %v3963 = vunpack.c.0.s8 %v3962
        %v3964 = vlaneseq
        %v3965 = vshrl.u32 %v3964, 7
        %v3966 = vsub.s32 %v3963, %v3965
        %v3967 = vrot.slane %v3955, %v3966
        %3968 = vrot.lane.b32.xlu0 %v3967, 32
        %v3969 = vpop.permute.xlu0 %3968
        %v3971 = vadd.f32 %v3587, %v3969
        %v3972 = vxor.u32 %v3971, 2147483648
        %v3973 = vmul.f32 %v3972, 1.442695
        %v3974 = vpow.pop %v3973
        %v3975 = vadd.f32 %v3974, 1.0
        %v3976 = vrcp.pop %v3975
        %v3977 = vmul.f32 1.0, %v3976
        %3978 = vmatprep.subr.bf16.mxu0 0
        %3979 = vmatpush1.bf16.msra.mxu0 %v3727
        %3980 = vmatprep.subr.bf16.mxu0 0
        %3981 = vmatpush1.bf16.msra.mxu0 %v3729
        %3982 = vmatprep.subr.bf16.mxu0 0
        %3983 = vmatpush1.bf16.msra.mxu0 0
        %3984 = vmatprep.subr.bf16.mxu0 0
        %3985 = vmatpush1.bf16.msra.mxu0 0
        %3986 = vmatprep.subr.bf16.mxu0 0
        %3987 = vmatpush1.bf16.msra.mxu0 0
        %3988 = vmatprep.subr.bf16.mxu0 0
        %3989 = vmatpush1.bf16.msra.mxu0 0
        %3990 = vmatprep.subr.bf16.mxu0 0
        %3991 = vmatpush1.bf16.msra.mxu0 0
        %3992 = vmatprep.subr.bf16.mxu0 0
        %3993 = vmatpush1.bf16.msra.mxu0 0
        %3994 = vmatprep.subr.bf16.mxu0 0
        %3995 = vmatpush1.bf16.msra.mxu0 0
        %3996 = vmatprep.subr.bf16.mxu0 0
        %3997 = vmatpush1.bf16.msra.mxu0 0
        %3998 = vmatprep.subr.bf16.mxu0 0
        %3999 = vmatpush1.bf16.msra.mxu0 0
        %4000 = vmatprep.subr.bf16.mxu0 0
        %4001 = vmatpush1.bf16.msra.mxu0 0
        %4002 = vmatprep.subr.bf16.mxu0 0
        %4003 = vmatpush1.bf16.msra.mxu0 0
        %4004 = vmatprep.subr.bf16.mxu0 0
        %4005 = vmatpush1.bf16.msra.mxu0 0
        %4006 = vmatprep.subr.bf16.mxu0 0
        %4007 = vmatpush1.bf16.msra.mxu0 0
        %4008 = vmatprep.subr.bf16.mxu0 0
        %4009 = vmatpush1.bf16.msra.mxu0 0
        %4010 = vmatprep.mubr.bf16.mxu0 0
        %4011 = vmatmul.mubr.bf16.gmra.mrb[0].mxu0 %v3871
        %v4012 = vpop.f32.mrb[0].mxu0
        %v4013 = vadd.f32 0.0, %v4012
        %v4014 = vpop.f32.mrb[0].mxu0
        %v4015 = vpop.f32.mrb[0].mxu0
        %v4016 = vpop.f32.mrb[0].mxu0
        %4017 = vdwg.mxu0
        %v4020 = vunpack.c.l.s4 1983009808
        %v4021 = vunpack.c.0.s8 %v4020
        %v4022 = vlaneseq
        %v4023 = vshrl.u32 %v4022, 7
        %v4024 = vsub.s32 %v4021, %v4023
        %v4025 = vrot.slane %v4013, %v4024
        %4026 = vrot.lane.b32.xlu0 %v4025, 64
        %v4027 = vpop.permute.xlu0 %4026
        %v4029 = vadd.f32 %v3587, %v4027
        %v4030 = vtanh.pop %v4029
        %4031 = vmatprep.subr.bf16.mxu0 0
        %4032 = vmatpush1.bf16.msra.mxu0 %v3786
        %4033 = vmatprep.subr.bf16.mxu0 0
        %4034 = vmatpush1.bf16.msra.mxu0 %v3788
        %4035 = vmatprep.subr.bf16.mxu0 0
        %4036 = vmatpush1.bf16.msra.mxu0 0
        %4037 = vmatprep.subr.bf16.mxu0 0
        %4038 = vmatpush1.bf16.msra.mxu0 0
        %4039 = vmatprep.subr.bf16.mxu0 0
        %4040 = vmatpush1.bf16.msra.mxu0 0
        %4041 = vmatprep.subr.bf16.mxu0 0
        %4042 = vmatpush1.bf16.msra.mxu0 0
        %4043 = vmatprep.subr.bf16.mxu0 0
        %4044 = vmatpush1.bf16.msra.mxu0 0
        %4045 = vmatprep.subr.bf16.mxu0 0
        %4046 = vmatpush1.bf16.msra.mxu0 0
        %4047 = vmatprep.subr.bf16.mxu0 0
        %4048 = vmatpush1.bf16.msra.mxu0 0
        %4049 = vmatprep.subr.bf16.mxu0 0
        %4050 = vmatpush1.bf16.msra.mxu0 0
        %4051 = vmatprep.subr.bf16.mxu0 0
        %4052 = vmatpush1.bf16.msra.mxu0 0
        %4053 = vmatprep.subr.bf16.mxu0 0
        %4054 = vmatpush1.bf16.msra.mxu0 0
        %4055 = vmatprep.subr.bf16.mxu0 0
        %4056 = vmatpush1.bf16.msra.mxu0 0
        %4057 = vmatprep.subr.bf16.mxu0 0
        %4058 = vmatpush1.bf16.msra.mxu0 0
        %4059 = vmatprep.subr.bf16.mxu0 0
        %4060 = vmatpush1.bf16.msra.mxu0 0
        %4061 = vmatprep.subr.bf16.mxu0 0
        %4062 = vmatpush1.bf16.msra.mxu0 0
        %4063 = vmatprep.mubr.bf16.mxu0 0
        %4064 = vmatmul.mubr.bf16.gmra.mrb[0].mxu0 %v3871
        %v4065 = vpop.f32.mrb[0].mxu0
        %v4066 = vadd.f32 0.0, %v4065
        %v4067 = vpop.f32.mrb[0].mxu0
        %v4068 = vpop.f32.mrb[0].mxu0
        %v4069 = vpop.f32.mrb[0].mxu0
        %4070 = vdwg.mxu0
        %v4073 = vunpack.c.l.s4 1983009808
        %v4074 = vunpack.c.0.s8 %v4073
        %v4075 = vlaneseq
        %v4076 = vshrl.u32 %v4075, 7
        %v4077 = vsub.s32 %v4074, %v4076
        %v4078 = vrot.slane %v4066, %v4077
        %4079 = vrot.lane.b32.xlu0 %v4078, 96
        %v4080 = vpop.permute.xlu0 %4079
        %v4082 = vadd.f32 %v3587, %v4080
        %v4083 = vxor.u32 %v4082, 2147483648
        %v4084 = vmul.f32 %v4083, 1.442695
        %v4085 = vpow.pop %v4084
        %v4086 = vadd.f32 %v4085, 1.0
        %v4087 = vrcp.pop %v4086
        %v4088 = vmul.f32 1.0, %v4087
        %v4089 = vmul.f32 %v3977, %v3859
        %4091 = vrot.lane.b32.xlu0 %v4030, 64
        %v4092 = vpop.permute.xlu0 %4091
        %v4094 = vmul.f32 %v3919, %v4092
        %4096 = vrot.lane.b32.xlu0 %v4094, 32
        %v4097 = vpop.permute.xlu0 %4096
        %v4099 = vadd.f32 %v4089, %v4097
        %v4100 = vtanh.pop %v4099
        %4102 = vrot.lane.b32.xlu0 %v4100, 64
        %v4103 = vpop.permute.xlu0 %4102
        %v4105 = vmul.f32 %v4088, %v4103
        %v4106 = vpack.c.bf16 %v4105, %v4105
        %4108 = vrot.lane.b32.xlu0 %v4106, 32
        %v4109 = vpop.permute.xlu0 %4108
        %v4111 = vsel %vm1498, %v4109, 0
        %4113 = vmatprep.subr.bf16.mxu0 0
        %4114 = vmatpush1.bf16.msra.mxu0 %v3611
        %4115 = vmatprep.subr.bf16.mxu0 0
        %4116 = vmatpush1.bf16.msra.mxu0 %v3612
        %4117 = vmatprep.subr.bf16.mxu0 0
        %4118 = vmatpush1.bf16.msra.mxu0 0
        %4119 = vmatprep.subr.bf16.mxu0 0
        %4120 = vmatpush1.bf16.msra.mxu0 0
        %4121 = vmatprep.subr.bf16.mxu0 0
        %4122 = vmatpush1.bf16.msra.mxu0 0
        %4123 = vmatprep.subr.bf16.mxu0 0
        %4124 = vmatpush1.bf16.msra.mxu0 0
        %4125 = vmatprep.subr.bf16.mxu0 0
        %4126 = vmatpush1.bf16.msra.mxu0 0
        %4127 = vmatprep.subr.bf16.mxu0 0
        %4128 = vmatpush1.bf16.msra.mxu0 0
        %4129 = vmatprep.subr.bf16.mxu0 0
        %4130 = vmatpush1.bf16.msra.mxu0 0
        %4131 = vmatprep.subr.bf16.mxu0 0
        %4132 = vmatpush1.bf16.msra.mxu0 0
        %4133 = vmatprep.subr.bf16.mxu0 0
        %4134 = vmatpush1.bf16.msra.mxu0 0
        %4135 = vmatprep.subr.bf16.mxu0 0
        %4136 = vmatpush1.bf16.msra.mxu0 0
        %4137 = vmatprep.subr.bf16.mxu0 0
        %4138 = vmatpush1.bf16.msra.mxu0 0
        %4139 = vmatprep.subr.bf16.mxu0 0
        %4140 = vmatpush1.bf16.msra.mxu0 0
        %4141 = vmatprep.subr.bf16.mxu0 0
        %4142 = vmatpush1.bf16.msra.mxu0 0
        %4143 = vmatprep.subr.bf16.mxu0 0
        %4144 = vmatpush1.bf16.msra.mxu0 0
        %4145 = vmatprep.mubr.bf16.mxu0 0
        %4146 = vmatmul.mubr.bf16.gmra.mrb[0].mxu0 %v4111
        %v4147 = vpop.f32.mrb[0].mxu0
        %v4148 = vadd.f32 0.0, %v4147
        %v4149 = vpop.f32.mrb[0].mxu0
        %v4150 = vpop.f32.mrb[0].mxu0
        %v4151 = vpop.f32.mrb[0].mxu0
        %4152 = vdwg.mxu0
        %v4153 = vadd.f32 %v3586, %v4148
        %v4154 = vxor.u32 %v4153, 2147483648
        %v4155 = vmul.f32 %v4154, 1.442695
        %v4156 = vpow.pop %v4155
        %v4157 = vadd.f32 %v4156, 1.0
        %v4158 = vrcp.pop %v4157
        %v4159 = vmul.f32 1.0, %v4158
        %4160 = vmatprep.subr.bf16.mxu0 0
        %4161 = vmatpush1.bf16.msra.mxu0 %v3663
        %4162 = vmatprep.subr.bf16.mxu0 0
        %4163 = vmatpush1.bf16.msra.mxu0 %v3665
        %4164 = vmatprep.subr.bf16.mxu0 0
        %4165 = vmatpush1.bf16.msra.mxu0 0
        %4166 = vmatprep.subr.bf16.mxu0 0
        %4167 = vmatpush1.bf16.msra.mxu0 0
        %4168 = vmatprep.subr.bf16.mxu0 0
        %4169 = vmatpush1.bf16.msra.mxu0 0
        %4170 = vmatprep.subr.bf16.mxu0 0
        %4171 = vmatpush1.bf16.msra.mxu0 0
        %4172 = vmatprep.subr.bf16.mxu0 0
        %4173 = vmatpush1.bf16.msra.mxu0 0
        %4174 = vmatprep.subr.bf16.mxu0 0
        %4175 = vmatpush1.bf16.msra.mxu0 0
        %4176 = vmatprep.subr.bf16.mxu0 0
        %4177 = vmatpush1.bf16.msra.mxu0 0
        %4178 = vmatprep.subr.bf16.mxu0 0
        %4179 = vmatpush1.bf16.msra.mxu0 0
        %4180 = vmatprep.subr.bf16.mxu0 0
        %4181 = vmatpush1.bf16.msra.mxu0 0
        %4182 = vmatprep.subr.bf16.mxu0 0
        %4183 = vmatpush1.bf16.msra.mxu0 0
        %4184 = vmatprep.subr.bf16.mxu0 0
        %4185 = vmatpush1.bf16.msra.mxu0 0
        %4186 = vmatprep.subr.bf16.mxu0 0
        %4187 = vmatpush1.bf16.msra.mxu0 0
        %4188 = vmatprep.subr.bf16.mxu0 0
        %4189 = vmatpush1.bf16.msra.mxu0 0
        %4190 = vmatprep.subr.bf16.mxu0 0
        %4191 = vmatpush1.bf16.msra.mxu0 0
        %4192 = vmatprep.mubr.bf16.mxu0 0
        %4193 = vmatmul.mubr.bf16.gmra.mrb[0].mxu0 %v4111
        %v4194 = vpop.f32.mrb[0].mxu0
        %v4195 = vadd.f32 0.0, %v4194
        %v4196 = vpop.f32.mrb[0].mxu0
        %v4197 = vpop.f32.mrb[0].mxu0
        %v4198 = vpop.f32.mrb[0].mxu0
        %4199 = vdwg.mxu0
        %v4202 = vunpack.c.l.s4 1983009808
        %v4203 = vunpack.c.0.s8 %v4202
        %v4204 = vlaneseq
        %v4205 = vshrl.u32 %v4204, 7
        %v4206 = vsub.s32 %v4203, %v4205
        %v4207 = vrot.slane %v4195, %v4206
        %4208 = vrot.lane.b32.xlu0 %v4207, 32
        %v4209 = vpop.permute.xlu0 %4208
        %v4211 = vadd.f32 %v3586, %v4209
        %v4212 = vxor.u32 %v4211, 2147483648
        %v4213 = vmul.f32 %v4212, 1.442695
        %v4214 = vpow.pop %v4213
        %v4215 = vadd.f32 %v4214, 1.0
        %v4216 = vrcp.pop %v4215
        %v4217 = vmul.f32 1.0, %v4216
        %4218 = vmatprep.subr.bf16.mxu0 0
        %4219 = vmatpush1.bf16.msra.mxu0 %v3727
        %4220 = vmatprep.subr.bf16.mxu0 0
        %4221 = vmatpush1.bf16.msra.mxu0 %v3729
        %4222 = vmatprep.subr.bf16.mxu0 0
        %4223 = vmatpush1.bf16.msra.mxu0 0
        %4224 = vmatprep.subr.bf16.mxu0 0
        %4225 = vmatpush1.bf16.msra.mxu0 0
        %4226 = vmatprep.subr.bf16.mxu0 0
        %4227 = vmatpush1.bf16.msra.mxu0 0
        %4228 = vmatprep.subr.bf16.mxu0 0
        %4229 = vmatpush1.bf16.msra.mxu0 0
        %4230 = vmatprep.subr.bf16.mxu0 0
        %4231 = vmatpush1.bf16.msra.mxu0 0
        %4232 = vmatprep.subr.bf16.mxu0 0
        %4233 = vmatpush1.bf16.msra.mxu0 0
        %4234 = vmatprep.subr.bf16.mxu0 0
        %4235 = vmatpush1.bf16.msra.mxu0 0
        %4236 = vmatprep.subr.bf16.mxu0 0
        %4237 = vmatpush1.bf16.msra.mxu0 0
        %4238 = vmatprep.subr.bf16.mxu0 0
        %4239 = vmatpush1.bf16.msra.mxu0 0
        %4240 = vmatprep.subr.bf16.mxu0 0
        %4241 = vmatpush1.bf16.msra.mxu0 0
        %4242 = vmatprep.subr.bf16.mxu0 0
        %4243 = vmatpush1.bf16.msra.mxu0 0
        %4244 = vmatprep.subr.bf16.mxu0 0
        %4245 = vmatpush1.bf16.msra.mxu0 0
        %4246 = vmatprep.subr.bf16.mxu0 0
        %4247 = vmatpush1.bf16.msra.mxu0 0
        %4248 = vmatprep.subr.bf16.mxu0 0
        %4249 = vmatpush1.bf16.msra.mxu0 0
        %4250 = vmatprep.mubr.bf16.mxu0 0
        %4251 = vmatmul.mubr.bf16.gmra.mrb[0].mxu0 %v4111
        %v4252 = vpop.f32.mrb[0].mxu0
        %v4253 = vadd.f32 0.0, %v4252
        %v4254 = vpop.f32.mrb[0].mxu0
        %v4255 = vpop.f32.mrb[0].mxu0
        %v4256 = vpop.f32.mrb[0].mxu0
        %4257 = vdwg.mxu0
        %v4260 = vunpack.c.l.s4 1983009808
        %v4261 = vunpack.c.0.s8 %v4260
        %v4262 = vlaneseq
        %v4263 = vshrl.u32 %v4262, 7
        %v4264 = vsub.s32 %v4261, %v4263
        %v4265 = vrot.slane %v4253, %v4264
        %4266 = vrot.lane.b32.xlu0 %v4265, 64
        %v4267 = vpop.permute.xlu0 %4266
        %v4269 = vadd.f32 %v3586, %v4267
        %v4270 = vtanh.pop %v4269
        %4271 = vmatprep.subr.bf16.mxu0 0
        %4272 = vmatpush1.bf16.msra.mxu0 %v3786
        %4273 = vmatprep.subr.bf16.mxu0 0
        %4274 = vmatpush1.bf16.msra.mxu0 %v3788
        %4275 = vmatprep.subr.bf16.mxu0 0
        %4276 = vmatpush1.bf16.msra.mxu0 0
        %4277 = vmatprep.subr.bf16.mxu0 0
        %4278 = vmatpush1.bf16.msra.mxu0 0
        %4279 = vmatprep.subr.bf16.mxu0 0
        %4280 = vmatpush1.bf16.msra.mxu0 0
        %4281 = vmatprep.subr.bf16.mxu0 0
        %4282 = vmatpush1.bf16.msra.mxu0 0
        %4283 = vmatprep.subr.bf16.mxu0 0
        %4284 = vmatpush1.bf16.msra.mxu0 0
        %4285 = vmatprep.subr.bf16.mxu0 0
        %4286 = vmatpush1.bf16.msra.mxu0 0
        %4287 = vmatprep.subr.bf16.mxu0 0
        %4288 = vmatpush1.bf16.msra.mxu0 0
        %4289 = vmatprep.subr.bf16.mxu0 0
        %4290 = vmatpush1.bf16.msra.mxu0 0
        %4291 = vmatprep.subr.bf16.mxu0 0
        %4292 = vmatpush1.bf16.msra.mxu0 0
        %4293 = vmatprep.subr.bf16.mxu0 0
        %4294 = vmatpush1.bf16.msra.mxu0 0
        %4295 = vmatprep.subr.bf16.mxu0 0
        %4296 = vmatpush1.bf16.msra.mxu0 0
        %4297 = vmatprep.subr.bf16.mxu0 0
        %4298 = vmatpush1.bf16.msra.mxu0 0
        %4299 = vmatprep.subr.bf16.mxu0 0
        %4300 = vmatpush1.bf16.msra.mxu0 0
        %4301 = vmatprep.subr.bf16.mxu0 0
        %4302 = vmatpush1.bf16.msra.mxu0 0
        %4303 = vmatprep.mubr.bf16.mxu0 0
        %4304 = vmatmul.mubr.bf16.gmra.mrb[0].mxu0 %v4111
        %v4305 = vpop.f32.mrb[0].mxu0
        %v4306 = vadd.f32 0.0, %v4305
        %v4307 = vpop.f32.mrb[0].mxu0
        %v4308 = vpop.f32.mrb[0].mxu0
        %v4309 = vpop.f32.mrb[0].mxu0
        %4310 = vdwg.mxu0
        %v4313 = vunpack.c.l.s4 1983009808
        %v4314 = vunpack.c.0.s8 %v4313
        %v4315 = vlaneseq
        %v4316 = vshrl.u32 %v4315, 7
        %v4317 = vsub.s32 %v4314, %v4316
        %v4318 = vrot.slane %v4306, %v4317
        %4319 = vrot.lane.b32.xlu0 %v4318, 96
        %v4320 = vpop.permute.xlu0 %4319
        %v4322 = vadd.f32 %v3586, %v4320
        %v4323 = vxor.u32 %v4322, 2147483648
        %v4324 = vmul.f32 %v4323, 1.442695
        %v4325 = vpow.pop %v4324
        %v4326 = vadd.f32 %v4325, 1.0
        %v4327 = vrcp.pop %v4326
        %v4328 = vmul.f32 1.0, %v4327
        %v4329 = vmul.f32 %v4217, %v4099
        %4331 = vrot.lane.b32.xlu0 %v4270, 64
        %v4332 = vpop.permute.xlu0 %4331
        %v4334 = vmul.f32 %v4159, %v4332
        %4336 = vrot.lane.b32.xlu0 %v4334, 32
        %v4337 = vpop.permute.xlu0 %4336
        %v4339 = vadd.f32 %v4329, %v4337
        %v4340 = vtanh.pop %v4339
        %4342 = vrot.lane.b32.xlu0 %v4340, 64
        %v4343 = vpop.permute.xlu0 %4342
        %v4345 = vmul.f32 %v4328, %v4343
        %v4346 = vpack.c.bf16 %v4345, %v4345
        %4348 = vrot.lane.b32.xlu0 %v4346, 32
        %v4349 = vpop.permute.xlu0 %4348
        %v4351 = vsel %vm1498, %v4349, 0
        %4353 = vmatprep.subr.bf16.mxu0 0
        %4354 = vmatpush1.bf16.msra.mxu0 %v3611
        %4355 = vmatprep.subr.bf16.mxu0 0
        %4356 = vmatpush1.bf16.msra.mxu0 %v3612
        %4357 = vmatprep.subr.bf16.mxu0 0
        %4358 = vmatpush1.bf16.msra.mxu0 0
        %4359 = vmatprep.subr.bf16.mxu0 0
        %4360 = vmatpush1.bf16.msra.mxu0 0
        %4361 = vmatprep.subr.bf16.mxu0 0
        %4362 = vmatpush1.bf16.msra.mxu0 0
        %4363 = vmatprep.subr.bf16.mxu0 0
        %4364 = vmatpush1.bf16.msra.mxu0 0
        %4365 = vmatprep.subr.bf16.mxu0 0
        %4366 = vmatpush1.bf16.msra.mxu0 0
        %4367 = vmatprep.subr.bf16.mxu0 0
        %4368 = vmatpush1.bf16.msra.mxu0 0
        %4369 = vmatprep.subr.bf16.mxu0 0
        %4370 = vmatpush1.bf16.msra.mxu0 0
        %4371 = vmatprep.subr.bf16.mxu0 0
        %4372 = vmatpush1.bf16.msra.mxu0 0
        %4373 = vmatprep.subr.bf16.mxu0 0
        %4374 = vmatpush1.bf16.msra.mxu0 0
        %4375 = vmatprep.subr.bf16.mxu0 0
        %4376 = vmatpush1.bf16.msra.mxu0 0
        %4377 = vmatprep.subr.bf16.mxu0 0
        %4378 = vmatpush1.bf16.msra.mxu0 0
        %4379 = vmatprep.subr.bf16.mxu0 0
        %4380 = vmatpush1.bf16.msra.mxu0 0
        %4381 = vmatprep.subr.bf16.mxu0 0
        %4382 = vmatpush1.bf16.msra.mxu0 0
        %4383 = vmatprep.subr.bf16.mxu0 0
        %4384 = vmatpush1.bf16.msra.mxu0 0
        %4385 = vmatprep.mubr.bf16.mxu0 0
        %4386 = vmatmul.mubr.bf16.gmra.mrb[0].mxu0 %v4351
        %v4387 = vpop.f32.mrb[0].mxu0
        %v4388 = vadd.f32 0.0, %v4387
        %v4389 = vpop.f32.mrb[0].mxu0
        %v4390 = vpop.f32.mrb[0].mxu0
        %v4391 = vpop.f32.mrb[0].mxu0
        %4392 = vdwg.mxu0
        %v4393 = vadd.f32 %v3588, %v4388
        %v4394 = vxor.u32 %v4393, 2147483648
        %v4395 = vmul.f32 %v4394, 1.442695
        %v4396 = vpow.pop %v4395
        %v4397 = vadd.f32 %v4396, 1.0
        %v4398 = vrcp.pop %v4397
        %v4399 = vmul.f32 1.0, %v4398
        %4400 = vmatprep.subr.bf16.mxu0 0
        %4401 = vmatpush1.bf16.msra.mxu0 %v3663
        %4402 = vmatprep.subr.bf16.mxu0 0
        %4403 = vmatpush1.bf16.msra.mxu0 %v3665
        %4404 = vmatprep.subr.bf16.mxu0 0
        %4405 = vmatpush1.bf16.msra.mxu0 0
        %4406 = vmatprep.subr.bf16.mxu0 0
        %4407 = vmatpush1.bf16.msra.mxu0 0
        %4408 = vmatprep.subr.bf16.mxu0 0
        %4409 = vmatpush1.bf16.msra.mxu0 0
        %4410 = vmatprep.subr.bf16.mxu0 0
        %4411 = vmatpush1.bf16.msra.mxu0 0
        %4412 = vmatprep.subr.bf16.mxu0 0
        %4413 = vmatpush1.bf16.msra.mxu0 0
        %4414 = vmatprep.subr.bf16.mxu0 0
        %4415 = vmatpush1.bf16.msra.mxu0 0
        %4416 = vmatprep.subr.bf16.mxu0 0
        %4417 = vmatpush1.bf16.msra.mxu0 0
        %4418 = vmatprep.subr.bf16.mxu0 0
        %4419 = vmatpush1.bf16.msra.mxu0 0
        %4420 = vmatprep.subr.bf16.mxu0 0
        %4421 = vmatpush1.bf16.msra.mxu0 0
        %4422 = vmatprep.subr.bf16.mxu0 0
        %4423 = vmatpush1.bf16.msra.mxu0 0
        %4424 = vmatprep.subr.bf16.mxu0 0
        %4425 = vmatpush1.bf16.msra.mxu0 0
        %4426 = vmatprep.subr.bf16.mxu0 0
        %4427 = vmatpush1.bf16.msra.mxu0 0
        %4428 = vmatprep.subr.bf16.mxu0 0
        %4429 = vmatpush1.bf16.msra.mxu0 0
        %4430 = vmatprep.subr.bf16.mxu0 0
        %4431 = vmatpush1.bf16.msra.mxu0 0
        %4432 = vmatprep.mubr.bf16.mxu0 0
        %4433 = vmatmul.mubr.bf16.gmra.mrb[0].mxu0 %v4351
        %v4434 = vpop.f32.mrb[0].mxu0
        %v4435 = vadd.f32 0.0, %v4434
        %v4436 = vpop.f32.mrb[0].mxu0
        %v4437 = vpop.f32.mrb[0].mxu0
        %v4438 = vpop.f32.mrb[0].mxu0
        %4439 = vdwg.mxu0
        %v4442 = vunpack.c.l.s4 1983009808
        %v4443 = vunpack.c.0.s8 %v4442
        %v4444 = vlaneseq
        %v4445 = vshrl.u32 %v4444, 7
        %v4446 = vsub.s32 %v4443, %v4445
        %v4447 = vrot.slane %v4435, %v4446
        %4448 = vrot.lane.b32.xlu0 %v4447, 32
        %v4449 = vpop.permute.xlu0 %4448
        %v4451 = vadd.f32 %v3588, %v4449
        %v4452 = vxor.u32 %v4451, 2147483648
        %v4453 = vmul.f32 %v4452, 1.442695
        %v4454 = vpow.pop %v4453
        %v4455 = vadd.f32 %v4454, 1.0
        %v4456 = vrcp.pop %v4455
        %v4457 = vmul.f32 1.0, %v4456
        %4458 = vmatprep.subr.bf16.mxu0 0
        %4459 = vmatpush1.bf16.msra.mxu0 %v3727
        %4460 = vmatprep.subr.bf16.mxu0 0
        %4461 = vmatpush1.bf16.msra.mxu0 %v3729
        %4462 = vmatprep.subr.bf16.mxu0 0
        %4463 = vmatpush1.bf16.msra.mxu0 0
        %4464 = vmatprep.subr.bf16.mxu0 0
        %4465 = vmatpush1.bf16.msra.mxu0 0
        %4466 = vmatprep.subr.bf16.mxu0 0
        %4467 = vmatpush1.bf16.msra.mxu0 0
        %4468 = vmatprep.subr.bf16.mxu0 0
        %4469 = vmatpush1.bf16.msra.mxu0 0
        %4470 = vmatprep.subr.bf16.mxu0 0
        %4471 = vmatpush1.bf16.msra.mxu0 0
        %4472 = vmatprep.subr.bf16.mxu0 0
        %4473 = vmatpush1.bf16.msra.mxu0 0
        %4474 = vmatprep.subr.bf16.mxu0 0
        %4475 = vmatpush1.bf16.msra.mxu0 0
        %4476 = vmatprep.subr.bf16.mxu0 0
        %4477 = vmatpush1.bf16.msra.mxu0 0
        %4478 = vmatprep.subr.bf16.mxu0 0
        %4479 = vmatpush1.bf16.msra.mxu0 0
        %4480 = vmatprep.subr.bf16.mxu0 0
        %4481 = vmatpush1.bf16.msra.mxu0 0
        %4482 = vmatprep.subr.bf16.mxu0 0
        %4483 = vmatpush1.bf16.msra.mxu0 0
        %4484 = vmatprep.subr.bf16.mxu0 0
        %4485 = vmatpush1.bf16.msra.mxu0 0
        %4486 = vmatprep.subr.bf16.mxu0 0
        %4487 = vmatpush1.bf16.msra.mxu0 0
        %4488 = vmatprep.subr.bf16.mxu0 0
        %4489 = vmatpush1.bf16.msra.mxu0 0
        %4490 = vmatprep.mubr.bf16.mxu0 0
        %4491 = vmatmul.mubr.bf16.gmra.mrb[0].mxu0 %v4351
        %v4492 = vpop.f32.mrb[0].mxu0
        %v4493 = vadd.f32 0.0, %v4492
        %v4494 = vpop.f32.mrb[0].mxu0
        %v4495 = vpop.f32.mrb[0].mxu0
        %v4496 = vpop.f32.mrb[0].mxu0
        %4497 = vdwg.mxu0
        %v4500 = vunpack.c.l.s4 1983009808
        %v4501 = vunpack.c.0.s8 %v4500
        %v4502 = vlaneseq
        %v4503 = vshrl.u32 %v4502, 7
        %v4504 = vsub.s32 %v4501, %v4503
        %v4505 = vrot.slane %v4493, %v4504
        %4506 = vrot.lane.b32.xlu0 %v4505, 64
        %v4507 = vpop.permute.xlu0 %4506
        %v4509 = vadd.f32 %v3588, %v4507
        %v4510 = vtanh.pop %v4509
        %4511 = vmatprep.subr.bf16.mxu0 0
        %4512 = vmatpush1.bf16.msra.mxu0 %v3786
        %4513 = vmatprep.subr.bf16.mxu0 0
        %4514 = vmatpush1.bf16.msra.mxu0 %v3788
        %4515 = vmatprep.subr.bf16.mxu0 0
        %4516 = vmatpush1.bf16.msra.mxu0 0
        %4517 = vmatprep.subr.bf16.mxu0 0
        %4518 = vmatpush1.bf16.msra.mxu0 0
        %4519 = vmatprep.subr.bf16.mxu0 0
        %4520 = vmatpush1.bf16.msra.mxu0 0
        %4521 = vmatprep.subr.bf16.mxu0 0
        %4522 = vmatpush1.bf16.msra.mxu0 0
        %4523 = vmatprep.subr.bf16.mxu0 0
        %4524 = vmatpush1.bf16.msra.mxu0 0
        %4525 = vmatprep.subr.bf16.mxu0 0
        %4526 = vmatpush1.bf16.msra.mxu0 0
        %4527 = vmatprep.subr.bf16.mxu0 0
        %4528 = vmatpush1.bf16.msra.mxu0 0
        %4529 = vmatprep.subr.bf16.mxu0 0
        %4530 = vmatpush1.bf16.msra.mxu0 0
        %4531 = vmatprep.subr.bf16.mxu0 0
        %4532 = vmatpush1.bf16.msra.mxu0 0
        %4533 = vmatprep.subr.bf16.mxu0 0
        %4534 = vmatpush1.bf16.msra.mxu0 0
        %4535 = vmatprep.subr.bf16.mxu0 0
        %4536 = vmatpush1.bf16.msra.mxu0 0
        %4537 = vmatprep.subr.bf16.mxu0 0
        %4538 = vmatpush1.bf16.msra.mxu0 0
        %4539 = vmatprep.subr.bf16.mxu0 0
        %4540 = vmatpush1.bf16.msra.mxu0 0
        %4541 = vmatprep.subr.bf16.mxu0 0
        %4542 = vmatpush1.bf16.msra.mxu0 0
        %4543 = vmatprep.mubr.bf16.mxu0 0
        %4544 = vmatmul.mubr.bf16.gmra.mrb[0].mxu0 %v4351
        %v4545 = vpop.f32.mrb[0].mxu0
        %v4546 = vadd.f32 0.0, %v4545
        %v4547 = vpop.f32.mrb[0].mxu0
        %v4548 = vpop.f32.mrb[0].mxu0
        %v4549 = vpop.f32.mrb[0].mxu0
        %4550 = vdwg.mxu0
        %v4553 = vunpack.c.l.s4 1983009808
        %v4554 = vunpack.c.0.s8 %v4553
        %v4555 = vlaneseq
        %v4556 = vshrl.u32 %v4555, 7
        %v4557 = vsub.s32 %v4554, %v4556
        %v4558 = vrot.slane %v4546, %v4557
        %4559 = vrot.lane.b32.xlu0 %v4558, 96
        %v4560 = vpop.permute.xlu0 %4559
        %v4562 = vadd.f32 %v3588, %v4560
        %v4563 = vxor.u32 %v4562, 2147483648
        %v4564 = vmul.f32 %v4563, 1.442695
        %v4565 = vpow.pop %v4564
        %v4566 = vadd.f32 %v4565, 1.0
        %v4567 = vrcp.pop %v4566
        %v4568 = vmul.f32 1.0, %v4567
        %v4569 = vmul.f32 %v4457, %v4339
        %4571 = vrot.lane.b32.xlu0 %v4510, 64
        %v4572 = vpop.permute.xlu0 %4571
        %v4574 = vmul.f32 %v4399, %v4572
        %4576 = vrot.lane.b32.xlu0 %v4574, 32
        %v4577 = vpop.permute.xlu0 %4576
        %v4579 = vadd.f32 %v4569, %v4577
        %v4580 = vtanh.pop %v4579
        %4582 = vrot.lane.b32.xlu0 %v4580, 64
        %v4583 = vpop.permute.xlu0 %4582
        %v4585 = vmul.f32 %v4568, %v4583
        %v4586 = vpack.c.bf16 %v4585, %v4585
        %4588 = vrot.lane.b32.xlu0 %v4586, 32
        %v4589 = vpop.permute.xlu0 %4588
        %v4591 = vsel %vm1498, %v4589, 0
        %4593 = vmatprep.subr.bf16.mxu0 0
        %4594 = vmatpush1.bf16.msra.mxu0 %v3611
        %4595 = vmatprep.subr.bf16.mxu0 0
        %4596 = vmatpush1.bf16.msra.mxu0 %v3612
        %4597 = vmatprep.subr.bf16.mxu0 0
        %4598 = vmatpush1.bf16.msra.mxu0 0
        %4599 = vmatprep.subr.bf16.mxu0 0
        %4600 = vmatpush1.bf16.msra.mxu0 0
        %4601 = vmatprep.subr.bf16.mxu0 0
        %4602 = vmatpush1.bf16.msra.mxu0 0
        %4603 = vmatprep.subr.bf16.mxu0 0
        %4604 = vmatpush1.bf16.msra.mxu0 0
        %4605 = vmatprep.subr.bf16.mxu0 0
        %4606 = vmatpush1.bf16.msra.mxu0 0
        %4607 = vmatprep.subr.bf16.mxu0 0
        %4608 = vmatpush1.bf16.msra.mxu0 0
        %4609 = vmatprep.subr.bf16.mxu0 0
        %4610 = vmatpush1.bf16.msra.mxu0 0
        %4611 = vmatprep.subr.bf16.mxu0 0
        %4612 = vmatpush1.bf16.msra.mxu0 0
        %4613 = vmatprep.subr.bf16.mxu0 0
        %4614 = vmatpush1.bf16.msra.mxu0 0
        %4615 = vmatprep.subr.bf16.mxu0 0
        %4616 = vmatpush1.bf16.msra.mxu0 0
        %4617 = vmatprep.subr.bf16.mxu0 0
        %4618 = vmatpush1.bf16.msra.mxu0 0
        %4619 = vmatprep.subr.bf16.mxu0 0
        %4620 = vmatpush1.bf16.msra.mxu0 0
        %4621 = vmatprep.subr.bf16.mxu0 0
        %4622 = vmatpush1.bf16.msra.mxu0 0
        %4623 = vmatprep.subr.bf16.mxu0 0
        %4624 = vmatpush1.bf16.msra.mxu0 0
        %4625 = vmatprep.mubr.bf16.mxu0 0
        %4626 = vmatmul.mubr.bf16.gmra.mrb[0].mxu0 %v4591
        %v4627 = vpop.f32.mrb[0].mxu0
        %v4628 = vadd.f32 0.0, %v4627
        %v4629 = vpop.f32.mrb[0].mxu0
        %v4630 = vpop.f32.mrb[0].mxu0
        %v4631 = vpop.f32.mrb[0].mxu0
        %4632 = vdwg.mxu0
        %v4633 = vadd.f32 %v3595, %v4628
        %v4634 = vxor.u32 %v4633, 2147483648
        %v4635 = vmul.f32 %v4634, 1.442695
        %v4636 = vpow.pop %v4635
        %v4637 = vadd.f32 %v4636, 1.0
        %v4638 = vrcp.pop %v4637
        %v4639 = vmul.f32 1.0, %v4638
        %4640 = vmatprep.subr.bf16.mxu0 0
        %4641 = vmatpush1.bf16.msra.mxu0 %v3663
        %4642 = vmatprep.subr.bf16.mxu0 0
        %4643 = vmatpush1.bf16.msra.mxu0 %v3665
        %4644 = vmatprep.subr.bf16.mxu0 0
        %4645 = vmatpush1.bf16.msra.mxu0 0
        %4646 = vmatprep.subr.bf16.mxu0 0
        %4647 = vmatpush1.bf16.msra.mxu0 0
        %4648 = vmatprep.subr.bf16.mxu0 0
        %4649 = vmatpush1.bf16.msra.mxu0 0
        %4650 = vmatprep.subr.bf16.mxu0 0
        %4651 = vmatpush1.bf16.msra.mxu0 0
        %4652 = vmatprep.subr.bf16.mxu0 0
        %4653 = vmatpush1.bf16.msra.mxu0 0
        %4654 = vmatprep.subr.bf16.mxu0 0
        %4655 = vmatpush1.bf16.msra.mxu0 0
        %4656 = vmatprep.subr.bf16.mxu0 0
        %4657 = vmatpush1.bf16.msra.mxu0 0
        %4658 = vmatprep.subr.bf16.mxu0 0
        %4659 = vmatpush1.bf16.msra.mxu0 0
        %4660 = vmatprep.subr.bf16.mxu0 0
        %4661 = vmatpush1.bf16.msra.mxu0 0
        %4662 = vmatprep.subr.bf16.mxu0 0
        %4663 = vmatpush1.bf16.msra.mxu0 0
        %4664 = vmatprep.subr.bf16.mxu0 0
        %4665 = vmatpush1.bf16.msra.mxu0 0
        %4666 = vmatprep.subr.bf16.mxu0 0
        %4667 = vmatpush1.bf16.msra.mxu0 0
        %4668 = vmatprep.subr.bf16.mxu0 0
        %4669 = vmatpush1.bf16.msra.mxu0 0
        %4670 = vmatprep.subr.bf16.mxu0 0
        %4671 = vmatpush1.bf16.msra.mxu0 0
        %4672 = vmatprep.mubr.bf16.mxu0 0
        %4673 = vmatmul.mubr.bf16.gmra.mrb[0].mxu0 %v4591
        %v4674 = vpop.f32.mrb[0].mxu0
        %v4675 = vadd.f32 0.0, %v4674
        %v4676 = vpop.f32.mrb[0].mxu0
        %v4677 = vpop.f32.mrb[0].mxu0
        %v4678 = vpop.f32.mrb[0].mxu0
        %4679 = vdwg.mxu0
        %v4682 = vunpack.c.l.s4 1983009808
        %v4683 = vunpack.c.0.s8 %v4682
        %v4684 = vlaneseq
        %v4685 = vshrl.u32 %v4684, 7
        %v4686 = vsub.s32 %v4683, %v4685
        %v4687 = vrot.slane %v4675, %v4686
        %4688 = vrot.lane.b32.xlu0 %v4687, 32
        %v4689 = vpop.permute.xlu0 %4688
        %v4691 = vadd.f32 %v3595, %v4689
        %v4692 = vxor.u32 %v4691, 2147483648
        %v4693 = vmul.f32 %v4692, 1.442695
        %v4694 = vpow.pop %v4693
        %v4695 = vadd.f32 %v4694, 1.0
        %v4696 = vrcp.pop %v4695
        %v4697 = vmul.f32 1.0, %v4696
        %4698 = vmatprep.subr.bf16.mxu0 0
        %4699 = vmatpush1.bf16.msra.mxu0 %v3727
        %4700 = vmatprep.subr.bf16.mxu0 0
        %4701 = vmatpush1.bf16.msra.mxu0 %v3729
        %4702 = vmatprep.subr.bf16.mxu0 0
        %4703 = vmatpush1.bf16.msra.mxu0 0
        %4704 = vmatprep.subr.bf16.mxu0 0
        %4705 = vmatpush1.bf16.msra.mxu0 0
        %4706 = vmatprep.subr.bf16.mxu0 0
        %4707 = vmatpush1.bf16.msra.mxu0 0
        %4708 = vmatprep.subr.bf16.mxu0 0
        %4709 = vmatpush1.bf16.msra.mxu0 0
        %4710 = vmatprep.subr.bf16.mxu0 0
        %4711 = vmatpush1.bf16.msra.mxu0 0
        %4712 = vmatprep.subr.bf16.mxu0 0
        %4713 = vmatpush1.bf16.msra.mxu0 0
        %4714 = vmatprep.subr.bf16.mxu0 0
        %4715 = vmatpush1.bf16.msra.mxu0 0
        %4716 = vmatprep.subr.bf16.mxu0 0
        %4717 = vmatpush1.bf16.msra.mxu0 0
        %4718 = vmatprep.subr.bf16.mxu0 0
        %4719 = vmatpush1.bf16.msra.mxu0 0
        %4720 = vmatprep.subr.bf16.mxu0 0
        %4721 = vmatpush1.bf16.msra.mxu0 0
        %4722 = vmatprep.subr.bf16.mxu0 0
        %4723 = vmatpush1.bf16.msra.mxu0 0
        %4724 = vmatprep.subr.bf16.mxu0 0
        %4725 = vmatpush1.bf16.msra.mxu0 0
        %4726 = vmatprep.subr.bf16.mxu0 0
        %4727 = vmatpush1.bf16.msra.mxu0 0
        %4728 = vmatprep.subr.bf16.mxu0 0
        %4729 = vmatpush1.bf16.msra.mxu0 0
        %4730 = vmatprep.mubr.bf16.mxu0 0
        %4731 = vmatmul.mubr.bf16.gmra.mrb[0].mxu0 %v4591
        %v4732 = vpop.f32.mrb[0].mxu0
        %v4733 = vadd.f32 0.0, %v4732
        %v4734 = vpop.f32.mrb[0].mxu0
        %v4735 = vpop.f32.mrb[0].mxu0
        %v4736 = vpop.f32.mrb[0].mxu0
        %4737 = vdwg.mxu0
        %v4740 = vunpack.c.l.s4 1983009808
        %v4741 = vunpack.c.0.s8 %v4740
        %v4742 = vlaneseq
        %v4743 = vshrl.u32 %v4742, 7
        %v4744 = vsub.s32 %v4741, %v4743
        %v4745 = vrot.slane %v4733, %v4744
        %4746 = vrot.lane.b32.xlu0 %v4745, 64
        %v4747 = vpop.permute.xlu0 %4746
        %v4749 = vadd.f32 %v3595, %v4747
        %v4750 = vtanh.pop %v4749
        %4751 = vmatprep.subr.bf16.mxu0 0
        %4752 = vmatpush1.bf16.msra.mxu0 %v3786
        %4753 = vmatprep.subr.bf16.mxu0 0
        %4754 = vmatpush1.bf16.msra.mxu0 %v3788
        %4755 = vmatprep.subr.bf16.mxu0 0
        %4756 = vmatpush1.bf16.msra.mxu0 0
        %4757 = vmatprep.subr.bf16.mxu0 0
        %4758 = vmatpush1.bf16.msra.mxu0 0
        %4759 = vmatprep.subr.bf16.mxu0 0
        %4760 = vmatpush1.bf16.msra.mxu0 0
        %4761 = vmatprep.subr.bf16.mxu0 0
        %4762 = vmatpush1.bf16.msra.mxu0 0
        %4763 = vmatprep.subr.bf16.mxu0 0
        %4764 = vmatpush1.bf16.msra.mxu0 0
        %4765 = vmatprep.subr.bf16.mxu0 0
        %4766 = vmatpush1.bf16.msra.mxu0 0
        %4767 = vmatprep.subr.bf16.mxu0 0
        %4768 = vmatpush1.bf16.msra.mxu0 0
        %4769 = vmatprep.subr.bf16.mxu0 0
        %4770 = vmatpush1.bf16.msra.mxu0 0
        %4771 = vmatprep.subr.bf16.mxu0 0
        %4772 = vmatpush1.bf16.msra.mxu0 0
        %4773 = vmatprep.subr.bf16.mxu0 0
        %4774 = vmatpush1.bf16.msra.mxu0 0
        %4775 = vmatprep.subr.bf16.mxu0 0
        %4776 = vmatpush1.bf16.msra.mxu0 0
        %4777 = vmatprep.subr.bf16.mxu0 0
        %4778 = vmatpush1.bf16.msra.mxu0 0
        %4779 = vmatprep.subr.bf16.mxu0 0
        %4780 = vmatpush1.bf16.msra.mxu0 0
        %4781 = vmatprep.subr.bf16.mxu0 0
        %4782 = vmatpush1.bf16.msra.mxu0 0
        %4783 = vmatprep.mubr.bf16.mxu0 0
        %4784 = vmatmul.mubr.bf16.gmra.mrb[0].mxu0 %v4591
        %v4785 = vpop.f32.mrb[0].mxu0
        %v4786 = vadd.f32 0.0, %v4785
        %v4787 = vpop.f32.mrb[0].mxu0
        %v4788 = vpop.f32.mrb[0].mxu0
        %v4789 = vpop.f32.mrb[0].mxu0
        %4790 = vdwg.mxu0
        %v4793 = vunpack.c.l.s4 1983009808
        %v4794 = vunpack.c.0.s8 %v4793
        %v4795 = vlaneseq
        %v4796 = vshrl.u32 %v4795, 7
        %v4797 = vsub.s32 %v4794, %v4796
        %v4798 = vrot.slane %v4786, %v4797
        %4799 = vrot.lane.b32.xlu0 %v4798, 96
        %v4800 = vpop.permute.xlu0 %4799
        %v4802 = vadd.f32 %v3595, %v4800
        %v4803 = vxor.u32 %v4802, 2147483648
        %v4804 = vmul.f32 %v4803, 1.442695
        %v4805 = vpow.pop %v4804
        %v4806 = vadd.f32 %v4805, 1.0
        %v4807 = vrcp.pop %v4806
        %v4808 = vmul.f32 1.0, %v4807
        %v4809 = vmul.f32 %v4697, %v4579
        %4811 = vrot.lane.b32.xlu0 %v4750, 64
        %v4812 = vpop.permute.xlu0 %4811
        %v4814 = vmul.f32 %v4639, %v4812
        %4816 = vrot.lane.b32.xlu0 %v4814, 32
        %v4817 = vpop.permute.xlu0 %4816
        %v4819 = vadd.f32 %v4809, %v4817
        %v4820 = vtanh.pop %v4819
        %4822 = vrot.lane.b32.xlu0 %v4820, 64
        %v4823 = vpop.permute.xlu0 %4822
        %v4825 = vmul.f32 %v4808, %v4823
        %v4826 = vpack.c.bf16 %v4825, %v4825
        %4828 = vrot.lane.b32.xlu0 %v4826, 32
        %v4829 = vpop.permute.xlu0 %4828
        %v4831 = vsel %vm1498, %v4829, 0
        %4833 = vmatprep.subr.bf16.mxu0 0
        %4834 = vmatpush1.bf16.msra.mxu0 %v3611
        %4835 = vmatprep.subr.bf16.mxu0 0
        %4836 = vmatpush1.bf16.msra.mxu0 %v3612
        %4837 = vmatprep.subr.bf16.mxu0 0
        %4838 = vmatpush1.bf16.msra.mxu0 0
        %4839 = vmatprep.subr.bf16.mxu0 0
        %4840 = vmatpush1.bf16.msra.mxu0 0
        %4841 = vmatprep.subr.bf16.mxu0 0
        %4842 = vmatpush1.bf16.msra.mxu0 0
        %4843 = vmatprep.subr.bf16.mxu0 0
        %4844 = vmatpush1.bf16.msra.mxu0 0
        %4845 = vmatprep.subr.bf16.mxu0 0
        %4846 = vmatpush1.bf16.msra.mxu0 0
        %4847 = vmatprep.subr.bf16.mxu0 0
        %4848 = vmatpush1.bf16.msra.mxu0 0
        %4849 = vmatprep.subr.bf16.mxu0 0
        %4850 = vmatpush1.bf16.msra.mxu0 0
        %4851 = vmatprep.subr.bf16.mxu0 0
        %4852 = vmatpush1.bf16.msra.mxu0 0
        %4853 = vmatprep.subr.bf16.mxu0 0
        %4854 = vmatpush1.bf16.msra.mxu0 0
        %4855 = vmatprep.subr.bf16.mxu0 0
        %4856 = vmatpush1.bf16.msra.mxu0 0
        %4857 = vmatprep.subr.bf16.mxu0 0
        %4858 = vmatpush1.bf16.msra.mxu0 0
        %4859 = vmatprep.subr.bf16.mxu0 0
        %4860 = vmatpush1.bf16.msra.mxu0 0
        %4861 = vmatprep.subr.bf16.mxu0 0
        %4862 = vmatpush1.bf16.msra.mxu0 0
        %4863 = vmatprep.subr.bf16.mxu0 0
        %4864 = vmatpush1.bf16.msra.mxu0 0
        %4865 = vmatprep.mubr.bf16.mxu0 0
        %4866 = vmatmul.mubr.bf16.gmra.mrb[0].mxu0 %v4831
        %v4867 = vpop.f32.mrb[0].mxu0
        %v4868 = vadd.f32 0.0, %v4867
        %v4869 = vpop.f32.mrb[0].mxu0
        %v4870 = vpop.f32.mrb[0].mxu0
        %v4871 = vpop.f32.mrb[0].mxu0
        %4872 = vdwg.mxu0
        %v4873 = vadd.f32 %v3596, %v4868
        %v4874 = vxor.u32 %v4873, 2147483648
        %v4875 = vmul.f32 %v4874, 1.442695
        %v4876 = vpow.pop %v4875
        %v4877 = vadd.f32 %v4876, 1.0
        %v4878 = vrcp.pop %v4877
        %v4879 = vmul.f32 1.0, %v4878
        %4880 = vmatprep.subr.bf16.mxu0 0
        %4881 = vmatpush1.bf16.msra.mxu0 %v3663
        %4882 = vmatprep.subr.bf16.mxu0 0
        %4883 = vmatpush1.bf16.msra.mxu0 %v3665
        %4884 = vmatprep.subr.bf16.mxu0 0
        %4885 = vmatpush1.bf16.msra.mxu0 0
        %4886 = vmatprep.subr.bf16.mxu0 0
        %4887 = vmatpush1.bf16.msra.mxu0 0
        %4888 = vmatprep.subr.bf16.mxu0 0
        %4889 = vmatpush1.bf16.msra.mxu0 0
        %4890 = vmatprep.subr.bf16.mxu0 0
        %4891 = vmatpush1.bf16.msra.mxu0 0
        %4892 = vmatprep.subr.bf16.mxu0 0
        %4893 = vmatpush1.bf16.msra.mxu0 0
        %4894 = vmatprep.subr.bf16.mxu0 0
        %4895 = vmatpush1.bf16.msra.mxu0 0
        %4896 = vmatprep.subr.bf16.mxu0 0
        %4897 = vmatpush1.bf16.msra.mxu0 0
        %4898 = vmatprep.subr.bf16.mxu0 0
        %4899 = vmatpush1.bf16.msra.mxu0 0
        %4900 = vmatprep.subr.bf16.mxu0 0
        %4901 = vmatpush1.bf16.msra.mxu0 0
        %4902 = vmatprep.subr.bf16.mxu0 0
        %4903 = vmatpush1.bf16.msra.mxu0 0
        %4904 = vmatprep.subr.bf16.mxu0 0
        %4905 = vmatpush1.bf16.msra.mxu0 0
        %4906 = vmatprep.subr.bf16.mxu0 0
        %4907 = vmatpush1.bf16.msra.mxu0 0
        %4908 = vmatprep.subr.bf16.mxu0 0
        %4909 = vmatpush1.bf16.msra.mxu0 0
        %4910 = vmatprep.subr.bf16.mxu0 0
        %4911 = vmatpush1.bf16.msra.mxu0 0
        %4912 = vmatprep.mubr.bf16.mxu0 0
        %4913 = vmatmul.mubr.bf16.gmra.mrb[0].mxu0 %v4831
        %v4914 = vpop.f32.mrb[0].mxu0
        %v4915 = vadd.f32 0.0, %v4914
        %v4916 = vpop.f32.mrb[0].mxu0
        %v4917 = vpop.f32.mrb[0].mxu0
        %v4918 = vpop.f32.mrb[0].mxu0
        %4919 = vdwg.mxu0
        %v4922 = vunpack.c.l.s4 1983009808
        %v4923 = vunpack.c.0.s8 %v4922
        %v4924 = vlaneseq
        %v4925 = vshrl.u32 %v4924, 7
        %v4926 = vsub.s32 %v4923, %v4925
        %v4927 = vrot.slane %v4915, %v4926
        %4928 = vrot.lane.b32.xlu0 %v4927, 32
        %v4929 = vpop.permute.xlu0 %4928
        %v4931 = vadd.f32 %v3596, %v4929
        %v4932 = vxor.u32 %v4931, 2147483648
        %v4933 = vmul.f32 %v4932, 1.442695
        %v4934 = vpow.pop %v4933
        %v4935 = vadd.f32 %v4934, 1.0
        %v4936 = vrcp.pop %v4935
        %v4937 = vmul.f32 1.0, %v4936
        %4938 = vmatprep.subr.bf16.mxu0 0
        %4939 = vmatpush1.bf16.msra.mxu0 %v3727
        %4940 = vmatprep.subr.bf16.mxu0 0
        %4941 = vmatpush1.bf16.msra.mxu0 %v3729
        %4942 = vmatprep.subr.bf16.mxu0 0
        %4943 = vmatpush1.bf16.msra.mxu0 0
        %4944 = vmatprep.subr.bf16.mxu0 0
        %4945 = vmatpush1.bf16.msra.mxu0 0
        %4946 = vmatprep.subr.bf16.mxu0 0
        %4947 = vmatpush1.bf16.msra.mxu0 0
        %4948 = vmatprep.subr.bf16.mxu0 0
        %4949 = vmatpush1.bf16.msra.mxu0 0
        %4950 = vmatprep.subr.bf16.mxu0 0
        %4951 = vmatpush1.bf16.msra.mxu0 0
        %4952 = vmatprep.subr.bf16.mxu0 0
        %4953 = vmatpush1.bf16.msra.mxu0 0
        %4954 = vmatprep.subr.bf16.mxu0 0
        %4955 = vmatpush1.bf16.msra.mxu0 0
        %4956 = vmatprep.subr.bf16.mxu0 0
        %4957 = vmatpush1.bf16.msra.mxu0 0
        %4958 = vmatprep.subr.bf16.mxu0 0
        %4959 = vmatpush1.bf16.msra.mxu0 0
        %4960 = vmatprep.subr.bf16.mxu0 0
        %4961 = vmatpush1.bf16.msra.mxu0 0
        %4962 = vmatprep.subr.bf16.mxu0 0
        %4963 = vmatpush1.bf16.msra.mxu0 0
        %4964 = vmatprep.subr.bf16.mxu0 0
        %4965 = vmatpush1.bf16.msra.mxu0 0
        %4966 = vmatprep.subr.bf16.mxu0 0
        %4967 = vmatpush1.bf16.msra.mxu0 0
        %4968 = vmatprep.subr.bf16.mxu0 0
        %4969 = vmatpush1.bf16.msra.mxu0 0
        %4970 = vmatprep.mubr.bf16.mxu0 0
        %4971 = vmatmul.mubr.bf16.gmra.mrb[0].mxu0 %v4831
        %v4972 = vpop.f32.mrb[0].mxu0
        %v4973 = vadd.f32 0.0, %v4972
        %v4974 = vpop.f32.mrb[0].mxu0
        %v4975 = vpop.f32.mrb[0].mxu0
        %v4976 = vpop.f32.mrb[0].mxu0
        %4977 = vdwg.mxu0
        %v4980 = vunpack.c.l.s4 1983009808
        %v4981 = vunpack.c.0.s8 %v4980
        %v4982 = vlaneseq
        %v4983 = vshrl.u32 %v4982, 7
        %v4984 = vsub.s32 %v4981, %v4983
        %v4985 = vrot.slane %v4973, %v4984
        %4986 = vrot.lane.b32.xlu0 %v4985, 64
        %v4987 = vpop.permute.xlu0 %4986
        %v4989 = vadd.f32 %v3596, %v4987
        %v4990 = vtanh.pop %v4989
        %4991 = vmatprep.subr.bf16.mxu0 0
        %4992 = vmatpush1.bf16.msra.mxu0 %v3786
        %4993 = vmatprep.subr.bf16.mxu0 0
        %4994 = vmatpush1.bf16.msra.mxu0 %v3788
        %4995 = vmatprep.subr.bf16.mxu0 0
        %4996 = vmatpush1.bf16.msra.mxu0 0
        %4997 = vmatprep.subr.bf16.mxu0 0
        %4998 = vmatpush1.bf16.msra.mxu0 0
        %4999 = vmatprep.subr.bf16.mxu0 0
        %5000 = vmatpush1.bf16.msra.mxu0 0
        %5001 = vmatprep.subr.bf16.mxu0 0
        %5002 = vmatpush1.bf16.msra.mxu0 0
        %5003 = vmatprep.subr.bf16.mxu0 0
        %5004 = vmatpush1.bf16.msra.mxu0 0
        %5005 = vmatprep.subr.bf16.mxu0 0
        %5006 = vmatpush1.bf16.msra.mxu0 0
        %5007 = vmatprep.subr.bf16.mxu0 0
        %5008 = vmatpush1.bf16.msra.mxu0 0
        %5009 = vmatprep.subr.bf16.mxu0 0
        %5010 = vmatpush1.bf16.msra.mxu0 0
        %5011 = vmatprep.subr.bf16.mxu0 0
        %5012 = vmatpush1.bf16.msra.mxu0 0
        %5013 = vmatprep.subr.bf16.mxu0 0
        %5014 = vmatpush1.bf16.msra.mxu0 0
        %5015 = vmatprep.subr.bf16.mxu0 0
        %5016 = vmatpush1.bf16.msra.mxu0 0
        %5017 = vmatprep.subr.bf16.mxu0 0
        %5018 = vmatpush1.bf16.msra.mxu0 0
        %5019 = vmatprep.subr.bf16.mxu0 0
        %5020 = vmatpush1.bf16.msra.mxu0 0
        %5021 = vmatprep.subr.bf16.mxu0 0
        %5022 = vmatpush1.bf16.msra.mxu0 0
        %5023 = vmatprep.mubr.bf16.mxu0 0
        %5024 = vmatmul.mubr.bf16.gmra.mrb[0].mxu0 %v4831
        %v5025 = vpop.f32.mrb[0].mxu0
        %v5026 = vadd.f32 0.0, %v5025
        %v5027 = vpop.f32.mrb[0].mxu0
        %v5028 = vpop.f32.mrb[0].mxu0
        %v5029 = vpop.f32.mrb[0].mxu0
        %5030 = vdwg.mxu0
        %v5033 = vunpack.c.l.s4 1983009808
        %v5034 = vunpack.c.0.s8 %v5033
        %v5035 = vlaneseq
        %v5036 = vshrl.u32 %v5035, 7
        %v5037 = vsub.s32 %v5034, %v5036
        %v5038 = vrot.slane %v5026, %v5037
        %5039 = vrot.lane.b32.xlu0 %v5038, 96
        %v5040 = vpop.permute.xlu0 %5039
        %v5042 = vadd.f32 %v3596, %v5040
        %v5043 = vxor.u32 %v5042, 2147483648
        %v5044 = vmul.f32 %v5043, 1.442695
        %v5045 = vpow.pop %v5044
        %v5046 = vadd.f32 %v5045, 1.0
        %v5047 = vrcp.pop %v5046
        %v5048 = vmul.f32 1.0, %v5047
        %v5049 = vmul.f32 %v4937, %v4819
        %5051 = vrot.lane.b32.xlu0 %v4990, 64
        %v5052 = vpop.permute.xlu0 %5051
        %v5054 = vmul.f32 %v4879, %v5052
        %5056 = vrot.lane.b32.xlu0 %v5054, 32
        %v5057 = vpop.permute.xlu0 %5056
        %v5059 = vadd.f32 %v5049, %v5057
        %v5060 = vtanh.pop %v5059
        %5062 = vrot.lane.b32.xlu0 %v5060, 64
        %v5063 = vpop.permute.xlu0 %5062
        %v5065 = vmul.f32 %v5048, %v5063
        %v5066 = vld [vmem:[%s710] sm:$0xf]
        %v5067 = vld [vmem:[%s710 + $0x4] sm:$0xf]
        %v5068 = vld [vmem:[%s710 + $0x8] sm:$0xf]
        %v5069 = vld [vmem:[%s710 + $0xc] sm:$0xf]
        %v5070 = vld [vmem:[%s866] sm:$0xf]
        %v5071 = vld [vmem:[%s866 + $0x4] sm:$0xf]
        %v5072 = vld [vmem:[%s866 + $0x8] sm:$0xf]
        %v5073 = vld [vmem:[%s866 + $0xc] sm:$0xf]
        %v5074 = vld [vmem:[%s718] sm:$0x1]
        %v5075 = vpack.c.bf16 %v5065, %v5065
        %v5077 = vlaneseq
        %v5078 = vshrl.u32 %v5077, 7
        %v5079 = vsub.s32 0, %v5078
        %v5080 = vrot.slane %v5074, %v5079
        %v5082 = vcombine.low %v3866, %v4106
        %v5083 = vcombine.low %v4346, %v4586
        %v5084 = vcombine.low %v4826, %v5075
        %v5086 = vunpack.c.l.s4 1966171168
        %v5087 = vunpack.c.0.s8 %v5086
        %v5088 = vlaneseq
        %v5089 = vshrl.u32 %v5088, 7
        %v5090 = vsub.s32 %v5087, %v5089
        %v5091 = vrot.slane %v5082, %v5090
        %v5093 = vunpack.c.l.s4 1966171168
        %v5094 = vunpack.c.0.s8 %v5093
        %v5095 = vlaneseq
        %v5096 = vshrl.u32 %v5095, 7
        %v5097 = vsub.s32 %v5094, %v5096
        %v5098 = vrot.slane %v5083, %v5097
        %v5100 = vunpack.c.l.s4 1966171168
        %v5101 = vunpack.c.0.s8 %v5100
        %v5102 = vlaneseq
        %v5103 = vshrl.u32 %v5102, 7
        %v5104 = vsub.s32 %v5101, %v5103
        %v5105 = vrot.slane %v5084, %v5104
        %v5106 = vcombine.low %v5091, %v5098
        %v5108 = vunpack.c.l.s4 1966171168
        %v5109 = vunpack.c.0.s8 %v5108
        %v5110 = vlaneseq
        %v5111 = vshrl.u32 %v5110, 7
        %v5112 = vsub.s32 %v5109, %v5111
        %v5113 = vrot.slane %v5106, %v5112
        %v5115 = vunpack.c.l.s4 1966171168
        %v5116 = vunpack.c.0.s8 %v5115
        %v5117 = vlaneseq
        %v5118 = vshrl.u32 %v5117, 7
        %v5119 = vsub.s32 %v5116, %v5118
        %v5120 = vrot.slane %v5105, %v5119
        %v5121 = vcombine.low %v5113, %v5120
        %5122 = vrot.lane.b32.xlu0 %v5121, 32
        %v5123 = vpop.permute.xlu0 %5122
        %v5128 = vunpack.c.l.b16 %v5066
        %v5129 = vunpack.c.l.b16 %v5067
        %v5130 = vunpack.c.l.b16 %v5068
        %v5131 = vunpack.c.l.b16 %v5069
        %v5132 = vpack.c.b16 %v5129, %v5128
        %v5133 = vpack.c.b16 %v5131, %v5130
        %v5136 = vcombine.low %v5080, %v5080
        %v5138 = vunpack.c.l.s4 1983009808
        %v5139 = vunpack.c.0.s8 %v5138
        %v5140 = vlaneseq
        %v5141 = vshrl.u32 %v5140, 7
        %v5142 = vsub.s32 %v5139, %v5141
        %v5143 = vrot.slane %v5136, %v5142
        %v5144 = vcombine.low %v5143, %v5143
        %v5148 = vsel %vm1498, %v5123, 0
        %5150 = vmatprep.subr.bf16.mxu0 0
        %5151 = vmatpush1.bf16.msra.mxu0 %v5132
        %5152 = vmatprep.subr.bf16.mxu0 0
        %5153 = vmatpush1.bf16.msra.mxu0 %v5133
        %5154 = vmatprep.subr.bf16.mxu0 0
        %5155 = vmatpush1.bf16.msra.mxu0 0
        %5156 = vmatprep.subr.bf16.mxu0 0
        %5157 = vmatpush1.bf16.msra.mxu0 0
        %5158 = vmatprep.subr.bf16.mxu0 0
        %5159 = vmatpush1.bf16.msra.mxu0 0
        %5160 = vmatprep.subr.bf16.mxu0 0
        %5161 = vmatpush1.bf16.msra.mxu0 0
        %5162 = vmatprep.subr.bf16.mxu0 0
        %5163 = vmatpush1.bf16.msra.mxu0 0
        %5164 = vmatprep.subr.bf16.mxu0 0
        %5165 = vmatpush1.bf16.msra.mxu0 0
        %5166 = vmatprep.subr.bf16.mxu0 0
        %5167 = vmatpush1.bf16.msra.mxu0 0
        %5168 = vmatprep.subr.bf16.mxu0 0
        %5169 = vmatpush1.bf16.msra.mxu0 0
        %5170 = vmatprep.subr.bf16.mxu0 0
        %5171 = vmatpush1.bf16.msra.mxu0 0
        %5172 = vmatprep.subr.bf16.mxu0 0
        %5173 = vmatpush1.bf16.msra.mxu0 0
        %5174 = vmatprep.subr.bf16.mxu0 0
        %5175 = vmatpush1.bf16.msra.mxu0 0
        %5176 = vmatprep.subr.bf16.mxu0 0
        %5177 = vmatpush1.bf16.msra.mxu0 0
        %5178 = vmatprep.subr.bf16.mxu0 0
        %5179 = vmatpush1.bf16.msra.mxu0 0
        %5180 = vmatprep.subr.bf16.mxu0 0
        %5181 = vmatpush1.bf16.msra.mxu0 0
        %5182 = vmatprep.mubr.bf16.mxu0 0
        %5183 = vmatmul.mubr.bf16.gmra.mrb[0].mxu0 %v5148
        %v5184 = vpop.f32.mrb[0].mxu0
        %v5185 = vadd.f32 %v5144, %v5184
        %v5186 = vpop.f32.mrb[0].mxu0
        %v5187 = vpop.f32.mrb[0].mxu0
        %v5188 = vadd.f32 %v5143, %v5187
        %v5189 = vpop.f32.mrb[0].mxu0
        %5190 = vdwg.mxu0
        %v5193 = vcombine.high %v5185, %v5185
        %v5195 = vunpack.c.l.s4 1983009808
        %v5196 = vunpack.c.0.s8 %v5195
        %v5197 = vlaneseq
        %v5198 = vshrl.u32 %v5197, 7
        %v5199 = vsub.s32 %v5196, %v5198
        %v5200 = vrot.slane %v5185, %v5199
        %v5202 = vunpack.c.l.s4 1983009808
        %v5203 = vunpack.c.0.s8 %v5202
        %v5204 = vlaneseq
        %v5205 = vshrl.u32 %v5204, 7
        %v5206 = vsub.s32 %v5203, %v5205
        %v5207 = vrot.slane %v5193, %v5206
        %v5208 = vcombine.high %v5200, %v5200
        %v5209 = vcombine.high %v5207, %v5207
        %v5211 = vunpack.c.l.s4 1983009808
        %v5212 = vunpack.c.0.s8 %v5211
        %v5213 = vlaneseq
        %v5214 = vshrl.u32 %v5213, 7
        %v5215 = vsub.s32 %v5212, %v5214
        %v5216 = vrot.slane %v5188, %v5215
        %v5217 = vcombine.high %v5216, %v5216
        %v5228 = vunpack.c.l.b16 %v5070
        %v5229 = vunpack.c.l.b16 %v5071
        %v5230 = vunpack.c.l.b16 %v5072
        %v5231 = vunpack.c.l.b16 %v5073
        %v5232 = vpack.c.b16 %v5229, %v5228
        %v5233 = vpack.c.b16 %v5231, %v5230
        %5236 = vmatprep.subr.bf16.mxu0 0
        %5237 = vmatpush1.bf16.msra.mxu0 %v5232
        %5238 = vmatprep.subr.bf16.mxu0 0
        %5239 = vmatpush1.bf16.msra.mxu0 %v5233
        %5240 = vmatprep.subr.bf16.mxu0 0
        %5241 = vmatpush1.bf16.msra.mxu0 0
        %5242 = vmatprep.subr.bf16.mxu0 0
        %5243 = vmatpush1.bf16.msra.mxu0 0
        %5244 = vmatprep.subr.bf16.mxu0 0
        %5245 = vmatpush1.bf16.msra.mxu0 0
        %5246 = vmatprep.subr.bf16.mxu0 0
        %5247 = vmatpush1.bf16.msra.mxu0 0
        %5248 = vmatprep.subr.bf16.mxu0 0
        %5249 = vmatpush1.bf16.msra.mxu0 0
        %5250 = vmatprep.subr.bf16.mxu0 0
        %5251 = vmatpush1.bf16.msra.mxu0 0
        %5252 = vmatprep.subr.bf16.mxu0 0
        %5253 = vmatpush1.bf16.msra.mxu0 0
        %5254 = vmatprep.subr.bf16.mxu0 0
        %5255 = vmatpush1.bf16.msra.mxu0 0
        %5256 = vmatprep.subr.bf16.mxu0 0
        %5257 = vmatpush1.bf16.msra.mxu0 0
        %5258 = vmatprep.subr.bf16.mxu0 0
        %5259 = vmatpush1.bf16.msra.mxu0 0
        %5260 = vmatprep.subr.bf16.mxu0 0
        %5261 = vmatpush1.bf16.msra.mxu0 0
        %5262 = vmatprep.subr.bf16.mxu0 0
        %5263 = vmatpush1.bf16.msra.mxu0 0
        %5264 = vmatprep.subr.bf16.mxu0 0
        %5265 = vmatpush1.bf16.msra.mxu0 0
        %5266 = vmatprep.subr.bf16.mxu0 0
        %5267 = vmatpush1.bf16.msra.mxu0 0
        %5268 = vmatprep.mubr.bf16.mxu0 0
        %5269 = vmatmul.mubr.bf16.gmra.mrb[0].mxu0 %v1992
        %v5270 = vpop.f32.mrb[0].mxu0
        %v5271 = vadd.f32 0.0, %v5270
        %v5272 = vpop.f32.mrb[0].mxu0
        %v5273 = vpop.f32.mrb[0].mxu0
        %v5274 = vpop.f32.mrb[0].mxu0
        %5275 = vdwg.mxu0
        %v5276 = vadd.f32 %v5200, %v5271
        %v5277 = vxor.u32 %v5276, 2147483648
        %v5278 = vmul.f32 %v5277, 1.442695
        %v5279 = vpow.pop %v5278
        %v5280 = vadd.f32 %v5279, 1.0
        %v5281 = vrcp.pop %v5280
        %v5282 = vmul.f32 1.0, %v5281
        %5283 = vrot.lane.b32.xlu0 %v5232, 96
        %v5284 = vpop.permute.xlu0 %5283
        %5285 = vrot.lane.b32.xlu0 %v5233, 96
        %v5286 = vpop.permute.xlu0 %5285
        %5289 = vmatprep.subr.bf16.mxu0 0
        %5290 = vmatpush1.bf16.msra.mxu0 %v5284
        %5291 = vmatprep.subr.bf16.mxu0 0
        %5292 = vmatpush1.bf16.msra.mxu0 %v5286
        %5293 = vmatprep.subr.bf16.mxu0 0
        %5294 = vmatpush1.bf16.msra.mxu0 0
        %5295 = vmatprep.subr.bf16.mxu0 0
        %5296 = vmatpush1.bf16.msra.mxu0 0
        %5297 = vmatprep.subr.bf16.mxu0 0
        %5298 = vmatpush1.bf16.msra.mxu0 0
        %5299 = vmatprep.subr.bf16.mxu0 0
        %5300 = vmatpush1.bf16.msra.mxu0 0
        %5301 = vmatprep.subr.bf16.mxu0 0
        %5302 = vmatpush1.bf16.msra.mxu0 0
        %5303 = vmatprep.subr.bf16.mxu0 0
        %5304 = vmatpush1.bf16.msra.mxu0 0
        %5305 = vmatprep.subr.bf16.mxu0 0
        %5306 = vmatpush1.bf16.msra.mxu0 0
        %5307 = vmatprep.subr.bf16.mxu0 0
        %5308 = vmatpush1.bf16.msra.mxu0 0
        %5309 = vmatprep.subr.bf16.mxu0 0
        %5310 = vmatpush1.bf16.msra.mxu0 0
        %5311 = vmatprep.subr.bf16.mxu0 0
        %5312 = vmatpush1.bf16.msra.mxu0 0
        %5313 = vmatprep.subr.bf16.mxu0 0
        %5314 = vmatpush1.bf16.msra.mxu0 0
        %5315 = vmatprep.subr.bf16.mxu0 0
        %5316 = vmatpush1.bf16.msra.mxu0 0
        %5317 = vmatprep.subr.bf16.mxu0 0
        %5318 = vmatpush1.bf16.msra.mxu0 0
        %5319 = vmatprep.subr.bf16.mxu0 0
        %5320 = vmatpush1.bf16.msra.mxu0 0
        %5321 = vmatprep.mubr.bf16.mxu0 0
        %5322 = vmatmul.mubr.bf16.gmra.mrb[0].mxu0 %v1992
        %v5323 = vpop.f32.mrb[0].mxu0
        %v5324 = vadd.f32 0.0, %v5323
        %v5325 = vpop.f32.mrb[0].mxu0
        %v5326 = vpop.f32.mrb[0].mxu0
        %v5327 = vpop.f32.mrb[0].mxu0
        %5328 = vdwg.mxu0
        %v5331 = vunpack.c.l.s4 1983009808
        %v5332 = vunpack.c.0.s8 %v5331
        %v5333 = vlaneseq
        %v5334 = vshrl.u32 %v5333, 7
        %v5335 = vsub.s32 %v5332, %v5334
        %v5336 = vrot.slane %v5324, %v5335
        %5337 = vrot.lane.b32.xlu0 %v5336, 32
        %v5338 = vpop.permute.xlu0 %5337
        %v5340 = vadd.f32 %v5200, %v5338
        %v5341 = vxor.u32 %v5340, 2147483648
        %v5342 = vmul.f32 %v5341, 1.442695
        %v5343 = vpow.pop %v5342
        %v5344 = vadd.f32 %v5343, 1.0
        %v5345 = vrcp.pop %v5344
        %v5346 = vmul.f32 1.0, %v5345
        %5347 = vrot.lane.b32.xlu0 %v5232, 64
        %v5348 = vpop.permute.xlu0 %5347
        %5349 = vrot.lane.b32.xlu0 %v5233, 64
        %v5350 = vpop.permute.xlu0 %5349
        %5353 = vmatprep.subr.bf16.mxu0 0
        %5354 = vmatpush1.bf16.msra.mxu0 %v5348
        %5355 = vmatprep.subr.bf16.mxu0 0
        %5356 = vmatpush1.bf16.msra.mxu0 %v5350
        %5357 = vmatprep.subr.bf16.mxu0 0
        %5358 = vmatpush1.bf16.msra.mxu0 0
        %5359 = vmatprep.subr.bf16.mxu0 0
        %5360 = vmatpush1.bf16.msra.mxu0 0
        %5361 = vmatprep.subr.bf16.mxu0 0
        %5362 = vmatpush1.bf16.msra.mxu0 0
        %5363 = vmatprep.subr.bf16.mxu0 0
        %5364 = vmatpush1.bf16.msra.mxu0 0
        %5365 = vmatprep.subr.bf16.mxu0 0
        %5366 = vmatpush1.bf16.msra.mxu0 0
        %5367 = vmatprep.subr.bf16.mxu0 0
        %5368 = vmatpush1.bf16.msra.mxu0 0
        %5369 = vmatprep.subr.bf16.mxu0 0
        %5370 = vmatpush1.bf16.msra.mxu0 0
        %5371 = vmatprep.subr.bf16.mxu0 0
        %5372 = vmatpush1.bf16.msra.mxu0 0
        %5373 = vmatprep.subr.bf16.mxu0 0
        %5374 = vmatpush1.bf16.msra.mxu0 0
        %5375 = vmatprep.subr.bf16.mxu0 0
        %5376 = vmatpush1.bf16.msra.mxu0 0
        %5377 = vmatprep.subr.bf16.mxu0 0
        %5378 = vmatpush1.bf16.msra.mxu0 0
        %5379 = vmatprep.subr.bf16.mxu0 0
        %5380 = vmatpush1.bf16.msra.mxu0 0
        %5381 = vmatprep.subr.bf16.mxu0 0
        %5382 = vmatpush1.bf16.msra.mxu0 0
        %5383 = vmatprep.subr.bf16.mxu0 0
        %5384 = vmatpush1.bf16.msra.mxu0 0
        %5385 = vmatprep.mubr.bf16.mxu0 0
        %5386 = vmatmul.mubr.bf16.gmra.mrb[0].mxu0 %v1992
        %v5387 = vpop.f32.mrb[0].mxu0
        %v5388 = vadd.f32 0.0, %v5387
        %v5389 = vpop.f32.mrb[0].mxu0
        %v5390 = vpop.f32.mrb[0].mxu0
        %v5391 = vpop.f32.mrb[0].mxu0
        %5392 = vdwg.mxu0
        %v5395 = vunpack.c.l.s4 1983009808
        %v5396 = vunpack.c.0.s8 %v5395
        %v5397 = vlaneseq
        %v5398 = vshrl.u32 %v5397, 7
        %v5399 = vsub.s32 %v5396, %v5398
        %v5400 = vrot.slane %v5388, %v5399
        %5401 = vrot.lane.b32.xlu0 %v5400, 64
        %v5402 = vpop.permute.xlu0 %5401
        %v5404 = vadd.f32 %v5200, %v5402
        %v5405 = vtanh.pop %v5404
        %5406 = vrot.lane.b32.xlu0 %v5232, 32
        %v5407 = vpop.permute.xlu0 %5406
        %5408 = vrot.lane.b32.xlu0 %v5233, 32
        %v5409 = vpop.permute.xlu0 %5408
        %5412 = vmatprep.subr.bf16.mxu0 0
        %5413 = vmatpush1.bf16.msra.mxu0 %v5407
        %5414 = vmatprep.subr.bf16.mxu0 0
        %5415 = vmatpush1.bf16.msra.mxu0 %v5409
        %5416 = vmatprep.subr.bf16.mxu0 0
        %5417 = vmatpush1.bf16.msra.mxu0 0
        %5418 = vmatprep.subr.bf16.mxu0 0
        %5419 = vmatpush1.bf16.msra.mxu0 0
        %5420 = vmatprep.subr.bf16.mxu0 0
        %5421 = vmatpush1.bf16.msra.mxu0 0
        %5422 = vmatprep.subr.bf16.mxu0 0
        %5423 = vmatpush1.bf16.msra.mxu0 0
        %5424 = vmatprep.subr.bf16.mxu0 0
        %5425 = vmatpush1.bf16.msra.mxu0 0
        %5426 = vmatprep.subr.bf16.mxu0 0
        %5427 = vmatpush1.bf16.msra.mxu0 0
        %5428 = vmatprep.subr.bf16.mxu0 0
        %5429 = vmatpush1.bf16.msra.mxu0 0
        %5430 = vmatprep.subr.bf16.mxu0 0
        %5431 = vmatpush1.bf16.msra.mxu0 0
        %5432 = vmatprep.subr.bf16.mxu0 0
        %5433 = vmatpush1.bf16.msra.mxu0 0
        %5434 = vmatprep.subr.bf16.mxu0 0
        %5435 = vmatpush1.bf16.msra.mxu0 0
        %5436 = vmatprep.subr.bf16.mxu0 0
        %5437 = vmatpush1.bf16.msra.mxu0 0
        %5438 = vmatprep.subr.bf16.mxu0 0
        %5439 = vmatpush1.bf16.msra.mxu0 0
        %5440 = vmatprep.subr.bf16.mxu0 0
        %5441 = vmatpush1.bf16.msra.mxu0 0
        %5442 = vmatprep.subr.bf16.mxu0 0
        %5443 = vmatpush1.bf16.msra.mxu0 0
        %5444 = vmatprep.mubr.bf16.mxu0 0
        %5445 = vmatmul.mubr.bf16.gmra.mrb[0].mxu0 %v1992
        %v5446 = vpop.f32.mrb[0].mxu0
        %v5447 = vadd.f32 0.0, %v5446
        %v5448 = vpop.f32.mrb[0].mxu0
        %v5449 = vpop.f32.mrb[0].mxu0
        %v5450 = vpop.f32.mrb[0].mxu0
        %5451 = vdwg.mxu0
        %v5454 = vunpack.c.l.s4 1983009808
        %v5455 = vunpack.c.0.s8 %v5454
        %v5456 = vlaneseq
        %v5457 = vshrl.u32 %v5456, 7
        %v5458 = vsub.s32 %v5455, %v5457
        %v5459 = vrot.slane %v5447, %v5458
        %5460 = vrot.lane.b32.xlu0 %v5459, 96
        %v5461 = vpop.permute.xlu0 %5460
        %v5463 = vadd.f32 %v5200, %v5461
        %v5464 = vxor.u32 %v5463, 2147483648
        %v5465 = vmul.f32 %v5464, 1.442695
        %v5466 = vpow.pop %v5465
        %v5467 = vadd.f32 %v5466, 1.0
        %v5468 = vrcp.pop %v5467
        %v5469 = vmul.f32 1.0, %v5468
        %v5470 = vmul.f32 %v5346, 0.0
        %5472 = vrot.lane.b32.xlu0 %v5405, 64
        %v5473 = vpop.permute.xlu0 %5472
        %v5475 = vmul.f32 %v5282, %v5473
        %5477 = vrot.lane.b32.xlu0 %v5475, 32
        %v5478 = vpop.permute.xlu0 %5477
        %v5480 = vadd.f32 %v5470, %v5478
        %v5481 = vtanh.pop %v5480
        %5483 = vrot.lane.b32.xlu0 %v5481, 64
        %v5484 = vpop.permute.xlu0 %5483
        %v5486 = vmul.f32 %v5469, %v5484
        %v5487 = vpack.c.bf16 %v5486, %v5486
        %5489 = vrot.lane.b32.xlu0 %v5487, 32
        %v5490 = vpop.permute.xlu0 %5489
        %v5492 = vsel %vm1498, %v5490, 0
        %5494 = vmatprep.subr.bf16.mxu0 0
        %5495 = vmatpush1.bf16.msra.mxu0 %v5232
        %5496 = vmatprep.subr.bf16.mxu0 0
        %5497 = vmatpush1.bf16.msra.mxu0 %v5233
        %5498 = vmatprep.subr.bf16.mxu0 0
        %5499 = vmatpush1.bf16.msra.mxu0 0
        %5500 = vmatprep.subr.bf16.mxu0 0
        %5501 = vmatpush1.bf16.msra.mxu0 0
        %5502 = vmatprep.subr.bf16.mxu0 0
        %5503 = vmatpush1.bf16.msra.mxu0 0
        %5504 = vmatprep.subr.bf16.mxu0 0
        %5505 = vmatpush1.bf16.msra.mxu0 0
        %5506 = vmatprep.subr.bf16.mxu0 0
        %5507 = vmatpush1.bf16.msra.mxu0 0
        %5508 = vmatprep.subr.bf16.mxu0 0
        %5509 = vmatpush1.bf16.msra.mxu0 0
        %5510 = vmatprep.subr.bf16.mxu0 0
        %5511 = vmatpush1.bf16.msra.mxu0 0
        %5512 = vmatprep.subr.bf16.mxu0 0
        %5513 = vmatpush1.bf16.msra.mxu0 0
        %5514 = vmatprep.subr.bf16.mxu0 0
        %5515 = vmatpush1.bf16.msra.mxu0 0
        %5516 = vmatprep.subr.bf16.mxu0 0
        %5517 = vmatpush1.bf16.msra.mxu0 0
        %5518 = vmatprep.subr.bf16.mxu0 0
        %5519 = vmatpush1.bf16.msra.mxu0 0
        %5520 = vmatprep.subr.bf16.mxu0 0
        %5521 = vmatpush1.bf16.msra.mxu0 0
        %5522 = vmatprep.subr.bf16.mxu0 0
        %5523 = vmatpush1.bf16.msra.mxu0 0
        %5524 = vmatprep.subr.bf16.mxu0 0
        %5525 = vmatpush1.bf16.msra.mxu0 0
        %5526 = vmatprep.mubr.bf16.mxu0 0
        %5527 = vmatmul.mubr.bf16.gmra.mrb[0].mxu0 %v5492
        %v5528 = vpop.f32.mrb[0].mxu0
        %v5529 = vadd.f32 0.0, %v5528
        %v5530 = vpop.f32.mrb[0].mxu0
        %v5531 = vpop.f32.mrb[0].mxu0
        %v5532 = vpop.f32.mrb[0].mxu0
        %5533 = vdwg.mxu0
        %v5534 = vadd.f32 %v5208, %v5529
        %v5535 = vxor.u32 %v5534, 2147483648
        %v5536 = vmul.f32 %v5535, 1.442695
        %v5537 = vpow.pop %v5536
        %v5538 = vadd.f32 %v5537, 1.0
        %v5539 = vrcp.pop %v5538
        %v5540 = vmul.f32 1.0, %v5539
        %5541 = vmatprep.subr.bf16.mxu0 0
        %5542 = vmatpush1.bf16.msra.mxu0 %v5284
        %5543 = vmatprep.subr.bf16.mxu0 0
        %5544 = vmatpush1.bf16.msra.mxu0 %v5286
        %5545 = vmatprep.subr.bf16.mxu0 0
        %5546 = vmatpush1.bf16.msra.mxu0 0
        %5547 = vmatprep.subr.bf16.mxu0 0
        %5548 = vmatpush1.bf16.msra.mxu0 0
        %5549 = vmatprep.subr.bf16.mxu0 0
        %5550 = vmatpush1.bf16.msra.mxu0 0
        %5551 = vmatprep.subr.bf16.mxu0 0
        %5552 = vmatpush1.bf16.msra.mxu0 0
        %5553 = vmatprep.subr.bf16.mxu0 0
        %5554 = vmatpush1.bf16.msra.mxu0 0
        %5555 = vmatprep.subr.bf16.mxu0 0
        %5556 = vmatpush1.bf16.msra.mxu0 0
        %5557 = vmatprep.subr.bf16.mxu0 0
        %5558 = vmatpush1.bf16.msra.mxu0 0
        %5559 = vmatprep.subr.bf16.mxu0 0
        %5560 = vmatpush1.bf16.msra.mxu0 0
        %5561 = vmatprep.subr.bf16.mxu0 0
        %5562 = vmatpush1.bf16.msra.mxu0 0
        %5563 = vmatprep.subr.bf16.mxu0 0
        %5564 = vmatpush1.bf16.msra.mxu0 0
        %5565 = vmatprep.subr.bf16.mxu0 0
        %5566 = vmatpush1.bf16.msra.mxu0 0
        %5567 = vmatprep.subr.bf16.mxu0 0
        %5568 = vmatpush1.bf16.msra.mxu0 0
        %5569 = vmatprep.subr.bf16.mxu0 0
        %5570 = vmatpush1.bf16.msra.mxu0 0
        %5571 = vmatprep.subr.bf16.mxu0 0
        %5572 = vmatpush1.bf16.msra.mxu0 0
        %5573 = vmatprep.mubr.bf16.mxu0 0
        %5574 = vmatmul.mubr.bf16.gmra.mrb[0].mxu0 %v5492
        %v5575 = vpop.f32.mrb[0].mxu0
        %v5576 = vadd.f32 0.0, %v5575
        %v5577 = vpop.f32.mrb[0].mxu0
        %v5578 = vpop.f32.mrb[0].mxu0
        %v5579 = vpop.f32.mrb[0].mxu0
        %5580 = vdwg.mxu0
        %v5583 = vunpack.c.l.s4 1983009808
        %v5584 = vunpack.c.0.s8 %v5583
        %v5585 = vlaneseq
        %v5586 = vshrl.u32 %v5585, 7
        %v5587 = vsub.s32 %v5584, %v5586
        %v5588 = vrot.slane %v5576, %v5587
        %5589 = vrot.lane.b32.xlu0 %v5588, 32
        %v5590 = vpop.permute.xlu0 %5589
        %v5592 = vadd.f32 %v5208, %v5590
        %v5593 = vxor.u32 %v5592, 2147483648
        %v5594 = vmul.f32 %v5593, 1.442695
        %v5595 = vpow.pop %v5594
        %v5596 = vadd.f32 %v5595, 1.0
        %v5597 = vrcp.pop %v5596
        %v5598 = vmul.f32 1.0, %v5597
        %5599 = vmatprep.subr.bf16.mxu0 0
        %5600 = vmatpush1.bf16.msra.mxu0 %v5348
        %5601 = vmatprep.subr.bf16.mxu0 0
        %5602 = vmatpush1.bf16.msra.mxu0 %v5350
        %5603 = vmatprep.subr.bf16.mxu0 0
        %5604 = vmatpush1.bf16.msra.mxu0 0
        %5605 = vmatprep.subr.bf16.mxu0 0
        %5606 = vmatpush1.bf16.msra.mxu0 0
        %5607 = vmatprep.subr.bf16.mxu0 0
        %5608 = vmatpush1.bf16.msra.mxu0 0
        %5609 = vmatprep.subr.bf16.mxu0 0
        %5610 = vmatpush1.bf16.msra.mxu0 0
        %5611 = vmatprep.subr.bf16.mxu0 0
        %5612 = vmatpush1.bf16.msra.mxu0 0
        %5613 = vmatprep.subr.bf16.mxu0 0
        %5614 = vmatpush1.bf16.msra.mxu0 0
        %5615 = vmatprep.subr.bf16.mxu0 0
        %5616 = vmatpush1.bf16.msra.mxu0 0
        %5617 = vmatprep.subr.bf16.mxu0 0
        %5618 = vmatpush1.bf16.msra.mxu0 0
        %5619 = vmatprep.subr.bf16.mxu0 0
        %5620 = vmatpush1.bf16.msra.mxu0 0
        %5621 = vmatprep.subr.bf16.mxu0 0
        %5622 = vmatpush1.bf16.msra.mxu0 0
        %5623 = vmatprep.subr.bf16.mxu0 0
        %5624 = vmatpush1.bf16.msra.mxu0 0
        %5625 = vmatprep.subr.bf16.mxu0 0
        %5626 = vmatpush1.bf16.msra.mxu0 0
        %5627 = vmatprep.subr.bf16.mxu0 0
        %5628 = vmatpush1.bf16.msra.mxu0 0
        %5629 = vmatprep.subr.bf16.mxu0 0
        %5630 = vmatpush1.bf16.msra.mxu0 0
        %5631 = vmatprep.mubr.bf16.mxu0 0
        %5632 = vmatmul.mubr.bf16.gmra.mrb[0].mxu0 %v5492
        %v5633 = vpop.f32.mrb[0].mxu0
        %v5634 = vadd.f32 0.0, %v5633
        %v5635 = vpop.f32.mrb[0].mxu0
        %v5636 = vpop.f32.mrb[0].mxu0
        %v5637 = vpop.f32.mrb[0].mxu0
        %5638 = vdwg.mxu0
        %v5641 = vunpack.c.l.s4 1983009808
        %v5642 = vunpack.c.0.s8 %v5641
        %v5643 = vlaneseq
        %v5644 = vshrl.u32 %v5643, 7
        %v5645 = vsub.s32 %v5642, %v5644
        %v5646 = vrot.slane %v5634, %v5645
        %5647 = vrot.lane.b32.xlu0 %v5646, 64
        %v5648 = vpop.permute.xlu0 %5647
        %v5650 = vadd.f32 %v5208, %v5648
        %v5651 = vtanh.pop %v5650
        %5652 = vmatprep.subr.bf16.mxu0 0
        %5653 = vmatpush1.bf16.msra.mxu0 %v5407
        %5654 = vmatprep.subr.bf16.mxu0 0
        %5655 = vmatpush1.bf16.msra.mxu0 %v5409
        %5656 = vmatprep.subr.bf16.mxu0 0
        %5657 = vmatpush1.bf16.msra.mxu0 0
        %5658 = vmatprep.subr.bf16.mxu0 0
        %5659 = vmatpush1.bf16.msra.mxu0 0
        %5660 = vmatprep.subr.bf16.mxu0 0
        %5661 = vmatpush1.bf16.msra.mxu0 0
        %5662 = vmatprep.subr.bf16.mxu0 0
        %5663 = vmatpush1.bf16.msra.mxu0 0
        %5664 = vmatprep.subr.bf16.mxu0 0
        %5665 = vmatpush1.bf16.msra.mxu0 0
        %5666 = vmatprep.subr.bf16.mxu0 0
        %5667 = vmatpush1.bf16.msra.mxu0 0
        %5668 = vmatprep.subr.bf16.mxu0 0
        %5669 = vmatpush1.bf16.msra.mxu0 0
        %5670 = vmatprep.subr.bf16.mxu0 0
        %5671 = vmatpush1.bf16.msra.mxu0 0
        %5672 = vmatprep.subr.bf16.mxu0 0
        %5673 = vmatpush1.bf16.msra.mxu0 0
        %5674 = vmatprep.subr.bf16.mxu0 0
        %5675 = vmatpush1.bf16.msra.mxu0 0
        %5676 = vmatprep.subr.bf16.mxu0 0
        %5677 = vmatpush1.bf16.msra.mxu0 0
        %5678 = vmatprep.subr.bf16.mxu0 0
        %5679 = vmatpush1.bf16.msra.mxu0 0
        %5680 = vmatprep.subr.bf16.mxu0 0
        %5681 = vmatpush1.bf16.msra.mxu0 0
        %5682 = vmatprep.subr.bf16.mxu0 0
        %5683 = vmatpush1.bf16.msra.mxu0 0
        %5684 = vmatprep.mubr.bf16.mxu0 0
        %5685 = vmatmul.mubr.bf16.gmra.mrb[0].mxu0 %v5492
        %v5686 = vpop.f32.mrb[0].mxu0
        %v5687 = vadd.f32 0.0, %v5686
        %v5688 = vpop.f32.mrb[0].mxu0
        %v5689 = vpop.f32.mrb[0].mxu0
        %v5690 = vpop.f32.mrb[0].mxu0
        %5691 = vdwg.mxu0
        %v5694 = vunpack.c.l.s4 1983009808
        %v5695 = vunpack.c.0.s8 %v5694
        %v5696 = vlaneseq
        %v5697 = vshrl.u32 %v5696, 7
        %v5698 = vsub.s32 %v5695, %v5697
        %v5699 = vrot.slane %v5687, %v5698
        %5700 = vrot.lane.b32.xlu0 %v5699, 96
        %v5701 = vpop.permute.xlu0 %5700
        %v5703 = vadd.f32 %v5208, %v5701
        %v5704 = vxor.u32 %v5703, 2147483648
        %v5705 = vmul.f32 %v5704, 1.442695
        %v5706 = vpow.pop %v5705
        %v5707 = vadd.f32 %v5706, 1.0
        %v5708 = vrcp.pop %v5707
        %v5709 = vmul.f32 1.0, %v5708
        %v5710 = vmul.f32 %v5598, %v5480
        %5712 = vrot.lane.b32.xlu0 %v5651, 64
        %v5713 = vpop.permute.xlu0 %5712
        %v5715 = vmul.f32 %v5540, %v5713
        %5717 = vrot.lane.b32.xlu0 %v5715, 32
        %v5718 = vpop.permute.xlu0 %5717
        %v5720 = vadd.f32 %v5710, %v5718
        %v5721 = vtanh.pop %v5720
        %5723 = vrot.lane.b32.xlu0 %v5721, 64
        %v5724 = vpop.permute.xlu0 %5723
        %v5726 = vmul.f32 %v5709, %v5724
        %v5727 = vpack.c.bf16 %v5726, %v5726
        %5729 = vrot.lane.b32.xlu0 %v5727, 32
        %v5730 = vpop.permute.xlu0 %5729
        %v5732 = vsel %vm1498, %v5730, 0
        %5734 = vmatprep.subr.bf16.mxu0 0
        %5735 = vmatpush1.bf16.msra.mxu0 %v5232
        %5736 = vmatprep.subr.bf16.mxu0 0
        %5737 = vmatpush1.bf16.msra.mxu0 %v5233
        %5738 = vmatprep.subr.bf16.mxu0 0
        %5739 = vmatpush1.bf16.msra.mxu0 0
        %5740 = vmatprep.subr.bf16.mxu0 0
        %5741 = vmatpush1.bf16.msra.mxu0 0
        %5742 = vmatprep.subr.bf16.mxu0 0
        %5743 = vmatpush1.bf16.msra.mxu0 0
        %5744 = vmatprep.subr.bf16.mxu0 0
        %5745 = vmatpush1.bf16.msra.mxu0 0
        %5746 = vmatprep.subr.bf16.mxu0 0
        %5747 = vmatpush1.bf16.msra.mxu0 0
        %5748 = vmatprep.subr.bf16.mxu0 0
        %5749 = vmatpush1.bf16.msra.mxu0 0
        %5750 = vmatprep.subr.bf16.mxu0 0
        %5751 = vmatpush1.bf16.msra.mxu0 0
        %5752 = vmatprep.subr.bf16.mxu0 0
        %5753 = vmatpush1.bf16.msra.mxu0 0
        %5754 = vmatprep.subr.bf16.mxu0 0
        %5755 = vmatpush1.bf16.msra.mxu0 0
        %5756 = vmatprep.subr.bf16.mxu0 0
        %5757 = vmatpush1.bf16.msra.mxu0 0
        %5758 = vmatprep.subr.bf16.mxu0 0
        %5759 = vmatpush1.bf16.msra.mxu0 0
        %5760 = vmatprep.subr.bf16.mxu0 0
        %5761 = vmatpush1.bf16.msra.mxu0 0
        %5762 = vmatprep.subr.bf16.mxu0 0
        %5763 = vmatpush1.bf16.msra.mxu0 0
        %5764 = vmatprep.subr.bf16.mxu0 0
        %5765 = vmatpush1.bf16.msra.mxu0 0
        %5766 = vmatprep.mubr.bf16.mxu0 0
        %5767 = vmatmul.mubr.bf16.gmra.mrb[0].mxu0 %v5732
        %v5768 = vpop.f32.mrb[0].mxu0
        %v5769 = vadd.f32 0.0, %v5768
        %v5770 = vpop.f32.mrb[0].mxu0
        %v5771 = vpop.f32.mrb[0].mxu0
        %v5772 = vpop.f32.mrb[0].mxu0
        %5773 = vdwg.mxu0
        %v5774 = vadd.f32 %v5207, %v5769
        %v5775 = vxor.u32 %v5774, 2147483648
        %v5776 = vmul.f32 %v5775, 1.442695
        %v5777 = vpow.pop %v5776
        %v5778 = vadd.f32 %v5777, 1.0
        %v5779 = vrcp.pop %v5778
        %v5780 = vmul.f32 1.0, %v5779
        %5781 = vmatprep.subr.bf16.mxu0 0
        %5782 = vmatpush1.bf16.msra.mxu0 %v5284
        %5783 = vmatprep.subr.bf16.mxu0 0
        %5784 = vmatpush1.bf16.msra.mxu0 %v5286
        %5785 = vmatprep.subr.bf16.mxu0 0
        %5786 = vmatpush1.bf16.msra.mxu0 0
        %5787 = vmatprep.subr.bf16.mxu0 0
        %5788 = vmatpush1.bf16.msra.mxu0 0
        %5789 = vmatprep.subr.bf16.mxu0 0
        %5790 = vmatpush1.bf16.msra.mxu0 0
        %5791 = vmatprep.subr.bf16.mxu0 0
        %5792 = vmatpush1.bf16.msra.mxu0 0
        %5793 = vmatprep.subr.bf16.mxu0 0
        %5794 = vmatpush1.bf16.msra.mxu0 0
        %5795 = vmatprep.subr.bf16.mxu0 0
        %5796 = vmatpush1.bf16.msra.mxu0 0
        %5797 = vmatprep.subr.bf16.mxu0 0
        %5798 = vmatpush1.bf16.msra.mxu0 0
        %5799 = vmatprep.subr.bf16.mxu0 0
        %5800 = vmatpush1.bf16.msra.mxu0 0
        %5801 = vmatprep.subr.bf16.mxu0 0
        %5802 = vmatpush1.bf16.msra.mxu0 0
        %5803 = vmatprep.subr.bf16.mxu0 0
        %5804 = vmatpush1.bf16.msra.mxu0 0
        %5805 = vmatprep.subr.bf16.mxu0 0
        %5806 = vmatpush1.bf16.msra.mxu0 0
        %5807 = vmatprep.subr.bf16.mxu0 0
        %5808 = vmatpush1.bf16.msra.mxu0 0
        %5809 = vmatprep.subr.bf16.mxu0 0
        %5810 = vmatpush1.bf16.msra.mxu0 0
        %5811 = vmatprep.subr.bf16.mxu0 0
        %5812 = vmatpush1.bf16.msra.mxu0 0
        %5813 = vmatprep.mubr.bf16.mxu0 0
        %5814 = vmatmul.mubr.bf16.gmra.mrb[0].mxu0 %v5732
        %v5815 = vpop.f32.mrb[0].mxu0
        %v5816 = vadd.f32 0.0, %v5815
        %v5817 = vpop.f32.mrb[0].mxu0
        %v5818 = vpop.f32.mrb[0].mxu0
        %v5819 = vpop.f32.mrb[0].mxu0
        %5820 = vdwg.mxu0
        %v5823 = vunpack.c.l.s4 1983009808
        %v5824 = vunpack.c.0.s8 %v5823
        %v5825 = vlaneseq
        %v5826 = vshrl.u32 %v5825, 7
        %v5827 = vsub.s32 %v5824, %v5826
        %v5828 = vrot.slane %v5816, %v5827
        %5829 = vrot.lane.b32.xlu0 %v5828, 32
        %v5830 = vpop.permute.xlu0 %5829
        %v5832 = vadd.f32 %v5207, %v5830
        %v5833 = vxor.u32 %v5832, 2147483648
        %v5834 = vmul.f32 %v5833, 1.442695
        %v5835 = vpow.pop %v5834
        %v5836 = vadd.f32 %v5835, 1.0
        %v5837 = vrcp.pop %v5836
        %v5838 = vmul.f32 1.0, %v5837
        %5839 = vmatprep.subr.bf16.mxu0 0
        %5840 = vmatpush1.bf16.msra.mxu0 %v5348
        %5841 = vmatprep.subr.bf16.mxu0 0
        %5842 = vmatpush1.bf16.msra.mxu0 %v5350
        %5843 = vmatprep.subr.bf16.mxu0 0
        %5844 = vmatpush1.bf16.msra.mxu0 0
        %5845 = vmatprep.subr.bf16.mxu0 0
        %5846 = vmatpush1.bf16.msra.mxu0 0
        %5847 = vmatprep.subr.bf16.mxu0 0
        %5848 = vmatpush1.bf16.msra.mxu0 0
        %5849 = vmatprep.subr.bf16.mxu0 0
        %5850 = vmatpush1.bf16.msra.mxu0 0
        %5851 = vmatprep.subr.bf16.mxu0 0
        %5852 = vmatpush1.bf16.msra.mxu0 0
        %5853 = vmatprep.subr.bf16.mxu0 0
        %5854 = vmatpush1.bf16.msra.mxu0 0
        %5855 = vmatprep.subr.bf16.mxu0 0
        %5856 = vmatpush1.bf16.msra.mxu0 0
        %5857 = vmatprep.subr.bf16.mxu0 0
        %5858 = vmatpush1.bf16.msra.mxu0 0
        %5859 = vmatprep.subr.bf16.mxu0 0
        %5860 = vmatpush1.bf16.msra.mxu0 0
        %5861 = vmatprep.subr.bf16.mxu0 0
        %5862 = vmatpush1.bf16.msra.mxu0 0
        %5863 = vmatprep.subr.bf16.mxu0 0
        %5864 = vmatpush1.bf16.msra.mxu0 0
        %5865 = vmatprep.subr.bf16.mxu0 0
        %5866 = vmatpush1.bf16.msra.mxu0 0
        %5867 = vmatprep.subr.bf16.mxu0 0
        %5868 = vmatpush1.bf16.msra.mxu0 0
        %5869 = vmatprep.subr.bf16.mxu0 0
        %5870 = vmatpush1.bf16.msra.mxu0 0
        %5871 = vmatprep.mubr.bf16.mxu0 0
        %5872 = vmatmul.mubr.bf16.gmra.mrb[0].mxu0 %v5732
        %v5873 = vpop.f32.mrb[0].mxu0
        %v5874 = vadd.f32 0.0, %v5873
        %v5875 = vpop.f32.mrb[0].mxu0
        %v5876 = vpop.f32.mrb[0].mxu0
        %v5877 = vpop.f32.mrb[0].mxu0
        %5878 = vdwg.mxu0
        %v5881 = vunpack.c.l.s4 1983009808
        %v5882 = vunpack.c.0.s8 %v5881
        %v5883 = vlaneseq
        %v5884 = vshrl.u32 %v5883, 7
        %v5885 = vsub.s32 %v5882, %v5884
        %v5886 = vrot.slane %v5874, %v5885
        %5887 = vrot.lane.b32.xlu0 %v5886, 64
        %v5888 = vpop.permute.xlu0 %5887
        %v5890 = vadd.f32 %v5207, %v5888
        %v5891 = vtanh.pop %v5890
        %5892 = vmatprep.subr.bf16.mxu0 0
        %5893 = vmatpush1.bf16.msra.mxu0 %v5407
        %5894 = vmatprep.subr.bf16.mxu0 0
        %5895 = vmatpush1.bf16.msra.mxu0 %v5409
        %5896 = vmatprep.subr.bf16.mxu0 0
        %5897 = vmatpush1.bf16.msra.mxu0 0
        %5898 = vmatprep.subr.bf16.mxu0 0
        %5899 = vmatpush1.bf16.msra.mxu0 0
        %5900 = vmatprep.subr.bf16.mxu0 0
        %5901 = vmatpush1.bf16.msra.mxu0 0
        %5902 = vmatprep.subr.bf16.mxu0 0
        %5903 = vmatpush1.bf16.msra.mxu0 0
        %5904 = vmatprep.subr.bf16.mxu0 0
        %5905 = vmatpush1.bf16.msra.mxu0 0
        %5906 = vmatprep.subr.bf16.mxu0 0
        %5907 = vmatpush1.bf16.msra.mxu0 0
        %5908 = vmatprep.subr.bf16.mxu0 0
        %5909 = vmatpush1.bf16.msra.mxu0 0
        %5910 = vmatprep.subr.bf16.mxu0 0
        %5911 = vmatpush1.bf16.msra.mxu0 0
        %5912 = vmatprep.subr.bf16.mxu0 0
        %5913 = vmatpush1.bf16.msra.mxu0 0
        %5914 = vmatprep.subr.bf16.mxu0 0
        %5915 = vmatpush1.bf16.msra.mxu0 0
        %5916 = vmatprep.subr.bf16.mxu0 0
        %5917 = vmatpush1.bf16.msra.mxu0 0
        %5918 = vmatprep.subr.bf16.mxu0 0
        %5919 = vmatpush1.bf16.msra.mxu0 0
        %5920 = vmatprep.subr.bf16.mxu0 0
        %5921 = vmatpush1.bf16.msra.mxu0 0
        %5922 = vmatprep.subr.bf16.mxu0 0
        %5923 = vmatpush1.bf16.msra.mxu0 0
        %5924 = vmatprep.mubr.bf16.mxu0 0
        %5925 = vmatmul.mubr.bf16.gmra.mrb[0].mxu0 %v5732
        %v5926 = vpop.f32.mrb[0].mxu0
        %v5927 = vadd.f32 0.0, %v5926
        %v5928 = vpop.f32.mrb[0].mxu0
        %v5929 = vpop.f32.mrb[0].mxu0
        %v5930 = vpop.f32.mrb[0].mxu0
        %5931 = vdwg.mxu0
        %v5934 = vunpack.c.l.s4 1983009808
        %v5935 = vunpack.c.0.s8 %v5934
        %v5936 = vlaneseq
        %v5937 = vshrl.u32 %v5936, 7
        %v5938 = vsub.s32 %v5935, %v5937
        %v5939 = vrot.slane %v5927, %v5938
        %5940 = vrot.lane.b32.xlu0 %v5939, 96
        %v5941 = vpop.permute.xlu0 %5940
        %v5943 = vadd.f32 %v5207, %v5941
        %v5944 = vxor.u32 %v5943, 2147483648
        %v5945 = vmul.f32 %v5944, 1.442695
        %v5946 = vpow.pop %v5945
        %v5947 = vadd.f32 %v5946, 1.0
        %v5948 = vrcp.pop %v5947
        %v5949 = vmul.f32 1.0, %v5948
        %v5950 = vmul.f32 %v5838, %v5720
        %5952 = vrot.lane.b32.xlu0 %v5891, 64
        %v5953 = vpop.permute.xlu0 %5952
        %v5955 = vmul.f32 %v5780, %v5953
        %5957 = vrot.lane.b32.xlu0 %v5955, 32
        %v5958 = vpop.permute.xlu0 %5957
        %v5960 = vadd.f32 %v5950, %v5958
        %v5961 = vtanh.pop %v5960
        %5963 = vrot.lane.b32.xlu0 %v5961, 64
        %v5964 = vpop.permute.xlu0 %5963
        %v5966 = vmul.f32 %v5949, %v5964
        %v5967 = vpack.c.bf16 %v5966, %v5966
        %5969 = vrot.lane.b32.xlu0 %v5967, 32
        %v5970 = vpop.permute.xlu0 %5969
        %v5972 = vsel %vm1498, %v5970, 0
        %5974 = vmatprep.subr.bf16.mxu0 0
        %5975 = vmatpush1.bf16.msra.mxu0 %v5232
        %5976 = vmatprep.subr.bf16.mxu0 0
        %5977 = vmatpush1.bf16.msra.mxu0 %v5233
        %5978 = vmatprep.subr.bf16.mxu0 0
        %5979 = vmatpush1.bf16.msra.mxu0 0
        %5980 = vmatprep.subr.bf16.mxu0 0
        %5981 = vmatpush1.bf16.msra.mxu0 0
        %5982 = vmatprep.subr.bf16.mxu0 0
        %5983 = vmatpush1.bf16.msra.mxu0 0
        %5984 = vmatprep.subr.bf16.mxu0 0
        %5985 = vmatpush1.bf16.msra.mxu0 0
        %5986 = vmatprep.subr.bf16.mxu0 0
        %5987 = vmatpush1.bf16.msra.mxu0 0
        %5988 = vmatprep.subr.bf16.mxu0 0
        %5989 = vmatpush1.bf16.msra.mxu0 0
        %5990 = vmatprep.subr.bf16.mxu0 0
        %5991 = vmatpush1.bf16.msra.mxu0 0
        %5992 = vmatprep.subr.bf16.mxu0 0
        %5993 = vmatpush1.bf16.msra.mxu0 0
        %5994 = vmatprep.subr.bf16.mxu0 0
        %5995 = vmatpush1.bf16.msra.mxu0 0
        %5996 = vmatprep.subr.bf16.mxu0 0
        %5997 = vmatpush1.bf16.msra.mxu0 0
        %5998 = vmatprep.subr.bf16.mxu0 0
        %5999 = vmatpush1.bf16.msra.mxu0 0
        %6000 = vmatprep.subr.bf16.mxu0 0
        %6001 = vmatpush1.bf16.msra.mxu0 0
        %6002 = vmatprep.subr.bf16.mxu0 0
        %6003 = vmatpush1.bf16.msra.mxu0 0
        %6004 = vmatprep.subr.bf16.mxu0 0
        %6005 = vmatpush1.bf16.msra.mxu0 0
        %6006 = vmatprep.mubr.bf16.mxu0 0
        %6007 = vmatmul.mubr.bf16.gmra.mrb[0].mxu0 %v5972
        %v6008 = vpop.f32.mrb[0].mxu0
        %v6009 = vadd.f32 0.0, %v6008
        %v6010 = vpop.f32.mrb[0].mxu0
        %v6011 = vpop.f32.mrb[0].mxu0
        %v6012 = vpop.f32.mrb[0].mxu0
        %6013 = vdwg.mxu0
        %v6014 = vadd.f32 %v5209, %v6009
        %v6015 = vxor.u32 %v6014, 2147483648
        %v6016 = vmul.f32 %v6015, 1.442695
        %v6017 = vpow.pop %v6016
        %v6018 = vadd.f32 %v6017, 1.0
        %v6019 = vrcp.pop %v6018
        %v6020 = vmul.f32 1.0, %v6019
        %6021 = vmatprep.subr.bf16.mxu0 0
        %6022 = vmatpush1.bf16.msra.mxu0 %v5284
        %6023 = vmatprep.subr.bf16.mxu0 0
        %6024 = vmatpush1.bf16.msra.mxu0 %v5286
        %6025 = vmatprep.subr.bf16.mxu0 0
        %6026 = vmatpush1.bf16.msra.mxu0 0
        %6027 = vmatprep.subr.bf16.mxu0 0
        %6028 = vmatpush1.bf16.msra.mxu0 0
        %6029 = vmatprep.subr.bf16.mxu0 0
        %6030 = vmatpush1.bf16.msra.mxu0 0
        %6031 = vmatprep.subr.bf16.mxu0 0
        %6032 = vmatpush1.bf16.msra.mxu0 0
        %6033 = vmatprep.subr.bf16.mxu0 0
        %6034 = vmatpush1.bf16.msra.mxu0 0
        %6035 = vmatprep.subr.bf16.mxu0 0
        %6036 = vmatpush1.bf16.msra.mxu0 0
        %6037 = vmatprep.subr.bf16.mxu0 0
        %6038 = vmatpush1.bf16.msra.mxu0 0
        %6039 = vmatprep.subr.bf16.mxu0 0
        %6040 = vmatpush1.bf16.msra.mxu0 0
        %6041 = vmatprep.subr.bf16.mxu0 0
        %6042 = vmatpush1.bf16.msra.mxu0 0
        %6043 = vmatprep.subr.bf16.mxu0 0
        %6044 = vmatpush1.bf16.msra.mxu0 0
        %6045 = vmatprep.subr.bf16.mxu0 0
        %6046 = vmatpush1.bf16.msra.mxu0 0
        %6047 = vmatprep.subr.bf16.mxu0 0
        %6048 = vmatpush1.bf16.msra.mxu0 0
        %6049 = vmatprep.subr.bf16.mxu0 0
        %6050 = vmatpush1.bf16.msra.mxu0 0
        %6051 = vmatprep.subr.bf16.mxu0 0
        %6052 = vmatpush1.bf16.msra.mxu0 0
        %6053 = vmatprep.mubr.bf16.mxu0 0
        %6054 = vmatmul.mubr.bf16.gmra.mrb[0].mxu0 %v5972
        %v6055 = vpop.f32.mrb[0].mxu0
        %v6056 = vadd.f32 0.0, %v6055
        %v6057 = vpop.f32.mrb[0].mxu0
        %v6058 = vpop.f32.mrb[0].mxu0
        %v6059 = vpop.f32.mrb[0].mxu0
        %6060 = vdwg.mxu0
        %v6063 = vunpack.c.l.s4 1983009808
        %v6064 = vunpack.c.0.s8 %v6063
        %v6065 = vlaneseq
        %v6066 = vshrl.u32 %v6065, 7
        %v6067 = vsub.s32 %v6064, %v6066
        %v6068 = vrot.slane %v6056, %v6067
        %6069 = vrot.lane.b32.xlu0 %v6068, 32
        %v6070 = vpop.permute.xlu0 %6069
        %v6072 = vadd.f32 %v5209, %v6070
        %v6073 = vxor.u32 %v6072, 2147483648
        %v6074 = vmul.f32 %v6073, 1.442695
        %v6075 = vpow.pop %v6074
        %v6076 = vadd.f32 %v6075, 1.0
        %v6077 = vrcp.pop %v6076
        %v6078 = vmul.f32 1.0, %v6077
        %6079 = vmatprep.subr.bf16.mxu0 0
        %6080 = vmatpush1.bf16.msra.mxu0 %v5348
        %6081 = vmatprep.subr.bf16.mxu0 0
        %6082 = vmatpush1.bf16.msra.mxu0 %v5350
        %6083 = vmatprep.subr.bf16.mxu0 0
        %6084 = vmatpush1.bf16.msra.mxu0 0
        %6085 = vmatprep.subr.bf16.mxu0 0
        %6086 = vmatpush1.bf16.msra.mxu0 0
        %6087 = vmatprep.subr.bf16.mxu0 0
        %6088 = vmatpush1.bf16.msra.mxu0 0
        %6089 = vmatprep.subr.bf16.mxu0 0
        %6090 = vmatpush1.bf16.msra.mxu0 0
        %6091 = vmatprep.subr.bf16.mxu0 0
        %6092 = vmatpush1.bf16.msra.mxu0 0
        %6093 = vmatprep.subr.bf16.mxu0 0
        %6094 = vmatpush1.bf16.msra.mxu0 0
        %6095 = vmatprep.subr.bf16.mxu0 0
        %6096 = vmatpush1.bf16.msra.mxu0 0
        %6097 = vmatprep.subr.bf16.mxu0 0
        %6098 = vmatpush1.bf16.msra.mxu0 0
        %6099 = vmatprep.subr.bf16.mxu0 0
        %6100 = vmatpush1.bf16.msra.mxu0 0
        %6101 = vmatprep.subr.bf16.mxu0 0
        %6102 = vmatpush1.bf16.msra.mxu0 0
        %6103 = vmatprep.subr.bf16.mxu0 0
        %6104 = vmatpush1.bf16.msra.mxu0 0
        %6105 = vmatprep.subr.bf16.mxu0 0
        %6106 = vmatpush1.bf16.msra.mxu0 0
        %6107 = vmatprep.subr.bf16.mxu0 0
        %6108 = vmatpush1.bf16.msra.mxu0 0
        %6109 = vmatprep.subr.bf16.mxu0 0
        %6110 = vmatpush1.bf16.msra.mxu0 0
        %6111 = vmatprep.mubr.bf16.mxu0 0
        %6112 = vmatmul.mubr.bf16.gmra.mrb[0].mxu0 %v5972
        %v6113 = vpop.f32.mrb[0].mxu0
        %v6114 = vadd.f32 0.0, %v6113
        %v6115 = vpop.f32.mrb[0].mxu0
        %v6116 = vpop.f32.mrb[0].mxu0
        %v6117 = vpop.f32.mrb[0].mxu0
        %6118 = vdwg.mxu0
        %v6121 = vunpack.c.l.s4 1983009808
        %v6122 = vunpack.c.0.s8 %v6121
        %v6123 = vlaneseq
        %v6124 = vshrl.u32 %v6123, 7
        %v6125 = vsub.s32 %v6122, %v6124
        %v6126 = vrot.slane %v6114, %v6125
        %6127 = vrot.lane.b32.xlu0 %v6126, 64
        %v6128 = vpop.permute.xlu0 %6127
        %v6130 = vadd.f32 %v5209, %v6128
        %v6131 = vtanh.pop %v6130
        %6132 = vmatprep.subr.bf16.mxu0 0
        %6133 = vmatpush1.bf16.msra.mxu0 %v5407
        %6134 = vmatprep.subr.bf16.mxu0 0
        %6135 = vmatpush1.bf16.msra.mxu0 %v5409
        %6136 = vmatprep.subr.bf16.mxu0 0
        %6137 = vmatpush1.bf16.msra.mxu0 0
        %6138 = vmatprep.subr.bf16.mxu0 0
        %6139 = vmatpush1.bf16.msra.mxu0 0
        %6140 = vmatprep.subr.bf16.mxu0 0
        %6141 = vmatpush1.bf16.msra.mxu0 0
        %6142 = vmatprep.subr.bf16.mxu0 0
        %6143 = vmatpush1.bf16.msra.mxu0 0
        %6144 = vmatprep.subr.bf16.mxu0 0
        %6145 = vmatpush1.bf16.msra.mxu0 0
        %6146 = vmatprep.subr.bf16.mxu0 0
        %6147 = vmatpush1.bf16.msra.mxu0 0
        %6148 = vmatprep.subr.bf16.mxu0 0
        %6149 = vmatpush1.bf16.msra.mxu0 0
        %6150 = vmatprep.subr.bf16.mxu0 0
        %6151 = vmatpush1.bf16.msra.mxu0 0
        %6152 = vmatprep.subr.bf16.mxu0 0
        %6153 = vmatpush1.bf16.msra.mxu0 0
        %6154 = vmatprep.subr.bf16.mxu0 0
        %6155 = vmatpush1.bf16.msra.mxu0 0
        %6156 = vmatprep.subr.bf16.mxu0 0
        %6157 = vmatpush1.bf16.msra.mxu0 0
        %6158 = vmatprep.subr.bf16.mxu0 0
        %6159 = vmatpush1.bf16.msra.mxu0 0
        %6160 = vmatprep.subr.bf16.mxu0 0
        %6161 = vmatpush1.bf16.msra.mxu0 0
        %6162 = vmatprep.subr.bf16.mxu0 0
        %6163 = vmatpush1.bf16.msra.mxu0 0
        %6164 = vmatprep.mubr.bf16.mxu0 0
        %6165 = vmatmul.mubr.bf16.gmra.mrb[0].mxu0 %v5972
        %v6166 = vpop.f32.mrb[0].mxu0
        %v6167 = vadd.f32 0.0, %v6166
        %v6168 = vpop.f32.mrb[0].mxu0
        %v6169 = vpop.f32.mrb[0].mxu0
        %v6170 = vpop.f32.mrb[0].mxu0
        %6171 = vdwg.mxu0
        %v6174 = vunpack.c.l.s4 1983009808
        %v6175 = vunpack.c.0.s8 %v6174
        %v6176 = vlaneseq
        %v6177 = vshrl.u32 %v6176, 7
        %v6178 = vsub.s32 %v6175, %v6177
        %v6179 = vrot.slane %v6167, %v6178
        %6180 = vrot.lane.b32.xlu0 %v6179, 96
        %v6181 = vpop.permute.xlu0 %6180
        %v6183 = vadd.f32 %v5209, %v6181
        %v6184 = vxor.u32 %v6183, 2147483648
        %v6185 = vmul.f32 %v6184, 1.442695
        %v6186 = vpow.pop %v6185
        %v6187 = vadd.f32 %v6186, 1.0
        %v6188 = vrcp.pop %v6187
        %v6189 = vmul.f32 1.0, %v6188
        %v6190 = vmul.f32 %v6078, %v5960
        %6192 = vrot.lane.b32.xlu0 %v6131, 64
        %v6193 = vpop.permute.xlu0 %6192
        %v6195 = vmul.f32 %v6020, %v6193
        %6197 = vrot.lane.b32.xlu0 %v6195, 32
        %v6198 = vpop.permute.xlu0 %6197
        %v6200 = vadd.f32 %v6190, %v6198
        %v6201 = vtanh.pop %v6200
        %6203 = vrot.lane.b32.xlu0 %v6201, 64
        %v6204 = vpop.permute.xlu0 %6203
        %v6206 = vmul.f32 %v6189, %v6204
        %v6207 = vpack.c.bf16 %v6206, %v6206
        %6209 = vrot.lane.b32.xlu0 %v6207, 32
        %v6210 = vpop.permute.xlu0 %6209
        %v6212 = vsel %vm1498, %v6210, 0
        %6214 = vmatprep.subr.bf16.mxu0 0
        %6215 = vmatpush1.bf16.msra.mxu0 %v5232
        %6216 = vmatprep.subr.bf16.mxu0 0
        %6217 = vmatpush1.bf16.msra.mxu0 %v5233
        %6218 = vmatprep.subr.bf16.mxu0 0
        %6219 = vmatpush1.bf16.msra.mxu0 0
        %6220 = vmatprep.subr.bf16.mxu0 0
        %6221 = vmatpush1.bf16.msra.mxu0 0
        %6222 = vmatprep.subr.bf16.mxu0 0
        %6223 = vmatpush1.bf16.msra.mxu0 0
        %6224 = vmatprep.subr.bf16.mxu0 0
        %6225 = vmatpush1.bf16.msra.mxu0 0
        %6226 = vmatprep.subr.bf16.mxu0 0
        %6227 = vmatpush1.bf16.msra.mxu0 0
        %6228 = vmatprep.subr.bf16.mxu0 0
        %6229 = vmatpush1.bf16.msra.mxu0 0
        %6230 = vmatprep.subr.bf16.mxu0 0
        %6231 = vmatpush1.bf16.msra.mxu0 0
        %6232 = vmatprep.subr.bf16.mxu0 0
        %6233 = vmatpush1.bf16.msra.mxu0 0
        %6234 = vmatprep.subr.bf16.mxu0 0
        %6235 = vmatpush1.bf16.msra.mxu0 0
        %6236 = vmatprep.subr.bf16.mxu0 0
        %6237 = vmatpush1.bf16.msra.mxu0 0
        %6238 = vmatprep.subr.bf16.mxu0 0
        %6239 = vmatpush1.bf16.msra.mxu0 0
        %6240 = vmatprep.subr.bf16.mxu0 0
        %6241 = vmatpush1.bf16.msra.mxu0 0
        %6242 = vmatprep.subr.bf16.mxu0 0
        %6243 = vmatpush1.bf16.msra.mxu0 0
        %6244 = vmatprep.subr.bf16.mxu0 0
        %6245 = vmatpush1.bf16.msra.mxu0 0
        %6246 = vmatprep.mubr.bf16.mxu0 0
        %6247 = vmatmul.mubr.bf16.gmra.mrb[0].mxu0 %v6212
        %v6248 = vpop.f32.mrb[0].mxu0
        %v6249 = vadd.f32 0.0, %v6248
        %v6250 = vpop.f32.mrb[0].mxu0
        %v6251 = vpop.f32.mrb[0].mxu0
        %v6252 = vpop.f32.mrb[0].mxu0
        %6253 = vdwg.mxu0
        %v6254 = vadd.f32 %v5216, %v6249
        %v6255 = vxor.u32 %v6254, 2147483648
        %v6256 = vmul.f32 %v6255, 1.442695
        %v6257 = vpow.pop %v6256
        %v6258 = vadd.f32 %v6257, 1.0
        %v6259 = vrcp.pop %v6258
        %v6260 = vmul.f32 1.0, %v6259
        %6261 = vmatprep.subr.bf16.mxu0 0
        %6262 = vmatpush1.bf16.msra.mxu0 %v5284
        %6263 = vmatprep.subr.bf16.mxu0 0
        %6264 = vmatpush1.bf16.msra.mxu0 %v5286
        %6265 = vmatprep.subr.bf16.mxu0 0
        %6266 = vmatpush1.bf16.msra.mxu0 0
        %6267 = vmatprep.subr.bf16.mxu0 0
        %6268 = vmatpush1.bf16.msra.mxu0 0
        %6269 = vmatprep.subr.bf16.mxu0 0
        %6270 = vmatpush1.bf16.msra.mxu0 0
        %6271 = vmatprep.subr.bf16.mxu0 0
        %6272 = vmatpush1.bf16.msra.mxu0 0
        %6273 = vmatprep.subr.bf16.mxu0 0
        %6274 = vmatpush1.bf16.msra.mxu0 0
        %6275 = vmatprep.subr.bf16.mxu0 0
        %6276 = vmatpush1.bf16.msra.mxu0 0
        %6277 = vmatprep.subr.bf16.mxu0 0
        %6278 = vmatpush1.bf16.msra.mxu0 0
        %6279 = vmatprep.subr.bf16.mxu0 0
        %6280 = vmatpush1.bf16.msra.mxu0 0
        %6281 = vmatprep.subr.bf16.mxu0 0
        %6282 = vmatpush1.bf16.msra.mxu0 0
        %6283 = vmatprep.subr.bf16.mxu0 0
        %6284 = vmatpush1.bf16.msra.mxu0 0
        %6285 = vmatprep.subr.bf16.mxu0 0
        %6286 = vmatpush1.bf16.msra.mxu0 0
        %6287 = vmatprep.subr.bf16.mxu0 0
        %6288 = vmatpush1.bf16.msra.mxu0 0
        %6289 = vmatprep.subr.bf16.mxu0 0
        %6290 = vmatpush1.bf16.msra.mxu0 0
        %6291 = vmatprep.subr.bf16.mxu0 0
        %6292 = vmatpush1.bf16.msra.mxu0 0
        %6293 = vmatprep.mubr.bf16.mxu0 0
        %6294 = vmatmul.mubr.bf16.gmra.mrb[0].mxu0 %v6212
        %v6295 = vpop.f32.mrb[0].mxu0
        %v6296 = vadd.f32 0.0, %v6295
        %v6297 = vpop.f32.mrb[0].mxu0
        %v6298 = vpop.f32.mrb[0].mxu0
        %v6299 = vpop.f32.mrb[0].mxu0
        %6300 = vdwg.mxu0
        %v6303 = vunpack.c.l.s4 1983009808
        %v6304 = vunpack.c.0.s8 %v6303
        %v6305 = vlaneseq
        %v6306 = vshrl.u32 %v6305, 7
        %v6307 = vsub.s32 %v6304, %v6306
        %v6308 = vrot.slane %v6296, %v6307
        %6309 = vrot.lane.b32.xlu0 %v6308, 32
        %v6310 = vpop.permute.xlu0 %6309
        %v6312 = vadd.f32 %v5216, %v6310
        %v6313 = vxor.u32 %v6312, 2147483648
        %v6314 = vmul.f32 %v6313, 1.442695
        %v6315 = vpow.pop %v6314
        %v6316 = vadd.f32 %v6315, 1.0
        %v6317 = vrcp.pop %v6316
        %v6318 = vmul.f32 1.0, %v6317
        %6319 = vmatprep.subr.bf16.mxu0 0
        %6320 = vmatpush1.bf16.msra.mxu0 %v5348
        %6321 = vmatprep.subr.bf16.mxu0 0
        %6322 = vmatpush1.bf16.msra.mxu0 %v5350
        %6323 = vmatprep.subr.bf16.mxu0 0
        %6324 = vmatpush1.bf16.msra.mxu0 0
        %6325 = vmatprep.subr.bf16.mxu0 0
        %6326 = vmatpush1.bf16.msra.mxu0 0
        %6327 = vmatprep.subr.bf16.mxu0 0
        %6328 = vmatpush1.bf16.msra.mxu0 0
        %6329 = vmatprep.subr.bf16.mxu0 0
        %6330 = vmatpush1.bf16.msra.mxu0 0
        %6331 = vmatprep.subr.bf16.mxu0 0
        %6332 = vmatpush1.bf16.msra.mxu0 0
        %6333 = vmatprep.subr.bf16.mxu0 0
        %6334 = vmatpush1.bf16.msra.mxu0 0
        %6335 = vmatprep.subr.bf16.mxu0 0
        %6336 = vmatpush1.bf16.msra.mxu0 0
        %6337 = vmatprep.subr.bf16.mxu0 0
        %6338 = vmatpush1.bf16.msra.mxu0 0
        %6339 = vmatprep.subr.bf16.mxu0 0
        %6340 = vmatpush1.bf16.msra.mxu0 0
        %6341 = vmatprep.subr.bf16.mxu0 0
        %6342 = vmatpush1.bf16.msra.mxu0 0
        %6343 = vmatprep.subr.bf16.mxu0 0
        %6344 = vmatpush1.bf16.msra.mxu0 0
        %6345 = vmatprep.subr.bf16.mxu0 0
        %6346 = vmatpush1.bf16.msra.mxu0 0
        %6347 = vmatprep.subr.bf16.mxu0 0
        %6348 = vmatpush1.bf16.msra.mxu0 0
        %6349 = vmatprep.subr.bf16.mxu0 0
        %6350 = vmatpush1.bf16.msra.mxu0 0
        %6351 = vmatprep.mubr.bf16.mxu0 0
        %6352 = vmatmul.mubr.bf16.gmra.mrb[0].mxu0 %v6212
        %v6353 = vpop.f32.mrb[0].mxu0
        %v6354 = vadd.f32 0.0, %v6353
        %v6355 = vpop.f32.mrb[0].mxu0
        %v6356 = vpop.f32.mrb[0].mxu0
        %v6357 = vpop.f32.mrb[0].mxu0
        %6358 = vdwg.mxu0
        %v6361 = vunpack.c.l.s4 1983009808
        %v6362 = vunpack.c.0.s8 %v6361
        %v6363 = vlaneseq
        %v6364 = vshrl.u32 %v6363, 7
        %v6365 = vsub.s32 %v6362, %v6364
        %v6366 = vrot.slane %v6354, %v6365
        %6367 = vrot.lane.b32.xlu0 %v6366, 64
        %v6368 = vpop.permute.xlu0 %6367
        %v6370 = vadd.f32 %v5216, %v6368
        %v6371 = vtanh.pop %v6370
        %6372 = vmatprep.subr.bf16.mxu0 0
        %6373 = vmatpush1.bf16.msra.mxu0 %v5407
        %6374 = vmatprep.subr.bf16.mxu0 0
        %6375 = vmatpush1.bf16.msra.mxu0 %v5409
        %6376 = vmatprep.subr.bf16.mxu0 0
        %6377 = vmatpush1.bf16.msra.mxu0 0
        %6378 = vmatprep.subr.bf16.mxu0 0
        %6379 = vmatpush1.bf16.msra.mxu0 0
        %6380 = vmatprep.subr.bf16.mxu0 0
        %6381 = vmatpush1.bf16.msra.mxu0 0
        %6382 = vmatprep.subr.bf16.mxu0 0
        %6383 = vmatpush1.bf16.msra.mxu0 0
        %6384 = vmatprep.subr.bf16.mxu0 0
        %6385 = vmatpush1.bf16.msra.mxu0 0
        %6386 = vmatprep.subr.bf16.mxu0 0
        %6387 = vmatpush1.bf16.msra.mxu0 0
        %6388 = vmatprep.subr.bf16.mxu0 0
        %6389 = vmatpush1.bf16.msra.mxu0 0
        %6390 = vmatprep.subr.bf16.mxu0 0
        %6391 = vmatpush1.bf16.msra.mxu0 0
        %6392 = vmatprep.subr.bf16.mxu0 0
        %6393 = vmatpush1.bf16.msra.mxu0 0
        %6394 = vmatprep.subr.bf16.mxu0 0
        %6395 = vmatpush1.bf16.msra.mxu0 0
        %6396 = vmatprep.subr.bf16.mxu0 0
        %6397 = vmatpush1.bf16.msra.mxu0 0
        %6398 = vmatprep.subr.bf16.mxu0 0
        %6399 = vmatpush1.bf16.msra.mxu0 0
        %6400 = vmatprep.subr.bf16.mxu0 0
        %6401 = vmatpush1.bf16.msra.mxu0 0
        %6402 = vmatprep.subr.bf16.mxu0 0
        %6403 = vmatpush1.bf16.msra.mxu0 0
        %6404 = vmatprep.mubr.bf16.mxu0 0
        %6405 = vmatmul.mubr.bf16.gmra.mrb[0].mxu0 %v6212
        %v6406 = vpop.f32.mrb[0].mxu0
        %v6407 = vadd.f32 0.0, %v6406
        %v6408 = vpop.f32.mrb[0].mxu0
        %v6409 = vpop.f32.mrb[0].mxu0
        %v6410 = vpop.f32.mrb[0].mxu0
        %6411 = vdwg.mxu0
        %v6414 = vunpack.c.l.s4 1983009808
        %v6415 = vunpack.c.0.s8 %v6414
        %v6416 = vlaneseq
        %v6417 = vshrl.u32 %v6416, 7
        %v6418 = vsub.s32 %v6415, %v6417
        %v6419 = vrot.slane %v6407, %v6418
        %6420 = vrot.lane.b32.xlu0 %v6419, 96
        %v6421 = vpop.permute.xlu0 %6420
        %v6423 = vadd.f32 %v5216, %v6421
        %v6424 = vxor.u32 %v6423, 2147483648
        %v6425 = vmul.f32 %v6424, 1.442695
        %v6426 = vpow.pop %v6425
        %v6427 = vadd.f32 %v6426, 1.0
        %v6428 = vrcp.pop %v6427
        %v6429 = vmul.f32 1.0, %v6428
        %v6430 = vmul.f32 %v6318, %v6200
        %6432 = vrot.lane.b32.xlu0 %v6371, 64
        %v6433 = vpop.permute.xlu0 %6432
        %v6435 = vmul.f32 %v6260, %v6433
        %6437 = vrot.lane.b32.xlu0 %v6435, 32
        %v6438 = vpop.permute.xlu0 %6437
        %v6440 = vadd.f32 %v6430, %v6438
        %v6441 = vtanh.pop %v6440
        %6443 = vrot.lane.b32.xlu0 %v6441, 64
        %v6444 = vpop.permute.xlu0 %6443
        %v6446 = vmul.f32 %v6429, %v6444
        %v6447 = vpack.c.bf16 %v6446, %v6446
        %6449 = vrot.lane.b32.xlu0 %v6447, 32
        %v6450 = vpop.permute.xlu0 %6449
        %v6452 = vsel %vm1498, %v6450, 0
        %6454 = vmatprep.subr.bf16.mxu0 0
        %6455 = vmatpush1.bf16.msra.mxu0 %v5232
        %6456 = vmatprep.subr.bf16.mxu0 0
        %6457 = vmatpush1.bf16.msra.mxu0 %v5233
        %6458 = vmatprep.subr.bf16.mxu0 0
        %6459 = vmatpush1.bf16.msra.mxu0 0
        %6460 = vmatprep.subr.bf16.mxu0 0
        %6461 = vmatpush1.bf16.msra.mxu0 0
        %6462 = vmatprep.subr.bf16.mxu0 0
        %6463 = vmatpush1.bf16.msra.mxu0 0
        %6464 = vmatprep.subr.bf16.mxu0 0
        %6465 = vmatpush1.bf16.msra.mxu0 0
        %6466 = vmatprep.subr.bf16.mxu0 0
        %6467 = vmatpush1.bf16.msra.mxu0 0
        %6468 = vmatprep.subr.bf16.mxu0 0
        %6469 = vmatpush1.bf16.msra.mxu0 0
        %6470 = vmatprep.subr.bf16.mxu0 0
        %6471 = vmatpush1.bf16.msra.mxu0 0
        %6472 = vmatprep.subr.bf16.mxu0 0
        %6473 = vmatpush1.bf16.msra.mxu0 0
        %6474 = vmatprep.subr.bf16.mxu0 0
        %6475 = vmatpush1.bf16.msra.mxu0 0
        %6476 = vmatprep.subr.bf16.mxu0 0
        %6477 = vmatpush1.bf16.msra.mxu0 0
        %6478 = vmatprep.subr.bf16.mxu0 0
        %6479 = vmatpush1.bf16.msra.mxu0 0
        %6480 = vmatprep.subr.bf16.mxu0 0
        %6481 = vmatpush1.bf16.msra.mxu0 0
        %6482 = vmatprep.subr.bf16.mxu0 0
        %6483 = vmatpush1.bf16.msra.mxu0 0
        %6484 = vmatprep.subr.bf16.mxu0 0
        %6485 = vmatpush1.bf16.msra.mxu0 0
        %6486 = vmatprep.mubr.bf16.mxu0 0
        %6487 = vmatmul.mubr.bf16.gmra.mrb[0].mxu0 %v6452
        %v6488 = vpop.f32.mrb[0].mxu0
        %v6489 = vadd.f32 0.0, %v6488
        %v6490 = vpop.f32.mrb[0].mxu0
        %v6491 = vpop.f32.mrb[0].mxu0
        %v6492 = vpop.f32.mrb[0].mxu0
        %6493 = vdwg.mxu0
        %v6494 = vadd.f32 %v5217, %v6489
        %v6495 = vxor.u32 %v6494, 2147483648
        %v6496 = vmul.f32 %v6495, 1.442695
        %v6497 = vpow.pop %v6496
        %v6498 = vadd.f32 %v6497, 1.0
        %v6499 = vrcp.pop %v6498
        %v6500 = vmul.f32 1.0, %v6499
        %6501 = vmatprep.subr.bf16.mxu0 0
        %6502 = vmatpush1.bf16.msra.mxu0 %v5284
        %6503 = vmatprep.subr.bf16.mxu0 0
        %6504 = vmatpush1.bf16.msra.mxu0 %v5286
        %6505 = vmatprep.subr.bf16.mxu0 0
        %6506 = vmatpush1.bf16.msra.mxu0 0
        %6507 = vmatprep.subr.bf16.mxu0 0
        %6508 = vmatpush1.bf16.msra.mxu0 0
        %6509 = vmatprep.subr.bf16.mxu0 0
        %6510 = vmatpush1.bf16.msra.mxu0 0
        %6511 = vmatprep.subr.bf16.mxu0 0
        %6512 = vmatpush1.bf16.msra.mxu0 0
        %6513 = vmatprep.subr.bf16.mxu0 0
        %6514 = vmatpush1.bf16.msra.mxu0 0
        %6515 = vmatprep.subr.bf16.mxu0 0
        %6516 = vmatpush1.bf16.msra.mxu0 0
        %6517 = vmatprep.subr.bf16.mxu0 0
        %6518 = vmatpush1.bf16.msra.mxu0 0
        %6519 = vmatprep.subr.bf16.mxu0 0
        %6520 = vmatpush1.bf16.msra.mxu0 0
        %6521 = vmatprep.subr.bf16.mxu0 0
        %6522 = vmatpush1.bf16.msra.mxu0 0
        %6523 = vmatprep.subr.bf16.mxu0 0
        %6524 = vmatpush1.bf16.msra.mxu0 0
        %6525 = vmatprep.subr.bf16.mxu0 0
        %6526 = vmatpush1.bf16.msra.mxu0 0
        %6527 = vmatprep.subr.bf16.mxu0 0
        %6528 = vmatpush1.bf16.msra.mxu0 0
        %6529 = vmatprep.subr.bf16.mxu0 0
        %6530 = vmatpush1.bf16.msra.mxu0 0
        %6531 = vmatprep.subr.bf16.mxu0 0
        %6532 = vmatpush1.bf16.msra.mxu0 0
        %6533 = vmatprep.mubr.bf16.mxu0 0
        %6534 = vmatmul.mubr.bf16.gmra.mrb[0].mxu0 %v6452
        %v6535 = vpop.f32.mrb[0].mxu0
        %v6536 = vadd.f32 0.0, %v6535
        %v6537 = vpop.f32.mrb[0].mxu0
        %v6538 = vpop.f32.mrb[0].mxu0
        %v6539 = vpop.f32.mrb[0].mxu0
        %6540 = vdwg.mxu0
        %v6543 = vunpack.c.l.s4 1983009808
        %v6544 = vunpack.c.0.s8 %v6543
        %v6545 = vlaneseq
        %v6546 = vshrl.u32 %v6545, 7
        %v6547 = vsub.s32 %v6544, %v6546
        %v6548 = vrot.slane %v6536, %v6547
        %6549 = vrot.lane.b32.xlu0 %v6548, 32
        %v6550 = vpop.permute.xlu0 %6549
        %v6552 = vadd.f32 %v5217, %v6550
        %v6553 = vxor.u32 %v6552, 2147483648
        %v6554 = vmul.f32 %v6553, 1.442695
        %v6555 = vpow.pop %v6554
        %v6556 = vadd.f32 %v6555, 1.0
        %v6557 = vrcp.pop %v6556
        %v6558 = vmul.f32 1.0, %v6557
        %6559 = vmatprep.subr.bf16.mxu0 0
        %6560 = vmatpush1.bf16.msra.mxu0 %v5348
        %6561 = vmatprep.subr.bf16.mxu0 0
        %6562 = vmatpush1.bf16.msra.mxu0 %v5350
        %6563 = vmatprep.subr.bf16.mxu0 0
        %6564 = vmatpush1.bf16.msra.mxu0 0
        %6565 = vmatprep.subr.bf16.mxu0 0
        %6566 = vmatpush1.bf16.msra.mxu0 0
        %6567 = vmatprep.subr.bf16.mxu0 0
        %6568 = vmatpush1.bf16.msra.mxu0 0
        %6569 = vmatprep.subr.bf16.mxu0 0
        %6570 = vmatpush1.bf16.msra.mxu0 0
        %6571 = vmatprep.subr.bf16.mxu0 0
        %6572 = vmatpush1.bf16.msra.mxu0 0
        %6573 = vmatprep.subr.bf16.mxu0 0
        %6574 = vmatpush1.bf16.msra.mxu0 0
        %6575 = vmatprep.subr.bf16.mxu0 0
        %6576 = vmatpush1.bf16.msra.mxu0 0
        %6577 = vmatprep.subr.bf16.mxu0 0
        %6578 = vmatpush1.bf16.msra.mxu0 0
        %6579 = vmatprep.subr.bf16.mxu0 0
        %6580 = vmatpush1.bf16.msra.mxu0 0
        %6581 = vmatprep.subr.bf16.mxu0 0
        %6582 = vmatpush1.bf16.msra.mxu0 0
        %6583 = vmatprep.subr.bf16.mxu0 0
        %6584 = vmatpush1.bf16.msra.mxu0 0
        %6585 = vmatprep.subr.bf16.mxu0 0
        %6586 = vmatpush1.bf16.msra.mxu0 0
        %6587 = vmatprep.subr.bf16.mxu0 0
        %6588 = vmatpush1.bf16.msra.mxu0 0
        %6589 = vmatprep.subr.bf16.mxu0 0
        %6590 = vmatpush1.bf16.msra.mxu0 0
        %6591 = vmatprep.mubr.bf16.mxu0 0
        %6592 = vmatmul.mubr.bf16.gmra.mrb[0].mxu0 %v6452
        %v6593 = vpop.f32.mrb[0].mxu0
        %v6594 = vadd.f32 0.0, %v6593
        %v6595 = vpop.f32.mrb[0].mxu0
        %v6596 = vpop.f32.mrb[0].mxu0
        %v6597 = vpop.f32.mrb[0].mxu0
        %6598 = vdwg.mxu0
        %v6601 = vunpack.c.l.s4 1983009808
        %v6602 = vunpack.c.0.s8 %v6601
        %v6603 = vlaneseq
        %v6604 = vshrl.u32 %v6603, 7
        %v6605 = vsub.s32 %v6602, %v6604
        %v6606 = vrot.slane %v6594, %v6605
        %6607 = vrot.lane.b32.xlu0 %v6606, 64
        %v6608 = vpop.permute.xlu0 %6607
        %v6610 = vadd.f32 %v5217, %v6608
        %v6611 = vtanh.pop %v6610
        %6612 = vmatprep.subr.bf16.mxu0 0
        %6613 = vmatpush1.bf16.msra.mxu0 %v5407
        %6614 = vmatprep.subr.bf16.mxu0 0
        %6615 = vmatpush1.bf16.msra.mxu0 %v5409
        %6616 = vmatprep.subr.bf16.mxu0 0
        %6617 = vmatpush1.bf16.msra.mxu0 0
        %6618 = vmatprep.subr.bf16.mxu0 0
        %6619 = vmatpush1.bf16.msra.mxu0 0
        %6620 = vmatprep.subr.bf16.mxu0 0
        %6621 = vmatpush1.bf16.msra.mxu0 0
        %6622 = vmatprep.subr.bf16.mxu0 0
        %6623 = vmatpush1.bf16.msra.mxu0 0
        %6624 = vmatprep.subr.bf16.mxu0 0
        %6625 = vmatpush1.bf16.msra.mxu0 0
        %6626 = vmatprep.subr.bf16.mxu0 0
        %6627 = vmatpush1.bf16.msra.mxu0 0
        %6628 = vmatprep.subr.bf16.mxu0 0
        %6629 = vmatpush1.bf16.msra.mxu0 0
        %6630 = vmatprep.subr.bf16.mxu0 0
        %6631 = vmatpush1.bf16.msra.mxu0 0
        %6632 = vmatprep.subr.bf16.mxu0 0
        %6633 = vmatpush1.bf16.msra.mxu0 0
        %6634 = vmatprep.subr.bf16.mxu0 0
        %6635 = vmatpush1.bf16.msra.mxu0 0
        %6636 = vmatprep.subr.bf16.mxu0 0
        %6637 = vmatpush1.bf16.msra.mxu0 0
        %6638 = vmatprep.subr.bf16.mxu0 0
        %6639 = vmatpush1.bf16.msra.mxu0 0
        %6640 = vmatprep.subr.bf16.mxu0 0
        %6641 = vmatpush1.bf16.msra.mxu0 0
        %6642 = vmatprep.subr.bf16.mxu0 0
        %6643 = vmatpush1.bf16.msra.mxu0 0
        %6644 = vmatprep.mubr.bf16.mxu0 0
        %6645 = vmatmul.mubr.bf16.gmra.mrb[0].mxu0 %v6452
        %v6646 = vpop.f32.mrb[0].mxu0
        %v6647 = vadd.f32 0.0, %v6646
        %v6648 = vpop.f32.mrb[0].mxu0
        %v6649 = vpop.f32.mrb[0].mxu0
        %v6650 = vpop.f32.mrb[0].mxu0
        %6651 = vdwg.mxu0
        %v6654 = vunpack.c.l.s4 1983009808
        %v6655 = vunpack.c.0.s8 %v6654
        %v6656 = vlaneseq
        %v6657 = vshrl.u32 %v6656, 7
        %v6658 = vsub.s32 %v6655, %v6657
        %v6659 = vrot.slane %v6647, %v6658
        %6660 = vrot.lane.b32.xlu0 %v6659, 96
        %v6661 = vpop.permute.xlu0 %6660
        %v6663 = vadd.f32 %v5217, %v6661
        %v6664 = vxor.u32 %v6663, 2147483648
        %v6665 = vmul.f32 %v6664, 1.442695
        %v6666 = vpow.pop %v6665
        %v6667 = vadd.f32 %v6666, 1.0
        %v6668 = vrcp.pop %v6667
        %v6669 = vmul.f32 1.0, %v6668
        %v6670 = vmul.f32 %v6558, %v6440
        %6672 = vrot.lane.b32.xlu0 %v6611, 64
        %v6673 = vpop.permute.xlu0 %6672
        %v6675 = vmul.f32 %v6500, %v6673
        %6677 = vrot.lane.b32.xlu0 %v6675, 32
        %v6678 = vpop.permute.xlu0 %6677
        %v6680 = vadd.f32 %v6670, %v6678
        %v6681 = vtanh.pop %v6680
        %6683 = vrot.lane.b32.xlu0 %v6681, 64
        %v6684 = vpop.permute.xlu0 %6683
        %v6686 = vmul.f32 %v6669, %v6684
        %v6687 = vld [vmem:[%s727] sm:$0xf]
        %v6688 = vld [vmem:[%s727 + $0x4] sm:$0xf]
        %v6689 = vld [vmem:[%s727 + $0x8] sm:$0xf]
        %v6690 = vld [vmem:[%s727 + $0xc] sm:$0xf]
        %v6691 = vld [vmem:[%s736] sm:$0xf]
        %v6692 = vld [vmem:[%s736 + $0x4] sm:$0xf]
        %v6693 = vld [vmem:[%s736 + $0x8] sm:$0xf]
        %v6694 = vld [vmem:[%s736 + $0xc] sm:$0xf]
        %v6695 = vld [vmem:[%s744] sm:$0x1]
        %v6696 = vpack.c.bf16 %v6686, %v6686
        %v6698 = vlaneseq
        %v6699 = vshrl.u32 %v6698, 7
        %v6700 = vsub.s32 0, %v6699
        %v6701 = vrot.slane %v6695, %v6700
        %v6703 = vcombine.low %v5487, %v5727
        %v6704 = vcombine.low %v5967, %v6207
        %v6705 = vcombine.low %v6447, %v6696
        %v6707 = vunpack.c.l.s4 1966171168
        %v6708 = vunpack.c.0.s8 %v6707
        %v6709 = vlaneseq
        %v6710 = vshrl.u32 %v6709, 7
        %v6711 = vsub.s32 %v6708, %v6710
        %v6712 = vrot.slane %v6703, %v6711
        %v6714 = vunpack.c.l.s4 1966171168
        %v6715 = vunpack.c.0.s8 %v6714
        %v6716 = vlaneseq
        %v6717 = vshrl.u32 %v6716, 7
        %v6718 = vsub.s32 %v6715, %v6717
        %v6719 = vrot.slane %v6704, %v6718
        %v6721 = vunpack.c.l.s4 1966171168
        %v6722 = vunpack.c.0.s8 %v6721
        %v6723 = vlaneseq
        %v6724 = vshrl.u32 %v6723, 7
        %v6725 = vsub.s32 %v6722, %v6724
        %v6726 = vrot.slane %v6705, %v6725
        %v6727 = vcombine.low %v6712, %v6719
        %v6729 = vunpack.c.l.s4 1966171168
        %v6730 = vunpack.c.0.s8 %v6729
        %v6731 = vlaneseq
        %v6732 = vshrl.u32 %v6731, 7
        %v6733 = vsub.s32 %v6730, %v6732
        %v6734 = vrot.slane %v6727, %v6733
        %v6736 = vunpack.c.l.s4 1966171168
        %v6737 = vunpack.c.0.s8 %v6736
        %v6738 = vlaneseq
        %v6739 = vshrl.u32 %v6738, 7
        %v6740 = vsub.s32 %v6737, %v6739
        %v6741 = vrot.slane %v6726, %v6740
        %v6742 = vcombine.low %v6734, %v6741
        %6743 = vrot.lane.b32.xlu0 %v6742, 32
        %v6744 = vpop.permute.xlu0 %6743
        %v6749 = vunpack.c.l.b16 %v6687
        %v6750 = vunpack.c.l.b16 %v6688
        %v6751 = vunpack.c.l.b16 %v6689
        %v6752 = vunpack.c.l.b16 %v6690
        %v6753 = vpack.c.b16 %v6750, %v6749
        %v6754 = vpack.c.b16 %v6752, %v6751
        %v6757 = vcombine.low %v6701, %v6701
        %v6759 = vunpack.c.l.s4 1983009808
        %v6760 = vunpack.c.0.s8 %v6759
        %v6761 = vlaneseq
        %v6762 = vshrl.u32 %v6761, 7
        %v6763 = vsub.s32 %v6760, %v6762
        %v6764 = vrot.slane %v6757, %v6763
        %v6765 = vcombine.low %v6764, %v6764
        %v6769 = vsel %vm1498, %v6744, 0
        %6771 = vmatprep.subr.bf16.mxu0 0
        %6772 = vmatpush1.bf16.msra.mxu0 %v6753
        %6773 = vmatprep.subr.bf16.mxu0 0
        %6774 = vmatpush1.bf16.msra.mxu0 %v6754
        %6775 = vmatprep.subr.bf16.mxu0 0
        %6776 = vmatpush1.bf16.msra.mxu0 0
        %6777 = vmatprep.subr.bf16.mxu0 0
        %6778 = vmatpush1.bf16.msra.mxu0 0
        %6779 = vmatprep.subr.bf16.mxu0 0
        %6780 = vmatpush1.bf16.msra.mxu0 0
        %6781 = vmatprep.subr.bf16.mxu0 0
        %6782 = vmatpush1.bf16.msra.mxu0 0
        %6783 = vmatprep.subr.bf16.mxu0 0
        %6784 = vmatpush1.bf16.msra.mxu0 0
        %6785 = vmatprep.subr.bf16.mxu0 0
        %6786 = vmatpush1.bf16.msra.mxu0 0
        %6787 = vmatprep.subr.bf16.mxu0 0
        %6788 = vmatpush1.bf16.msra.mxu0 0
        %6789 = vmatprep.subr.bf16.mxu0 0
        %6790 = vmatpush1.bf16.msra.mxu0 0
        %6791 = vmatprep.subr.bf16.mxu0 0
        %6792 = vmatpush1.bf16.msra.mxu0 0
        %6793 = vmatprep.subr.bf16.mxu0 0
        %6794 = vmatpush1.bf16.msra.mxu0 0
        %6795 = vmatprep.subr.bf16.mxu0 0
        %6796 = vmatpush1.bf16.msra.mxu0 0
        %6797 = vmatprep.subr.bf16.mxu0 0
        %6798 = vmatpush1.bf16.msra.mxu0 0
        %6799 = vmatprep.subr.bf16.mxu0 0
        %6800 = vmatpush1.bf16.msra.mxu0 0
        %6801 = vmatprep.subr.bf16.mxu0 0
        %6802 = vmatpush1.bf16.msra.mxu0 0
        %6803 = vmatprep.mubr.bf16.mxu0 0
        %6804 = vmatmul.mubr.bf16.gmra.mrb[0].mxu0 %v6769
        %v6805 = vpop.f32.mrb[0].mxu0
        %v6806 = vadd.f32 %v6765, %v6805
        %v6807 = vpop.f32.mrb[0].mxu0
        %v6808 = vpop.f32.mrb[0].mxu0
        %v6809 = vadd.f32 %v6764, %v6808
        %v6810 = vpop.f32.mrb[0].mxu0
        %6811 = vdwg.mxu0
        %v6814 = vcombine.high %v6806, %v6806
        %v6816 = vunpack.c.l.s4 1983009808
        %v6817 = vunpack.c.0.s8 %v6816
        %v6818 = vlaneseq
        %v6819 = vshrl.u32 %v6818, 7
        %v6820 = vsub.s32 %v6817, %v6819
        %v6821 = vrot.slane %v6806, %v6820
        %v6823 = vunpack.c.l.s4 1983009808
        %v6824 = vunpack.c.0.s8 %v6823
        %v6825 = vlaneseq
        %v6826 = vshrl.u32 %v6825, 7
        %v6827 = vsub.s32 %v6824, %v6826
        %v6828 = vrot.slane %v6814, %v6827
        %v6829 = vcombine.high %v6821, %v6821
        %v6830 = vcombine.high %v6828, %v6828
        %v6832 = vunpack.c.l.s4 1983009808
        %v6833 = vunpack.c.0.s8 %v6832
        %v6834 = vlaneseq
        %v6835 = vshrl.u32 %v6834, 7
        %v6836 = vsub.s32 %v6833, %v6835
        %v6837 = vrot.slane %v6809, %v6836
        %v6838 = vcombine.high %v6837, %v6837
        %v6849 = vunpack.c.l.b16 %v6691
        %v6850 = vunpack.c.l.b16 %v6692
        %v6851 = vunpack.c.l.b16 %v6693
        %v6852 = vunpack.c.l.b16 %v6694
        %v6853 = vpack.c.b16 %v6850, %v6849
        %v6854 = vpack.c.b16 %v6852, %v6851
        %6857 = vmatprep.subr.bf16.mxu0 0
        %6858 = vmatpush1.bf16.msra.mxu0 %v6853
        %6859 = vmatprep.subr.bf16.mxu0 0
        %6860 = vmatpush1.bf16.msra.mxu0 %v6854
        %6861 = vmatprep.subr.bf16.mxu0 0
        %6862 = vmatpush1.bf16.msra.mxu0 0
        %6863 = vmatprep.subr.bf16.mxu0 0
        %6864 = vmatpush1.bf16.msra.mxu0 0
        %6865 = vmatprep.subr.bf16.mxu0 0
        %6866 = vmatpush1.bf16.msra.mxu0 0
        %6867 = vmatprep.subr.bf16.mxu0 0
        %6868 = vmatpush1.bf16.msra.mxu0 0
        %6869 = vmatprep.subr.bf16.mxu0 0
        %6870 = vmatpush1.bf16.msra.mxu0 0
        %6871 = vmatprep.subr.bf16.mxu0 0
        %6872 = vmatpush1.bf16.msra.mxu0 0
        %6873 = vmatprep.subr.bf16.mxu0 0
        %6874 = vmatpush1.bf16.msra.mxu0 0
        %6875 = vmatprep.subr.bf16.mxu0 0
        %6876 = vmatpush1.bf16.msra.mxu0 0
        %6877 = vmatprep.subr.bf16.mxu0 0
        %6878 = vmatpush1.bf16.msra.mxu0 0
        %6879 = vmatprep.subr.bf16.mxu0 0
        %6880 = vmatpush1.bf16.msra.mxu0 0
        %6881 = vmatprep.subr.bf16.mxu0 0
        %6882 = vmatpush1.bf16.msra.mxu0 0
        %6883 = vmatprep.subr.bf16.mxu0 0
        %6884 = vmatpush1.bf16.msra.mxu0 0
        %6885 = vmatprep.subr.bf16.mxu0 0
        %6886 = vmatpush1.bf16.msra.mxu0 0
        %6887 = vmatprep.subr.bf16.mxu0 0
        %6888 = vmatpush1.bf16.msra.mxu0 0
        %6889 = vmatprep.mubr.bf16.mxu0 0
        %6890 = vmatmul.mubr.bf16.gmra.mrb[0].mxu0 %v1992
        %v6891 = vpop.f32.mrb[0].mxu0
        %v6892 = vadd.f32 0.0, %v6891
        %v6893 = vpop.f32.mrb[0].mxu0
        %v6894 = vpop.f32.mrb[0].mxu0
        %v6895 = vpop.f32.mrb[0].mxu0
        %6896 = vdwg.mxu0
        %v6897 = vadd.f32 %v6821, %v6892
        %v6898 = vxor.u32 %v6897, 2147483648
        %v6899 = vmul.f32 %v6898, 1.442695
        %v6900 = vpow.pop %v6899
        %v6901 = vadd.f32 %v6900, 1.0
        %v6902 = vrcp.pop %v6901
        %v6903 = vmul.f32 1.0, %v6902
        %6904 = vrot.lane.b32.xlu0 %v6853, 96
        %v6905 = vpop.permute.xlu0 %6904
        %6906 = vrot.lane.b32.xlu0 %v6854, 96
        %v6907 = vpop.permute.xlu0 %6906
        %6910 = vmatprep.subr.bf16.mxu0 0
        %6911 = vmatpush1.bf16.msra.mxu0 %v6905
        %6912 = vmatprep.subr.bf16.mxu0 0
        %6913 = vmatpush1.bf16.msra.mxu0 %v6907
        %6914 = vmatprep.subr.bf16.mxu0 0
        %6915 = vmatpush1.bf16.msra.mxu0 0
        %6916 = vmatprep.subr.bf16.mxu0 0
        %6917 = vmatpush1.bf16.msra.mxu0 0
        %6918 = vmatprep.subr.bf16.mxu0 0
        %6919 = vmatpush1.bf16.msra.mxu0 0
        %6920 = vmatprep.subr.bf16.mxu0 0
        %6921 = vmatpush1.bf16.msra.mxu0 0
        %6922 = vmatprep.subr.bf16.mxu0 0
        %6923 = vmatpush1.bf16.msra.mxu0 0
        %6924 = vmatprep.subr.bf16.mxu0 0
        %6925 = vmatpush1.bf16.msra.mxu0 0
        %6926 = vmatprep.subr.bf16.mxu0 0
        %6927 = vmatpush1.bf16.msra.mxu0 0
        %6928 = vmatprep.subr.bf16.mxu0 0
        %6929 = vmatpush1.bf16.msra.mxu0 0
        %6930 = vmatprep.subr.bf16.mxu0 0
        %6931 = vmatpush1.bf16.msra.mxu0 0
        %6932 = vmatprep.subr.bf16.mxu0 0
        %6933 = vmatpush1.bf16.msra.mxu0 0
        %6934 = vmatprep.subr.bf16.mxu0 0
        %6935 = vmatpush1.bf16.msra.mxu0 0
        %6936 = vmatprep.subr.bf16.mxu0 0
        %6937 = vmatpush1.bf16.msra.mxu0 0
        %6938 = vmatprep.subr.bf16.mxu0 0
        %6939 = vmatpush1.bf16.msra.mxu0 0
        %6940 = vmatprep.subr.bf16.mxu0 0
        %6941 = vmatpush1.bf16.msra.mxu0 0
        %6942 = vmatprep.mubr.bf16.mxu0 0
        %6943 = vmatmul.mubr.bf16.gmra.mrb[0].mxu0 %v1992
        %v6944 = vpop.f32.mrb[0].mxu0
        %v6945 = vadd.f32 0.0, %v6944
        %v6946 = vpop.f32.mrb[0].mxu0
        %v6947 = vpop.f32.mrb[0].mxu0
        %v6948 = vpop.f32.mrb[0].mxu0
        %6949 = vdwg.mxu0
        %v6952 = vunpack.c.l.s4 1983009808
        %v6953 = vunpack.c.0.s8 %v6952
        %v6954 = vlaneseq
        %v6955 = vshrl.u32 %v6954, 7
        %v6956 = vsub.s32 %v6953, %v6955
        %v6957 = vrot.slane %v6945, %v6956
        %6958 = vrot.lane.b32.xlu0 %v6957, 32
        %v6959 = vpop.permute.xlu0 %6958
        %v6961 = vadd.f32 %v6821, %v6959
        %v6962 = vxor.u32 %v6961, 2147483648
        %v6963 = vmul.f32 %v6962, 1.442695
        %v6964 = vpow.pop %v6963
        %v6965 = vadd.f32 %v6964, 1.0
        %v6966 = vrcp.pop %v6965
        %v6967 = vmul.f32 1.0, %v6966
        %6968 = vrot.lane.b32.xlu0 %v6853, 64
        %v6969 = vpop.permute.xlu0 %6968
        %6970 = vrot.lane.b32.xlu0 %v6854, 64
        %v6971 = vpop.permute.xlu0 %6970
        %6974 = vmatprep.subr.bf16.mxu0 0
        %6975 = vmatpush1.bf16.msra.mxu0 %v6969
        %6976 = vmatprep.subr.bf16.mxu0 0
        %6977 = vmatpush1.bf16.msra.mxu0 %v6971
        %6978 = vmatprep.subr.bf16.mxu0 0
        %6979 = vmatpush1.bf16.msra.mxu0 0
        %6980 = vmatprep.subr.bf16.mxu0 0
        %6981 = vmatpush1.bf16.msra.mxu0 0
        %6982 = vmatprep.subr.bf16.mxu0 0
        %6983 = vmatpush1.bf16.msra.mxu0 0
        %6984 = vmatprep.subr.bf16.mxu0 0
        %6985 = vmatpush1.bf16.msra.mxu0 0
        %6986 = vmatprep.subr.bf16.mxu0 0
        %6987 = vmatpush1.bf16.msra.mxu0 0
        %6988 = vmatprep.subr.bf16.mxu0 0
        %6989 = vmatpush1.bf16.msra.mxu0 0
        %6990 = vmatprep.subr.bf16.mxu0 0
        %6991 = vmatpush1.bf16.msra.mxu0 0
        %6992 = vmatprep.subr.bf16.mxu0 0
        %6993 = vmatpush1.bf16.msra.mxu0 0
        %6994 = vmatprep.subr.bf16.mxu0 0
        %6995 = vmatpush1.bf16.msra.mxu0 0
        %6996 = vmatprep.subr.bf16.mxu0 0
        %6997 = vmatpush1.bf16.msra.mxu0 0
        %6998 = vmatprep.subr.bf16.mxu0 0
        %6999 = vmatpush1.bf16.msra.mxu0 0
        %7000 = vmatprep.subr.bf16.mxu0 0
        %7001 = vmatpush1.bf16.msra.mxu0 0
        %7002 = vmatprep.subr.bf16.mxu0 0
        %7003 = vmatpush1.bf16.msra.mxu0 0
        %7004 = vmatprep.subr.bf16.mxu0 0
        %7005 = vmatpush1.bf16.msra.mxu0 0
        %7006 = vmatprep.mubr.bf16.mxu0 0
        %7007 = vmatmul.mubr.bf16.gmra.mrb[0].mxu0 %v1992
        %v7008 = vpop.f32.mrb[0].mxu0
        %v7009 = vadd.f32 0.0, %v7008
        %v7010 = vpop.f32.mrb[0].mxu0
        %v7011 = vpop.f32.mrb[0].mxu0
        %v7012 = vpop.f32.mrb[0].mxu0
        %7013 = vdwg.mxu0
        %v7016 = vunpack.c.l.s4 1983009808
        %v7017 = vunpack.c.0.s8 %v7016
        %v7018 = vlaneseq
        %v7019 = vshrl.u32 %v7018, 7
        %v7020 = vsub.s32 %v7017, %v7019
        %v7021 = vrot.slane %v7009, %v7020
        %7022 = vrot.lane.b32.xlu0 %v7021, 64
        %v7023 = vpop.permute.xlu0 %7022
        %v7025 = vadd.f32 %v6821, %v7023
        %v7026 = vtanh.pop %v7025
        %7027 = vrot.lane.b32.xlu0 %v6853, 32
        %v7028 = vpop.permute.xlu0 %7027
        %7029 = vrot.lane.b32.xlu0 %v6854, 32
        %v7030 = vpop.permute.xlu0 %7029
        %7033 = vmatprep.subr.bf16.mxu0 0
        %7034 = vmatpush1.bf16.msra.mxu0 %v7028
        %7035 = vmatprep.subr.bf16.mxu0 0
        %7036 = vmatpush1.bf16.msra.mxu0 %v7030
        %7037 = vmatprep.subr.bf16.mxu0 0
        %7038 = vmatpush1.bf16.msra.mxu0 0
        %7039 = vmatprep.subr.bf16.mxu0 0
        %7040 = vmatpush1.bf16.msra.mxu0 0
        %7041 = vmatprep.subr.bf16.mxu0 0
        %7042 = vmatpush1.bf16.msra.mxu0 0
        %7043 = vmatprep.subr.bf16.mxu0 0
        %7044 = vmatpush1.bf16.msra.mxu0 0
        %7045 = vmatprep.subr.bf16.mxu0 0
        %7046 = vmatpush1.bf16.msra.mxu0 0
        %7047 = vmatprep.subr.bf16.mxu0 0
        %7048 = vmatpush1.bf16.msra.mxu0 0
        %7049 = vmatprep.subr.bf16.mxu0 0
        %7050 = vmatpush1.bf16.msra.mxu0 0
        %7051 = vmatprep.subr.bf16.mxu0 0
        %7052 = vmatpush1.bf16.msra.mxu0 0
        %7053 = vmatprep.subr.bf16.mxu0 0
        %7054 = vmatpush1.bf16.msra.mxu0 0
        %7055 = vmatprep.subr.bf16.mxu0 0
        %7056 = vmatpush1.bf16.msra.mxu0 0
        %7057 = vmatprep.subr.bf16.mxu0 0
        %7058 = vmatpush1.bf16.msra.mxu0 0
        %7059 = vmatprep.subr.bf16.mxu0 0
        %7060 = vmatpush1.bf16.msra.mxu0 0
        %7061 = vmatprep.subr.bf16.mxu0 0
        %7062 = vmatpush1.bf16.msra.mxu0 0
        %7063 = vmatprep.subr.bf16.mxu0 0
        %7064 = vmatpush1.bf16.msra.mxu0 0
        %7065 = vmatprep.mubr.bf16.mxu0 0
        %7066 = vmatmul.mubr.bf16.gmra.mrb[0].mxu0 %v1992
        %v7067 = vpop.f32.mrb[0].mxu0
        %v7068 = vadd.f32 0.0, %v7067
        %v7069 = vpop.f32.mrb[0].mxu0
        %v7070 = vpop.f32.mrb[0].mxu0
        %v7071 = vpop.f32.mrb[0].mxu0
        %7072 = vdwg.mxu0
        %v7075 = vunpack.c.l.s4 1983009808
        %v7076 = vunpack.c.0.s8 %v7075
        %v7077 = vlaneseq
        %v7078 = vshrl.u32 %v7077, 7
        %v7079 = vsub.s32 %v7076, %v7078
        %v7080 = vrot.slane %v7068, %v7079
        %7081 = vrot.lane.b32.xlu0 %v7080, 96
        %v7082 = vpop.permute.xlu0 %7081
        %v7084 = vadd.f32 %v6821, %v7082
        %v7085 = vxor.u32 %v7084, 2147483648
        %v7086 = vmul.f32 %v7085, 1.442695
        %v7087 = vpow.pop %v7086
        %v7088 = vadd.f32 %v7087, 1.0
        %v7089 = vrcp.pop %v7088
        %v7090 = vmul.f32 1.0, %v7089
        %v7091 = vmul.f32 %v6967, 0.0
        %7093 = vrot.lane.b32.xlu0 %v7026, 64
        %v7094 = vpop.permute.xlu0 %7093
        %v7096 = vmul.f32 %v6903, %v7094
        %7098 = vrot.lane.b32.xlu0 %v7096, 32
        %v7099 = vpop.permute.xlu0 %7098
        %v7101 = vadd.f32 %v7091, %v7099
        %v7102 = vtanh.pop %v7101
        %7104 = vrot.lane.b32.xlu0 %v7102, 64
        %v7105 = vpop.permute.xlu0 %7104
        %v7107 = vmul.f32 %v7090, %v7105
        %v7108 = vpack.c.bf16 %v7107, %v7107
        %7110 = vrot.lane.b32.xlu0 %v7108, 32
        %v7111 = vpop.permute.xlu0 %7110
        %v7113 = vsel %vm1498, %v7111, 0
        %7115 = vmatprep.subr.bf16.mxu0 0
        %7116 = vmatpush1.bf16.msra.mxu0 %v6853
        %7117 = vmatprep.subr.bf16.mxu0 0
        %7118 = vmatpush1.bf16.msra.mxu0 %v6854
        %7119 = vmatprep.subr.bf16.mxu0 0
        %7120 = vmatpush1.bf16.msra.mxu0 0
        %7121 = vmatprep.subr.bf16.mxu0 0
        %7122 = vmatpush1.bf16.msra.mxu0 0
        %7123 = vmatprep.subr.bf16.mxu0 0
        %7124 = vmatpush1.bf16.msra.mxu0 0
        %7125 = vmatprep.subr.bf16.mxu0 0
        %7126 = vmatpush1.bf16.msra.mxu0 0
        %7127 = vmatprep.subr.bf16.mxu0 0
        %7128 = vmatpush1.bf16.msra.mxu0 0
        %7129 = vmatprep.subr.bf16.mxu0 0
        %7130 = vmatpush1.bf16.msra.mxu0 0
        %7131 = vmatprep.subr.bf16.mxu0 0
        %7132 = vmatpush1.bf16.msra.mxu0 0
        %7133 = vmatprep.subr.bf16.mxu0 0
        %7134 = vmatpush1.bf16.msra.mxu0 0
        %7135 = vmatprep.subr.bf16.mxu0 0
        %7136 = vmatpush1.bf16.msra.mxu0 0
        %7137 = vmatprep.subr.bf16.mxu0 0
        %7138 = vmatpush1.bf16.msra.mxu0 0
        %7139 = vmatprep.subr.bf16.mxu0 0
        %7140 = vmatpush1.bf16.msra.mxu0 0
        %7141 = vmatprep.subr.bf16.mxu0 0
        %7142 = vmatpush1.bf16.msra.mxu0 0
        %7143 = vmatprep.subr.bf16.mxu0 0
        %7144 = vmatpush1.bf16.msra.mxu0 0
        %7145 = vmatprep.subr.bf16.mxu0 0
        %7146 = vmatpush1.bf16.msra.mxu0 0
        %7147 = vmatprep.mubr.bf16.mxu0 0
        %7148 = vmatmul.mubr.bf16.gmra.mrb[0].mxu0 %v7113
        %v7149 = vpop.f32.mrb[0].mxu0
        %v7150 = vadd.f32 0.0, %v7149
        %v7151 = vpop.f32.mrb[0].mxu0
        %v7152 = vpop.f32.mrb[0].mxu0
        %v7153 = vpop.f32.mrb[0].mxu0
        %7154 = vdwg.mxu0
        %v7155 = vadd.f32 %v6829, %v7150
        %v7156 = vxor.u32 %v7155, 2147483648
        %v7157 = vmul.f32 %v7156, 1.442695
        %v7158 = vpow.pop %v7157
        %v7159 = vadd.f32 %v7158, 1.0
        %v7160 = vrcp.pop %v7159
        %v7161 = vmul.f32 1.0, %v7160
        %7162 = vmatprep.subr.bf16.mxu0 0
        %7163 = vmatpush1.bf16.msra.mxu0 %v6905
        %7164 = vmatprep.subr.bf16.mxu0 0
        %7165 = vmatpush1.bf16.msra.mxu0 %v6907
        %7166 = vmatprep.subr.bf16.mxu0 0
        %7167 = vmatpush1.bf16.msra.mxu0 0
        %7168 = vmatprep.subr.bf16.mxu0 0
        %7169 = vmatpush1.bf16.msra.mxu0 0
        %7170 = vmatprep.subr.bf16.mxu0 0
        %7171 = vmatpush1.bf16.msra.mxu0 0
        %7172 = vmatprep.subr.bf16.mxu0 0
        %7173 = vmatpush1.bf16.msra.mxu0 0
        %7174 = vmatprep.subr.bf16.mxu0 0
        %7175 = vmatpush1.bf16.msra.mxu0 0
        %7176 = vmatprep.subr.bf16.mxu0 0
        %7177 = vmatpush1.bf16.msra.mxu0 0
        %7178 = vmatprep.subr.bf16.mxu0 0
        %7179 = vmatpush1.bf16.msra.mxu0 0
        %7180 = vmatprep.subr.bf16.mxu0 0
        %7181 = vmatpush1.bf16.msra.mxu0 0
        %7182 = vmatprep.subr.bf16.mxu0 0
        %7183 = vmatpush1.bf16.msra.mxu0 0
        %7184 = vmatprep.subr.bf16.mxu0 0
        %7185 = vmatpush1.bf16.msra.mxu0 0
        %7186 = vmatprep.subr.bf16.mxu0 0
        %7187 = vmatpush1.bf16.msra.mxu0 0
        %7188 = vmatprep.subr.bf16.mxu0 0
        %7189 = vmatpush1.bf16.msra.mxu0 0
        %7190 = vmatprep.subr.bf16.mxu0 0
        %7191 = vmatpush1.bf16.msra.mxu0 0
        %7192 = vmatprep.subr.bf16.mxu0 0
        %7193 = vmatpush1.bf16.msra.mxu0 0
        %7194 = vmatprep.mubr.bf16.mxu0 0
        %7195 = vmatmul.mubr.bf16.gmra.mrb[0].mxu0 %v7113
        %v7196 = vpop.f32.mrb[0].mxu0
        %v7197 = vadd.f32 0.0, %v7196
        %v7198 = vpop.f32.mrb[0].mxu0
        %v7199 = vpop.f32.mrb[0].mxu0
        %v7200 = vpop.f32.mrb[0].mxu0
        %7201 = vdwg.mxu0
        %v7204 = vunpack.c.l.s4 1983009808
        %v7205 = vunpack.c.0.s8 %v7204
        %v7206 = vlaneseq
        %v7207 = vshrl.u32 %v7206, 7
        %v7208 = vsub.s32 %v7205, %v7207
        %v7209 = vrot.slane %v7197, %v7208
        %7210 = vrot.lane.b32.xlu0 %v7209, 32
        %v7211 = vpop.permute.xlu0 %7210
        %v7213 = vadd.f32 %v6829, %v7211
        %v7214 = vxor.u32 %v7213, 2147483648
        %v7215 = vmul.f32 %v7214, 1.442695
        %v7216 = vpow.pop %v7215
        %v7217 = vadd.f32 %v7216, 1.0
        %v7218 = vrcp.pop %v7217
        %v7219 = vmul.f32 1.0, %v7218
        %7220 = vmatprep.subr.bf16.mxu0 0
        %7221 = vmatpush1.bf16.msra.mxu0 %v6969
        %7222 = vmatprep.subr.bf16.mxu0 0
        %7223 = vmatpush1.bf16.msra.mxu0 %v6971
        %7224 = vmatprep.subr.bf16.mxu0 0
        %7225 = vmatpush1.bf16.msra.mxu0 0
        %7226 = vmatprep.subr.bf16.mxu0 0
        %7227 = vmatpush1.bf16.msra.mxu0 0
        %7228 = vmatprep.subr.bf16.mxu0 0
        %7229 = vmatpush1.bf16.msra.mxu0 0
        %7230 = vmatprep.subr.bf16.mxu0 0
        %7231 = vmatpush1.bf16.msra.mxu0 0
        %7232 = vmatprep.subr.bf16.mxu0 0
        %7233 = vmatpush1.bf16.msra.mxu0 0
        %7234 = vmatprep.subr.bf16.mxu0 0
        %7235 = vmatpush1.bf16.msra.mxu0 0
        %7236 = vmatprep.subr.bf16.mxu0 0
        %7237 = vmatpush1.bf16.msra.mxu0 0
        %7238 = vmatprep.subr.bf16.mxu0 0
        %7239 = vmatpush1.bf16.msra.mxu0 0
        %7240 = vmatprep.subr.bf16.mxu0 0
        %7241 = vmatpush1.bf16.msra.mxu0 0
        %7242 = vmatprep.subr.bf16.mxu0 0
        %7243 = vmatpush1.bf16.msra.mxu0 0
        %7244 = vmatprep.subr.bf16.mxu0 0
        %7245 = vmatpush1.bf16.msra.mxu0 0
        %7246 = vmatprep.subr.bf16.mxu0 0
        %7247 = vmatpush1.bf16.msra.mxu0 0
        %7248 = vmatprep.subr.bf16.mxu0 0
        %7249 = vmatpush1.bf16.msra.mxu0 0
        %7250 = vmatprep.subr.bf16.mxu0 0
        %7251 = vmatpush1.bf16.msra.mxu0 0
        %7252 = vmatprep.mubr.bf16.mxu0 0
        %7253 = vmatmul.mubr.bf16.gmra.mrb[0].mxu0 %v7113
        %v7254 = vpop.f32.mrb[0].mxu0
        %v7255 = vadd.f32 0.0, %v7254
        %v7256 = vpop.f32.mrb[0].mxu0
        %v7257 = vpop.f32.mrb[0].mxu0
        %v7258 = vpop.f32.mrb[0].mxu0
        %7259 = vdwg.mxu0
        %v7262 = vunpack.c.l.s4 1983009808
        %v7263 = vunpack.c.0.s8 %v7262
        %v7264 = vlaneseq
        %v7265 = vshrl.u32 %v7264, 7
        %v7266 = vsub.s32 %v7263, %v7265
        %v7267 = vrot.slane %v7255, %v7266
        %7268 = vrot.lane.b32.xlu0 %v7267, 64
        %v7269 = vpop.permute.xlu0 %7268
        %v7271 = vadd.f32 %v6829, %v7269
        %v7272 = vtanh.pop %v7271
        %7273 = vmatprep.subr.bf16.mxu0 0
        %7274 = vmatpush1.bf16.msra.mxu0 %v7028
        %7275 = vmatprep.subr.bf16.mxu0 0
        %7276 = vmatpush1.bf16.msra.mxu0 %v7030
        %7277 = vmatprep.subr.bf16.mxu0 0
        %7278 = vmatpush1.bf16.msra.mxu0 0
        %7279 = vmatprep.subr.bf16.mxu0 0
        %7280 = vmatpush1.bf16.msra.mxu0 0
        %7281 = vmatprep.subr.bf16.mxu0 0
        %7282 = vmatpush1.bf16.msra.mxu0 0
        %7283 = vmatprep.subr.bf16.mxu0 0
        %7284 = vmatpush1.bf16.msra.mxu0 0
        %7285 = vmatprep.subr.bf16.mxu0 0
        %7286 = vmatpush1.bf16.msra.mxu0 0
        %7287 = vmatprep.subr.bf16.mxu0 0
        %7288 = vmatpush1.bf16.msra.mxu0 0
        %7289 = vmatprep.subr.bf16.mxu0 0
        %7290 = vmatpush1.bf16.msra.mxu0 0
        %7291 = vmatprep.subr.bf16.mxu0 0
        %7292 = vmatpush1.bf16.msra.mxu0 0
        %7293 = vmatprep.subr.bf16.mxu0 0
        %7294 = vmatpush1.bf16.msra.mxu0 0
        %7295 = vmatprep.subr.bf16.mxu0 0
        %7296 = vmatpush1.bf16.msra.mxu0 0
        %7297 = vmatprep.subr.bf16.mxu0 0
        %7298 = vmatpush1.bf16.msra.mxu0 0
        %7299 = vmatprep.subr.bf16.mxu0 0
        %7300 = vmatpush1.bf16.msra.mxu0 0
        %7301 = vmatprep.subr.bf16.mxu0 0
        %7302 = vmatpush1.bf16.msra.mxu0 0
        %7303 = vmatprep.subr.bf16.mxu0 0
        %7304 = vmatpush1.bf16.msra.mxu0 0
        %7305 = vmatprep.mubr.bf16.mxu0 0
        %7306 = vmatmul.mubr.bf16.gmra.mrb[0].mxu0 %v7113
        %v7307 = vpop.f32.mrb[0].mxu0
        %v7308 = vadd.f32 0.0, %v7307
        %v7309 = vpop.f32.mrb[0].mxu0
        %v7310 = vpop.f32.mrb[0].mxu0
        %v7311 = vpop.f32.mrb[0].mxu0
        %7312 = vdwg.mxu0
        %v7315 = vunpack.c.l.s4 1983009808
        %v7316 = vunpack.c.0.s8 %v7315
        %v7317 = vlaneseq
        %v7318 = vshrl.u32 %v7317, 7
        %v7319 = vsub.s32 %v7316, %v7318
        %v7320 = vrot.slane %v7308, %v7319
        %7321 = vrot.lane.b32.xlu0 %v7320, 96
        %v7322 = vpop.permute.xlu0 %7321
        %v7324 = vadd.f32 %v6829, %v7322
        %v7325 = vxor.u32 %v7324, 2147483648
        %v7326 = vmul.f32 %v7325, 1.442695
        %v7327 = vpow.pop %v7326
        %v7328 = vadd.f32 %v7327, 1.0
        %v7329 = vrcp.pop %v7328
        %v7330 = vmul.f32 1.0, %v7329
        %v7331 = vmul.f32 %v7219, %v7101
        %7333 = vrot.lane.b32.xlu0 %v7272, 64
        %v7334 = vpop.permute.xlu0 %7333
        %v7336 = vmul.f32 %v7161, %v7334
        %7338 = vrot.lane.b32.xlu0 %v7336, 32
        %v7339 = vpop.permute.xlu0 %7338
        %v7341 = vadd.f32 %v7331, %v7339
        %v7342 = vtanh.pop %v7341
        %7344 = vrot.lane.b32.xlu0 %v7342, 64
        %v7345 = vpop.permute.xlu0 %7344
        %v7347 = vmul.f32 %v7330, %v7345
        %v7348 = vpack.c.bf16 %v7347, %v7347
        %7350 = vrot.lane.b32.xlu0 %v7348, 32
        %v7351 = vpop.permute.xlu0 %7350
        %v7353 = vsel %vm1498, %v7351, 0
        %7355 = vmatprep.subr.bf16.mxu0 0
        %7356 = vmatpush1.bf16.msra.mxu0 %v6853
        %7357 = vmatprep.subr.bf16.mxu0 0
        %7358 = vmatpush1.bf16.msra.mxu0 %v6854
        %7359 = vmatprep.subr.bf16.mxu0 0
        %7360 = vmatpush1.bf16.msra.mxu0 0
        %7361 = vmatprep.subr.bf16.mxu0 0
        %7362 = vmatpush1.bf16.msra.mxu0 0
        %7363 = vmatprep.subr.bf16.mxu0 0
        %7364 = vmatpush1.bf16.msra.mxu0 0
        %7365 = vmatprep.subr.bf16.mxu0 0
        %7366 = vmatpush1.bf16.msra.mxu0 0
        %7367 = vmatprep.subr.bf16.mxu0 0
        %7368 = vmatpush1.bf16.msra.mxu0 0
        %7369 = vmatprep.subr.bf16.mxu0 0
        %7370 = vmatpush1.bf16.msra.mxu0 0
        %7371 = vmatprep.subr.bf16.mxu0 0
        %7372 = vmatpush1.bf16.msra.mxu0 0
        %7373 = vmatprep.subr.bf16.mxu0 0
        %7374 = vmatpush1.bf16.msra.mxu0 0
        %7375 = vmatprep.subr.bf16.mxu0 0
        %7376 = vmatpush1.bf16.msra.mxu0 0
        %7377 = vmatprep.subr.bf16.mxu0 0
        %7378 = vmatpush1.bf16.msra.mxu0 0
        %7379 = vmatprep.subr.bf16.mxu0 0
        %7380 = vmatpush1.bf16.msra.mxu0 0
        %7381 = vmatprep.subr.bf16.mxu0 0
        %7382 = vmatpush1.bf16.msra.mxu0 0
        %7383 = vmatprep.subr.bf16.mxu0 0
        %7384 = vmatpush1.bf16.msra.mxu0 0
        %7385 = vmatprep.subr.bf16.mxu0 0
        %7386 = vmatpush1.bf16.msra.mxu0 0
        %7387 = vmatprep.mubr.bf16.mxu0 0
        %7388 = vmatmul.mubr.bf16.gmra.mrb[0].mxu0 %v7353
        %v7389 = vpop.f32.mrb[0].mxu0
        %v7390 = vadd.f32 0.0, %v7389
        %v7391 = vpop.f32.mrb[0].mxu0
        %v7392 = vpop.f32.mrb[0].mxu0
        %v7393 = vpop.f32.mrb[0].mxu0
        %7394 = vdwg.mxu0
        %v7395 = vadd.f32 %v6828, %v7390
        %v7396 = vxor.u32 %v7395, 2147483648
        %v7397 = vmul.f32 %v7396, 1.442695
        %v7398 = vpow.pop %v7397
        %v7399 = vadd.f32 %v7398, 1.0
        %v7400 = vrcp.pop %v7399
        %v7401 = vmul.f32 1.0, %v7400
        %7402 = vmatprep.subr.bf16.mxu0 0
        %7403 = vmatpush1.bf16.msra.mxu0 %v6905
        %7404 = vmatprep.subr.bf16.mxu0 0
        %7405 = vmatpush1.bf16.msra.mxu0 %v6907
        %7406 = vmatprep.subr.bf16.mxu0 0
        %7407 = vmatpush1.bf16.msra.mxu0 0
        %7408 = vmatprep.subr.bf16.mxu0 0
        %7409 = vmatpush1.bf16.msra.mxu0 0
        %7410 = vmatprep.subr.bf16.mxu0 0
        %7411 = vmatpush1.bf16.msra.mxu0 0
        %7412 = vmatprep.subr.bf16.mxu0 0
        %7413 = vmatpush1.bf16.msra.mxu0 0
        %7414 = vmatprep.subr.bf16.mxu0 0
        %7415 = vmatpush1.bf16.msra.mxu0 0
        %7416 = vmatprep.subr.bf16.mxu0 0
        %7417 = vmatpush1.bf16.msra.mxu0 0
        %7418 = vmatprep.subr.bf16.mxu0 0
        %7419 = vmatpush1.bf16.msra.mxu0 0
        %7420 = vmatprep.subr.bf16.mxu0 0
        %7421 = vmatpush1.bf16.msra.mxu0 0
        %7422 = vmatprep.subr.bf16.mxu0 0
        %7423 = vmatpush1.bf16.msra.mxu0 0
        %7424 = vmatprep.subr.bf16.mxu0 0
        %7425 = vmatpush1.bf16.msra.mxu0 0
        %7426 = vmatprep.subr.bf16.mxu0 0
        %7427 = vmatpush1.bf16.msra.mxu0 0
        %7428 = vmatprep.subr.bf16.mxu0 0
        %7429 = vmatpush1.bf16.msra.mxu0 0
        %7430 = vmatprep.subr.bf16.mxu0 0
        %7431 = vmatpush1.bf16.msra.mxu0 0
        %7432 = vmatprep.subr.bf16.mxu0 0
        %7433 = vmatpush1.bf16.msra.mxu0 0
        %7434 = vmatprep.mubr.bf16.mxu0 0
        %7435 = vmatmul.mubr.bf16.gmra.mrb[0].mxu0 %v7353
        %v7436 = vpop.f32.mrb[0].mxu0
        %v7437 = vadd.f32 0.0, %v7436
        %v7438 = vpop.f32.mrb[0].mxu0
        %v7439 = vpop.f32.mrb[0].mxu0
        %v7440 = vpop.f32.mrb[0].mxu0
        %7441 = vdwg.mxu0
        %v7444 = vunpack.c.l.s4 1983009808
        %v7445 = vunpack.c.0.s8 %v7444
        %v7446 = vlaneseq
        %v7447 = vshrl.u32 %v7446, 7
        %v7448 = vsub.s32 %v7445, %v7447
        %v7449 = vrot.slane %v7437, %v7448
        %7450 = vrot.lane.b32.xlu0 %v7449, 32
        %v7451 = vpop.permute.xlu0 %7450
        %v7453 = vadd.f32 %v6828, %v7451
        %v7454 = vxor.u32 %v7453, 2147483648
        %v7455 = vmul.f32 %v7454, 1.442695
        %v7456 = vpow.pop %v7455
        %v7457 = vadd.f32 %v7456, 1.0
        %v7458 = vrcp.pop %v7457
        %v7459 = vmul.f32 1.0, %v7458
        %7460 = vmatprep.subr.bf16.mxu0 0
        %7461 = vmatpush1.bf16.msra.mxu0 %v6969
        %7462 = vmatprep.subr.bf16.mxu0 0
        %7463 = vmatpush1.bf16.msra.mxu0 %v6971
        %7464 = vmatprep.subr.bf16.mxu0 0
        %7465 = vmatpush1.bf16.msra.mxu0 0
        %7466 = vmatprep.subr.bf16.mxu0 0
        %7467 = vmatpush1.bf16.msra.mxu0 0
        %7468 = vmatprep.subr.bf16.mxu0 0
        %7469 = vmatpush1.bf16.msra.mxu0 0
        %7470 = vmatprep.subr.bf16.mxu0 0
        %7471 = vmatpush1.bf16.msra.mxu0 0
        %7472 = vmatprep.subr.bf16.mxu0 0
        %7473 = vmatpush1.bf16.msra.mxu0 0
        %7474 = vmatprep.subr.bf16.mxu0 0
        %7475 = vmatpush1.bf16.msra.mxu0 0
        %7476 = vmatprep.subr.bf16.mxu0 0
        %7477 = vmatpush1.bf16.msra.mxu0 0
        %7478 = vmatprep.subr.bf16.mxu0 0
        %7479 = vmatpush1.bf16.msra.mxu0 0
        %7480 = vmatprep.subr.bf16.mxu0 0
        %7481 = vmatpush1.bf16.msra.mxu0 0
        %7482 = vmatprep.subr.bf16.mxu0 0
        %7483 = vmatpush1.bf16.msra.mxu0 0
        %7484 = vmatprep.subr.bf16.mxu0 0
        %7485 = vmatpush1.bf16.msra.mxu0 0
        %7486 = vmatprep.subr.bf16.mxu0 0
        %7487 = vmatpush1.bf16.msra.mxu0 0
        %7488 = vmatprep.subr.bf16.mxu0 0
        %7489 = vmatpush1.bf16.msra.mxu0 0
        %7490 = vmatprep.subr.bf16.mxu0 0
        %7491 = vmatpush1.bf16.msra.mxu0 0
        %7492 = vmatprep.mubr.bf16.mxu0 0
        %7493 = vmatmul.mubr.bf16.gmra.mrb[0].mxu0 %v7353
        %v7494 = vpop.f32.mrb[0].mxu0
        %v7495 = vadd.f32 0.0, %v7494
        %v7496 = vpop.f32.mrb[0].mxu0
        %v7497 = vpop.f32.mrb[0].mxu0
        %v7498 = vpop.f32.mrb[0].mxu0
        %7499 = vdwg.mxu0
        %v7502 = vunpack.c.l.s4 1983009808
        %v7503 = vunpack.c.0.s8 %v7502
        %v7504 = vlaneseq
        %v7505 = vshrl.u32 %v7504, 7
        %v7506 = vsub.s32 %v7503, %v7505
        %v7507 = vrot.slane %v7495, %v7506
        %7508 = vrot.lane.b32.xlu0 %v7507, 64
        %v7509 = vpop.permute.xlu0 %7508
        %v7511 = vadd.f32 %v6828, %v7509
        %v7512 = vtanh.pop %v7511
        %7513 = vmatprep.subr.bf16.mxu0 0
        %7514 = vmatpush1.bf16.msra.mxu0 %v7028
        %7515 = vmatprep.subr.bf16.mxu0 0
        %7516 = vmatpush1.bf16.msra.mxu0 %v7030
        %7517 = vmatprep.subr.bf16.mxu0 0
        %7518 = vmatpush1.bf16.msra.mxu0 0
        %7519 = vmatprep.subr.bf16.mxu0 0
        %7520 = vmatpush1.bf16.msra.mxu0 0
        %7521 = vmatprep.subr.bf16.mxu0 0
        %7522 = vmatpush1.bf16.msra.mxu0 0
        %7523 = vmatprep.subr.bf16.mxu0 0
        %7524 = vmatpush1.bf16.msra.mxu0 0
        %7525 = vmatprep.subr.bf16.mxu0 0
        %7526 = vmatpush1.bf16.msra.mxu0 0
        %7527 = vmatprep.subr.bf16.mxu0 0
        %7528 = vmatpush1.bf16.msra.mxu0 0
        %7529 = vmatprep.subr.bf16.mxu0 0
        %7530 = vmatpush1.bf16.msra.mxu0 0
        %7531 = vmatprep.subr.bf16.mxu0 0
        %7532 = vmatpush1.bf16.msra.mxu0 0
        %7533 = vmatprep.subr.bf16.mxu0 0
        %7534 = vmatpush1.bf16.msra.mxu0 0
        %7535 = vmatprep.subr.bf16.mxu0 0
        %7536 = vmatpush1.bf16.msra.mxu0 0
        %7537 = vmatprep.subr.bf16.mxu0 0
        %7538 = vmatpush1.bf16.msra.mxu0 0
        %7539 = vmatprep.subr.bf16.mxu0 0
        %7540 = vmatpush1.bf16.msra.mxu0 0
        %7541 = vmatprep.subr.bf16.mxu0 0
        %7542 = vmatpush1.bf16.msra.mxu0 0
        %7543 = vmatprep.subr.bf16.mxu0 0
        %7544 = vmatpush1.bf16.msra.mxu0 0
        %7545 = vmatprep.mubr.bf16.mxu0 0
        %7546 = vmatmul.mubr.bf16.gmra.mrb[0].mxu0 %v7353
        %v7547 = vpop.f32.mrb[0].mxu0
        %v7548 = vadd.f32 0.0, %v7547
        %v7549 = vpop.f32.mrb[0].mxu0
        %v7550 = vpop.f32.mrb[0].mxu0
        %v7551 = vpop.f32.mrb[0].mxu0
        %7552 = vdwg.mxu0
        %v7555 = vunpack.c.l.s4 1983009808
        %v7556 = vunpack.c.0.s8 %v7555
        %v7557 = vlaneseq
        %v7558 = vshrl.u32 %v7557, 7
        %v7559 = vsub.s32 %v7556, %v7558
        %v7560 = vrot.slane %v7548, %v7559
        %7561 = vrot.lane.b32.xlu0 %v7560, 96
        %v7562 = vpop.permute.xlu0 %7561
        %v7564 = vadd.f32 %v6828, %v7562
        %v7565 = vxor.u32 %v7564, 2147483648
        %v7566 = vmul.f32 %v7565, 1.442695
        %v7567 = vpow.pop %v7566
        %v7568 = vadd.f32 %v7567, 1.0
        %v7569 = vrcp.pop %v7568
        %v7570 = vmul.f32 1.0, %v7569
        %v7571 = vmul.f32 %v7459, %v7341
        %7573 = vrot.lane.b32.xlu0 %v7512, 64
        %v7574 = vpop.permute.xlu0 %7573
        %v7576 = vmul.f32 %v7401, %v7574
        %7578 = vrot.lane.b32.xlu0 %v7576, 32
        %v7579 = vpop.permute.xlu0 %7578
        %v7581 = vadd.f32 %v7571, %v7579
        %v7582 = vtanh.pop %v7581
        %7584 = vrot.lane.b32.xlu0 %v7582, 64
        %v7585 = vpop.permute.xlu0 %7584
        %v7587 = vmul.f32 %v7570, %v7585
        %v7588 = vpack.c.bf16 %v7587, %v7587
        %7590 = vrot.lane.b32.xlu0 %v7588, 32
        %v7591 = vpop.permute.xlu0 %7590
        %v7593 = vsel %vm1498, %v7591, 0
        %7595 = vmatprep.subr.bf16.mxu0 0
        %7596 = vmatpush1.bf16.msra.mxu0 %v6853
        %7597 = vmatprep.subr.bf16.mxu0 0
        %7598 = vmatpush1.bf16.msra.mxu0 %v6854
        %7599 = vmatprep.subr.bf16.mxu0 0
        %7600 = vmatpush1.bf16.msra.mxu0 0
        %7601 = vmatprep.subr.bf16.mxu0 0
        %7602 = vmatpush1.bf16.msra.mxu0 0
        %7603 = vmatprep.subr.bf16.mxu0 0
        %7604 = vmatpush1.bf16.msra.mxu0 0
        %7605 = vmatprep.subr.bf16.mxu0 0
        %7606 = vmatpush1.bf16.msra.mxu0 0
        %7607 = vmatprep.subr.bf16.mxu0 0
        %7608 = vmatpush1.bf16.msra.mxu0 0
        %7609 = vmatprep.subr.bf16.mxu0 0
        %7610 = vmatpush1.bf16.msra.mxu0 0
        %7611 = vmatprep.subr.bf16.mxu0 0
        %7612 = vmatpush1.bf16.msra.mxu0 0
        %7613 = vmatprep.subr.bf16.mxu0 0
        %7614 = vmatpush1.bf16.msra.mxu0 0
        %7615 = vmatprep.subr.bf16.mxu0 0
        %7616 = vmatpush1.bf16.msra.mxu0 0
        %7617 = vmatprep.subr.bf16.mxu0 0
        %7618 = vmatpush1.bf16.msra.mxu0 0
        %7619 = vmatprep.subr.bf16.mxu0 0
        %7620 = vmatpush1.bf16.msra.mxu0 0
        %7621 = vmatprep.subr.bf16.mxu0 0
        %7622 = vmatpush1.bf16.msra.mxu0 0
        %7623 = vmatprep.subr.bf16.mxu0 0
        %7624 = vmatpush1.bf16.msra.mxu0 0
        %7625 = vmatprep.subr.bf16.mxu0 0
        %7626 = vmatpush1.bf16.msra.mxu0 0
        %7627 = vmatprep.mubr.bf16.mxu0 0
        %7628 = vmatmul.mubr.bf16.gmra.mrb[0].mxu0 %v7593
        %v7629 = vpop.f32.mrb[0].mxu0
        %v7630 = vadd.f32 0.0, %v7629
        %v7631 = vpop.f32.mrb[0].mxu0
        %v7632 = vpop.f32.mrb[0].mxu0
        %v7633 = vpop.f32.mrb[0].mxu0
        %7634 = vdwg.mxu0
        %v7635 = vadd.f32 %v6830, %v7630
        %v7636 = vxor.u32 %v7635, 2147483648
        %v7637 = vmul.f32 %v7636, 1.442695
        %v7638 = vpow.pop %v7637
        %v7639 = vadd.f32 %v7638, 1.0
        %v7640 = vrcp.pop %v7639
        %v7641 = vmul.f32 1.0, %v7640
        %7642 = vmatprep.subr.bf16.mxu0 0
        %7643 = vmatpush1.bf16.msra.mxu0 %v6905
        %7644 = vmatprep.subr.bf16.mxu0 0
        %7645 = vmatpush1.bf16.msra.mxu0 %v6907
        %7646 = vmatprep.subr.bf16.mxu0 0
        %7647 = vmatpush1.bf16.msra.mxu0 0
        %7648 = vmatprep.subr.bf16.mxu0 0
        %7649 = vmatpush1.bf16.msra.mxu0 0
        %7650 = vmatprep.subr.bf16.mxu0 0
        %7651 = vmatpush1.bf16.msra.mxu0 0
        %7652 = vmatprep.subr.bf16.mxu0 0
        %7653 = vmatpush1.bf16.msra.mxu0 0
        %7654 = vmatprep.subr.bf16.mxu0 0
        %7655 = vmatpush1.bf16.msra.mxu0 0
        %7656 = vmatprep.subr.bf16.mxu0 0
        %7657 = vmatpush1.bf16.msra.mxu0 0
        %7658 = vmatprep.subr.bf16.mxu0 0
        %7659 = vmatpush1.bf16.msra.mxu0 0
        %7660 = vmatprep.subr.bf16.mxu0 0
        %7661 = vmatpush1.bf16.msra.mxu0 0
        %7662 = vmatprep.subr.bf16.mxu0 0
        %7663 = vmatpush1.bf16.msra.mxu0 0
        %7664 = vmatprep.subr.bf16.mxu0 0
        %7665 = vmatpush1.bf16.msra.mxu0 0
        %7666 = vmatprep.subr.bf16.mxu0 0
        %7667 = vmatpush1.bf16.msra.mxu0 0
        %7668 = vmatprep.subr.bf16.mxu0 0
        %7669 = vmatpush1.bf16.msra.mxu0 0
        %7670 = vmatprep.subr.bf16.mxu0 0
        %7671 = vmatpush1.bf16.msra.mxu0 0
        %7672 = vmatprep.subr.bf16.mxu0 0
        %7673 = vmatpush1.bf16.msra.mxu0 0
        %7674 = vmatprep.mubr.bf16.mxu0 0
        %7675 = vmatmul.mubr.bf16.gmra.mrb[0].mxu0 %v7593
        %v7676 = vpop.f32.mrb[0].mxu0
        %v7677 = vadd.f32 0.0, %v7676
        %v7678 = vpop.f32.mrb[0].mxu0
        %v7679 = vpop.f32.mrb[0].mxu0
        %v7680 = vpop.f32.mrb[0].mxu0
        %7681 = vdwg.mxu0
        %v7684 = vunpack.c.l.s4 1983009808
        %v7685 = vunpack.c.0.s8 %v7684
        %v7686 = vlaneseq
        %v7687 = vshrl.u32 %v7686, 7
        %v7688 = vsub.s32 %v7685, %v7687
        %v7689 = vrot.slane %v7677, %v7688
        %7690 = vrot.lane.b32.xlu0 %v7689, 32
        %v7691 = vpop.permute.xlu0 %7690
        %v7693 = vadd.f32 %v6830, %v7691
        %v7694 = vxor.u32 %v7693, 2147483648
        %v7695 = vmul.f32 %v7694, 1.442695
        %v7696 = vpow.pop %v7695
        %v7697 = vadd.f32 %v7696, 1.0
        %v7698 = vrcp.pop %v7697
        %v7699 = vmul.f32 1.0, %v7698
        %7700 = vmatprep.subr.bf16.mxu0 0
        %7701 = vmatpush1.bf16.msra.mxu0 %v6969
        %7702 = vmatprep.subr.bf16.mxu0 0
        %7703 = vmatpush1.bf16.msra.mxu0 %v6971
        %7704 = vmatprep.subr.bf16.mxu0 0
        %7705 = vmatpush1.bf16.msra.mxu0 0
        %7706 = vmatprep.subr.bf16.mxu0 0
        %7707 = vmatpush1.bf16.msra.mxu0 0
        %7708 = vmatprep.subr.bf16.mxu0 0
        %7709 = vmatpush1.bf16.msra.mxu0 0
        %7710 = vmatprep.subr.bf16.mxu0 0
        %7711 = vmatpush1.bf16.msra.mxu0 0
        %7712 = vmatprep.subr.bf16.mxu0 0
        %7713 = vmatpush1.bf16.msra.mxu0 0
        %7714 = vmatprep.subr.bf16.mxu0 0
        %7715 = vmatpush1.bf16.msra.mxu0 0
        %7716 = vmatprep.subr.bf16.mxu0 0
        %7717 = vmatpush1.bf16.msra.mxu0 0
        %7718 = vmatprep.subr.bf16.mxu0 0
        %7719 = vmatpush1.bf16.msra.mxu0 0
        %7720 = vmatprep.subr.bf16.mxu0 0
        %7721 = vmatpush1.bf16.msra.mxu0 0
        %7722 = vmatprep.subr.bf16.mxu0 0
        %7723 = vmatpush1.bf16.msra.mxu0 0
        %7724 = vmatprep.subr.bf16.mxu0 0
        %7725 = vmatpush1.bf16.msra.mxu0 0
        %7726 = vmatprep.subr.bf16.mxu0 0
        %7727 = vmatpush1.bf16.msra.mxu0 0
        %7728 = vmatprep.subr.bf16.mxu0 0
        %7729 = vmatpush1.bf16.msra.mxu0 0
        %7730 = vmatprep.subr.bf16.mxu0 0
        %7731 = vmatpush1.bf16.msra.mxu0 0
        %7732 = vmatprep.mubr.bf16.mxu0 0
        %7733 = vmatmul.mubr.bf16.gmra.mrb[0].mxu0 %v7593
        %v7734 = vpop.f32.mrb[0].mxu0
        %v7735 = vadd.f32 0.0, %v7734
        %v7736 = vpop.f32.mrb[0].mxu0
        %v7737 = vpop.f32.mrb[0].mxu0
        %v7738 = vpop.f32.mrb[0].mxu0
        %7739 = vdwg.mxu0
        %v7742 = vunpack.c.l.s4 1983009808
        %v7743 = vunpack.c.0.s8 %v7742
        %v7744 = vlaneseq
        %v7745 = vshrl.u32 %v7744, 7
        %v7746 = vsub.s32 %v7743, %v7745
        %v7747 = vrot.slane %v7735, %v7746
        %7748 = vrot.lane.b32.xlu0 %v7747, 64
        %v7749 = vpop.permute.xlu0 %7748
        %v7751 = vadd.f32 %v6830, %v7749
        %v7752 = vtanh.pop %v7751
        %7753 = vmatprep.subr.bf16.mxu0 0
        %7754 = vmatpush1.bf16.msra.mxu0 %v7028
        %7755 = vmatprep.subr.bf16.mxu0 0
        %7756 = vmatpush1.bf16.msra.mxu0 %v7030
        %7757 = vmatprep.subr.bf16.mxu0 0
        %7758 = vmatpush1.bf16.msra.mxu0 0
        %7759 = vmatprep.subr.bf16.mxu0 0
        %7760 = vmatpush1.bf16.msra.mxu0 0
        %7761 = vmatprep.subr.bf16.mxu0 0
        %7762 = vmatpush1.bf16.msra.mxu0 0
        %7763 = vmatprep.subr.bf16.mxu0 0
        %7764 = vmatpush1.bf16.msra.mxu0 0
        %7765 = vmatprep.subr.bf16.mxu0 0
        %7766 = vmatpush1.bf16.msra.mxu0 0
        %7767 = vmatprep.subr.bf16.mxu0 0
        %7768 = vmatpush1.bf16.msra.mxu0 0
        %7769 = vmatprep.subr.bf16.mxu0 0
        %7770 = vmatpush1.bf16.msra.mxu0 0
        %7771 = vmatprep.subr.bf16.mxu0 0
        %7772 = vmatpush1.bf16.msra.mxu0 0
        %7773 = vmatprep.subr.bf16.mxu0 0
        %7774 = vmatpush1.bf16.msra.mxu0 0
        %7775 = vmatprep.subr.bf16.mxu0 0
        %7776 = vmatpush1.bf16.msra.mxu0 0
        %7777 = vmatprep.subr.bf16.mxu0 0
        %7778 = vmatpush1.bf16.msra.mxu0 0
        %7779 = vmatprep.subr.bf16.mxu0 0
        %7780 = vmatpush1.bf16.msra.mxu0 0
        %7781 = vmatprep.subr.bf16.mxu0 0
        %7782 = vmatpush1.bf16.msra.mxu0 0
        %7783 = vmatprep.subr.bf16.mxu0 0
        %7784 = vmatpush1.bf16.msra.mxu0 0
        %7785 = vmatprep.mubr.bf16.mxu0 0
        %7786 = vmatmul.mubr.bf16.gmra.mrb[0].mxu0 %v7593
        %v7787 = vpop.f32.mrb[0].mxu0
        %v7788 = vadd.f32 0.0, %v7787
        %v7789 = vpop.f32.mrb[0].mxu0
        %v7790 = vpop.f32.mrb[0].mxu0
        %v7791 = vpop.f32.mrb[0].mxu0
        %7792 = vdwg.mxu0
        %v7795 = vunpack.c.l.s4 1983009808
        %v7796 = vunpack.c.0.s8 %v7795
        %v7797 = vlaneseq
        %v7798 = vshrl.u32 %v7797, 7
        %v7799 = vsub.s32 %v7796, %v7798
        %v7800 = vrot.slane %v7788, %v7799
        %7801 = vrot.lane.b32.xlu0 %v7800, 96
        %v7802 = vpop.permute.xlu0 %7801
        %v7804 = vadd.f32 %v6830, %v7802
        %v7805 = vxor.u32 %v7804, 2147483648
        %v7806 = vmul.f32 %v7805, 1.442695
        %v7807 = vpow.pop %v7806
        %v7808 = vadd.f32 %v7807, 1.0
        %v7809 = vrcp.pop %v7808
        %v7810 = vmul.f32 1.0, %v7809
        %v7811 = vmul.f32 %v7699, %v7581
        %7813 = vrot.lane.b32.xlu0 %v7752, 64
        %v7814 = vpop.permute.xlu0 %7813
        %v7816 = vmul.f32 %v7641, %v7814
        %7818 = vrot.lane.b32.xlu0 %v7816, 32
        %v7819 = vpop.permute.xlu0 %7818
        %v7821 = vadd.f32 %v7811, %v7819
        %v7822 = vtanh.pop %v7821
        %7824 = vrot.lane.b32.xlu0 %v7822, 64
        %v7825 = vpop.permute.xlu0 %7824
        %v7827 = vmul.f32 %v7810, %v7825
        %v7828 = vpack.c.bf16 %v7827, %v7827
        %7830 = vrot.lane.b32.xlu0 %v7828, 32
        %v7831 = vpop.permute.xlu0 %7830
        %v7833 = vsel %vm1498, %v7831, 0
        %7835 = vmatprep.subr.bf16.mxu0 0
        %7836 = vmatpush1.bf16.msra.mxu0 %v6853
        %7837 = vmatprep.subr.bf16.mxu0 0
        %7838 = vmatpush1.bf16.msra.mxu0 %v6854
        %7839 = vmatprep.subr.bf16.mxu0 0
        %7840 = vmatpush1.bf16.msra.mxu0 0
        %7841 = vmatprep.subr.bf16.mxu0 0
        %7842 = vmatpush1.bf16.msra.mxu0 0
        %7843 = vmatprep.subr.bf16.mxu0 0
        %7844 = vmatpush1.bf16.msra.mxu0 0
        %7845 = vmatprep.subr.bf16.mxu0 0
        %7846 = vmatpush1.bf16.msra.mxu0 0
        %7847 = vmatprep.subr.bf16.mxu0 0
        %7848 = vmatpush1.bf16.msra.mxu0 0
        %7849 = vmatprep.subr.bf16.mxu0 0
        %7850 = vmatpush1.bf16.msra.mxu0 0
        %7851 = vmatprep.subr.bf16.mxu0 0
        %7852 = vmatpush1.bf16.msra.mxu0 0
        %7853 = vmatprep.subr.bf16.mxu0 0
        %7854 = vmatpush1.bf16.msra.mxu0 0
        %7855 = vmatprep.subr.bf16.mxu0 0
        %7856 = vmatpush1.bf16.msra.mxu0 0
        %7857 = vmatprep.subr.bf16.mxu0 0
        %7858 = vmatpush1.bf16.msra.mxu0 0
        %7859 = vmatprep.subr.bf16.mxu0 0
        %7860 = vmatpush1.bf16.msra.mxu0 0
        %7861 = vmatprep.subr.bf16.mxu0 0
        %7862 = vmatpush1.bf16.msra.mxu0 0
        %7863 = vmatprep.subr.bf16.mxu0 0
        %7864 = vmatpush1.bf16.msra.mxu0 0
        %7865 = vmatprep.subr.bf16.mxu0 0
        %7866 = vmatpush1.bf16.msra.mxu0 0
        %7867 = vmatprep.mubr.bf16.mxu0 0
        %7868 = vmatmul.mubr.bf16.gmra.mrb[0].mxu0 %v7833
        %v7869 = vpop.f32.mrb[0].mxu0
        %v7870 = vadd.f32 0.0, %v7869
        %v7871 = vpop.f32.mrb[0].mxu0
        %v7872 = vpop.f32.mrb[0].mxu0
        %v7873 = vpop.f32.mrb[0].mxu0
        %7874 = vdwg.mxu0
        %v7875 = vadd.f32 %v6837, %v7870
        %v7876 = vxor.u32 %v7875, 2147483648
        %v7877 = vmul.f32 %v7876, 1.442695
        %v7878 = vpow.pop %v7877
        %v7879 = vadd.f32 %v7878, 1.0
        %v7880 = vrcp.pop %v7879
        %v7881 = vmul.f32 1.0, %v7880
        %7882 = vmatprep.subr.bf16.mxu0 0
        %7883 = vmatpush1.bf16.msra.mxu0 %v6905
        %7884 = vmatprep.subr.bf16.mxu0 0
        %7885 = vmatpush1.bf16.msra.mxu0 %v6907
        %7886 = vmatprep.subr.bf16.mxu0 0
        %7887 = vmatpush1.bf16.msra.mxu0 0
        %7888 = vmatprep.subr.bf16.mxu0 0
        %7889 = vmatpush1.bf16.msra.mxu0 0
        %7890 = vmatprep.subr.bf16.mxu0 0
        %7891 = vmatpush1.bf16.msra.mxu0 0
        %7892 = vmatprep.subr.bf16.mxu0 0
        %7893 = vmatpush1.bf16.msra.mxu0 0
        %7894 = vmatprep.subr.bf16.mxu0 0
        %7895 = vmatpush1.bf16.msra.mxu0 0
        %7896 = vmatprep.subr.bf16.mxu0 0
        %7897 = vmatpush1.bf16.msra.mxu0 0
        %7898 = vmatprep.subr.bf16.mxu0 0
        %7899 = vmatpush1.bf16.msra.mxu0 0
        %7900 = vmatprep.subr.bf16.mxu0 0
        %7901 = vmatpush1.bf16.msra.mxu0 0
        %7902 = vmatprep.subr.bf16.mxu0 0
        %7903 = vmatpush1.bf16.msra.mxu0 0
        %7904 = vmatprep.subr.bf16.mxu0 0
        %7905 = vmatpush1.bf16.msra.mxu0 0
        %7906 = vmatprep.subr.bf16.mxu0 0
        %7907 = vmatpush1.bf16.msra.mxu0 0
        %7908 = vmatprep.subr.bf16.mxu0 0
        %7909 = vmatpush1.bf16.msra.mxu0 0
        %7910 = vmatprep.subr.bf16.mxu0 0
        %7911 = vmatpush1.bf16.msra.mxu0 0
        %7912 = vmatprep.subr.bf16.mxu0 0
        %7913 = vmatpush1.bf16.msra.mxu0 0
        %7914 = vmatprep.mubr.bf16.mxu0 0
        %7915 = vmatmul.mubr.bf16.gmra.mrb[0].mxu0 %v7833
        %v7916 = vpop.f32.mrb[0].mxu0
        %v7917 = vadd.f32 0.0, %v7916
        %v7918 = vpop.f32.mrb[0].mxu0
        %v7919 = vpop.f32.mrb[0].mxu0
        %v7920 = vpop.f32.mrb[0].mxu0
        %7921 = vdwg.mxu0
        %v7924 = vunpack.c.l.s4 1983009808
        %v7925 = vunpack.c.0.s8 %v7924
        %v7926 = vlaneseq
        %v7927 = vshrl.u32 %v7926, 7
        %v7928 = vsub.s32 %v7925, %v7927
        %v7929 = vrot.slane %v7917, %v7928
        %7930 = vrot.lane.b32.xlu0 %v7929, 32
        %v7931 = vpop.permute.xlu0 %7930
        %v7933 = vadd.f32 %v6837, %v7931
        %v7934 = vxor.u32 %v7933, 2147483648
        %v7935 = vmul.f32 %v7934, 1.442695
        %v7936 = vpow.pop %v7935
        %v7937 = vadd.f32 %v7936, 1.0
        %v7938 = vrcp.pop %v7937
        %v7939 = vmul.f32 1.0, %v7938
        %7940 = vmatprep.subr.bf16.mxu0 0
        %7941 = vmatpush1.bf16.msra.mxu0 %v6969
        %7942 = vmatprep.subr.bf16.mxu0 0
        %7943 = vmatpush1.bf16.msra.mxu0 %v6971
        %7944 = vmatprep.subr.bf16.mxu0 0
        %7945 = vmatpush1.bf16.msra.mxu0 0
        %7946 = vmatprep.subr.bf16.mxu0 0
        %7947 = vmatpush1.bf16.msra.mxu0 0
        %7948 = vmatprep.subr.bf16.mxu0 0
        %7949 = vmatpush1.bf16.msra.mxu0 0
        %7950 = vmatprep.subr.bf16.mxu0 0
        %7951 = vmatpush1.bf16.msra.mxu0 0
        %7952 = vmatprep.subr.bf16.mxu0 0
        %7953 = vmatpush1.bf16.msra.mxu0 0
        %7954 = vmatprep.subr.bf16.mxu0 0
        %7955 = vmatpush1.bf16.msra.mxu0 0
        %7956 = vmatprep.subr.bf16.mxu0 0
        %7957 = vmatpush1.bf16.msra.mxu0 0
        %7958 = vmatprep.subr.bf16.mxu0 0
        %7959 = vmatpush1.bf16.msra.mxu0 0
        %7960 = vmatprep.subr.bf16.mxu0 0
        %7961 = vmatpush1.bf16.msra.mxu0 0
        %7962 = vmatprep.subr.bf16.mxu0 0
        %7963 = vmatpush1.bf16.msra.mxu0 0
        %7964 = vmatprep.subr.bf16.mxu0 0
        %7965 = vmatpush1.bf16.msra.mxu0 0
        %7966 = vmatprep.subr.bf16.mxu0 0
        %7967 = vmatpush1.bf16.msra.mxu0 0
        %7968 = vmatprep.subr.bf16.mxu0 0
        %7969 = vmatpush1.bf16.msra.mxu0 0
        %7970 = vmatprep.subr.bf16.mxu0 0
        %7971 = vmatpush1.bf16.msra.mxu0 0
        %7972 = vmatprep.mubr.bf16.mxu0 0
        %7973 = vmatmul.mubr.bf16.gmra.mrb[0].mxu0 %v7833
        %v7974 = vpop.f32.mrb[0].mxu0
        %v7975 = vadd.f32 0.0, %v7974
        %v7976 = vpop.f32.mrb[0].mxu0
        %v7977 = vpop.f32.mrb[0].mxu0
        %v7978 = vpop.f32.mrb[0].mxu0
        %7979 = vdwg.mxu0
        %v7982 = vunpack.c.l.s4 1983009808
        %v7983 = vunpack.c.0.s8 %v7982
        %v7984 = vlaneseq
        %v7985 = vshrl.u32 %v7984, 7
        %v7986 = vsub.s32 %v7983, %v7985
        %v7987 = vrot.slane %v7975, %v7986
        %7988 = vrot.lane.b32.xlu0 %v7987, 64
        %v7989 = vpop.permute.xlu0 %7988
        %v7991 = vadd.f32 %v6837, %v7989
        %v7992 = vtanh.pop %v7991
        %7993 = vmatprep.subr.bf16.mxu0 0
        %7994 = vmatpush1.bf16.msra.mxu0 %v7028
        %7995 = vmatprep.subr.bf16.mxu0 0
        %7996 = vmatpush1.bf16.msra.mxu0 %v7030
        %7997 = vmatprep.subr.bf16.mxu0 0
        %7998 = vmatpush1.bf16.msra.mxu0 0
        %7999 = vmatprep.subr.bf16.mxu0 0
        %8000 = vmatpush1.bf16.msra.mxu0 0
        %8001 = vmatprep.subr.bf16.mxu0 0
        %8002 = vmatpush1.bf16.msra.mxu0 0
        %8003 = vmatprep.subr.bf16.mxu0 0
        %8004 = vmatpush1.bf16.msra.mxu0 0
        %8005 = vmatprep.subr.bf16.mxu0 0
        %8006 = vmatpush1.bf16.msra.mxu0 0
        %8007 = vmatprep.subr.bf16.mxu0 0
        %8008 = vmatpush1.bf16.msra.mxu0 0
        %8009 = vmatprep.subr.bf16.mxu0 0
        %8010 = vmatpush1.bf16.msra.mxu0 0
        %8011 = vmatprep.subr.bf16.mxu0 0
        %8012 = vmatpush1.bf16.msra.mxu0 0
        %8013 = vmatprep.subr.bf16.mxu0 0
        %8014 = vmatpush1.bf16.msra.mxu0 0
        %8015 = vmatprep.subr.bf16.mxu0 0
        %8016 = vmatpush1.bf16.msra.mxu0 0
        %8017 = vmatprep.subr.bf16.mxu0 0
        %8018 = vmatpush1.bf16.msra.mxu0 0
        %8019 = vmatprep.subr.bf16.mxu0 0
        %8020 = vmatpush1.bf16.msra.mxu0 0
        %8021 = vmatprep.subr.bf16.mxu0 0
        %8022 = vmatpush1.bf16.msra.mxu0 0
        %8023 = vmatprep.subr.bf16.mxu0 0
        %8024 = vmatpush1.bf16.msra.mxu0 0
        %8025 = vmatprep.mubr.bf16.mxu0 0
        %8026 = vmatmul.mubr.bf16.gmra.mrb[0].mxu0 %v7833
        %v8027 = vpop.f32.mrb[0].mxu0
        %v8028 = vadd.f32 0.0, %v8027
        %v8029 = vpop.f32.mrb[0].mxu0
        %v8030 = vpop.f32.mrb[0].mxu0
        %v8031 = vpop.f32.mrb[0].mxu0
        %8032 = vdwg.mxu0
        %v8035 = vunpack.c.l.s4 1983009808
        %v8036 = vunpack.c.0.s8 %v8035
        %v8037 = vlaneseq
        %v8038 = vshrl.u32 %v8037, 7
        %v8039 = vsub.s32 %v8036, %v8038
        %v8040 = vrot.slane %v8028, %v8039
        %8041 = vrot.lane.b32.xlu0 %v8040, 96
        %v8042 = vpop.permute.xlu0 %8041
        %v8044 = vadd.f32 %v6837, %v8042
        %v8045 = vxor.u32 %v8044, 2147483648
        %v8046 = vmul.f32 %v8045, 1.442695
        %v8047 = vpow.pop %v8046
        %v8048 = vadd.f32 %v8047, 1.0
        %v8049 = vrcp.pop %v8048
        %v8050 = vmul.f32 1.0, %v8049
        %v8051 = vmul.f32 %v7939, %v7821
        %8053 = vrot.lane.b32.xlu0 %v7992, 64
        %v8054 = vpop.permute.xlu0 %8053
        %v8056 = vmul.f32 %v7881, %v8054
        %8058 = vrot.lane.b32.xlu0 %v8056, 32
        %v8059 = vpop.permute.xlu0 %8058
        %v8061 = vadd.f32 %v8051, %v8059
        %v8062 = vtanh.pop %v8061
        %8064 = vrot.lane.b32.xlu0 %v8062, 64
        %v8065 = vpop.permute.xlu0 %8064
        %v8067 = vmul.f32 %v8050, %v8065
        %v8068 = vpack.c.bf16 %v8067, %v8067
        %8070 = vrot.lane.b32.xlu0 %v8068, 32
        %v8071 = vpop.permute.xlu0 %8070
        %v8073 = vsel %vm1498, %v8071, 0
        %8075 = vmatprep.subr.bf16.mxu0 0
        %8076 = vmatpush1.bf16.msra.mxu0 %v6853
        %8077 = vmatprep.subr.bf16.mxu0 0
        %8078 = vmatpush1.bf16.msra.mxu0 %v6854
        %8079 = vmatprep.subr.bf16.mxu0 0
        %8080 = vmatpush1.bf16.msra.mxu0 0
        %8081 = vmatprep.subr.bf16.mxu0 0
        %8082 = vmatpush1.bf16.msra.mxu0 0
        %8083 = vmatprep.subr.bf16.mxu0 0
        %8084 = vmatpush1.bf16.msra.mxu0 0
        %8085 = vmatprep.subr.bf16.mxu0 0
        %8086 = vmatpush1.bf16.msra.mxu0 0
        %8087 = vmatprep.subr.bf16.mxu0 0
        %8088 = vmatpush1.bf16.msra.mxu0 0
        %8089 = vmatprep.subr.bf16.mxu0 0
        %8090 = vmatpush1.bf16.msra.mxu0 0
        %8091 = vmatprep.subr.bf16.mxu0 0
        %8092 = vmatpush1.bf16.msra.mxu0 0
        %8093 = vmatprep.subr.bf16.mxu0 0
        %8094 = vmatpush1.bf16.msra.mxu0 0
        %8095 = vmatprep.subr.bf16.mxu0 0
        %8096 = vmatpush1.bf16.msra.mxu0 0
        %8097 = vmatprep.subr.bf16.mxu0 0
        %8098 = vmatpush1.bf16.msra.mxu0 0
        %8099 = vmatprep.subr.bf16.mxu0 0
        %8100 = vmatpush1.bf16.msra.mxu0 0
        %8101 = vmatprep.subr.bf16.mxu0 0
        %8102 = vmatpush1.bf16.msra.mxu0 0
        %8103 = vmatprep.subr.bf16.mxu0 0
        %8104 = vmatpush1.bf16.msra.mxu0 0
        %8105 = vmatprep.subr.bf16.mxu0 0
        %8106 = vmatpush1.bf16.msra.mxu0 0
        %8107 = vmatprep.mubr.bf16.mxu0 0
        %8108 = vmatmul.mubr.bf16.gmra.mrb[0].mxu0 %v8073
        %v8109 = vpop.f32.mrb[0].mxu0
        %v8110 = vadd.f32 0.0, %v8109
        %v8111 = vpop.f32.mrb[0].mxu0
        %v8112 = vpop.f32.mrb[0].mxu0
        %v8113 = vpop.f32.mrb[0].mxu0
        %8114 = vdwg.mxu0
        %v8115 = vadd.f32 %v6838, %v8110
        %v8116 = vxor.u32 %v8115, 2147483648
        %v8117 = vmul.f32 %v8116, 1.442695
        %v8118 = vpow.pop %v8117
        %v8119 = vadd.f32 %v8118, 1.0
        %v8120 = vrcp.pop %v8119
        %v8121 = vmul.f32 1.0, %v8120
        %8122 = vmatprep.subr.bf16.mxu0 0
        %8123 = vmatpush1.bf16.msra.mxu0 %v6905
        %8124 = vmatprep.subr.bf16.mxu0 0
        %8125 = vmatpush1.bf16.msra.mxu0 %v6907
        %8126 = vmatprep.subr.bf16.mxu0 0
        %8127 = vmatpush1.bf16.msra.mxu0 0
        %8128 = vmatprep.subr.bf16.mxu0 0
        %8129 = vmatpush1.bf16.msra.mxu0 0
        %8130 = vmatprep.subr.bf16.mxu0 0
        %8131 = vmatpush1.bf16.msra.mxu0 0
        %8132 = vmatprep.subr.bf16.mxu0 0
        %8133 = vmatpush1.bf16.msra.mxu0 0
        %8134 = vmatprep.subr.bf16.mxu0 0
        %8135 = vmatpush1.bf16.msra.mxu0 0
        %8136 = vmatprep.subr.bf16.mxu0 0
        %8137 = vmatpush1.bf16.msra.mxu0 0
        %8138 = vmatprep.subr.bf16.mxu0 0
        %8139 = vmatpush1.bf16.msra.mxu0 0
        %8140 = vmatprep.subr.bf16.mxu0 0
        %8141 = vmatpush1.bf16.msra.mxu0 0
        %8142 = vmatprep.subr.bf16.mxu0 0
        %8143 = vmatpush1.bf16.msra.mxu0 0
        %8144 = vmatprep.subr.bf16.mxu0 0
        %8145 = vmatpush1.bf16.msra.mxu0 0
        %8146 = vmatprep.subr.bf16.mxu0 0
        %8147 = vmatpush1.bf16.msra.mxu0 0
        %8148 = vmatprep.subr.bf16.mxu0 0
        %8149 = vmatpush1.bf16.msra.mxu0 0
        %8150 = vmatprep.subr.bf16.mxu0 0
        %8151 = vmatpush1.bf16.msra.mxu0 0
        %8152 = vmatprep.subr.bf16.mxu0 0
        %8153 = vmatpush1.bf16.msra.mxu0 0
        %8154 = vmatprep.mubr.bf16.mxu0 0
        %8155 = vmatmul.mubr.bf16.gmra.mrb[0].mxu0 %v8073
        %v8156 = vpop.f32.mrb[0].mxu0
        %v8157 = vadd.f32 0.0, %v8156
        %v8158 = vpop.f32.mrb[0].mxu0
        %v8159 = vpop.f32.mrb[0].mxu0
        %v8160 = vpop.f32.mrb[0].mxu0
        %8161 = vdwg.mxu0
        %v8164 = vunpack.c.l.s4 1983009808
        %v8165 = vunpack.c.0.s8 %v8164
        %v8166 = vlaneseq
        %v8167 = vshrl.u32 %v8166, 7
        %v8168 = vsub.s32 %v8165, %v8167
        %v8169 = vrot.slane %v8157, %v8168
        %8170 = vrot.lane.b32.xlu0 %v8169, 32
        %v8171 = vpop.permute.xlu0 %8170
        %v8173 = vadd.f32 %v6838, %v8171
        %v8174 = vxor.u32 %v8173, 2147483648
        %v8175 = vmul.f32 %v8174, 1.442695
        %v8176 = vpow.pop %v8175
        %v8177 = vadd.f32 %v8176, 1.0
        %v8178 = vrcp.pop %v8177
        %v8179 = vmul.f32 1.0, %v8178
        %8180 = vmatprep.subr.bf16.mxu0 0
        %8181 = vmatpush1.bf16.msra.mxu0 %v6969
        %8182 = vmatprep.subr.bf16.mxu0 0
        %8183 = vmatpush1.bf16.msra.mxu0 %v6971
        %8184 = vmatprep.subr.bf16.mxu0 0
        %8185 = vmatpush1.bf16.msra.mxu0 0
        %8186 = vmatprep.subr.bf16.mxu0 0
        %8187 = vmatpush1.bf16.msra.mxu0 0
        %8188 = vmatprep.subr.bf16.mxu0 0
        %8189 = vmatpush1.bf16.msra.mxu0 0
        %8190 = vmatprep.subr.bf16.mxu0 0
        %8191 = vmatpush1.bf16.msra.mxu0 0
        %8192 = vmatprep.subr.bf16.mxu0 0
        %8193 = vmatpush1.bf16.msra.mxu0 0
        %8194 = vmatprep.subr.bf16.mxu0 0
        %8195 = vmatpush1.bf16.msra.mxu0 0
        %8196 = vmatprep.subr.bf16.mxu0 0
        %8197 = vmatpush1.bf16.msra.mxu0 0
        %8198 = vmatprep.subr.bf16.mxu0 0
        %8199 = vmatpush1.bf16.msra.mxu0 0
        %8200 = vmatprep.subr.bf16.mxu0 0
        %8201 = vmatpush1.bf16.msra.mxu0 0
        %8202 = vmatprep.subr.bf16.mxu0 0
        %8203 = vmatpush1.bf16.msra.mxu0 0
        %8204 = vmatprep.subr.bf16.mxu0 0
        %8205 = vmatpush1.bf16.msra.mxu0 0
        %8206 = vmatprep.subr.bf16.mxu0 0
        %8207 = vmatpush1.bf16.msra.mxu0 0
        %8208 = vmatprep.subr.bf16.mxu0 0
        %8209 = vmatpush1.bf16.msra.mxu0 0
        %8210 = vmatprep.subr.bf16.mxu0 0
        %8211 = vmatpush1.bf16.msra.mxu0 0
        %8212 = vmatprep.mubr.bf16.mxu0 0
        %8213 = vmatmul.mubr.bf16.gmra.mrb[0].mxu0 %v8073
        %v8214 = vpop.f32.mrb[0].mxu0
        %v8215 = vadd.f32 0.0, %v8214
        %v8216 = vpop.f32.mrb[0].mxu0
        %v8217 = vpop.f32.mrb[0].mxu0
        %v8218 = vpop.f32.mrb[0].mxu0
        %8219 = vdwg.mxu0
        %v8222 = vunpack.c.l.s4 1983009808
        %v8223 = vunpack.c.0.s8 %v8222
        %v8224 = vlaneseq
        %v8225 = vshrl.u32 %v8224, 7
        %v8226 = vsub.s32 %v8223, %v8225
        %v8227 = vrot.slane %v8215, %v8226
        %8228 = vrot.lane.b32.xlu0 %v8227, 64
        %v8229 = vpop.permute.xlu0 %8228
        %v8231 = vadd.f32 %v6838, %v8229
        %v8232 = vtanh.pop %v8231
        %8233 = vmatprep.subr.bf16.mxu0 0
        %8234 = vmatpush1.bf16.msra.mxu0 %v7028
        %8235 = vmatprep.subr.bf16.mxu0 0
        %8236 = vmatpush1.bf16.msra.mxu0 %v7030
        %8237 = vmatprep.subr.bf16.mxu0 0
        %8238 = vmatpush1.bf16.msra.mxu0 0
        %8239 = vmatprep.subr.bf16.mxu0 0
        %8240 = vmatpush1.bf16.msra.mxu0 0
        %8241 = vmatprep.subr.bf16.mxu0 0
        %8242 = vmatpush1.bf16.msra.mxu0 0
        %8243 = vmatprep.subr.bf16.mxu0 0
        %8244 = vmatpush1.bf16.msra.mxu0 0
        %8245 = vmatprep.subr.bf16.mxu0 0
        %8246 = vmatpush1.bf16.msra.mxu0 0
        %8247 = vmatprep.subr.bf16.mxu0 0
        %8248 = vmatpush1.bf16.msra.mxu0 0
        %8249 = vmatprep.subr.bf16.mxu0 0
        %8250 = vmatpush1.bf16.msra.mxu0 0
        %8251 = vmatprep.subr.bf16.mxu0 0
        %8252 = vmatpush1.bf16.msra.mxu0 0
        %8253 = vmatprep.subr.bf16.mxu0 0
        %8254 = vmatpush1.bf16.msra.mxu0 0
        %8255 = vmatprep.subr.bf16.mxu0 0
        %8256 = vmatpush1.bf16.msra.mxu0 0
        %8257 = vmatprep.subr.bf16.mxu0 0
        %8258 = vmatpush1.bf16.msra.mxu0 0
        %8259 = vmatprep.subr.bf16.mxu0 0
        %8260 = vmatpush1.bf16.msra.mxu0 0
        %8261 = vmatprep.subr.bf16.mxu0 0
        %8262 = vmatpush1.bf16.msra.mxu0 0
        %8263 = vmatprep.subr.bf16.mxu0 0
        %8264 = vmatpush1.bf16.msra.mxu0 0
        %8265 = vmatprep.mubr.bf16.mxu0 0
        %8266 = vmatmul.mubr.bf16.gmra.mrb[0].mxu0 %v8073
        %v8267 = vpop.f32.mrb[0].mxu0
        %v8268 = vadd.f32 0.0, %v8267
        %v8269 = vpop.f32.mrb[0].mxu0
        %v8270 = vpop.f32.mrb[0].mxu0
        %v8271 = vpop.f32.mrb[0].mxu0
        %8272 = vdwg.mxu0
        %v8275 = vunpack.c.l.s4 1983009808
        %v8276 = vunpack.c.0.s8 %v8275
        %v8277 = vlaneseq
        %v8278 = vshrl.u32 %v8277, 7
        %v8279 = vsub.s32 %v8276, %v8278
        %v8280 = vrot.slane %v8268, %v8279
        %8281 = vrot.lane.b32.xlu0 %v8280, 96
        %v8282 = vpop.permute.xlu0 %8281
        %v8284 = vadd.f32 %v6838, %v8282
        %v8285 = vxor.u32 %v8284, 2147483648
        %v8286 = vmul.f32 %v8285, 1.442695
        %v8287 = vpow.pop %v8286
        %v8288 = vadd.f32 %v8287, 1.0
        %v8289 = vrcp.pop %v8288
        %v8290 = vmul.f32 1.0, %v8289
        %v8291 = vmul.f32 %v8179, %v8061
        %8293 = vrot.lane.b32.xlu0 %v8232, 64
        %v8294 = vpop.permute.xlu0 %8293
        %v8296 = vmul.f32 %v8121, %v8294
        %8298 = vrot.lane.b32.xlu0 %v8296, 32
        %v8299 = vpop.permute.xlu0 %8298
        %v8301 = vadd.f32 %v8291, %v8299
        %v8302 = vtanh.pop %v8301
        %8304 = vrot.lane.b32.xlu0 %v8302, 64
        %v8305 = vpop.permute.xlu0 %8304
        %v8307 = vmul.f32 %v8290, %v8305
        %v8310 = vunpack.c.l.s4 1983009808
        %v8311 = vunpack.c.0.s8 %v8310
        %v8312 = vlaneseq
        %v8313 = vshrl.u32 %v8312, 7
        %v8314 = vsub.s32 %v8311, %v8313
        %v8315 = vrot.slane %v8307, %v8314
        %8316 = vrot.lane.b32.xlu0 %v8315, 32
        %v8317 = vpop.permute.xlu0 %8316
        %vm8319 = vcmask 254976
        %8320 = vst.msk [vmem:[%s870] sm:$0x3] %vm8319, %v8317
        %p8321 = scmp.lt.s32.totalorder %s40, 1
        %s8322 = scalar_select %p8321, %s40, 1
        %s8323 = smul.addr %s8322, 2
        %s8324 = scalar_lea.vmem %s17, %s8323
        // Predicated region
        $region117: #{cnn1d_lstm_forward.2} parent=87 // pred_check
          %p8325 = pneg %p475
        $region118: #{cnn1d_lstm_forward.2} parent=87 // pred_check_branch
          %8327 = sbr.rel (%p8325) target = $region120
        $region119: #{cnn1d_lstm_forward.2} parent=87 // pred_region
          _
        $region120: #{cnn1d_lstm_forward.2} parent=87 // pred_fallthru
          _
      $region88: #{cnn1d_lstm_forward.2} parent=5 // pred_fallthru
        _
      %p8328 = scmp.le.s32.totalorder 2, %s35
      // Predicated region
      $region121: #{cnn1d_lstm_forward.2} parent=5 // pred_check
        %p8329 = pneg %p8328
      $region122: #{cnn1d_lstm_forward.2} parent=5 // pred_check_branch
        %8331 = sbr.rel (%p8329) target = $region124
      $region123: #{cnn1d_lstm_forward.2} parent=5 // pred_region
        %s8332 = ssub.s32 %s35, 2
        // Predicated region
        $region125: #{cnn1d_lstm_forward.2} parent=123 // pred_check
          %p8333 = pneg %p481
        $region126: #{cnn1d_lstm_forward.2} parent=123 // pred_check_branch
          %8335 = sbr.rel (%p8333) target = $region128
        $region127: #{cnn1d_lstm_forward.2} parent=123 // pred_region
          %p8336 = scmp.lt.s32.totalorder %s41, 1
          %s8337 = scalar_select %p8336, %s41, 1
          %s8338 = smul.addr %s8337, 2
          %s8339 = scalar_lea.vmem %s17, %s8338
        $region128: #{cnn1d_lstm_forward.2} parent=123 // pred_fallthru
          _
      $region124: #{cnn1d_lstm_forward.2} parent=5 // pred_fallthru
        _
    $region6: #{cnn1d_lstm_forward.2} parent=1 // loop_footer
      %s39 = sadd.s32 1, %s35
    $region7: #{cnn1d_lstm_forward.2} parent=1 // loop_footer_branch
      %34 = sbr.rel target = $region3
    $region8: #{cnn1d_lstm_forward.2} parent=1 // loop_exit
      _
    %8340 = vsyncpa [#allocation3], 1
    %s8341 = scalar_lea.sflag [#allocation3], 1
    %8342 = vsyncpa %s8341, 1
    %8343 = vsyncpa [#allocation5], 1
    %s8344 = scalar_lea.sflag [#allocation5], 1
    %8345 = vsyncpa %s8344, 1
    %8346 = vsyncpa [#allocation8], 1
    %s8347 = scalar_lea.sflag [#allocation8], 1
    %8348 = vsyncpa %s8347, 1
    %8349 = vsyncpa [#allocation11], 1
    %s8350 = scalar_lea.sflag [#allocation11], 1
    %8351 = vsyncpa %s8350, 1

</llo_original>
